<compile_context>
chip_gen: v6e
topology: v6e:2x2x1
jax: 0.10.0
libtpu: 0.0.40
codegen_flags: <defaults>
</compile_context>

<pallas_src>
import functools

import jax
import jax.numpy as jnp
from jax.experimental import pallas as pl
from jax.experimental.pallas import tpu as pltpu


# ---------------------------------------------------------------------------
# Single fused Pallas kernel: all LSTM layers (bidirectional) + head MLP.
# Grid = batch chunks (independent -> "parallel").
# ---------------------------------------------------------------------------
def _model_kernel(*refs, num_layers, T, Bc, H):
    n_in = 1 + 3 * num_layers + 4
    x_ref = refs[0]
    layer_refs = [refs[1 + 3 * l: 4 + 3 * l] for l in range(num_layers)]
    w1_ref, b1_ref, w2_ref, b2_ref = refs[n_in - 4:n_in]
    out_ref = refs[n_in]
    xp_ref = refs[n_in + 1]     # (T*Bc, 8H) input-projection slab (reused per layer)
    hid_ref = refs[n_in + 2]    # (T*Bc, 2H) [h_fwd | h_bwd] next-layer-input slab

    H2, H4, H6, H8 = 2 * H, 4 * H, 6 * H, 8 * H

    # Static lane mask selecting the forward-direction half (first H lanes) of
    # each 2H-wide gate block. Hoisted out of every loop (broadcasts aren't CSE'd).
    lane = jax.lax.broadcasted_iota(jnp.int32, (Bc, H8), 1)
    fwd_lanes = (lane % H2) < H

    unroll = True if T <= 32 else 8   # partial unroll if T grows large

    def run_layer(inp, wih_ref, whh_ref, b_ref):
        # Input projection for ALL timesteps and BOTH directions: one MXU matmul.
        xp_ref[...] = (jnp.dot(inp, wih_ref[...],
                               preferred_element_type=jnp.float32)
                       + b_ref[...]).astype(xp_ref.dtype)            # (T*Bc, 8H)

        whh = whh_ref[...]                                            # (2H, 8H) block-diag

        def step(s, carry):
            h, c = carry                     # h: (Bc,2H)=[h_f|h_b] bf16, c: (Bc,2H) f32
            s_rev = T - 1 - s
            row_f = pl.ds(pl.multiple_of(s * Bc, Bc), Bc)
            row_b = pl.ds(pl.multiple_of(s_rev * Bc, Bc), Bc)
            # Fused bidirectional recurrent matmul; LHS is the raw carry.
            hg = jnp.dot(h, whh, preferred_element_type=jnp.float32)  # (Bc, 8H)
            # Forward gate columns use time s, backward columns use time T-1-s.
            xgate = jnp.where(fwd_lanes, xp_ref[row_f, :], xp_ref[row_b, :])
            gates = hg + xgate                                        # f32, [i|f|o|g]x2H
            sg = jax.nn.sigmoid(gates[:, 0:H6])   # single EUP pass over i, f, o
            g = jnp.tanh(gates[:, H6:H8])
            c = sg[:, H2:H4] * c + sg[:, 0:H2] * g                    # f32 cell state
            h = (sg[:, H4:H6] * jnp.tanh(c)).astype(hid_ref.dtype)
            # Write straight into the next-layer-input slab:
            #   fwd half at time s, bwd half at time T-1-s.
            hid_ref[row_f, pl.ds(0, H)] = h[:, 0:H]
            hid_ref[row_b, pl.ds(H, H)] = h[:, H:H2]
            return (h, c)

        carry0 = (jnp.zeros((Bc, H2), hid_ref.dtype),
                  jnp.zeros((Bc, H2), jnp.float32))
        jax.lax.fori_loop(0, T, step, carry0, unroll=unroll)
        return hid_ref[...]                                           # (T*Bc, 2H)

    inp = x_ref[...]
    for layer in range(num_layers):
        inp = run_layer(inp, *layer_refs[layer])

    # Head MLP fused into the epilogue: tanh(x @ W1^T + b1) @ W2^T + b2.
    hid = jnp.tanh(jnp.dot(inp, w1_ref[...],
                           preferred_element_type=jnp.float32) + b1_ref[...])
    out_ref[...] = (jnp.dot(hid.astype(w2_ref.dtype), w2_ref[...],
                            preferred_element_type=jnp.float32)
                    + b2_ref[...]).astype(out_ref.dtype)


# ---------------------------------------------------------------------------
# One-time parameter preparation: transposes, bias folds, direction-interleaved
# gate column layout [i_f|i_b|f_f|f_b|o_f|o_b|g_f|g_b], block-diag W_hh, dtype cast.
# ---------------------------------------------------------------------------
_GATE_ORDER = (0, 1, 3, 2)   # PyTorch gate order [i,f,g,o] -> kernel order [i,f,o,g]


def prepare_params(params, hidden_size, compute_dtype=jnp.bfloat16):
    H = hidden_size

    def pack_ih(wih_f, wih_b):
        wf, wb = wih_f.T, wih_b.T                              # (K, 4H)
        cols = []
        for g in _GATE_ORDER:
            cols += [wf[:, g * H:(g + 1) * H], wb[:, g * H:(g + 1) * H]]
        return jnp.concatenate(cols, axis=1)                   # (K, 8H)

    def pack_hh(whh_f, whh_b):
        wf, wb = whh_f.T, whh_b.T                              # (H, 4H)
        z = jnp.zeros((H, H), jnp.float32)
        cols = []
        for g in _GATE_ORDER:
            cols += [jnp.concatenate([wf[:, g * H:(g + 1) * H], z], axis=0),
                     jnp.concatenate([z, wb[:, g * H:(g + 1) * H]], axis=0)]
        return jnp.concatenate(cols, axis=1)                   # (2H, 8H) block-diag

    def pack_b(bf, bb):
        cols = []
        for g in _GATE_ORDER:
            cols += [bf[g * H:(g + 1) * H], bb[g * H:(g + 1) * H]]
        return jnp.concatenate(cols).reshape(1, 8 * H)

    prepped = {"layers": []}
    for lp in params["lstm"]:
        wih_f, whh_f, bih_f, bhh_f = lp["fwd"]
        wih_b, whh_b, bih_b, bhh_b = lp["bwd"]
        prepped["layers"].append((
            pack_ih(wih_f, wih_b).astype(compute_dtype),
            pack_hh(whh_f, whh_b).astype(compute_dtype),
            pack_b(bih_f + bhh_f, bih_b + bhh_b),              # biases stay f32
        ))
    prepped["w1_t"] = params["h1_w"].T.astype(compute_dtype)   # (2H, H)
    prepped["b1"] = params["h1_b"].reshape(1, -1)              # f32
    prepped["w2_t"] = params["fc_w"].T.astype(compute_dtype)   # (H, O)
    prepped["b2"] = params["fc_b"].reshape(1, -1)              # f32
    return prepped


# ---------------------------------------------------------------------------
# Full model forward (labels=None path): returns (logits, None)
# ---------------------------------------------------------------------------
def lstm_model_forward(x, prepped, hidden_size, num_layers, block_batch=8):
    B, T, I = x.shape
    H = hidden_size
    O = prepped["w2_t"].shape[1]
    cdt = prepped["layers"][0][0].dtype
    Bc = block_batch                      # sublane-aligned batch tile (multiple of 8)
    nb = pl.cdiv(B, Bc)
    Bp = nb * Bc

    # Pad batch to a multiple of Bc; lay each chunk out time-major: rows = (chunk, t, b).
    x_pad = jnp.zeros((Bp, T, I), x.dtype).at[:B].set(x)
    x2d = (x_pad.reshape(nb, Bc, T, I).transpose(0, 2, 1, 3)
           .reshape(nb * T * Bc, I).astype(cdt))

    inputs = [x2d]
    in_specs = [pl.BlockSpec((T * Bc, I), lambda i: (i, 0))]
    for (wih, whh, b) in prepped["layers"]:
        inputs += [wih, whh, b]
        in_specs += [pl.BlockSpec(wih.shape, lambda i: (0, 0)),
                     pl.BlockSpec(whh.shape, lambda i: (0, 0)),
                     pl.BlockSpec(b.shape, lambda i: (0, 0))]
    inputs += [prepped["w1_t"], prepped["b1"], prepped["w2_t"], prepped["b2"]]
    in_specs += [pl.BlockSpec(prepped["w1_t"].shape, lambda i: (0, 0)),
                 pl.BlockSpec(prepped["b1"].shape, lambda i: (0, 0)),
                 pl.BlockSpec(prepped["w2_t"].shape, lambda i: (0, 0)),
                 pl.BlockSpec(prepped["b2"].shape, lambda i: (0, 0))]

    kernel = functools.partial(_model_kernel, num_layers=num_layers,
                               T=T, Bc=Bc, H=H)
    out2d = pl.pallas_call(
        kernel,
        out_shape=jax.ShapeDtypeStruct((nb * T * Bc, O), jnp.float32),
        grid=(nb,),                                       # batch chunks (v7x: 2nd core)
        in_specs=in_specs,
        out_specs=pl.BlockSpec((T * Bc, O), lambda i: (i, 0)),
        scratch_shapes=[
            pltpu.VMEM((T * Bc, 8 * H), cdt),   # x @ W_ih for all t, both directions
            pltpu.VMEM((T * Bc, 2 * H), cdt),   # [h_fwd | h_bwd] next-layer input
        ],
        compiler_params=pltpu.CompilerParams(
            dimension_semantics=("parallel",)),
    )(*inputs)

    logits = (out2d.reshape(nb, T, Bc, O).transpose(0, 2, 1, 3)
              .reshape(Bp, T, O)[:B])                     # (B, T, O)
    return logits, None


# ---------------------------------------------------------------------------
# Pure-JAX reference (lax.scan) for numerical validation
# ---------------------------------------------------------------------------
def _ref_lstm_dir(x_tbi, w_ih, w_hh, b_ih, b_hh, H):
    B = x_tbi.shape[1]

    def step(carry, xt):
        h, c = carry
        gates = xt @ w_ih.T + h @ w_hh.T + b_ih + b_hh
        i, f, g, o = jnp.split(gates, 4, axis=-1)
        i, f, o = jax.nn.sigmoid(i), jax.nn.sigmoid(f), jax.nn.sigmoid(o)
        g = jnp.tanh(g)
        c = f * c + i * g
        h = o * jnp.tanh(c)
        return (h, c), h

    init = (jnp.zeros((B, H), jnp.float32), jnp.zeros((B, H), jnp.float32))
    _, hs = jax.lax.scan(step, init, x_tbi)
    return hs


def ref_forward(x, params, hidden_size, num_layers):
    inp = jnp.transpose(x, (1, 0, 2))
    for layer in range(num_layers):
        pf = params["lstm"][layer]["fwd"]
        pb = params["lstm"][layer]["bwd"]
        h_fwd = _ref_lstm_dir(inp, *pf, hidden_size)
        h_bwd = _ref_lstm_dir(inp[::-1], *pb, hidden_size)[::-1]
        inp = jnp.concatenate([h_fwd, h_bwd], axis=-1)
    out = jnp.transpose(inp, (1, 0, 2))
    h = jnp.tanh(out @ params["h1_w"].T + params["h1_b"])
    return h @ params["fc_w"].T + params["fc_b"]


def _round_weights_bf16(params):
    """Round weight matrices (not biases) through bf16, for bf16-mode validation."""
    def rt(a):
        return a.astype(jnp.bfloat16).astype(jnp.float32)

    q = {"lstm": []}
    for lp in params["lstm"]:
        q["lstm"].append({
            d: (rt(lp[d][0]), rt(lp[d][1]), lp[d][2], lp[d][3])
            for d in ("fwd", "bwd")})
    q["h1_w"] = rt(params["h1_w"]); q["h1_b"] = params["h1_b"]
    q["fc_w"] = rt(params["fc_w"]); q["fc_b"] = params["fc_b"]
    return q


# ---------------------------------------------------------------------------
# Deterministic parameter init (PyTorch-style uniform(-1/sqrt(H), 1/sqrt(H)))
# ---------------------------------------------------------------------------
def init_params(key, input_size, hidden_size, num_layers, output_size):
    H = hidden_size
    k_lstm = 1.0 / jnp.sqrt(H)

    def u(key, shape, k):
        return jax.random.uniform(key, shape, jnp.float32, -k, k)

    params = {"lstm": []}
    for layer in range(num_layers):
        in_sz = input_size if layer == 0 else 2 * H
        layer_p = {}
        for d in ("fwd", "bwd"):
            key, k1, k2, k3, k4 = jax.random.split(key, 5)
            layer_p[d] = (
                u(k1, (4 * H, in_sz), k_lstm),   # w_ih
                u(k2, (4 * H, H), k_lstm),       # w_hh
                u(k3, (4 * H,), k_lstm),         # b_ih
                u(k4, (4 * H,), k_lstm),         # b_hh
            )
        params["lstm"].append(layer_p)

    key, k1, k2, k3, k4 = jax.random.split(key, 5)
    k_h1 = 1.0 / jnp.sqrt(2 * H)
    k_fc = 1.0 / jnp.sqrt(H)
    params["h1_w"] = u(k1, (H, 2 * H), k_h1)
    params["h1_b"] = u(k2, (H,), k_h1)
    params["fc_w"] = u(k3, (output_size, H), k_fc)
    params["fc_b"] = u(k4, (output_size,), k_fc)
    return params


if __name__ == "__main__":
    # Small shapes consistent with the module's forward: x is (B, T, input_size)
    B, T = 2, 8
    input_size = 32
    hidden_size = 32
    num_layers = 4
    output_size = 2

    key = jax.random.PRNGKey(0)
    key, kx, kp = jax.random.split(key, 3)
    x = jax.random.normal(kx, (B, T, input_size), jnp.float32)
    params = init_params(kp, input_size, hidden_size, num_layers, output_size)

    fwd = jax.jit(functools.partial(lstm_model_forward,
                                    hidden_size=hidden_size,
                                    num_layers=num_layers))

    # ---- f32 mode: exact-parity check against the pure-f32 reference ----
    prepped_f32 = prepare_params(params, hidden_size, compute_dtype=jnp.float32)
    logits32, loss = fwd(x, prepped_f32)
    logits32 = jax.block_until_ready(logits32)
    assert logits32.shape == (B, T, output_size)
    assert loss is None

    ref32 = jax.block_until_ready(ref_forward(x, params, hidden_size, num_layers))
    assert jnp.allclose(logits32, ref32, rtol=1e-4, atol=1e-4), (
        float(jnp.max(jnp.abs(logits32 - ref32))))

    # ---- bf16 mode (perf config): compare against the reference evaluated with
    #      bf16-rounded weights/inputs (matmul accumulation + c-state stay f32). ----
    prepped_bf16 = prepare_params(params, hidden_size, compute_dtype=jnp.bfloat16)
    logits16, _ = fwd(x, prepped_bf16)
    logits16 = jax.block_until_ready(logits16)

    params_q = _round_weights_bf16(params)
    x_q = x.astype(jnp.bfloat16).astype(jnp.float32)
    ref16 = jax.block_until_ready(ref_forward(x_q, params_q, hidden_size, num_layers))
    assert jnp.allclose(logits16, ref16, rtol=2e-2, atol=2e-2), (
        float(jnp.max(jnp.abs(logits16 - ref16))))

    print("KERNEL_OK")
</pallas_src>

<mosaic_0001>
module attributes {stable_mosaic.version = 11 : i64} {
  func.func @_model_kernel(%arg0: i32, %arg1: memref<64x32xf32, #tpu.memory_space<vmem>>, %arg2: memref<32x256xf32, #tpu.memory_space<vmem>>, %arg3: memref<64x256xf32, #tpu.memory_space<vmem>>, %arg4: memref<1x256xf32, #tpu.memory_space<vmem>>, %arg5: memref<64x256xf32, #tpu.memory_space<vmem>>, %arg6: memref<64x256xf32, #tpu.memory_space<vmem>>, %arg7: memref<1x256xf32, #tpu.memory_space<vmem>>, %arg8: memref<64x256xf32, #tpu.memory_space<vmem>>, %arg9: memref<64x256xf32, #tpu.memory_space<vmem>>, %arg10: memref<1x256xf32, #tpu.memory_space<vmem>>, %arg11: memref<64x256xf32, #tpu.memory_space<vmem>>, %arg12: memref<64x256xf32, #tpu.memory_space<vmem>>, %arg13: memref<1x256xf32, #tpu.memory_space<vmem>>, %arg14: memref<64x32xf32, #tpu.memory_space<vmem>>, %arg15: memref<1x32xf32, #tpu.memory_space<vmem>>, %arg16: memref<32x2xf32, #tpu.memory_space<vmem>>, %arg17: memref<1x2xf32, #tpu.memory_space<vmem>>, %arg18: memref<64x2xf32, #tpu.memory_space<vmem>>, %arg19: memref<64x256xf32, #tpu.memory_space<vmem>>, %arg20: memref<64x64xf32, #tpu.memory_space<vmem>>) attributes {dimension_semantics = [#tpu.dimension_semantics<parallel>], iteration_bounds = array<i64: 1>, scalar_prefetch = 0 : i64, scratch_operands = 2 : i64, tpu.core_type = #tpu.core_type<tc>, window_params = [{transform_indices = @transform_0, window_bounds = array<i64: 64, 32>}, {pipeline_mode = #tpu.pipeline_mode<synchronous>, transform_indices = @transform_1, window_bounds = array<i64: 32, 256>}, {pipeline_mode = #tpu.pipeline_mode<synchronous>, transform_indices = @transform_2, window_bounds = array<i64: 64, 256>}, {pipeline_mode = #tpu.pipeline_mode<synchronous>, transform_indices = @transform_3, window_bounds = array<i64: 1, 256>}, {pipeline_mode = #tpu.pipeline_mode<synchronous>, transform_indices = @transform_4, window_bounds = array<i64: 64, 256>}, {pipeline_mode = #tpu.pipeline_mode<synchronous>, transform_indices = @transform_5, window_bounds = array<i64: 64, 256>}, {pipeline_mode = #tpu.pipeline_mode<synchronous>, transform_indices = @transform_6, window_bounds = array<i64: 1, 256>}, {pipeline_mode = #tpu.pipeline_mode<synchronous>, transform_indices = @transform_7, window_bounds = array<i64: 64, 256>}, {pipeline_mode = #tpu.pipeline_mode<synchronous>, transform_indices = @transform_8, window_bounds = array<i64: 64, 256>}, {pipeline_mode = #tpu.pipeline_mode<synchronous>, transform_indices = @transform_9, window_bounds = array<i64: 1, 256>}, {pipeline_mode = #tpu.pipeline_mode<synchronous>, transform_indices = @transform_10, window_bounds = array<i64: 64, 256>}, {pipeline_mode = #tpu.pipeline_mode<synchronous>, transform_indices = @transform_11, window_bounds = array<i64: 64, 256>}, {pipeline_mode = #tpu.pipeline_mode<synchronous>, transform_indices = @transform_12, window_bounds = array<i64: 1, 256>}, {pipeline_mode = #tpu.pipeline_mode<synchronous>, transform_indices = @transform_13, window_bounds = array<i64: 64, 32>}, {pipeline_mode = #tpu.pipeline_mode<synchronous>, transform_indices = @transform_14, window_bounds = array<i64: 1, 32>}, {pipeline_mode = #tpu.pipeline_mode<synchronous>, transform_indices = @transform_15, window_bounds = array<i64: 32, 2>}, {pipeline_mode = #tpu.pipeline_mode<synchronous>, transform_indices = @transform_16, window_bounds = array<i64: 1, 2>}, {transform_indices = @transform_17, window_bounds = array<i64: 64, 2>}]} {
    %0 = tpu.iota {dimensions = array<i32: 1>} : vector<8x256xi32>
    %c64_i32 = arith.constant 64 : i32
    %c0_i32 = arith.constant 0 : i32
    %1 = arith.cmpi eq, %c64_i32, %c0_i32 : i32
    %c1_i32 = arith.constant 1 : i32
    %2 = arith.select %1, %c1_i32, %c64_i32 : i32
    %3 = vector.broadcast %2 : i32 to vector<8x256xi32>
    %4 = arith.remsi %0, %3 : vector<8x256xi32>
    %c0_i32_0 = arith.constant 0 : i32
    %5 = vector.broadcast %c0_i32_0 : i32 to vector<8x256xi32>
    %6 = arith.cmpi ne, %4, %5 : vector<8x256xi32>
    %c0_i32_1 = arith.constant 0 : i32
    %7 = vector.broadcast %c0_i32_1 : i32 to vector<8x256xi32>
    %8 = arith.cmpi slt, %4, %7 : vector<8x256xi32>
    %c0_i32_2 = arith.constant 0 : i32
    %9 = arith.cmpi slt, %2, %c0_i32_2 : i32
    %10 = vector.broadcast %9 : i1 to vector<8x256xi1>
    %11 = vector.broadcast %10 : vector<8x256xi1> to vector<8x256xi1>
    %12 = arith.xori %8, %11 : vector<8x256xi1>
    %13 = arith.andi %12, %6 : vector<8x256xi1>
    %14 = vector.broadcast %2 : i32 to vector<8x256xi32>
    %15 = arith.addi %4, %14 : vector<8x256xi32>
    %16 = arith.select %13, %15, %4 : vector<8x256xi1>, vector<8x256xi32>
    %c32_i32 = arith.constant 32 : i32
    %17 = vector.broadcast %c32_i32 : i32 to vector<8x256xi32>
    %18 = arith.cmpi slt, %16, %17 : vector<8x256xi32>
    %c0 = arith.constant 0 : index
    %c0_3 = arith.constant 0 : index
    %19 = vector.load %arg1[%c0, %c0_3] : memref<64x32xf32, #tpu.memory_space<vmem>>, vector<64x32xf32>
    %c0_4 = arith.constant 0 : index
    %c0_5 = arith.constant 0 : index
    %20 = vector.load %arg2[%c0_4, %c0_5] : memref<32x256xf32, #tpu.memory_space<vmem>>, vector<32x256xf32>
    %cst = arith.constant dense<0.000000e+00> : vector<64x256xf32>
    %21 = tpu.matmul %19, %20, %cst {dimension_numbers = #tpu.dot_dimension_numbers<[1], [0], [0], [1], [0, 0, 1, 1], [], []>} : vector<64x32xf32>, vector<32x256xf32>, vector<64x256xf32> -> vector<64x256xf32>
    %c0_6 = arith.constant 0 : index
    %c0_7 = arith.constant 0 : index
    %22 = vector.load %arg4[%c0_6, %c0_7] : memref<1x256xf32, #tpu.memory_space<vmem>>, vector<1x256xf32>
    %23 = vector.broadcast %22 : vector<1x256xf32> to vector<64x256xf32>
    %24 = arith.addf %21, %23 : vector<64x256xf32>
    %c0_8 = arith.constant 0 : index
    %c0_9 = arith.constant 0 : index
    %25 = vector.load %arg19[%c0_8, %c0_9] : memref<64x256xf32, #tpu.memory_space<vmem>>, vector<64x256xf32>
    tpu.vector_store %arg19[%c0_8, %c0_9], %24 {strides = array<i32>} : memref<64x256xf32, #tpu.memory_space<vmem>>, vector<64x256xf32>,
    %c0_10 = arith.constant 0 : index
    %c0_11 = arith.constant 0 : index
    %26 = vector.load %arg3[%c0_10, %c0_11] : memref<64x256xf32, #tpu.memory_space<vmem>>, vector<64x256xf32>
    %cst_12 = arith.constant 0.000000e+00 : f32
    %27 = vector.broadcast %cst_12 : f32 to vector<8x64xf32>
    %cst_13 = arith.constant 0.000000e+00 : f32
    %28 = vector.broadcast %cst_13 : f32 to vector<8x64xf32>
    %c0_i32_14 = arith.constant 0 : i32
    %c7_i32 = arith.constant 7 : i32
    %29 = arith.subi %c7_i32, %c0_i32_14 : i32
    %c8_i32 = arith.constant 8 : i32
    %30 = arith.muli %c0_i32_14, %c8_i32 : i32
    %31 = tpu.assume_multiple %30, 8 : i32
    %c8_i32_15 = arith.constant 8 : i32
    %32 = arith.muli %29, %c8_i32_15 : i32
    %33 = tpu.assume_multiple %32, 8 : i32
    %cst_16 = arith.constant dense<0.000000e+00> : vector<8x256xf32>
    %34 = tpu.matmul %27, %26, %cst_16 {dimension_numbers = #tpu.dot_dimension_numbers<[1], [0], [0], [1], [0, 0, 1, 1], [], []>} : vector<8x64xf32>, vector<64x256xf32>, vector<8x256xf32> -> vector<8x256xf32>
    %35 = arith.index_cast %31 : i32 to index
    %c0_17 = arith.constant 0 : index
    %36 = vector.load %arg19[%35, %c0_17] : memref<64x256xf32, #tpu.memory_space<vmem>>, vector<8x256xf32>
    %37 = arith.index_cast %33 : i32 to index
    %c0_18 = arith.constant 0 : index
    %38 = vector.load %arg19[%37, %c0_18] : memref<64x256xf32, #tpu.memory_space<vmem>>, vector<8x256xf32>
    %39 = arith.select %18, %36, %38 : vector<8x256xi1>, vector<8x256xf32>
    %40 = arith.addf %34, %39 : vector<8x256xf32>
    %41 = vector.extract_strided_slice %40 {offsets = [0, 0], sizes = [8, 192], strides = [1, 1]} : vector<8x256xf32> to vector<8x192xf32>
    %42 = arith.negf %41 : vector<8x192xf32>
    %43 = math.exp %42 : vector<8x192xf32>
    %cst_19 = arith.constant 1.000000e+00 : f32
    %44 = vector.broadcast %cst_19 : f32 to vector<8x192xf32>
    %45 = arith.addf %44, %43 : vector<8x192xf32>
    %46 = arith.divf %44, %45 : vector<8x192xf32>
    %47 = vector.extract_strided_slice %40 {offsets = [0, 192], sizes = [8, 64], strides = [1, 1]} : vector<8x256xf32> to vector<8x64xf32>
    %48 = math.tanh %47 : vector<8x64xf32>
    %49 = vector.extract_strided_slice %46 {offsets = [0, 64], sizes = [8, 64], strides = [1, 1]} : vector<8x192xf32> to vector<8x64xf32>
    %50 = arith.mulf %49, %28 : vector<8x64xf32>
    %51 = vector.extract_strided_slice %46 {offsets = [0, 0], sizes = [8, 64], strides = [1, 1]} : vector<8x192xf32> to vector<8x64xf32>
    %52 = arith.mulf %51, %48 : vector<8x64xf32>
    %53 = arith.addf %50, %52 : vector<8x64xf32>
    %54 = vector.extract_strided_slice %46 {offsets = [0, 128], sizes = [8, 64], strides = [1, 1]} : vector<8x192xf32> to vector<8x64xf32>
    %55 = math.tanh %53 : vector<8x64xf32>
    %56 = arith.mulf %54, %55 : vector<8x64xf32>
    %57 = vector.extract_strided_slice %56 {offsets = [0, 0], sizes = [8, 32], strides = [1, 1]} : vector<8x64xf32> to vector<8x32xf32>
    %58 = arith.index_cast %31 : i32 to index
    %c0_20 = arith.constant 0 : index
    %59 = vector.load %arg20[%58, %c0_20] : memref<64x64xf32, #tpu.memory_space<vmem>>, vector<8x32xf32>
    tpu.vector_store %arg20[%58, %c0_20], %57 {strides = array<i32>} : memref<64x64xf32, #tpu.memory_space<vmem>>, vector<8x32xf32>,
    %60 = vector.extract_strided_slice %56 {offsets = [0, 32], sizes = [8, 32], strides = [1, 1]} : vector<8x64xf32> to vector<8x32xf32>
    %61 = arith.index_cast %33 : i32 to index
    %c32 = arith.constant 32 : index
    %62 = vector.load %arg20[%61, %c32] : memref<64x64xf32, #tpu.memory_space<vmem>>, vector<8x32xf32>
    tpu.vector_store %arg20[%61, %c32], %60 {strides = array<i32>} : memref<64x64xf32, #tpu.memory_space<vmem>>, vector<8x32xf32>,
    %c1_i32_21 = arith.constant 1 : i32
    %c7_i32_22 = arith.constant 7 : i32
    %63 = arith.subi %c7_i32_22, %c1_i32_21 : i32
    %c8_i32_23 = arith.constant 8 : i32
    %64 = arith.muli %c1_i32_21, %c8_i32_23 : i32
    %65 = tpu.assume_multiple %64, 8 : i32
    %c8_i32_24 = arith.constant 8 : i32
    %66 = arith.muli %63, %c8_i32_24 : i32
    %67 = tpu.assume_multiple %66, 8 : i32
    %cst_25 = arith.constant dense<0.000000e+00> : vector<8x256xf32>
    %68 = tpu.matmul %56, %26, %cst_25 {dimension_numbers = #tpu.dot_dimension_numbers<[1], [0], [0], [1], [0, 0, 1, 1], [], []>} : vector<8x64xf32>, vector<64x256xf32>, vector<8x256xf32> -> vector<8x256xf32>
    %69 = arith.index_cast %65 : i32 to index
    %c0_26 = arith.constant 0 : index
    %70 = vector.load %arg19[%69, %c0_26] : memref<64x256xf32, #tpu.memory_space<vmem>>, vector<8x256xf32>
    %71 = arith.index_cast %67 : i32 to index
    %c0_27 = arith.constant 0 : index
    %72 = vector.load %arg19[%71, %c0_27] : memref<64x256xf32, #tpu.memory_space<vmem>>, vector<8x256xf32>
    %73 = arith.select %18, %70, %72 : vector<8x256xi1>, vector<8x256xf32>
    %74 = arith.addf %68, %73 : vector<8x256xf32>
    %75 = vector.extract_strided_slice %74 {offsets = [0, 0], sizes = [8, 192], strides = [1, 1]} : vector<8x256xf32> to vector<8x192xf32>
    %76 = arith.negf %75 : vector<8x192xf32>
    %77 = math.exp %76 : vector<8x192xf32>
    %cst_28 = arith.constant 1.000000e+00 : f32
    %78 = vector.broadcast %cst_28 : f32 to vector<8x192xf32>
    %79 = arith.addf %78, %77 : vector<8x192xf32>
    %80 = arith.divf %78, %79 : vector<8x192xf32>
    %81 = vector.extract_strided_slice %74 {offsets = [0, 192], sizes = [8, 64], strides = [1, 1]} : vector<8x256xf32> to vector<8x64xf32>
    %82 = math.tanh %81 : vector<8x64xf32>
    %83 = vector.extract_strided_slice %80 {offsets = [0, 64], sizes = [8, 64], strides = [1, 1]} : vector<8x192xf32> to vector<8x64xf32>
    %84 = arith.mulf %83, %53 : vector<8x64xf32>
    %85 = vector.extract_strided_slice %80 {offsets = [0, 0], sizes = [8, 64], strides = [1, 1]} : vector<8x192xf32> to vector<8x64xf32>
    %86 = arith.mulf %85, %82 : vector<8x64xf32>
    %87 = arith.addf %84, %86 : vector<8x64xf32>
    %88 = vector.extract_strided_slice %80 {offsets = [0, 128], sizes = [8, 64], strides = [1, 1]} : vector<8x192xf32> to vector<8x64xf32>
    %89 = math.tanh %87 : vector<8x64xf32>
    %90 = arith.mulf %88, %89 : vector<8x64xf32>
    %91 = vector.extract_strided_slice %90 {offsets = [0, 0], sizes = [8, 32], strides = [1, 1]} : vector<8x64xf32> to vector<8x32xf32>
    %92 = arith.index_cast %65 : i32 to index
    %c0_29 = arith.constant 0 : index
    %93 = vector.load %arg20[%92, %c0_29] : memref<64x64xf32, #tpu.memory_space<vmem>>, vector<8x32xf32>
    tpu.vector_store %arg20[%92, %c0_29], %91 {strides = array<i32>} : memref<64x64xf32, #tpu.memory_space<vmem>>, vector<8x32xf32>,
    %94 = vector.extract_strided_slice %90 {offsets = [0, 32], sizes = [8, 32], strides = [1, 1]} : vector<8x64xf32> to vector<8x32xf32>
    %95 = arith.index_cast %67 : i32 to index
    %c32_30 = arith.constant 32 : index
    %96 = vector.load %arg20[%95, %c32_30] : memref<64x64xf32, #tpu.memory_space<vmem>>, vector<8x32xf32>
    tpu.vector_store %arg20[%95, %c32_30], %94 {strides = array<i32>} : memref<64x64xf32, #tpu.memory_space<vmem>>, vector<8x32xf32>,
    %c2_i32 = arith.constant 2 : i32
    %c7_i32_31 = arith.constant 7 : i32
    %97 = arith.subi %c7_i32_31, %c2_i32 : i32
    %c8_i32_32 = arith.constant 8 : i32
    %98 = arith.muli %c2_i32, %c8_i32_32 : i32
    %99 = tpu.assume_multiple %98, 8 : i32
    %c8_i32_33 = arith.constant 8 : i32
    %100 = arith.muli %97, %c8_i32_33 : i32
    %101 = tpu.assume_multiple %100, 8 : i32
    %cst_34 = arith.constant dense<0.000000e+00> : vector<8x256xf32>
    %102 = tpu.matmul %90, %26, %cst_34 {dimension_numbers = #tpu.dot_dimension_numbers<[1], [0], [0], [1], [0, 0, 1, 1], [], []>} : vector<8x64xf32>, vector<64x256xf32>, vector<8x256xf32> -> vector<8x256xf32>
    %103 = arith.index_cast %99 : i32 to index
    %c0_35 = arith.constant 0 : index
    %104 = vector.load %arg19[%103, %c0_35] : memref<64x256xf32, #tpu.memory_space<vmem>>, vector<8x256xf32>
    %105 = arith.index_cast %101 : i32 to index
    %c0_36 = arith.constant 0 : index
    %106 = vector.load %arg19[%105, %c0_36] : memref<64x256xf32, #tpu.memory_space<vmem>>, vector<8x256xf32>
    %107 = arith.select %18, %104, %106 : vector<8x256xi1>, vector<8x256xf32>
    %108 = arith.addf %102, %107 : vector<8x256xf32>
    %109 = vector.extract_strided_slice %108 {offsets = [0, 0], sizes = [8, 192], strides = [1, 1]} : vector<8x256xf32> to vector<8x192xf32>
    %110 = arith.negf %109 : vector<8x192xf32>
    %111 = math.exp %110 : vector<8x192xf32>
    %cst_37 = arith.constant 1.000000e+00 : f32
    %112 = vector.broadcast %cst_37 : f32 to vector<8x192xf32>
    %113 = arith.addf %112, %111 : vector<8x192xf32>
    %114 = arith.divf %112, %113 : vector<8x192xf32>
    %115 = vector.extract_strided_slice %108 {offsets = [0, 192], sizes = [8, 64], strides = [1, 1]} : vector<8x256xf32> to vector<8x64xf32>
    %116 = math.tanh %115 : vector<8x64xf32>
    %117 = vector.extract_strided_slice %114 {offsets = [0, 64], sizes = [8, 64], strides = [1, 1]} : vector<8x192xf32> to vector<8x64xf32>
    %118 = arith.mulf %117, %87 : vector<8x64xf32>
    %119 = vector.extract_strided_slice %114 {offsets = [0, 0], sizes = [8, 64], strides = [1, 1]} : vector<8x192xf32> to vector<8x64xf32>
    %120 = arith.mulf %119, %116 : vector<8x64xf32>
    %121 = arith.addf %118, %120 : vector<8x64xf32>
    %122 = vector.extract_strided_slice %114 {offsets = [0, 128], sizes = [8, 64], strides = [1, 1]} : vector<8x192xf32> to vector<8x64xf32>
    %123 = math.tanh %121 : vector<8x64xf32>
    %124 = arith.mulf %122, %123 : vector<8x64xf32>
    %125 = vector.extract_strided_slice %124 {offsets = [0, 0], sizes = [8, 32], strides = [1, 1]} : vector<8x64xf32> to vector<8x32xf32>
    %126 = arith.index_cast %99 : i32 to index
    %c0_38 = arith.constant 0 : index
    %127 = vector.load %arg20[%126, %c0_38] : memref<64x64xf32, #tpu.memory_space<vmem>>, vector<8x32xf32>
    tpu.vector_store %arg20[%126, %c0_38], %125 {strides = array<i32>} : memref<64x64xf32, #tpu.memory_space<vmem>>, vector<8x32xf32>,
    %128 = vector.extract_strided_slice %124 {offsets = [0, 32], sizes = [8, 32], strides = [1, 1]} : vector<8x64xf32> to vector<8x32xf32>
    %129 = arith.index_cast %101 : i32 to index
    %c32_39 = arith.constant 32 : index
    %130 = vector.load %arg20[%129, %c32_39] : memref<64x64xf32, #tpu.memory_space<vmem>>, vector<8x32xf32>
    tpu.vector_store %arg20[%129, %c32_39], %128 {strides = array<i32>} : memref<64x64xf32, #tpu.memory_space<vmem>>, vector<8x32xf32>,
    %c3_i32 = arith.constant 3 : i32
    %c7_i32_40 = arith.constant 7 : i32
    %131 = arith.subi %c7_i32_40, %c3_i32 : i32
    %c8_i32_41 = arith.constant 8 : i32
    %132 = arith.muli %c3_i32, %c8_i32_41 : i32
    %133 = tpu.assume_multiple %132, 8 : i32
    %c8_i32_42 = arith.constant 8 : i32
    %134 = arith.muli %131, %c8_i32_42 : i32
    %135 = tpu.assume_multiple %134, 8 : i32
    %cst_43 = arith.constant dense<0.000000e+00> : vector<8x256xf32>
    %136 = tpu.matmul %124, %26, %cst_43 {dimension_numbers = #tpu.dot_dimension_numbers<[1], [0], [0], [1], [0, 0, 1, 1], [], []>} : vector<8x64xf32>, vector<64x256xf32>, vector<8x256xf32> -> vector<8x256xf32>
    %137 = arith.index_cast %133 : i32 to index
    %c0_44 = arith.constant 0 : index
    %138 = vector.load %arg19[%137, %c0_44] : memref<64x256xf32, #tpu.memory_space<vmem>>, vector<8x256xf32>
    %139 = arith.index_cast %135 : i32 to index
    %c0_45 = arith.constant 0 : index
    %140 = vector.load %arg19[%139, %c0_45] : memref<64x256xf32, #tpu.memory_space<vmem>>, vector<8x256xf32>
    %141 = arith.select %18, %138, %140 : vector<8x256xi1>, vector<8x256xf32>
    %142 = arith.addf %136, %141 : vector<8x256xf32>
    %143 = vector.extract_strided_slice %142 {offsets = [0, 0], sizes = [8, 192], strides = [1, 1]} : vector<8x256xf32> to vector<8x192xf32>
    %144 = arith.negf %143 : vector<8x192xf32>
    %145 = math.exp %144 : vector<8x192xf32>
    %cst_46 = arith.constant 1.000000e+00 : f32
    %146 = vector.broadcast %cst_46 : f32 to vector<8x192xf32>
    %147 = arith.addf %146, %145 : vector<8x192xf32>
    %148 = arith.divf %146, %147 : vector<8x192xf32>
    %149 = vector.extract_strided_slice %142 {offsets = [0, 192], sizes = [8, 64], strides = [1, 1]} : vector<8x256xf32> to vector<8x64xf32>
    %150 = math.tanh %149 : vector<8x64xf32>
    %151 = vector.extract_strided_slice %148 {offsets = [0, 64], sizes = [8, 64], strides = [1, 1]} : vector<8x192xf32> to vector<8x64xf32>
    %152 = arith.mulf %151, %121 : vector<8x64xf32>
    %153 = vector.extract_strided_slice %148 {offsets = [0, 0], sizes = [8, 64], strides = [1, 1]} : vector<8x192xf32> to vector<8x64xf32>
    %154 = arith.mulf %153, %150 : vector<8x64xf32>
    %155 = arith.addf %152, %154 : vector<8x64xf32>
    %156 = vector.extract_strided_slice %148 {offsets = [0, 128], sizes = [8, 64], strides = [1, 1]} : vector<8x192xf32> to vector<8x64xf32>
    %157 = math.tanh %155 : vector<8x64xf32>
    %158 = arith.mulf %156, %157 : vector<8x64xf32>
    %159 = vector.extract_strided_slice %158 {offsets = [0, 0], sizes = [8, 32], strides = [1, 1]} : vector<8x64xf32> to vector<8x32xf32>
    %160 = arith.index_cast %133 : i32 to index
    %c0_47 = arith.constant 0 : index
    %161 = vector.load %arg20[%160, %c0_47] : memref<64x64xf32, #tpu.memory_space<vmem>>, vector<8x32xf32>
    tpu.vector_store %arg20[%160, %c0_47], %159 {strides = array<i32>} : memref<64x64xf32, #tpu.memory_space<vmem>>, vector<8x32xf32>,
    %162 = vector.extract_strided_slice %158 {offsets = [0, 32], sizes = [8, 32], strides = [1, 1]} : vector<8x64xf32> to vector<8x32xf32>
    %163 = arith.index_cast %135 : i32 to index
    %c32_48 = arith.constant 32 : index
    %164 = vector.load %arg20[%163, %c32_48] : memref<64x64xf32, #tpu.memory_space<vmem>>, vector<8x32xf32>
    tpu.vector_store %arg20[%163, %c32_48], %162 {strides = array<i32>} : memref<64x64xf32, #tpu.memory_space<vmem>>, vector<8x32xf32>,
    %c4_i32 = arith.constant 4 : i32
    %c7_i32_49 = arith.constant 7 : i32
    %165 = arith.subi %c7_i32_49, %c4_i32 : i32
    %c8_i32_50 = arith.constant 8 : i32
    %166 = arith.muli %c4_i32, %c8_i32_50 : i32
    %167 = tpu.assume_multiple %166, 8 : i32
    %c8_i32_51 = arith.constant 8 : i32
    %168 = arith.muli %165, %c8_i32_51 : i32
    %169 = tpu.assume_multiple %168, 8 : i32
    %cst_52 = arith.constant dense<0.000000e+00> : vector<8x256xf32>
    %170 = tpu.matmul %158, %26, %cst_52 {dimension_numbers = #tpu.dot_dimension_numbers<[1], [0], [0], [1], [0, 0, 1, 1], [], []>} : vector<8x64xf32>, vector<64x256xf32>, vector<8x256xf32> -> vector<8x256xf32>
    %171 = arith.index_cast %167 : i32 to index
    %c0_53 = arith.constant 0 : index
    %172 = vector.load %arg19[%171, %c0_53] : memref<64x256xf32, #tpu.memory_space<vmem>>, vector<8x256xf32>
    %173 = arith.index_cast %169 : i32 to index
    %c0_54 = arith.constant 0 : index
    %174 = vector.load %arg19[%173, %c0_54] : memref<64x256xf32, #tpu.memory_space<vmem>>, vector<8x256xf32>
    %175 = arith.select %18, %172, %174 : vector<8x256xi1>, vector<8x256xf32>
    %176 = arith.addf %170, %175 : vector<8x256xf32>
    %177 = vector.extract_strided_slice %176 {offsets = [0, 0], sizes = [8, 192], strides = [1, 1]} : vector<8x256xf32> to vector<8x192xf32>
    %178 = arith.negf %177 : vector<8x192xf32>
    %179 = math.exp %178 : vector<8x192xf32>
    %cst_55 = arith.constant 1.000000e+00 : f32
    %180 = vector.broadcast %cst_55 : f32 to vector<8x192xf32>
    %181 = arith.addf %180, %179 : vector<8x192xf32>
    %182 = arith.divf %180, %181 : vector<8x192xf32>
    %183 = vector.extract_strided_slice %176 {offsets = [0, 192], sizes = [8, 64], strides = [1, 1]} : vector<8x256xf32> to vector<8x64xf32>
    %184 = math.tanh %183 : vector<8x64xf32>
    %185 = vector.extract_strided_slice %182 {offsets = [0, 64], sizes = [8, 64], strides = [1, 1]} : vector<8x192xf32> to vector<8x64xf32>
    %186 = arith.mulf %185, %155 : vector<8x64xf32>
    %187 = vector.extract_strided_slice %182 {offsets = [0, 0], sizes = [8, 64], strides = [1, 1]} : vector<8x192xf32> to vector<8x64xf32>
    %188 = arith.mulf %187, %184 : vector<8x64xf32>
    %189 = arith.addf %186, %188 : vector<8x64xf32>
    %190 = vector.extract_strided_slice %182 {offsets = [0, 128], sizes = [8, 64], strides = [1, 1]} : vector<8x192xf32> to vector<8x64xf32>
    %191 = math.tanh %189 : vector<8x64xf32>
    %192 = arith.mulf %190, %191 : vector<8x64xf32>
    %193 = vector.extract_strided_slice %192 {offsets = [0, 0], sizes = [8, 32], strides = [1, 1]} : vector<8x64xf32> to vector<8x32xf32>
    %194 = arith.index_cast %167 : i32 to index
    %c0_56 = arith.constant 0 : index
    %195 = vector.load %arg20[%194, %c0_56] : memref<64x64xf32, #tpu.memory_space<vmem>>, vector<8x32xf32>
    tpu.vector_store %arg20[%194, %c0_56], %193 {strides = array<i32>} : memref<64x64xf32, #tpu.memory_space<vmem>>, vector<8x32xf32>,
    %196 = vector.extract_strided_slice %192 {offsets = [0, 32], sizes = [8, 32], strides = [1, 1]} : vector<8x64xf32> to vector<8x32xf32>
    %197 = arith.index_cast %169 : i32 to index
    %c32_57 = arith.constant 32 : index
    %198 = vector.load %arg20[%197, %c32_57] : memref<64x64xf32, #tpu.memory_space<vmem>>, vector<8x32xf32>
    tpu.vector_store %arg20[%197, %c32_57], %196 {strides = array<i32>} : memref<64x64xf32, #tpu.memory_space<vmem>>, vector<8x32xf32>,
    %c5_i32 = arith.constant 5 : i32
    %c7_i32_58 = arith.constant 7 : i32
    %199 = arith.subi %c7_i32_58, %c5_i32 : i32
    %c8_i32_59 = arith.constant 8 : i32
    %200 = arith.muli %c5_i32, %c8_i32_59 : i32
    %201 = tpu.assume_multiple %200, 8 : i32
    %c8_i32_60 = arith.constant 8 : i32
    %202 = arith.muli %199, %c8_i32_60 : i32
    %203 = tpu.assume_multiple %202, 8 : i32
    %cst_61 = arith.constant dense<0.000000e+00> : vector<8x256xf32>
    %204 = tpu.matmul %192, %26, %cst_61 {dimension_numbers = #tpu.dot_dimension_numbers<[1], [0], [0], [1], [0, 0, 1, 1], [], []>} : vector<8x64xf32>, vector<64x256xf32>, vector<8x256xf32> -> vector<8x256xf32>
    %205 = arith.index_cast %201 : i32 to index
    %c0_62 = arith.constant 0 : index
    %206 = vector.load %arg19[%205, %c0_62] : memref<64x256xf32, #tpu.memory_space<vmem>>, vector<8x256xf32>
    %207 = arith.index_cast %203 : i32 to index
    %c0_63 = arith.constant 0 : index
    %208 = vector.load %arg19[%207, %c0_63] : memref<64x256xf32, #tpu.memory_space<vmem>>, vector<8x256xf32>
    %209 = arith.select %18, %206, %208 : vector<8x256xi1>, vector<8x256xf32>
    %210 = arith.addf %204, %209 : vector<8x256xf32>
    %211 = vector.extract_strided_slice %210 {offsets = [0, 0], sizes = [8, 192], strides = [1, 1]} : vector<8x256xf32> to vector<8x192xf32>
    %212 = arith.negf %211 : vector<8x192xf32>
    %213 = math.exp %212 : vector<8x192xf32>
    %cst_64 = arith.constant 1.000000e+00 : f32
    %214 = vector.broadcast %cst_64 : f32 to vector<8x192xf32>
    %215 = arith.addf %214, %213 : vector<8x192xf32>
    %216 = arith.divf %214, %215 : vector<8x192xf32>
    %217 = vector.extract_strided_slice %210 {offsets = [0, 192], sizes = [8, 64], strides = [1, 1]} : vector<8x256xf32> to vector<8x64xf32>
    %218 = math.tanh %217 : vector<8x64xf32>
    %219 = vector.extract_strided_slice %216 {offsets = [0, 64], sizes = [8, 64], strides = [1, 1]} : vector<8x192xf32> to vector<8x64xf32>
    %220 = arith.mulf %219, %189 : vector<8x64xf32>
    %221 = vector.extract_strided_slice %216 {offsets = [0, 0], sizes = [8, 64], strides = [1, 1]} : vector<8x192xf32> to vector<8x64xf32>
    %222 = arith.mulf %221, %218 : vector<8x64xf32>
    %223 = arith.addf %220, %222 : vector<8x64xf32>
    %224 = vector.extract_strided_slice %216 {offsets = [0, 128], sizes = [8, 64], strides = [1, 1]} : vector<8x192xf32> to vector<8x64xf32>
    %225 = math.tanh %223 : vector<8x64xf32>
    %226 = arith.mulf %224, %225 : vector<8x64xf32>
    %227 = vector.extract_strided_slice %226 {offsets = [0, 0], sizes = [8, 32], strides = [1, 1]} : vector<8x64xf32> to vector<8x32xf32>
    %228 = arith.index_cast %201 : i32 to index
    %c0_65 = arith.constant 0 : index
    %229 = vector.load %arg20[%228, %c0_65] : memref<64x64xf32, #tpu.memory_space<vmem>>, vector<8x32xf32>
    tpu.vector_store %arg20[%228, %c0_65], %227 {strides = array<i32>} : memref<64x64xf32, #tpu.memory_space<vmem>>, vector<8x32xf32>,
    %230 = vector.extract_strided_slice %226 {offsets = [0, 32], sizes = [8, 32], strides = [1, 1]} : vector<8x64xf32> to vector<8x32xf32>
    %231 = arith.index_cast %203 : i32 to index
    %c32_66 = arith.constant 32 : index
    %232 = vector.load %arg20[%231, %c32_66] : memref<64x64xf32, #tpu.memory_space<vmem>>, vector<8x32xf32>
    tpu.vector_store %arg20[%231, %c32_66], %230 {strides = array<i32>} : memref<64x64xf32, #tpu.memory_space<vmem>>, vector<8x32xf32>,
    %c6_i32 = arith.constant 6 : i32
    %c7_i32_67 = arith.constant 7 : i32
    %233 = arith.subi %c7_i32_67, %c6_i32 : i32
    %c8_i32_68 = arith.constant 8 : i32
    %234 = arith.muli %c6_i32, %c8_i32_68 : i32
    %235 = tpu.assume_multiple %234, 8 : i32
    %c8_i32_69 = arith.constant 8 : i32
    %236 = arith.muli %233, %c8_i32_69 : i32
    %237 = tpu.assume_multiple %236, 8 : i32
    %cst_70 = arith.constant dense<0.000000e+00> : vector<8x256xf32>
    %238 = tpu.matmul %226, %26, %cst_70 {dimension_numbers = #tpu.dot_dimension_numbers<[1], [0], [0], [1], [0, 0, 1, 1], [], []>} : vector<8x64xf32>, vector<64x256xf32>, vector<8x256xf32> -> vector<8x256xf32>
    %239 = arith.index_cast %235 : i32 to index
    %c0_71 = arith.constant 0 : index
    %240 = vector.load %arg19[%239, %c0_71] : memref<64x256xf32, #tpu.memory_space<vmem>>, vector<8x256xf32>
    %241 = arith.index_cast %237 : i32 to index
    %c0_72 = arith.constant 0 : index
    %242 = vector.load %arg19[%241, %c0_72] : memref<64x256xf32, #tpu.memory_space<vmem>>, vector<8x256xf32>
    %243 = arith.select %18, %240, %242 : vector<8x256xi1>, vector<8x256xf32>
    %244 = arith.addf %238, %243 : vector<8x256xf32>
    %245 = vector.extract_strided_slice %244 {offsets = [0, 0], sizes = [8, 192], strides = [1, 1]} : vector<8x256xf32> to vector<8x192xf32>
    %246 = arith.negf %245 : vector<8x192xf32>
    %247 = math.exp %246 : vector<8x192xf32>
    %cst_73 = arith.constant 1.000000e+00 : f32
    %248 = vector.broadcast %cst_73 : f32 to vector<8x192xf32>
    %249 = arith.addf %248, %247 : vector<8x192xf32>
    %250 = arith.divf %248, %249 : vector<8x192xf32>
    %251 = vector.extract_strided_slice %244 {offsets = [0, 192], sizes = [8, 64], strides = [1, 1]} : vector<8x256xf32> to vector<8x64xf32>
    %252 = math.tanh %251 : vector<8x64xf32>
    %253 = vector.extract_strided_slice %250 {offsets = [0, 64], sizes = [8, 64], strides = [1, 1]} : vector<8x192xf32> to vector<8x64xf32>
    %254 = arith.mulf %253, %223 : vector<8x64xf32>
    %255 = vector.extract_strided_slice %250 {offsets = [0, 0], sizes = [8, 64], strides = [1, 1]} : vector<8x192xf32> to vector<8x64xf32>
    %256 = arith.mulf %255, %252 : vector<8x64xf32>
    %257 = arith.addf %254, %256 : vector<8x64xf32>
    %258 = vector.extract_strided_slice %250 {offsets = [0, 128], sizes = [8, 64], strides = [1, 1]} : vector<8x192xf32> to vector<8x64xf32>
    %259 = math.tanh %257 : vector<8x64xf32>
    %260 = arith.mulf %258, %259 : vector<8x64xf32>
    %261 = vector.extract_strided_slice %260 {offsets = [0, 0], sizes = [8, 32], strides = [1, 1]} : vector<8x64xf32> to vector<8x32xf32>
    %262 = arith.index_cast %235 : i32 to index
    %c0_74 = arith.constant 0 : index
    %263 = vector.load %arg20[%262, %c0_74] : memref<64x64xf32, #tpu.memory_space<vmem>>, vector<8x32xf32>
    tpu.vector_store %arg20[%262, %c0_74], %261 {strides = array<i32>} : memref<64x64xf32, #tpu.memory_space<vmem>>, vector<8x32xf32>,
    %264 = vector.extract_strided_slice %260 {offsets = [0, 32], sizes = [8, 32], strides = [1, 1]} : vector<8x64xf32> to vector<8x32xf32>
    %265 = arith.index_cast %237 : i32 to index
    %c32_75 = arith.constant 32 : index
    %266 = vector.load %arg20[%265, %c32_75] : memref<64x64xf32, #tpu.memory_space<vmem>>, vector<8x32xf32>
    tpu.vector_store %arg20[%265, %c32_75], %264 {strides = array<i32>} : memref<64x64xf32, #tpu.memory_space<vmem>>, vector<8x32xf32>,
    %c7_i32_76 = arith.constant 7 : i32
    %c7_i32_77 = arith.constant 7 : i32
    %267 = arith.subi %c7_i32_77, %c7_i32_76 : i32
    %c8_i32_78 = arith.constant 8 : i32
    %268 = arith.muli %c7_i32_76, %c8_i32_78 : i32
    %269 = tpu.assume_multiple %268, 8 : i32
    %c8_i32_79 = arith.constant 8 : i32
    %270 = arith.muli %267, %c8_i32_79 : i32
    %271 = tpu.assume_multiple %270, 8 : i32
    %cst_80 = arith.constant dense<0.000000e+00> : vector<8x256xf32>
    %272 = tpu.matmul %260, %26, %cst_80 {dimension_numbers = #tpu.dot_dimension_numbers<[1], [0], [0], [1], [0, 0, 1, 1], [], []>} : vector<8x64xf32>, vector<64x256xf32>, vector<8x256xf32> -> vector<8x256xf32>
    %273 = arith.index_cast %269 : i32 to index
    %c0_81 = arith.constant 0 : index
    %274 = vector.load %arg19[%273, %c0_81] : memref<64x256xf32, #tpu.memory_space<vmem>>, vector<8x256xf32>
    %275 = arith.index_cast %271 : i32 to index
    %c0_82 = arith.constant 0 : index
    %276 = vector.load %arg19[%275, %c0_82] : memref<64x256xf32, #tpu.memory_space<vmem>>, vector<8x256xf32>
    %277 = arith.select %18, %274, %276 : vector<8x256xi1>, vector<8x256xf32>
    %278 = arith.addf %272, %277 : vector<8x256xf32>
    %279 = vector.extract_strided_slice %278 {offsets = [0, 0], sizes = [8, 192], strides = [1, 1]} : vector<8x256xf32> to vector<8x192xf32>
    %280 = arith.negf %279 : vector<8x192xf32>
    %281 = math.exp %280 : vector<8x192xf32>
    %cst_83 = arith.constant 1.000000e+00 : f32
    %282 = vector.broadcast %cst_83 : f32 to vector<8x192xf32>
    %283 = arith.addf %282, %281 : vector<8x192xf32>
    %284 = arith.divf %282, %283 : vector<8x192xf32>
    %285 = vector.extract_strided_slice %278 {offsets = [0, 192], sizes = [8, 64], strides = [1, 1]} : vector<8x256xf32> to vector<8x64xf32>
    %286 = math.tanh %285 : vector<8x64xf32>
    %287 = vector.extract_strided_slice %284 {offsets = [0, 64], sizes = [8, 64], strides = [1, 1]} : vector<8x192xf32> to vector<8x64xf32>
    %288 = arith.mulf %287, %257 : vector<8x64xf32>
    %289 = vector.extract_strided_slice %284 {offsets = [0, 0], sizes = [8, 64], strides = [1, 1]} : vector<8x192xf32> to vector<8x64xf32>
    %290 = arith.mulf %289, %286 : vector<8x64xf32>
    %291 = arith.addf %288, %290 : vector<8x64xf32>
    %292 = vector.extract_strided_slice %284 {offsets = [0, 128], sizes = [8, 64], strides = [1, 1]} : vector<8x192xf32> to vector<8x64xf32>
    %293 = math.tanh %291 : vector<8x64xf32>
    %294 = arith.mulf %292, %293 : vector<8x64xf32>
    %295 = vector.extract_strided_slice %294 {offsets = [0, 0], sizes = [8, 32], strides = [1, 1]} : vector<8x64xf32> to vector<8x32xf32>
    %296 = arith.index_cast %269 : i32 to index
    %c0_84 = arith.constant 0 : index
    %297 = vector.load %arg20[%296, %c0_84] : memref<64x64xf32, #tpu.memory_space<vmem>>, vector<8x32xf32>
    tpu.vector_store %arg20[%296, %c0_84], %295 {strides = array<i32>} : memref<64x64xf32, #tpu.memory_space<vmem>>, vector<8x32xf32>,
    %298 = vector.extract_strided_slice %294 {offsets = [0, 32], sizes = [8, 32], strides = [1, 1]} : vector<8x64xf32> to vector<8x32xf32>
    %299 = arith.index_cast %271 : i32 to index
    %c32_85 = arith.constant 32 : index
    %300 = vector.load %arg20[%299, %c32_85] : memref<64x64xf32, #tpu.memory_space<vmem>>, vector<8x32xf32>
    tpu.vector_store %arg20[%299, %c32_85], %298 {strides = array<i32>} : memref<64x64xf32, #tpu.memory_space<vmem>>, vector<8x32xf32>,
    %c8_i32_86 = arith.constant 8 : i32
    %c0_87 = arith.constant 0 : index
    %c0_88 = arith.constant 0 : index
    %301 = vector.load %arg20[%c0_87, %c0_88] : memref<64x64xf32, #tpu.memory_space<vmem>>, vector<64x64xf32>
    %c0_89 = arith.constant 0 : index
    %c0_90 = arith.constant 0 : index
    %302 = vector.load %arg5[%c0_89, %c0_90] : memref<64x256xf32, #tpu.memory_space<vmem>>, vector<64x256xf32>
    %cst_91 = arith.constant dense<0.000000e+00> : vector<64x256xf32>
    %303 = tpu.matmul %301, %302, %cst_91 {dimension_numbers = #tpu.dot_dimension_numbers<[1], [0], [0], [1], [0, 0, 1, 1], [], []>} : vector<64x64xf32>, vector<64x256xf32>, vector<64x256xf32> -> vector<64x256xf32>
    %c0_92 = arith.constant 0 : index
    %c0_93 = arith.constant 0 : index
    %304 = vector.load %arg7[%c0_92, %c0_93] : memref<1x256xf32, #tpu.memory_space<vmem>>, vector<1x256xf32>
    %305 = vector.broadcast %304 : vector<1x256xf32> to vector<64x256xf32>
    %306 = arith.addf %303, %305 : vector<64x256xf32>
    %c0_94 = arith.constant 0 : index
    %c0_95 = arith.constant 0 : index
    %307 = vector.load %arg19[%c0_94, %c0_95] : memref<64x256xf32, #tpu.memory_space<vmem>>, vector<64x256xf32>
    tpu.vector_store %arg19[%c0_94, %c0_95], %306 {strides = array<i32>} : memref<64x256xf32, #tpu.memory_space<vmem>>, vector<64x256xf32>,
    %c0_96 = arith.constant 0 : index
    %c0_97 = arith.constant 0 : index
    %308 = vector.load %arg6[%c0_96, %c0_97] : memref<64x256xf32, #tpu.memory_space<vmem>>, vector<64x256xf32>
    %cst_98 = arith.constant 0.000000e+00 : f32
    %309 = vector.broadcast %cst_98 : f32 to vector<8x64xf32>
    %cst_99 = arith.constant 0.000000e+00 : f32
    %310 = vector.broadcast %cst_99 : f32 to vector<8x64xf32>
    %c0_i32_100 = arith.constant 0 : i32
    %c7_i32_101 = arith.constant 7 : i32
    %311 = arith.subi %c7_i32_101, %c0_i32_100 : i32
    %c8_i32_102 = arith.constant 8 : i32
    %312 = arith.muli %c0_i32_100, %c8_i32_102 : i32
    %313 = tpu.assume_multiple %312, 8 : i32
    %c8_i32_103 = arith.constant 8 : i32
    %314 = arith.muli %311, %c8_i32_103 : i32
    %315 = tpu.assume_multiple %314, 8 : i32
    %cst_104 = arith.constant dense<0.000000e+00> : vector<8x256xf32>
    %316 = tpu.matmul %309, %308, %cst_104 {dimension_numbers = #tpu.dot_dimension_numbers<[1], [0], [0], [1], [0, 0, 1, 1], [], []>} : vector<8x64xf32>, vector<64x256xf32>, vector<8x256xf32> -> vector<8x256xf32>
    %317 = arith.index_cast %313 : i32 to index
    %c0_105 = arith.constant 0 : index
    %318 = vector.load %arg19[%317, %c0_105] : memref<64x256xf32, #tpu.memory_space<vmem>>, vector<8x256xf32>
    %319 = arith.index_cast %315 : i32 to index
    %c0_106 = arith.constant 0 : index
    %320 = vector.load %arg19[%319, %c0_106] : memref<64x256xf32, #tpu.memory_space<vmem>>, vector<8x256xf32>
    %321 = arith.select %18, %318, %320 : vector<8x256xi1>, vector<8x256xf32>
    %322 = arith.addf %316, %321 : vector<8x256xf32>
    %323 = vector.extract_strided_slice %322 {offsets = [0, 0], sizes = [8, 192], strides = [1, 1]} : vector<8x256xf32> to vector<8x192xf32>
    %324 = arith.negf %323 : vector<8x192xf32>
    %325 = math.exp %324 : vector<8x192xf32>
    %cst_107 = arith.constant 1.000000e+00 : f32
    %326 = vector.broadcast %cst_107 : f32 to vector<8x192xf32>
    %327 = arith.addf %326, %325 : vector<8x192xf32>
    %328 = arith.divf %326, %327 : vector<8x192xf32>
    %329 = vector.extract_strided_slice %322 {offsets = [0, 192], sizes = [8, 64], strides = [1, 1]} : vector<8x256xf32> to vector<8x64xf32>
    %330 = math.tanh %329 : vector<8x64xf32>
    %331 = vector.extract_strided_slice %328 {offsets = [0, 64], sizes = [8, 64], strides = [1, 1]} : vector<8x192xf32> to vector<8x64xf32>
    %332 = arith.mulf %331, %310 : vector<8x64xf32>
    %333 = vector.extract_strided_slice %328 {offsets = [0, 0], sizes = [8, 64], strides = [1, 1]} : vector<8x192xf32> to vector<8x64xf32>
    %334 = arith.mulf %333, %330 : vector<8x64xf32>
    %335 = arith.addf %332, %334 : vector<8x64xf32>
    %336 = vector.extract_strided_slice %328 {offsets = [0, 128], sizes = [8, 64], strides = [1, 1]} : vector<8x192xf32> to vector<8x64xf32>
    %337 = math.tanh %335 : vector<8x64xf32>
    %338 = arith.mulf %336, %337 : vector<8x64xf32>
    %339 = vector.extract_strided_slice %338 {offsets = [0, 0], sizes = [8, 32], strides = [1, 1]} : vector<8x64xf32> to vector<8x32xf32>
    %340 = arith.index_cast %313 : i32 to index
    %c0_108 = arith.constant 0 : index
    %341 = vector.load %arg20[%340, %c0_108] : memref<64x64xf32, #tpu.memory_space<vmem>>, vector<8x32xf32>
    tpu.vector_store %arg20[%340, %c0_108], %339 {strides = array<i32>} : memref<64x64xf32, #tpu.memory_space<vmem>>, vector<8x32xf32>,
    %342 = vector.extract_strided_slice %338 {offsets = [0, 32], sizes = [8, 32], strides = [1, 1]} : vector<8x64xf32> to vector<8x32xf32>
    %343 = arith.index_cast %315 : i32 to index
    %c32_109 = arith.constant 32 : index
    %344 = vector.load %arg20[%343, %c32_109] : memref<64x64xf32, #tpu.memory_space<vmem>>, vector<8x32xf32>
    tpu.vector_store %arg20[%343, %c32_109], %342 {strides = array<i32>} : memref<64x64xf32, #tpu.memory_space<vmem>>, vector<8x32xf32>,
    %c1_i32_110 = arith.constant 1 : i32
    %c7_i32_111 = arith.constant 7 : i32
    %345 = arith.subi %c7_i32_111, %c1_i32_110 : i32
    %c8_i32_112 = arith.constant 8 : i32
    %346 = arith.muli %c1_i32_110, %c8_i32_112 : i32
    %347 = tpu.assume_multiple %346, 8 : i32
    %c8_i32_113 = arith.constant 8 : i32
    %348 = arith.muli %345, %c8_i32_113 : i32
    %349 = tpu.assume_multiple %348, 8 : i32
    %cst_114 = arith.constant dense<0.000000e+00> : vector<8x256xf32>
    %350 = tpu.matmul %338, %308, %cst_114 {dimension_numbers = #tpu.dot_dimension_numbers<[1], [0], [0], [1], [0, 0, 1, 1], [], []>} : vector<8x64xf32>, vector<64x256xf32>, vector<8x256xf32> -> vector<8x256xf32>
    %351 = arith.index_cast %347 : i32 to index
    %c0_115 = arith.constant 0 : index
    %352 = vector.load %arg19[%351, %c0_115] : memref<64x256xf32, #tpu.memory_space<vmem>>, vector<8x256xf32>
    %353 = arith.index_cast %349 : i32 to index
    %c0_116 = arith.constant 0 : index
    %354 = vector.load %arg19[%353, %c0_116] : memref<64x256xf32, #tpu.memory_space<vmem>>, vector<8x256xf32>
    %355 = arith.select %18, %352, %354 : vector<8x256xi1>, vector<8x256xf32>
    %356 = arith.addf %350, %355 : vector<8x256xf32>
    %357 = vector.extract_strided_slice %356 {offsets = [0, 0], sizes = [8, 192], strides = [1, 1]} : vector<8x256xf32> to vector<8x192xf32>
    %358 = arith.negf %357 : vector<8x192xf32>
    %359 = math.exp %358 : vector<8x192xf32>
    %cst_117 = arith.constant 1.000000e+00 : f32
    %360 = vector.broadcast %cst_117 : f32 to vector<8x192xf32>
    %361 = arith.addf %360, %359 : vector<8x192xf32>
    %362 = arith.divf %360, %361 : vector<8x192xf32>
    %363 = vector.extract_strided_slice %356 {offsets = [0, 192], sizes = [8, 64], strides = [1, 1]} : vector<8x256xf32> to vector<8x64xf32>
    %364 = math.tanh %363 : vector<8x64xf32>
    %365 = vector.extract_strided_slice %362 {offsets = [0, 64], sizes = [8, 64], strides = [1, 1]} : vector<8x192xf32> to vector<8x64xf32>
    %366 = arith.mulf %365, %335 : vector<8x64xf32>
    %367 = vector.extract_strided_slice %362 {offsets = [0, 0], sizes = [8, 64], strides = [1, 1]} : vector<8x192xf32> to vector<8x64xf32>
    %368 = arith.mulf %367, %364 : vector<8x64xf32>
    %369 = arith.addf %366, %368 : vector<8x64xf32>
    %370 = vector.extract_strided_slice %362 {offsets = [0, 128], sizes = [8, 64], strides = [1, 1]} : vector<8x192xf32> to vector<8x64xf32>
    %371 = math.tanh %369 : vector<8x64xf32>
    %372 = arith.mulf %370, %371 : vector<8x64xf32>
    %373 = vector.extract_strided_slice %372 {offsets = [0, 0], sizes = [8, 32], strides = [1, 1]} : vector<8x64xf32> to vector<8x32xf32>
    %374 = arith.index_cast %347 : i32 to index
    %c0_118 = arith.constant 0 : index
    %375 = vector.load %arg20[%374, %c0_118] : memref<64x64xf32, #tpu.memory_space<vmem>>, vector<8x32xf32>
    tpu.vector_store %arg20[%374, %c0_118], %373 {strides = array<i32>} : memref<64x64xf32, #tpu.memory_space<vmem>>, vector<8x32xf32>,
    %376 = vector.extract_strided_slice %372 {offsets = [0, 32], sizes = [8, 32], strides = [1, 1]} : vector<8x64xf32> to vector<8x32xf32>
    %377 = arith.index_cast %349 : i32 to index
    %c32_119 = arith.constant 32 : index
    %378 = vector.load %arg20[%377, %c32_119] : memref<64x64xf32, #tpu.memory_space<vmem>>, vector<8x32xf32>
    tpu.vector_store %arg20[%377, %c32_119], %376 {strides = array<i32>} : memref<64x64xf32, #tpu.memory_space<vmem>>, vector<8x32xf32>,
    %c2_i32_120 = arith.constant 2 : i32
    %c7_i32_121 = arith.constant 7 : i32
    %379 = arith.subi %c7_i32_121, %c2_i32_120 : i32
    %c8_i32_122 = arith.constant 8 : i32
    %380 = arith.muli %c2_i32_120, %c8_i32_122 : i32
    %381 = tpu.assume_multiple %380, 8 : i32
    %c8_i32_123 = arith.constant 8 : i32
    %382 = arith.muli %379, %c8_i32_123 : i32
    %383 = tpu.assume_multiple %382, 8 : i32
    %cst_124 = arith.constant dense<0.000000e+00> : vector<8x256xf32>
    %384 = tpu.matmul %372, %308, %cst_124 {dimension_numbers = #tpu.dot_dimension_numbers<[1], [0], [0], [1], [0, 0, 1, 1], [], []>} : vector<8x64xf32>, vector<64x256xf32>, vector<8x256xf32> -> vector<8x256xf32>
    %385 = arith.index_cast %381 : i32 to index
    %c0_125 = arith.constant 0 : index
    %386 = vector.load %arg19[%385, %c0_125] : memref<64x256xf32, #tpu.memory_space<vmem>>, vector<8x256xf32>
    %387 = arith.index_cast %383 : i32 to index
    %c0_126 = arith.constant 0 : index
    %388 = vector.load %arg19[%387, %c0_126] : memref<64x256xf32, #tpu.memory_space<vmem>>, vector<8x256xf32>
    %389 = arith.select %18, %386, %388 : vector<8x256xi1>, vector<8x256xf32>
    %390 = arith.addf %384, %389 : vector<8x256xf32>
    %391 = vector.extract_strided_slice %390 {offsets = [0, 0], sizes = [8, 192], strides = [1, 1]} : vector<8x256xf32> to vector<8x192xf32>
    %392 = arith.negf %391 : vector<8x192xf32>
    %393 = math.exp %392 : vector<8x192xf32>
    %cst_127 = arith.constant 1.000000e+00 : f32
    %394 = vector.broadcast %cst_127 : f32 to vector<8x192xf32>
    %395 = arith.addf %394, %393 : vector<8x192xf32>
    %396 = arith.divf %394, %395 : vector<8x192xf32>
    %397 = vector.extract_strided_slice %390 {offsets = [0, 192], sizes = [8, 64], strides = [1, 1]} : vector<8x256xf32> to vector<8x64xf32>
    %398 = math.tanh %397 : vector<8x64xf32>
    %399 = vector.extract_strided_slice %396 {offsets = [0, 64], sizes = [8, 64], strides = [1, 1]} : vector<8x192xf32> to vector<8x64xf32>
    %400 = arith.mulf %399, %369 : vector<8x64xf32>
    %401 = vector.extract_strided_slice %396 {offsets = [0, 0], sizes = [8, 64], strides = [1, 1]} : vector<8x192xf32> to vector<8x64xf32>
    %402 = arith.mulf %401, %398 : vector<8x64xf32>
    %403 = arith.addf %400, %402 : vector<8x64xf32>
    %404 = vector.extract_strided_slice %396 {offsets = [0, 128], sizes = [8, 64], strides = [1, 1]} : vector<8x192xf32> to vector<8x64xf32>
    %405 = math.tanh %403 : vector<8x64xf32>
    %406 = arith.mulf %404, %405 : vector<8x64xf32>
    %407 = vector.extract_strided_slice %406 {offsets = [0, 0], sizes = [8, 32], strides = [1, 1]} : vector<8x64xf32> to vector<8x32xf32>
    %408 = arith.index_cast %381 : i32 to index
    %c0_128 = arith.constant 0 : index
    %409 = vector.load %arg20[%408, %c0_128] : memref<64x64xf32, #tpu.memory_space<vmem>>, vector<8x32xf32>
    tpu.vector_store %arg20[%408, %c0_128], %407 {strides = array<i32>} : memref<64x64xf32, #tpu.memory_space<vmem>>, vector<8x32xf32>,
    %410 = vector.extract_strided_slice %406 {offsets = [0, 32], sizes = [8, 32], strides = [1, 1]} : vector<8x64xf32> to vector<8x32xf32>
    %411 = arith.index_cast %383 : i32 to index
    %c32_129 = arith.constant 32 : index
    %412 = vector.load %arg20[%411, %c32_129] : memref<64x64xf32, #tpu.memory_space<vmem>>, vector<8x32xf32>
    tpu.vector_store %arg20[%411, %c32_129], %410 {strides = array<i32>} : memref<64x64xf32, #tpu.memory_space<vmem>>, vector<8x32xf32>,
    %c3_i32_130 = arith.constant 3 : i32
    %c7_i32_131 = arith.constant 7 : i32
    %413 = arith.subi %c7_i32_131, %c3_i32_130 : i32
    %c8_i32_132 = arith.constant 8 : i32
    %414 = arith.muli %c3_i32_130, %c8_i32_132 : i32
    %415 = tpu.assume_multiple %414, 8 : i32
    %c8_i32_133 = arith.constant 8 : i32
    %416 = arith.muli %413, %c8_i32_133 : i32
    %417 = tpu.assume_multiple %416, 8 : i32
    %cst_134 = arith.constant dense<0.000000e+00> : vector<8x256xf32>
    %418 = tpu.matmul %406, %308, %cst_134 {dimension_numbers = #tpu.dot_dimension_numbers<[1], [0], [0], [1], [0, 0, 1, 1], [], []>} : vector<8x64xf32>, vector<64x256xf32>, vector<8x256xf32> -> vector<8x256xf32>
    %419 = arith.index_cast %415 : i32 to index
    %c0_135 = arith.constant 0 : index
    %420 = vector.load %arg19[%419, %c0_135] : memref<64x256xf32, #tpu.memory_space<vmem>>, vector<8x256xf32>
    %421 = arith.index_cast %417 : i32 to index
    %c0_136 = arith.constant 0 : index
    %422 = vector.load %arg19[%421, %c0_136] : memref<64x256xf32, #tpu.memory_space<vmem>>, vector<8x256xf32>
    %423 = arith.select %18, %420, %422 : vector<8x256xi1>, vector<8x256xf32>
    %424 = arith.addf %418, %423 : vector<8x256xf32>
    %425 = vector.extract_strided_slice %424 {offsets = [0, 0], sizes = [8, 192], strides = [1, 1]} : vector<8x256xf32> to vector<8x192xf32>
    %426 = arith.negf %425 : vector<8x192xf32>
    %427 = math.exp %426 : vector<8x192xf32>
    %cst_137 = arith.constant 1.000000e+00 : f32
    %428 = vector.broadcast %cst_137 : f32 to vector<8x192xf32>
    %429 = arith.addf %428, %427 : vector<8x192xf32>
    %430 = arith.divf %428, %429 : vector<8x192xf32>
    %431 = vector.extract_strided_slice %424 {offsets = [0, 192], sizes = [8, 64], strides = [1, 1]} : vector<8x256xf32> to vector<8x64xf32>
    %432 = math.tanh %431 : vector<8x64xf32>
    %433 = vector.extract_strided_slice %430 {offsets = [0, 64], sizes = [8, 64], strides = [1, 1]} : vector<8x192xf32> to vector<8x64xf32>
    %434 = arith.mulf %433, %403 : vector<8x64xf32>
    %435 = vector.extract_strided_slice %430 {offsets = [0, 0], sizes = [8, 64], strides = [1, 1]} : vector<8x192xf32> to vector<8x64xf32>
    %436 = arith.mulf %435, %432 : vector<8x64xf32>
    %437 = arith.addf %434, %436 : vector<8x64xf32>
    %438 = vector.extract_strided_slice %430 {offsets = [0, 128], sizes = [8, 64], strides = [1, 1]} : vector<8x192xf32> to vector<8x64xf32>
    %439 = math.tanh %437 : vector<8x64xf32>
    %440 = arith.mulf %438, %439 : vector<8x64xf32>
    %441 = vector.extract_strided_slice %440 {offsets = [0, 0], sizes = [8, 32], strides = [1, 1]} : vector<8x64xf32> to vector<8x32xf32>
    %442 = arith.index_cast %415 : i32 to index
    %c0_138 = arith.constant 0 : index
    %443 = vector.load %arg20[%442, %c0_138] : memref<64x64xf32, #tpu.memory_space<vmem>>, vector<8x32xf32>
    tpu.vector_store %arg20[%442, %c0_138], %441 {strides = array<i32>} : memref<64x64xf32, #tpu.memory_space<vmem>>, vector<8x32xf32>,
    %444 = vector.extract_strided_slice %440 {offsets = [0, 32], sizes = [8, 32], strides = [1, 1]} : vector<8x64xf32> to vector<8x32xf32>
    %445 = arith.index_cast %417 : i32 to index
    %c32_139 = arith.constant 32 : index
    %446 = vector.load %arg20[%445, %c32_139] : memref<64x64xf32, #tpu.memory_space<vmem>>, vector<8x32xf32>
    tpu.vector_store %arg20[%445, %c32_139], %444 {strides = array<i32>} : memref<64x64xf32, #tpu.memory_space<vmem>>, vector<8x32xf32>,
    %c4_i32_140 = arith.constant 4 : i32
    %c7_i32_141 = arith.constant 7 : i32
    %447 = arith.subi %c7_i32_141, %c4_i32_140 : i32
    %c8_i32_142 = arith.constant 8 : i32
    %448 = arith.muli %c4_i32_140, %c8_i32_142 : i32
    %449 = tpu.assume_multiple %448, 8 : i32
    %c8_i32_143 = arith.constant 8 : i32
    %450 = arith.muli %447, %c8_i32_143 : i32
    %451 = tpu.assume_multiple %450, 8 : i32
    %cst_144 = arith.constant dense<0.000000e+00> : vector<8x256xf32>
    %452 = tpu.matmul %440, %308, %cst_144 {dimension_numbers = #tpu.dot_dimension_numbers<[1], [0], [0], [1], [0, 0, 1, 1], [], []>} : vector<8x64xf32>, vector<64x256xf32>, vector<8x256xf32> -> vector<8x256xf32>
    %453 = arith.index_cast %449 : i32 to index
    %c0_145 = arith.constant 0 : index
    %454 = vector.load %arg19[%453, %c0_145] : memref<64x256xf32, #tpu.memory_space<vmem>>, vector<8x256xf32>
    %455 = arith.index_cast %451 : i32 to index
    %c0_146 = arith.constant 0 : index
    %456 = vector.load %arg19[%455, %c0_146] : memref<64x256xf32, #tpu.memory_space<vmem>>, vector<8x256xf32>
    %457 = arith.select %18, %454, %456 : vector<8x256xi1>, vector<8x256xf32>
    %458 = arith.addf %452, %457 : vector<8x256xf32>
    %459 = vector.extract_strided_slice %458 {offsets = [0, 0], sizes = [8, 192], strides = [1, 1]} : vector<8x256xf32> to vector<8x192xf32>
    %460 = arith.negf %459 : vector<8x192xf32>
    %461 = math.exp %460 : vector<8x192xf32>
    %cst_147 = arith.constant 1.000000e+00 : f32
    %462 = vector.broadcast %cst_147 : f32 to vector<8x192xf32>
    %463 = arith.addf %462, %461 : vector<8x192xf32>
    %464 = arith.divf %462, %463 : vector<8x192xf32>
    %465 = vector.extract_strided_slice %458 {offsets = [0, 192], sizes = [8, 64], strides = [1, 1]} : vector<8x256xf32> to vector<8x64xf32>
    %466 = math.tanh %465 : vector<8x64xf32>
    %467 = vector.extract_strided_slice %464 {offsets = [0, 64], sizes = [8, 64], strides = [1, 1]} : vector<8x192xf32> to vector<8x64xf32>
    %468 = arith.mulf %467, %437 : vector<8x64xf32>
    %469 = vector.extract_strided_slice %464 {offsets = [0, 0], sizes = [8, 64], strides = [1, 1]} : vector<8x192xf32> to vector<8x64xf32>
    %470 = arith.mulf %469, %466 : vector<8x64xf32>
    %471 = arith.addf %468, %470 : vector<8x64xf32>
    %472 = vector.extract_strided_slice %464 {offsets = [0, 128], sizes = [8, 64], strides = [1, 1]} : vector<8x192xf32> to vector<8x64xf32>
    %473 = math.tanh %471 : vector<8x64xf32>
    %474 = arith.mulf %472, %473 : vector<8x64xf32>
    %475 = vector.extract_strided_slice %474 {offsets = [0, 0], sizes = [8, 32], strides = [1, 1]} : vector<8x64xf32> to vector<8x32xf32>
    %476 = arith.index_cast %449 : i32 to index
    %c0_148 = arith.constant 0 : index
    %477 = vector.load %arg20[%476, %c0_148] : memref<64x64xf32, #tpu.memory_space<vmem>>, vector<8x32xf32>
    tpu.vector_store %arg20[%476, %c0_148], %475 {strides = array<i32>} : memref<64x64xf32, #tpu.memory_space<vmem>>, vector<8x32xf32>,
    %478 = vector.extract_strided_slice %474 {offsets = [0, 32], sizes = [8, 32], strides = [1, 1]} : vector<8x64xf32> to vector<8x32xf32>
    %479 = arith.index_cast %451 : i32 to index
    %c32_149 = arith.constant 32 : index
    %480 = vector.load %arg20[%479, %c32_149] : memref<64x64xf32, #tpu.memory_space<vmem>>, vector<8x32xf32>
    tpu.vector_store %arg20[%479, %c32_149], %478 {strides = array<i32>} : memref<64x64xf32, #tpu.memory_space<vmem>>, vector<8x32xf32>,
    %c5_i32_150 = arith.constant 5 : i32
    %c7_i32_151 = arith.constant 7 : i32
    %481 = arith.subi %c7_i32_151, %c5_i32_150 : i32
    %c8_i32_152 = arith.constant 8 : i32
    %482 = arith.muli %c5_i32_150, %c8_i32_152 : i32
    %483 = tpu.assume_multiple %482, 8 : i32
    %c8_i32_153 = arith.constant 8 : i32
    %484 = arith.muli %481, %c8_i32_153 : i32
    %485 = tpu.assume_multiple %484, 8 : i32
    %cst_154 = arith.constant dense<0.000000e+00> : vector<8x256xf32>
    %486 = tpu.matmul %474, %308, %cst_154 {dimension_numbers = #tpu.dot_dimension_numbers<[1], [0], [0], [1], [0, 0, 1, 1], [], []>} : vector<8x64xf32>, vector<64x256xf32>, vector<8x256xf32> -> vector<8x256xf32>
    %487 = arith.index_cast %483 : i32 to index
    %c0_155 = arith.constant 0 : index
    %488 = vector.load %arg19[%487, %c0_155] : memref<64x256xf32, #tpu.memory_space<vmem>>, vector<8x256xf32>
    %489 = arith.index_cast %485 : i32 to index
    %c0_156 = arith.constant 0 : index
    %490 = vector.load %arg19[%489, %c0_156] : memref<64x256xf32, #tpu.memory_space<vmem>>, vector<8x256xf32>
    %491 = arith.select %18, %488, %490 : vector<8x256xi1>, vector<8x256xf32>
    %492 = arith.addf %486, %491 : vector<8x256xf32>
    %493 = vector.extract_strided_slice %492 {offsets = [0, 0], sizes = [8, 192], strides = [1, 1]} : vector<8x256xf32> to vector<8x192xf32>
    %494 = arith.negf %493 : vector<8x192xf32>
    %495 = math.exp %494 : vector<8x192xf32>
    %cst_157 = arith.constant 1.000000e+00 : f32
    %496 = vector.broadcast %cst_157 : f32 to vector<8x192xf32>
    %497 = arith.addf %496, %495 : vector<8x192xf32>
    %498 = arith.divf %496, %497 : vector<8x192xf32>
    %499 = vector.extract_strided_slice %492 {offsets = [0, 192], sizes = [8, 64], strides = [1, 1]} : vector<8x256xf32> to vector<8x64xf32>
    %500 = math.tanh %499 : vector<8x64xf32>
    %501 = vector.extract_strided_slice %498 {offsets = [0, 64], sizes = [8, 64], strides = [1, 1]} : vector<8x192xf32> to vector<8x64xf32>
    %502 = arith.mulf %501, %471 : vector<8x64xf32>
    %503 = vector.extract_strided_slice %498 {offsets = [0, 0], sizes = [8, 64], strides = [1, 1]} : vector<8x192xf32> to vector<8x64xf32>
    %504 = arith.mulf %503, %500 : vector<8x64xf32>
    %505 = arith.addf %502, %504 : vector<8x64xf32>
    %506 = vector.extract_strided_slice %498 {offsets = [0, 128], sizes = [8, 64], strides = [1, 1]} : vector<8x192xf32> to vector<8x64xf32>
    %507 = math.tanh %505 : vector<8x64xf32>
    %508 = arith.mulf %506, %507 : vector<8x64xf32>
    %509 = vector.extract_strided_slice %508 {offsets = [0, 0], sizes = [8, 32], strides = [1, 1]} : vector<8x64xf32> to vector<8x32xf32>
    %510 = arith.index_cast %483 : i32 to index
    %c0_158 = arith.constant 0 : index
    %511 = vector.load %arg20[%510, %c0_158] : memref<64x64xf32, #tpu.memory_space<vmem>>, vector<8x32xf32>
    tpu.vector_store %arg20[%510, %c0_158], %509 {strides = array<i32>} : memref<64x64xf32, #tpu.memory_space<vmem>>, vector<8x32xf32>,
    %512 = vector.extract_strided_slice %508 {offsets = [0, 32], sizes = [8, 32], strides = [1, 1]} : vector<8x64xf32> to vector<8x32xf32>
    %513 = arith.index_cast %485 : i32 to index
    %c32_159 = arith.constant 32 : index
    %514 = vector.load %arg20[%513, %c32_159] : memref<64x64xf32, #tpu.memory_space<vmem>>, vector<8x32xf32>
    tpu.vector_store %arg20[%513, %c32_159], %512 {strides = array<i32>} : memref<64x64xf32, #tpu.memory_space<vmem>>, vector<8x32xf32>,
    %c6_i32_160 = arith.constant 6 : i32
    %c7_i32_161 = arith.constant 7 : i32
    %515 = arith.subi %c7_i32_161, %c6_i32_160 : i32
    %c8_i32_162 = arith.constant 8 : i32
    %516 = arith.muli %c6_i32_160, %c8_i32_162 : i32
    %517 = tpu.assume_multiple %516, 8 : i32
    %c8_i32_163 = arith.constant 8 : i32
    %518 = arith.muli %515, %c8_i32_163 : i32
    %519 = tpu.assume_multiple %518, 8 : i32
    %cst_164 = arith.constant dense<0.000000e+00> : vector<8x256xf32>
    %520 = tpu.matmul %508, %308, %cst_164 {dimension_numbers = #tpu.dot_dimension_numbers<[1], [0], [0], [1], [0, 0, 1, 1], [], []>} : vector<8x64xf32>, vector<64x256xf32>, vector<8x256xf32> -> vector<8x256xf32>
    %521 = arith.index_cast %517 : i32 to index
    %c0_165 = arith.constant 0 : index
    %522 = vector.load %arg19[%521, %c0_165] : memref<64x256xf32, #tpu.memory_space<vmem>>, vector<8x256xf32>
    %523 = arith.index_cast %519 : i32 to index
    %c0_166 = arith.constant 0 : index
    %524 = vector.load %arg19[%523, %c0_166] : memref<64x256xf32, #tpu.memory_space<vmem>>, vector<8x256xf32>
    %525 = arith.select %18, %522, %524 : vector<8x256xi1>, vector<8x256xf32>
    %526 = arith.addf %520, %525 : vector<8x256xf32>
    %527 = vector.extract_strided_slice %526 {offsets = [0, 0], sizes = [8, 192], strides = [1, 1]} : vector<8x256xf32> to vector<8x192xf32>
    %528 = arith.negf %527 : vector<8x192xf32>
    %529 = math.exp %528 : vector<8x192xf32>
    %cst_167 = arith.constant 1.000000e+00 : f32
    %530 = vector.broadcast %cst_167 : f32 to vector<8x192xf32>
    %531 = arith.addf %530, %529 : vector<8x192xf32>
    %532 = arith.divf %530, %531 : vector<8x192xf32>
    %533 = vector.extract_strided_slice %526 {offsets = [0, 192], sizes = [8, 64], strides = [1, 1]} : vector<8x256xf32> to vector<8x64xf32>
    %534 = math.tanh %533 : vector<8x64xf32>
    %535 = vector.extract_strided_slice %532 {offsets = [0, 64], sizes = [8, 64], strides = [1, 1]} : vector<8x192xf32> to vector<8x64xf32>
    %536 = arith.mulf %535, %505 : vector<8x64xf32>
    %537 = vector.extract_strided_slice %532 {offsets = [0, 0], sizes = [8, 64], strides = [1, 1]} : vector<8x192xf32> to vector<8x64xf32>
    %538 = arith.mulf %537, %534 : vector<8x64xf32>
    %539 = arith.addf %536, %538 : vector<8x64xf32>
    %540 = vector.extract_strided_slice %532 {offsets = [0, 128], sizes = [8, 64], strides = [1, 1]} : vector<8x192xf32> to vector<8x64xf32>
    %541 = math.tanh %539 : vector<8x64xf32>
    %542 = arith.mulf %540, %541 : vector<8x64xf32>
    %543 = vector.extract_strided_slice %542 {offsets = [0, 0], sizes = [8, 32], strides = [1, 1]} : vector<8x64xf32> to vector<8x32xf32>
    %544 = arith.index_cast %517 : i32 to index
    %c0_168 = arith.constant 0 : index
    %545 = vector.load %arg20[%544, %c0_168] : memref<64x64xf32, #tpu.memory_space<vmem>>, vector<8x32xf32>
    tpu.vector_store %arg20[%544, %c0_168], %543 {strides = array<i32>} : memref<64x64xf32, #tpu.memory_space<vmem>>, vector<8x32xf32>,
    %546 = vector.extract_strided_slice %542 {offsets = [0, 32], sizes = [8, 32], strides = [1, 1]} : vector<8x64xf32> to vector<8x32xf32>
    %547 = arith.index_cast %519 : i32 to index
    %c32_169 = arith.constant 32 : index
    %548 = vector.load %arg20[%547, %c32_169] : memref<64x64xf32, #tpu.memory_space<vmem>>, vector<8x32xf32>
    tpu.vector_store %arg20[%547, %c32_169], %546 {strides = array<i32>} : memref<64x64xf32, #tpu.memory_space<vmem>>, vector<8x32xf32>,
    %c7_i32_170 = arith.constant 7 : i32
    %c7_i32_171 = arith.constant 7 : i32
    %549 = arith.subi %c7_i32_171, %c7_i32_170 : i32
    %c8_i32_172 = arith.constant 8 : i32
    %550 = arith.muli %c7_i32_170, %c8_i32_172 : i32
    %551 = tpu.assume_multiple %550, 8 : i32
    %c8_i32_173 = arith.constant 8 : i32
    %552 = arith.muli %549, %c8_i32_173 : i32
    %553 = tpu.assume_multiple %552, 8 : i32
    %cst_174 = arith.constant dense<0.000000e+00> : vector<8x256xf32>
    %554 = tpu.matmul %542, %308, %cst_174 {dimension_numbers = #tpu.dot_dimension_numbers<[1], [0], [0], [1], [0, 0, 1, 1], [], []>} : vector<8x64xf32>, vector<64x256xf32>, vector<8x256xf32> -> vector<8x256xf32>
    %555 = arith.index_cast %551 : i32 to index
    %c0_175 = arith.constant 0 : index
    %556 = vector.load %arg19[%555, %c0_175] : memref<64x256xf32, #tpu.memory_space<vmem>>, vector<8x256xf32>
    %557 = arith.index_cast %553 : i32 to index
    %c0_176 = arith.constant 0 : index
    %558 = vector.load %arg19[%557, %c0_176] : memref<64x256xf32, #tpu.memory_space<vmem>>, vector<8x256xf32>
    %559 = arith.select %18, %556, %558 : vector<8x256xi1>, vector<8x256xf32>
    %560 = arith.addf %554, %559 : vector<8x256xf32>
    %561 = vector.extract_strided_slice %560 {offsets = [0, 0], sizes = [8, 192], strides = [1, 1]} : vector<8x256xf32> to vector<8x192xf32>
    %562 = arith.negf %561 : vector<8x192xf32>
    %563 = math.exp %562 : vector<8x192xf32>
    %cst_177 = arith.constant 1.000000e+00 : f32
    %564 = vector.broadcast %cst_177 : f32 to vector<8x192xf32>
    %565 = arith.addf %564, %563 : vector<8x192xf32>
    %566 = arith.divf %564, %565 : vector<8x192xf32>
    %567 = vector.extract_strided_slice %560 {offsets = [0, 192], sizes = [8, 64], strides = [1, 1]} : vector<8x256xf32> to vector<8x64xf32>
    %568 = math.tanh %567 : vector<8x64xf32>
    %569 = vector.extract_strided_slice %566 {offsets = [0, 64], sizes = [8, 64], strides = [1, 1]} : vector<8x192xf32> to vector<8x64xf32>
    %570 = arith.mulf %569, %539 : vector<8x64xf32>
    %571 = vector.extract_strided_slice %566 {offsets = [0, 0], sizes = [8, 64], strides = [1, 1]} : vector<8x192xf32> to vector<8x64xf32>
    %572 = arith.mulf %571, %568 : vector<8x64xf32>
    %573 = arith.addf %570, %572 : vector<8x64xf32>
    %574 = vector.extract_strided_slice %566 {offsets = [0, 128], sizes = [8, 64], strides = [1, 1]} : vector<8x192xf32> to vector<8x64xf32>
    %575 = math.tanh %573 : vector<8x64xf32>
    %576 = arith.mulf %574, %575 : vector<8x64xf32>
    %577 = vector.extract_strided_slice %576 {offsets = [0, 0], sizes = [8, 32], strides = [1, 1]} : vector<8x64xf32> to vector<8x32xf32>
    %578 = arith.index_cast %551 : i32 to index
    %c0_178 = arith.constant 0 : index
    %579 = vector.load %arg20[%578, %c0_178] : memref<64x64xf32, #tpu.memory_space<vmem>>, vector<8x32xf32>
    tpu.vector_store %arg20[%578, %c0_178], %577 {strides = array<i32>} : memref<64x64xf32, #tpu.memory_space<vmem>>, vector<8x32xf32>,
    %580 = vector.extract_strided_slice %576 {offsets = [0, 32], sizes = [8, 32], strides = [1, 1]} : vector<8x64xf32> to vector<8x32xf32>
    %581 = arith.index_cast %553 : i32 to index
    %c32_179 = arith.constant 32 : index
    %582 = vector.load %arg20[%581, %c32_179] : memref<64x64xf32, #tpu.memory_space<vmem>>, vector<8x32xf32>
    tpu.vector_store %arg20[%581, %c32_179], %580 {strides = array<i32>} : memref<64x64xf32, #tpu.memory_space<vmem>>, vector<8x32xf32>,
    %c8_i32_180 = arith.constant 8 : i32
    %c0_181 = arith.constant 0 : index
    %c0_182 = arith.constant 0 : index
    %583 = vector.load %arg20[%c0_181, %c0_182] : memref<64x64xf32, #tpu.memory_space<vmem>>, vector<64x64xf32>
    %c0_183 = arith.constant 0 : index
    %c0_184 = arith.constant 0 : index
    %584 = vector.load %arg8[%c0_183, %c0_184] : memref<64x256xf32, #tpu.memory_space<vmem>>, vector<64x256xf32>
    %cst_185 = arith.constant dense<0.000000e+00> : vector<64x256xf32>
    %585 = tpu.matmul %583, %584, %cst_185 {dimension_numbers = #tpu.dot_dimension_numbers<[1], [0], [0], [1], [0, 0, 1, 1], [], []>} : vector<64x64xf32>, vector<64x256xf32>, vector<64x256xf32> -> vector<64x256xf32>
    %c0_186 = arith.constant 0 : index
    %c0_187 = arith.constant 0 : index
    %586 = vector.load %arg10[%c0_186, %c0_187] : memref<1x256xf32, #tpu.memory_space<vmem>>, vector<1x256xf32>
    %587 = vector.broadcast %586 : vector<1x256xf32> to vector<64x256xf32>
    %588 = arith.addf %585, %587 : vector<64x256xf32>
    %c0_188 = arith.constant 0 : index
    %c0_189 = arith.constant 0 : index
    %589 = vector.load %arg19[%c0_188, %c0_189] : memref<64x256xf32, #tpu.memory_space<vmem>>, vector<64x256xf32>
    tpu.vector_store %arg19[%c0_188, %c0_189], %588 {strides = array<i32>} : memref<64x256xf32, #tpu.memory_space<vmem>>, vector<64x256xf32>,
    %c0_190 = arith.constant 0 : index
    %c0_191 = arith.constant 0 : index
    %590 = vector.load %arg9[%c0_190, %c0_191] : memref<64x256xf32, #tpu.memory_space<vmem>>, vector<64x256xf32>
    %cst_192 = arith.constant 0.000000e+00 : f32
    %591 = vector.broadcast %cst_192 : f32 to vector<8x64xf32>
    %cst_193 = arith.constant 0.000000e+00 : f32
    %592 = vector.broadcast %cst_193 : f32 to vector<8x64xf32>
    %c0_i32_194 = arith.constant 0 : i32
    %c7_i32_195 = arith.constant 7 : i32
    %593 = arith.subi %c7_i32_195, %c0_i32_194 : i32
    %c8_i32_196 = arith.constant 8 : i32
    %594 = arith.muli %c0_i32_194, %c8_i32_196 : i32
    %595 = tpu.assume_multiple %594, 8 : i32
    %c8_i32_197 = arith.constant 8 : i32
    %596 = arith.muli %593, %c8_i32_197 : i32
    %597 = tpu.assume_multiple %596, 8 : i32
    %cst_198 = arith.constant dense<0.000000e+00> : vector<8x256xf32>
    %598 = tpu.matmul %591, %590, %cst_198 {dimension_numbers = #tpu.dot_dimension_numbers<[1], [0], [0], [1], [0, 0, 1, 1], [], []>} : vector<8x64xf32>, vector<64x256xf32>, vector<8x256xf32> -> vector<8x256xf32>
    %599 = arith.index_cast %595 : i32 to index
    %c0_199 = arith.constant 0 : index
    %600 = vector.load %arg19[%599, %c0_199] : memref<64x256xf32, #tpu.memory_space<vmem>>, vector<8x256xf32>
    %601 = arith.index_cast %597 : i32 to index
    %c0_200 = arith.constant 0 : index
    %602 = vector.load %arg19[%601, %c0_200] : memref<64x256xf32, #tpu.memory_space<vmem>>, vector<8x256xf32>
    %603 = arith.select %18, %600, %602 : vector<8x256xi1>, vector<8x256xf32>
    %604 = arith.addf %598, %603 : vector<8x256xf32>
    %605 = vector.extract_strided_slice %604 {offsets = [0, 0], sizes = [8, 192], strides = [1, 1]} : vector<8x256xf32> to vector<8x192xf32>
    %606 = arith.negf %605 : vector<8x192xf32>
    %607 = math.exp %606 : vector<8x192xf32>
    %cst_201 = arith.constant 1.000000e+00 : f32
    %608 = vector.broadcast %cst_201 : f32 to vector<8x192xf32>
    %609 = arith.addf %608, %607 : vector<8x192xf32>
    %610 = arith.divf %608, %609 : vector<8x192xf32>
    %611 = vector.extract_strided_slice %604 {offsets = [0, 192], sizes = [8, 64], strides = [1, 1]} : vector<8x256xf32> to vector<8x64xf32>
    %612 = math.tanh %611 : vector<8x64xf32>
    %613 = vector.extract_strided_slice %610 {offsets = [0, 64], sizes = [8, 64], strides = [1, 1]} : vector<8x192xf32> to vector<8x64xf32>
    %614 = arith.mulf %613, %592 : vector<8x64xf32>
    %615 = vector.extract_strided_slice %610 {offsets = [0, 0], sizes = [8, 64], strides = [1, 1]} : vector<8x192xf32> to vector<8x64xf32>
    %616 = arith.mulf %615, %612 : vector<8x64xf32>
    %617 = arith.addf %614, %616 : vector<8x64xf32>
    %618 = vector.extract_strided_slice %610 {offsets = [0, 128], sizes = [8, 64], strides = [1, 1]} : vector<8x192xf32> to vector<8x64xf32>
    %619 = math.tanh %617 : vector<8x64xf32>
    %620 = arith.mulf %618, %619 : vector<8x64xf32>
    %621 = vector.extract_strided_slice %620 {offsets = [0, 0], sizes = [8, 32], strides = [1, 1]} : vector<8x64xf32> to vector<8x32xf32>
    %622 = arith.index_cast %595 : i32 to index
    %c0_202 = arith.constant 0 : index
    %623 = vector.load %arg20[%622, %c0_202] : memref<64x64xf32, #tpu.memory_space<vmem>>, vector<8x32xf32>
    tpu.vector_store %arg20[%622, %c0_202], %621 {strides = array<i32>} : memref<64x64xf32, #tpu.memory_space<vmem>>, vector<8x32xf32>,
    %624 = vector.extract_strided_slice %620 {offsets = [0, 32], sizes = [8, 32], strides = [1, 1]} : vector<8x64xf32> to vector<8x32xf32>
    %625 = arith.index_cast %597 : i32 to index
    %c32_203 = arith.constant 32 : index
    %626 = vector.load %arg20[%625, %c32_203] : memref<64x64xf32, #tpu.memory_space<vmem>>, vector<8x32xf32>
    tpu.vector_store %arg20[%625, %c32_203], %624 {strides = array<i32>} : memref<64x64xf32, #tpu.memory_space<vmem>>, vector<8x32xf32>,
    %c1_i32_204 = arith.constant 1 : i32
    %c7_i32_205 = arith.constant 7 : i32
    %627 = arith.subi %c7_i32_205, %c1_i32_204 : i32
    %c8_i32_206 = arith.constant 8 : i32
    %628 = arith.muli %c1_i32_204, %c8_i32_206 : i32
    %629 = tpu.assume_multiple %628, 8 : i32
    %c8_i32_207 = arith.constant 8 : i32
    %630 = arith.muli %627, %c8_i32_207 : i32
    %631 = tpu.assume_multiple %630, 8 : i32
    %cst_208 = arith.constant dense<0.000000e+00> : vector<8x256xf32>
    %632 = tpu.matmul %620, %590, %cst_208 {dimension_numbers = #tpu.dot_dimension_numbers<[1], [0], [0], [1], [0, 0, 1, 1], [], []>} : vector<8x64xf32>, vector<64x256xf32>, vector<8x256xf32> -> vector<8x256xf32>
    %633 = arith.index_cast %629 : i32 to index
    %c0_209 = arith.constant 0 : index
    %634 = vector.load %arg19[%633, %c0_209] : memref<64x256xf32, #tpu.memory_space<vmem>>, vector<8x256xf32>
    %635 = arith.index_cast %631 : i32 to index
    %c0_210 = arith.constant 0 : index
    %636 = vector.load %arg19[%635, %c0_210] : memref<64x256xf32, #tpu.memory_space<vmem>>, vector<8x256xf32>
    %637 = arith.select %18, %634, %636 : vector<8x256xi1>, vector<8x256xf32>
    %638 = arith.addf %632, %637 : vector<8x256xf32>
    %639 = vector.extract_strided_slice %638 {offsets = [0, 0], sizes = [8, 192], strides = [1, 1]} : vector<8x256xf32> to vector<8x192xf32>
    %640 = arith.negf %639 : vector<8x192xf32>
    %641 = math.exp %640 : vector<8x192xf32>
    %cst_211 = arith.constant 1.000000e+00 : f32
    %642 = vector.broadcast %cst_211 : f32 to vector<8x192xf32>
    %643 = arith.addf %642, %641 : vector<8x192xf32>
    %644 = arith.divf %642, %643 : vector<8x192xf32>
    %645 = vector.extract_strided_slice %638 {offsets = [0, 192], sizes = [8, 64], strides = [1, 1]} : vector<8x256xf32> to vector<8x64xf32>
    %646 = math.tanh %645 : vector<8x64xf32>
    %647 = vector.extract_strided_slice %644 {offsets = [0, 64], sizes = [8, 64], strides = [1, 1]} : vector<8x192xf32> to vector<8x64xf32>
    %648 = arith.mulf %647, %617 : vector<8x64xf32>
    %649 = vector.extract_strided_slice %644 {offsets = [0, 0], sizes = [8, 64], strides = [1, 1]} : vector<8x192xf32> to vector<8x64xf32>
    %650 = arith.mulf %649, %646 : vector<8x64xf32>
    %651 = arith.addf %648, %650 : vector<8x64xf32>
    %652 = vector.extract_strided_slice %644 {offsets = [0, 128], sizes = [8, 64], strides = [1, 1]} : vector<8x192xf32> to vector<8x64xf32>
    %653 = math.tanh %651 : vector<8x64xf32>
    %654 = arith.mulf %652, %653 : vector<8x64xf32>
    %655 = vector.extract_strided_slice %654 {offsets = [0, 0], sizes = [8, 32], strides = [1, 1]} : vector<8x64xf32> to vector<8x32xf32>
    %656 = arith.index_cast %629 : i32 to index
    %c0_212 = arith.constant 0 : index
    %657 = vector.load %arg20[%656, %c0_212] : memref<64x64xf32, #tpu.memory_space<vmem>>, vector<8x32xf32>
    tpu.vector_store %arg20[%656, %c0_212], %655 {strides = array<i32>} : memref<64x64xf32, #tpu.memory_space<vmem>>, vector<8x32xf32>,
    %658 = vector.extract_strided_slice %654 {offsets = [0, 32], sizes = [8, 32], strides = [1, 1]} : vector<8x64xf32> to vector<8x32xf32>
    %659 = arith.index_cast %631 : i32 to index
    %c32_213 = arith.constant 32 : index
    %660 = vector.load %arg20[%659, %c32_213] : memref<64x64xf32, #tpu.memory_space<vmem>>, vector<8x32xf32>
    tpu.vector_store %arg20[%659, %c32_213], %658 {strides = array<i32>} : memref<64x64xf32, #tpu.memory_space<vmem>>, vector<8x32xf32>,
    %c2_i32_214 = arith.constant 2 : i32
    %c7_i32_215 = arith.constant 7 : i32
    %661 = arith.subi %c7_i32_215, %c2_i32_214 : i32
    %c8_i32_216 = arith.constant 8 : i32
    %662 = arith.muli %c2_i32_214, %c8_i32_216 : i32
    %663 = tpu.assume_multiple %662, 8 : i32
    %c8_i32_217 = arith.constant 8 : i32
    %664 = arith.muli %661, %c8_i32_217 : i32
    %665 = tpu.assume_multiple %664, 8 : i32
    %cst_218 = arith.constant dense<0.000000e+00> : vector<8x256xf32>
    %666 = tpu.matmul %654, %590, %cst_218 {dimension_numbers = #tpu.dot_dimension_numbers<[1], [0], [0], [1], [0, 0, 1, 1], [], []>} : vector<8x64xf32>, vector<64x256xf32>, vector<8x256xf32> -> vector<8x256xf32>
    %667 = arith.index_cast %663 : i32 to index
    %c0_219 = arith.constant 0 : index
    %668 = vector.load %arg19[%667, %c0_219] : memref<64x256xf32, #tpu.memory_space<vmem>>, vector<8x256xf32>
    %669 = arith.index_cast %665 : i32 to index
    %c0_220 = arith.constant 0 : index
    %670 = vector.load %arg19[%669, %c0_220] : memref<64x256xf32, #tpu.memory_space<vmem>>, vector<8x256xf32>
    %671 = arith.select %18, %668, %670 : vector<8x256xi1>, vector<8x256xf32>
    %672 = arith.addf %666, %671 : vector<8x256xf32>
    %673 = vector.extract_strided_slice %672 {offsets = [0, 0], sizes = [8, 192], strides = [1, 1]} : vector<8x256xf32> to vector<8x192xf32>
    %674 = arith.negf %673 : vector<8x192xf32>
    %675 = math.exp %674 : vector<8x192xf32>
    %cst_221 = arith.constant 1.000000e+00 : f32
    %676 = vector.broadcast %cst_221 : f32 to vector<8x192xf32>
    %677 = arith.addf %676, %675 : vector<8x192xf32>
    %678 = arith.divf %676, %677 : vector<8x192xf32>
    %679 = vector.extract_strided_slice %672 {offsets = [0, 192], sizes = [8, 64], strides = [1, 1]} : vector<8x256xf32> to vector<8x64xf32>
    %680 = math.tanh %679 : vector<8x64xf32>
    %681 = vector.extract_strided_slice %678 {offsets = [0, 64], sizes = [8, 64], strides = [1, 1]} : vector<8x192xf32> to vector<8x64xf32>
    %682 = arith.mulf %681, %651 : vector<8x64xf32>
    %683 = vector.extract_strided_slice %678 {offsets = [0, 0], sizes = [8, 64], strides = [1, 1]} : vector<8x192xf32> to vector<8x64xf32>
    %684 = arith.mulf %683, %680 : vector<8x64xf32>
    %685 = arith.addf %682, %684 : vector<8x64xf32>
    %686 = vector.extract_strided_slice %678 {offsets = [0, 128], sizes = [8, 64], strides = [1, 1]} : vector<8x192xf32> to vector<8x64xf32>
    %687 = math.tanh %685 : vector<8x64xf32>
    %688 = arith.mulf %686, %687 : vector<8x64xf32>
    %689 = vector.extract_strided_slice %688 {offsets = [0, 0], sizes = [8, 32], strides = [1, 1]} : vector<8x64xf32> to vector<8x32xf32>
    %690 = arith.index_cast %663 : i32 to index
    %c0_222 = arith.constant 0 : index
    %691 = vector.load %arg20[%690, %c0_222] : memref<64x64xf32, #tpu.memory_space<vmem>>, vector<8x32xf32>
    tpu.vector_store %arg20[%690, %c0_222], %689 {strides = array<i32>} : memref<64x64xf32, #tpu.memory_space<vmem>>, vector<8x32xf32>,
    %692 = vector.extract_strided_slice %688 {offsets = [0, 32], sizes = [8, 32], strides = [1, 1]} : vector<8x64xf32> to vector<8x32xf32>
    %693 = arith.index_cast %665 : i32 to index
    %c32_223 = arith.constant 32 : index
    %694 = vector.load %arg20[%693, %c32_223] : memref<64x64xf32, #tpu.memory_space<vmem>>, vector<8x32xf32>
    tpu.vector_store %arg20[%693, %c32_223], %692 {strides = array<i32>} : memref<64x64xf32, #tpu.memory_space<vmem>>, vector<8x32xf32>,
    %c3_i32_224 = arith.constant 3 : i32
    %c7_i32_225 = arith.constant 7 : i32
    %695 = arith.subi %c7_i32_225, %c3_i32_224 : i32
    %c8_i32_226 = arith.constant 8 : i32
    %696 = arith.muli %c3_i32_224, %c8_i32_226 : i32
    %697 = tpu.assume_multiple %696, 8 : i32
    %c8_i32_227 = arith.constant 8 : i32
    %698 = arith.muli %695, %c8_i32_227 : i32
    %699 = tpu.assume_multiple %698, 8 : i32
    %cst_228 = arith.constant dense<0.000000e+00> : vector<8x256xf32>
    %700 = tpu.matmul %688, %590, %cst_228 {dimension_numbers = #tpu.dot_dimension_numbers<[1], [0], [0], [1], [0, 0, 1, 1], [], []>} : vector<8x64xf32>, vector<64x256xf32>, vector<8x256xf32> -> vector<8x256xf32>
    %701 = arith.index_cast %697 : i32 to index
    %c0_229 = arith.constant 0 : index
    %702 = vector.load %arg19[%701, %c0_229] : memref<64x256xf32, #tpu.memory_space<vmem>>, vector<8x256xf32>
    %703 = arith.index_cast %699 : i32 to index
    %c0_230 = arith.constant 0 : index
    %704 = vector.load %arg19[%703, %c0_230] : memref<64x256xf32, #tpu.memory_space<vmem>>, vector<8x256xf32>
    %705 = arith.select %18, %702, %704 : vector<8x256xi1>, vector<8x256xf32>
    %706 = arith.addf %700, %705 : vector<8x256xf32>
    %707 = vector.extract_strided_slice %706 {offsets = [0, 0], sizes = [8, 192], strides = [1, 1]} : vector<8x256xf32> to vector<8x192xf32>
    %708 = arith.negf %707 : vector<8x192xf32>
    %709 = math.exp %708 : vector<8x192xf32>
    %cst_231 = arith.constant 1.000000e+00 : f32
    %710 = vector.broadcast %cst_231 : f32 to vector<8x192xf32>
    %711 = arith.addf %710, %709 : vector<8x192xf32>
    %712 = arith.divf %710, %711 : vector<8x192xf32>
    %713 = vector.extract_strided_slice %706 {offsets = [0, 192], sizes = [8, 64], strides = [1, 1]} : vector<8x256xf32> to vector<8x64xf32>
    %714 = math.tanh %713 : vector<8x64xf32>
    %715 = vector.extract_strided_slice %712 {offsets = [0, 64], sizes = [8, 64], strides = [1, 1]} : vector<8x192xf32> to vector<8x64xf32>
    %716 = arith.mulf %715, %685 : vector<8x64xf32>
    %717 = vector.extract_strided_slice %712 {offsets = [0, 0], sizes = [8, 64], strides = [1, 1]} : vector<8x192xf32> to vector<8x64xf32>
    %718 = arith.mulf %717, %714 : vector<8x64xf32>
    %719 = arith.addf %716, %718 : vector<8x64xf32>
    %720 = vector.extract_strided_slice %712 {offsets = [0, 128], sizes = [8, 64], strides = [1, 1]} : vector<8x192xf32> to vector<8x64xf32>
    %721 = math.tanh %719 : vector<8x64xf32>
    %722 = arith.mulf %720, %721 : vector<8x64xf32>
    %723 = vector.extract_strided_slice %722 {offsets = [0, 0], sizes = [8, 32], strides = [1, 1]} : vector<8x64xf32> to vector<8x32xf32>
    %724 = arith.index_cast %697 : i32 to index
    %c0_232 = arith.constant 0 : index
    %725 = vector.load %arg20[%724, %c0_232] : memref<64x64xf32, #tpu.memory_space<vmem>>, vector<8x32xf32>
    tpu.vector_store %arg20[%724, %c0_232], %723 {strides = array<i32>} : memref<64x64xf32, #tpu.memory_space<vmem>>, vector<8x32xf32>,
    %726 = vector.extract_strided_slice %722 {offsets = [0, 32], sizes = [8, 32], strides = [1, 1]} : vector<8x64xf32> to vector<8x32xf32>
    %727 = arith.index_cast %699 : i32 to index
    %c32_233 = arith.constant 32 : index
    %728 = vector.load %arg20[%727, %c32_233] : memref<64x64xf32, #tpu.memory_space<vmem>>, vector<8x32xf32>
    tpu.vector_store %arg20[%727, %c32_233], %726 {strides = array<i32>} : memref<64x64xf32, #tpu.memory_space<vmem>>, vector<8x32xf32>,
    %c4_i32_234 = arith.constant 4 : i32
    %c7_i32_235 = arith.constant 7 : i32
    %729 = arith.subi %c7_i32_235, %c4_i32_234 : i32
    %c8_i32_236 = arith.constant 8 : i32
    %730 = arith.muli %c4_i32_234, %c8_i32_236 : i32
    %731 = tpu.assume_multiple %730, 8 : i32
    %c8_i32_237 = arith.constant 8 : i32
    %732 = arith.muli %729, %c8_i32_237 : i32
    %733 = tpu.assume_multiple %732, 8 : i32
    %cst_238 = arith.constant dense<0.000000e+00> : vector<8x256xf32>
    %734 = tpu.matmul %722, %590, %cst_238 {dimension_numbers = #tpu.dot_dimension_numbers<[1], [0], [0], [1], [0, 0, 1, 1], [], []>} : vector<8x64xf32>, vector<64x256xf32>, vector<8x256xf32> -> vector<8x256xf32>
    %735 = arith.index_cast %731 : i32 to index
    %c0_239 = arith.constant 0 : index
    %736 = vector.load %arg19[%735, %c0_239] : memref<64x256xf32, #tpu.memory_space<vmem>>, vector<8x256xf32>
    %737 = arith.index_cast %733 : i32 to index
    %c0_240 = arith.constant 0 : index
    %738 = vector.load %arg19[%737, %c0_240] : memref<64x256xf32, #tpu.memory_space<vmem>>, vector<8x256xf32>
    %739 = arith.select %18, %736, %738 : vector<8x256xi1>, vector<8x256xf32>
    %740 = arith.addf %734, %739 : vector<8x256xf32>
    %741 = vector.extract_strided_slice %740 {offsets = [0, 0], sizes = [8, 192], strides = [1, 1]} : vector<8x256xf32> to vector<8x192xf32>
    %742 = arith.negf %741 : vector<8x192xf32>
    %743 = math.exp %742 : vector<8x192xf32>
    %cst_241 = arith.constant 1.000000e+00 : f32
    %744 = vector.broadcast %cst_241 : f32 to vector<8x192xf32>
    %745 = arith.addf %744, %743 : vector<8x192xf32>
    %746 = arith.divf %744, %745 : vector<8x192xf32>
    %747 = vector.extract_strided_slice %740 {offsets = [0, 192], sizes = [8, 64], strides = [1, 1]} : vector<8x256xf32> to vector<8x64xf32>
    %748 = math.tanh %747 : vector<8x64xf32>
    %749 = vector.extract_strided_slice %746 {offsets = [0, 64], sizes = [8, 64], strides = [1, 1]} : vector<8x192xf32> to vector<8x64xf32>
    %750 = arith.mulf %749, %719 : vector<8x64xf32>
    %751 = vector.extract_strided_slice %746 {offsets = [0, 0], sizes = [8, 64], strides = [1, 1]} : vector<8x192xf32> to vector<8x64xf32>
    %752 = arith.mulf %751, %748 : vector<8x64xf32>
    %753 = arith.addf %750, %752 : vector<8x64xf32>
    %754 = vector.extract_strided_slice %746 {offsets = [0, 128], sizes = [8, 64], strides = [1, 1]} : vector<8x192xf32> to vector<8x64xf32>
    %755 = math.tanh %753 : vector<8x64xf32>
    %756 = arith.mulf %754, %755 : vector<8x64xf32>
    %757 = vector.extract_strided_slice %756 {offsets = [0, 0], sizes = [8, 32], strides = [1, 1]} : vector<8x64xf32> to vector<8x32xf32>
    %758 = arith.index_cast %731 : i32 to index
    %c0_242 = arith.constant 0 : index
    %759 = vector.load %arg20[%758, %c0_242] : memref<64x64xf32, #tpu.memory_space<vmem>>, vector<8x32xf32>
    tpu.vector_store %arg20[%758, %c0_242], %757 {strides = array<i32>} : memref<64x64xf32, #tpu.memory_space<vmem>>, vector<8x32xf32>,
    %760 = vector.extract_strided_slice %756 {offsets = [0, 32], sizes = [8, 32], strides = [1, 1]} : vector<8x64xf32> to vector<8x32xf32>
    %761 = arith.index_cast %733 : i32 to index
    %c32_243 = arith.constant 32 : index
    %762 = vector.load %arg20[%761, %c32_243] : memref<64x64xf32, #tpu.memory_space<vmem>>, vector<8x32xf32>
    tpu.vector_store %arg20[%761, %c32_243], %760 {strides = array<i32>} : memref<64x64xf32, #tpu.memory_space<vmem>>, vector<8x32xf32>,
    %c5_i32_244 = arith.constant 5 : i32
    %c7_i32_245 = arith.constant 7 : i32
    %763 = arith.subi %c7_i32_245, %c5_i32_244 : i32
    %c8_i32_246 = arith.constant 8 : i32
    %764 = arith.muli %c5_i32_244, %c8_i32_246 : i32
    %765 = tpu.assume_multiple %764, 8 : i32
    %c8_i32_247 = arith.constant 8 : i32
    %766 = arith.muli %763, %c8_i32_247 : i32
    %767 = tpu.assume_multiple %766, 8 : i32
    %cst_248 = arith.constant dense<0.000000e+00> : vector<8x256xf32>
    %768 = tpu.matmul %756, %590, %cst_248 {dimension_numbers = #tpu.dot_dimension_numbers<[1], [0], [0], [1], [0, 0, 1, 1], [], []>} : vector<8x64xf32>, vector<64x256xf32>, vector<8x256xf32> -> vector<8x256xf32>
    %769 = arith.index_cast %765 : i32 to index
    %c0_249 = arith.constant 0 : index
    %770 = vector.load %arg19[%769, %c0_249] : memref<64x256xf32, #tpu.memory_space<vmem>>, vector<8x256xf32>
    %771 = arith.index_cast %767 : i32 to index
    %c0_250 = arith.constant 0 : index
    %772 = vector.load %arg19[%771, %c0_250] : memref<64x256xf32, #tpu.memory_space<vmem>>, vector<8x256xf32>
    %773 = arith.select %18, %770, %772 : vector<8x256xi1>, vector<8x256xf32>
    %774 = arith.addf %768, %773 : vector<8x256xf32>
    %775 = vector.extract_strided_slice %774 {offsets = [0, 0], sizes = [8, 192], strides = [1, 1]} : vector<8x256xf32> to vector<8x192xf32>
    %776 = arith.negf %775 : vector<8x192xf32>
    %777 = math.exp %776 : vector<8x192xf32>
    %cst_251 = arith.constant 1.000000e+00 : f32
    %778 = vector.broadcast %cst_251 : f32 to vector<8x192xf32>
    %779 = arith.addf %778, %777 : vector<8x192xf32>
    %780 = arith.divf %778, %779 : vector<8x192xf32>
    %781 = vector.extract_strided_slice %774 {offsets = [0, 192], sizes = [8, 64], strides = [1, 1]} : vector<8x256xf32> to vector<8x64xf32>
    %782 = math.tanh %781 : vector<8x64xf32>
    %783 = vector.extract_strided_slice %780 {offsets = [0, 64], sizes = [8, 64], strides = [1, 1]} : vector<8x192xf32> to vector<8x64xf32>
    %784 = arith.mulf %783, %753 : vector<8x64xf32>
    %785 = vector.extract_strided_slice %780 {offsets = [0, 0], sizes = [8, 64], strides = [1, 1]} : vector<8x192xf32> to vector<8x64xf32>
    %786 = arith.mulf %785, %782 : vector<8x64xf32>
    %787 = arith.addf %784, %786 : vector<8x64xf32>
    %788 = vector.extract_strided_slice %780 {offsets = [0, 128], sizes = [8, 64], strides = [1, 1]} : vector<8x192xf32> to vector<8x64xf32>
    %789 = math.tanh %787 : vector<8x64xf32>
    %790 = arith.mulf %788, %789 : vector<8x64xf32>
    %791 = vector.extract_strided_slice %790 {offsets = [0, 0], sizes = [8, 32], strides = [1, 1]} : vector<8x64xf32> to vector<8x32xf32>
    %792 = arith.index_cast %765 : i32 to index
    %c0_252 = arith.constant 0 : index
    %793 = vector.load %arg20[%792, %c0_252] : memref<64x64xf32, #tpu.memory_space<vmem>>, vector<8x32xf32>
    tpu.vector_store %arg20[%792, %c0_252], %791 {strides = array<i32>} : memref<64x64xf32, #tpu.memory_space<vmem>>, vector<8x32xf32>,
    %794 = vector.extract_strided_slice %790 {offsets = [0, 32], sizes = [8, 32], strides = [1, 1]} : vector<8x64xf32> to vector<8x32xf32>
    %795 = arith.index_cast %767 : i32 to index
    %c32_253 = arith.constant 32 : index
    %796 = vector.load %arg20[%795, %c32_253] : memref<64x64xf32, #tpu.memory_space<vmem>>, vector<8x32xf32>
    tpu.vector_store %arg20[%795, %c32_253], %794 {strides = array<i32>} : memref<64x64xf32, #tpu.memory_space<vmem>>, vector<8x32xf32>,
    %c6_i32_254 = arith.constant 6 : i32
    %c7_i32_255 = arith.constant 7 : i32
    %797 = arith.subi %c7_i32_255, %c6_i32_254 : i32
    %c8_i32_256 = arith.constant 8 : i32
    %798 = arith.muli %c6_i32_254, %c8_i32_256 : i32
    %799 = tpu.assume_multiple %798, 8 : i32
    %c8_i32_257 = arith.constant 8 : i32
    %800 = arith.muli %797, %c8_i32_257 : i32
    %801 = tpu.assume_multiple %800, 8 : i32
    %cst_258 = arith.constant dense<0.000000e+00> : vector<8x256xf32>
    %802 = tpu.matmul %790, %590, %cst_258 {dimension_numbers = #tpu.dot_dimension_numbers<[1], [0], [0], [1], [0, 0, 1, 1], [], []>} : vector<8x64xf32>, vector<64x256xf32>, vector<8x256xf32> -> vector<8x256xf32>
    %803 = arith.index_cast %799 : i32 to index
    %c0_259 = arith.constant 0 : index
    %804 = vector.load %arg19[%803, %c0_259] : memref<64x256xf32, #tpu.memory_space<vmem>>, vector<8x256xf32>
    %805 = arith.index_cast %801 : i32 to index
    %c0_260 = arith.constant 0 : index
    %806 = vector.load %arg19[%805, %c0_260] : memref<64x256xf32, #tpu.memory_space<vmem>>, vector<8x256xf32>
    %807 = arith.select %18, %804, %806 : vector<8x256xi1>, vector<8x256xf32>
    %808 = arith.addf %802, %807 : vector<8x256xf32>
    %809 = vector.extract_strided_slice %808 {offsets = [0, 0], sizes = [8, 192], strides = [1, 1]} : vector<8x256xf32> to vector<8x192xf32>
    %810 = arith.negf %809 : vector<8x192xf32>
    %811 = math.exp %810 : vector<8x192xf32>
    %cst_261 = arith.constant 1.000000e+00 : f32
    %812 = vector.broadcast %cst_261 : f32 to vector<8x192xf32>
    %813 = arith.addf %812, %811 : vector<8x192xf32>
    %814 = arith.divf %812, %813 : vector<8x192xf32>
    %815 = vector.extract_strided_slice %808 {offsets = [0, 192], sizes = [8, 64], strides = [1, 1]} : vector<8x256xf32> to vector<8x64xf32>
    %816 = math.tanh %815 : vector<8x64xf32>
    %817 = vector.extract_strided_slice %814 {offsets = [0, 64], sizes = [8, 64], strides = [1, 1]} : vector<8x192xf32> to vector<8x64xf32>
    %818 = arith.mulf %817, %787 : vector<8x64xf32>
    %819 = vector.extract_strided_slice %814 {offsets = [0, 0], sizes = [8, 64], strides = [1, 1]} : vector<8x192xf32> to vector<8x64xf32>
    %820 = arith.mulf %819, %816 : vector<8x64xf32>
    %821 = arith.addf %818, %820 : vector<8x64xf32>
    %822 = vector.extract_strided_slice %814 {offsets = [0, 128], sizes = [8, 64], strides = [1, 1]} : vector<8x192xf32> to vector<8x64xf32>
    %823 = math.tanh %821 : vector<8x64xf32>
    %824 = arith.mulf %822, %823 : vector<8x64xf32>
    %825 = vector.extract_strided_slice %824 {offsets = [0, 0], sizes = [8, 32], strides = [1, 1]} : vector<8x64xf32> to vector<8x32xf32>
    %826 = arith.index_cast %799 : i32 to index
    %c0_262 = arith.constant 0 : index
    %827 = vector.load %arg20[%826, %c0_262] : memref<64x64xf32, #tpu.memory_space<vmem>>, vector<8x32xf32>
    tpu.vector_store %arg20[%826, %c0_262], %825 {strides = array<i32>} : memref<64x64xf32, #tpu.memory_space<vmem>>, vector<8x32xf32>,
    %828 = vector.extract_strided_slice %824 {offsets = [0, 32], sizes = [8, 32], strides = [1, 1]} : vector<8x64xf32> to vector<8x32xf32>
    %829 = arith.index_cast %801 : i32 to index
    %c32_263 = arith.constant 32 : index
    %830 = vector.load %arg20[%829, %c32_263] : memref<64x64xf32, #tpu.memory_space<vmem>>, vector<8x32xf32>
    tpu.vector_store %arg20[%829, %c32_263], %828 {strides = array<i32>} : memref<64x64xf32, #tpu.memory_space<vmem>>, vector<8x32xf32>,
    %c7_i32_264 = arith.constant 7 : i32
    %c7_i32_265 = arith.constant 7 : i32
    %831 = arith.subi %c7_i32_265, %c7_i32_264 : i32
    %c8_i32_266 = arith.constant 8 : i32
    %832 = arith.muli %c7_i32_264, %c8_i32_266 : i32
    %833 = tpu.assume_multiple %832, 8 : i32
    %c8_i32_267 = arith.constant 8 : i32
    %834 = arith.muli %831, %c8_i32_267 : i32
    %835 = tpu.assume_multiple %834, 8 : i32
    %cst_268 = arith.constant dense<0.000000e+00> : vector<8x256xf32>
    %836 = tpu.matmul %824, %590, %cst_268 {dimension_numbers = #tpu.dot_dimension_numbers<[1], [0], [0], [1], [0, 0, 1, 1], [], []>} : vector<8x64xf32>, vector<64x256xf32>, vector<8x256xf32> -> vector<8x256xf32>
    %837 = arith.index_cast %833 : i32 to index
    %c0_269 = arith.constant 0 : index
    %838 = vector.load %arg19[%837, %c0_269] : memref<64x256xf32, #tpu.memory_space<vmem>>, vector<8x256xf32>
    %839 = arith.index_cast %835 : i32 to index
    %c0_270 = arith.constant 0 : index
    %840 = vector.load %arg19[%839, %c0_270] : memref<64x256xf32, #tpu.memory_space<vmem>>, vector<8x256xf32>
    %841 = arith.select %18, %838, %840 : vector<8x256xi1>, vector<8x256xf32>
    %842 = arith.addf %836, %841 : vector<8x256xf32>
    %843 = vector.extract_strided_slice %842 {offsets = [0, 0], sizes = [8, 192], strides = [1, 1]} : vector<8x256xf32> to vector<8x192xf32>
    %844 = arith.negf %843 : vector<8x192xf32>
    %845 = math.exp %844 : vector<8x192xf32>
    %cst_271 = arith.constant 1.000000e+00 : f32
    %846 = vector.broadcast %cst_271 : f32 to vector<8x192xf32>
    %847 = arith.addf %846, %845 : vector<8x192xf32>
    %848 = arith.divf %846, %847 : vector<8x192xf32>
    %849 = vector.extract_strided_slice %842 {offsets = [0, 192], sizes = [8, 64], strides = [1, 1]} : vector<8x256xf32> to vector<8x64xf32>
    %850 = math.tanh %849 : vector<8x64xf32>
    %851 = vector.extract_strided_slice %848 {offsets = [0, 64], sizes = [8, 64], strides = [1, 1]} : vector<8x192xf32> to vector<8x64xf32>
    %852 = arith.mulf %851, %821 : vector<8x64xf32>
    %853 = vector.extract_strided_slice %848 {offsets = [0, 0], sizes = [8, 64], strides = [1, 1]} : vector<8x192xf32> to vector<8x64xf32>
    %854 = arith.mulf %853, %850 : vector<8x64xf32>
    %855 = arith.addf %852, %854 : vector<8x64xf32>
    %856 = vector.extract_strided_slice %848 {offsets = [0, 128], sizes = [8, 64], strides = [1, 1]} : vector<8x192xf32> to vector<8x64xf32>
    %857 = math.tanh %855 : vector<8x64xf32>
    %858 = arith.mulf %856, %857 : vector<8x64xf32>
    %859 = vector.extract_strided_slice %858 {offsets = [0, 0], sizes = [8, 32], strides = [1, 1]} : vector<8x64xf32> to vector<8x32xf32>
    %860 = arith.index_cast %833 : i32 to index
    %c0_272 = arith.constant 0 : index
    %861 = vector.load %arg20[%860, %c0_272] : memref<64x64xf32, #tpu.memory_space<vmem>>, vector<8x32xf32>
    tpu.vector_store %arg20[%860, %c0_272], %859 {strides = array<i32>} : memref<64x64xf32, #tpu.memory_space<vmem>>, vector<8x32xf32>,
    %862 = vector.extract_strided_slice %858 {offsets = [0, 32], sizes = [8, 32], strides = [1, 1]} : vector<8x64xf32> to vector<8x32xf32>
    %863 = arith.index_cast %835 : i32 to index
    %c32_273 = arith.constant 32 : index
    %864 = vector.load %arg20[%863, %c32_273] : memref<64x64xf32, #tpu.memory_space<vmem>>, vector<8x32xf32>
    tpu.vector_store %arg20[%863, %c32_273], %862 {strides = array<i32>} : memref<64x64xf32, #tpu.memory_space<vmem>>, vector<8x32xf32>,
    %c8_i32_274 = arith.constant 8 : i32
    %c0_275 = arith.constant 0 : index
    %c0_276 = arith.constant 0 : index
    %865 = vector.load %arg20[%c0_275, %c0_276] : memref<64x64xf32, #tpu.memory_space<vmem>>, vector<64x64xf32>
    %c0_277 = arith.constant 0 : index
    %c0_278 = arith.constant 0 : index
    %866 = vector.load %arg11[%c0_277, %c0_278] : memref<64x256xf32, #tpu.memory_space<vmem>>, vector<64x256xf32>
    %cst_279 = arith.constant dense<0.000000e+00> : vector<64x256xf32>
    %867 = tpu.matmul %865, %866, %cst_279 {dimension_numbers = #tpu.dot_dimension_numbers<[1], [0], [0], [1], [0, 0, 1, 1], [], []>} : vector<64x64xf32>, vector<64x256xf32>, vector<64x256xf32> -> vector<64x256xf32>
    %c0_280 = arith.constant 0 : index
    %c0_281 = arith.constant 0 : index
    %868 = vector.load %arg13[%c0_280, %c0_281] : memref<1x256xf32, #tpu.memory_space<vmem>>, vector<1x256xf32>
    %869 = vector.broadcast %868 : vector<1x256xf32> to vector<64x256xf32>
    %870 = arith.addf %867, %869 : vector<64x256xf32>
    %c0_282 = arith.constant 0 : index
    %c0_283 = arith.constant 0 : index
    %871 = vector.load %arg19[%c0_282, %c0_283] : memref<64x256xf32, #tpu.memory_space<vmem>>, vector<64x256xf32>
    tpu.vector_store %arg19[%c0_282, %c0_283], %870 {strides = array<i32>} : memref<64x256xf32, #tpu.memory_space<vmem>>, vector<64x256xf32>,
    %c0_284 = arith.constant 0 : index
    %c0_285 = arith.constant 0 : index
    %872 = vector.load %arg12[%c0_284, %c0_285] : memref<64x256xf32, #tpu.memory_space<vmem>>, vector<64x256xf32>
    %cst_286 = arith.constant 0.000000e+00 : f32
    %873 = vector.broadcast %cst_286 : f32 to vector<8x64xf32>
    %cst_287 = arith.constant 0.000000e+00 : f32
    %874 = vector.broadcast %cst_287 : f32 to vector<8x64xf32>
    %c0_i32_288 = arith.constant 0 : i32
    %c7_i32_289 = arith.constant 7 : i32
    %875 = arith.subi %c7_i32_289, %c0_i32_288 : i32
    %c8_i32_290 = arith.constant 8 : i32
    %876 = arith.muli %c0_i32_288, %c8_i32_290 : i32
    %877 = tpu.assume_multiple %876, 8 : i32
    %c8_i32_291 = arith.constant 8 : i32
    %878 = arith.muli %875, %c8_i32_291 : i32
    %879 = tpu.assume_multiple %878, 8 : i32
    %cst_292 = arith.constant dense<0.000000e+00> : vector<8x256xf32>
    %880 = tpu.matmul %873, %872, %cst_292 {dimension_numbers = #tpu.dot_dimension_numbers<[1], [0], [0], [1], [0, 0, 1, 1], [], []>} : vector<8x64xf32>, vector<64x256xf32>, vector<8x256xf32> -> vector<8x256xf32>
    %881 = arith.index_cast %877 : i32 to index
    %c0_293 = arith.constant 0 : index
    %882 = vector.load %arg19[%881, %c0_293] : memref<64x256xf32, #tpu.memory_space<vmem>>, vector<8x256xf32>
    %883 = arith.index_cast %879 : i32 to index
    %c0_294 = arith.constant 0 : index
    %884 = vector.load %arg19[%883, %c0_294] : memref<64x256xf32, #tpu.memory_space<vmem>>, vector<8x256xf32>
    %885 = arith.select %18, %882, %884 : vector<8x256xi1>, vector<8x256xf32>
    %886 = arith.addf %880, %885 : vector<8x256xf32>
    %887 = vector.extract_strided_slice %886 {offsets = [0, 0], sizes = [8, 192], strides = [1, 1]} : vector<8x256xf32> to vector<8x192xf32>
    %888 = arith.negf %887 : vector<8x192xf32>
    %889 = math.exp %888 : vector<8x192xf32>
    %cst_295 = arith.constant 1.000000e+00 : f32
    %890 = vector.broadcast %cst_295 : f32 to vector<8x192xf32>
    %891 = arith.addf %890, %889 : vector<8x192xf32>
    %892 = arith.divf %890, %891 : vector<8x192xf32>
    %893 = vector.extract_strided_slice %886 {offsets = [0, 192], sizes = [8, 64], strides = [1, 1]} : vector<8x256xf32> to vector<8x64xf32>
    %894 = math.tanh %893 : vector<8x64xf32>
    %895 = vector.extract_strided_slice %892 {offsets = [0, 64], sizes = [8, 64], strides = [1, 1]} : vector<8x192xf32> to vector<8x64xf32>
    %896 = arith.mulf %895, %874 : vector<8x64xf32>
    %897 = vector.extract_strided_slice %892 {offsets = [0, 0], sizes = [8, 64], strides = [1, 1]} : vector<8x192xf32> to vector<8x64xf32>
    %898 = arith.mulf %897, %894 : vector<8x64xf32>
    %899 = arith.addf %896, %898 : vector<8x64xf32>
    %900 = vector.extract_strided_slice %892 {offsets = [0, 128], sizes = [8, 64], strides = [1, 1]} : vector<8x192xf32> to vector<8x64xf32>
    %901 = math.tanh %899 : vector<8x64xf32>
    %902 = arith.mulf %900, %901 : vector<8x64xf32>
    %903 = vector.extract_strided_slice %902 {offsets = [0, 0], sizes = [8, 32], strides = [1, 1]} : vector<8x64xf32> to vector<8x32xf32>
    %904 = arith.index_cast %877 : i32 to index
    %c0_296 = arith.constant 0 : index
    %905 = vector.load %arg20[%904, %c0_296] : memref<64x64xf32, #tpu.memory_space<vmem>>, vector<8x32xf32>
    tpu.vector_store %arg20[%904, %c0_296], %903 {strides = array<i32>} : memref<64x64xf32, #tpu.memory_space<vmem>>, vector<8x32xf32>,
    %906 = vector.extract_strided_slice %902 {offsets = [0, 32], sizes = [8, 32], strides = [1, 1]} : vector<8x64xf32> to vector<8x32xf32>
    %907 = arith.index_cast %879 : i32 to index
    %c32_297 = arith.constant 32 : index
    %908 = vector.load %arg20[%907, %c32_297] : memref<64x64xf32, #tpu.memory_space<vmem>>, vector<8x32xf32>
    tpu.vector_store %arg20[%907, %c32_297], %906 {strides = array<i32>} : memref<64x64xf32, #tpu.memory_space<vmem>>, vector<8x32xf32>,
    %c1_i32_298 = arith.constant 1 : i32
    %c7_i32_299 = arith.constant 7 : i32
    %909 = arith.subi %c7_i32_299, %c1_i32_298 : i32
    %c8_i32_300 = arith.constant 8 : i32
    %910 = arith.muli %c1_i32_298, %c8_i32_300 : i32
    %911 = tpu.assume_multiple %910, 8 : i32
    %c8_i32_301 = arith.constant 8 : i32
    %912 = arith.muli %909, %c8_i32_301 : i32
    %913 = tpu.assume_multiple %912, 8 : i32
    %cst_302 = arith.constant dense<0.000000e+00> : vector<8x256xf32>
    %914 = tpu.matmul %902, %872, %cst_302 {dimension_numbers = #tpu.dot_dimension_numbers<[1], [0], [0], [1], [0, 0, 1, 1], [], []>} : vector<8x64xf32>, vector<64x256xf32>, vector<8x256xf32> -> vector<8x256xf32>
    %915 = arith.index_cast %911 : i32 to index
    %c0_303 = arith.constant 0 : index
    %916 = vector.load %arg19[%915, %c0_303] : memref<64x256xf32, #tpu.memory_space<vmem>>, vector<8x256xf32>
    %917 = arith.index_cast %913 : i32 to index
    %c0_304 = arith.constant 0 : index
    %918 = vector.load %arg19[%917, %c0_304] : memref<64x256xf32, #tpu.memory_space<vmem>>, vector<8x256xf32>
    %919 = arith.select %18, %916, %918 : vector<8x256xi1>, vector<8x256xf32>
    %920 = arith.addf %914, %919 : vector<8x256xf32>
    %921 = vector.extract_strided_slice %920 {offsets = [0, 0], sizes = [8, 192], strides = [1, 1]} : vector<8x256xf32> to vector<8x192xf32>
    %922 = arith.negf %921 : vector<8x192xf32>
    %923 = math.exp %922 : vector<8x192xf32>
    %cst_305 = arith.constant 1.000000e+00 : f32
    %924 = vector.broadcast %cst_305 : f32 to vector<8x192xf32>
    %925 = arith.addf %924, %923 : vector<8x192xf32>
    %926 = arith.divf %924, %925 : vector<8x192xf32>
    %927 = vector.extract_strided_slice %920 {offsets = [0, 192], sizes = [8, 64], strides = [1, 1]} : vector<8x256xf32> to vector<8x64xf32>
    %928 = math.tanh %927 : vector<8x64xf32>
    %929 = vector.extract_strided_slice %926 {offsets = [0, 64], sizes = [8, 64], strides = [1, 1]} : vector<8x192xf32> to vector<8x64xf32>
    %930 = arith.mulf %929, %899 : vector<8x64xf32>
    %931 = vector.extract_strided_slice %926 {offsets = [0, 0], sizes = [8, 64], strides = [1, 1]} : vector<8x192xf32> to vector<8x64xf32>
    %932 = arith.mulf %931, %928 : vector<8x64xf32>
    %933 = arith.addf %930, %932 : vector<8x64xf32>
    %934 = vector.extract_strided_slice %926 {offsets = [0, 128], sizes = [8, 64], strides = [1, 1]} : vector<8x192xf32> to vector<8x64xf32>
    %935 = math.tanh %933 : vector<8x64xf32>
    %936 = arith.mulf %934, %935 : vector<8x64xf32>
    %937 = vector.extract_strided_slice %936 {offsets = [0, 0], sizes = [8, 32], strides = [1, 1]} : vector<8x64xf32> to vector<8x32xf32>
    %938 = arith.index_cast %911 : i32 to index
    %c0_306 = arith.constant 0 : index
    %939 = vector.load %arg20[%938, %c0_306] : memref<64x64xf32, #tpu.memory_space<vmem>>, vector<8x32xf32>
    tpu.vector_store %arg20[%938, %c0_306], %937 {strides = array<i32>} : memref<64x64xf32, #tpu.memory_space<vmem>>, vector<8x32xf32>,
    %940 = vector.extract_strided_slice %936 {offsets = [0, 32], sizes = [8, 32], strides = [1, 1]} : vector<8x64xf32> to vector<8x32xf32>
    %941 = arith.index_cast %913 : i32 to index
    %c32_307 = arith.constant 32 : index
    %942 = vector.load %arg20[%941, %c32_307] : memref<64x64xf32, #tpu.memory_space<vmem>>, vector<8x32xf32>
    tpu.vector_store %arg20[%941, %c32_307], %940 {strides = array<i32>} : memref<64x64xf32, #tpu.memory_space<vmem>>, vector<8x32xf32>,
    %c2_i32_308 = arith.constant 2 : i32
    %c7_i32_309 = arith.constant 7 : i32
    %943 = arith.subi %c7_i32_309, %c2_i32_308 : i32
    %c8_i32_310 = arith.constant 8 : i32
    %944 = arith.muli %c2_i32_308, %c8_i32_310 : i32
    %945 = tpu.assume_multiple %944, 8 : i32
    %c8_i32_311 = arith.constant 8 : i32
    %946 = arith.muli %943, %c8_i32_311 : i32
    %947 = tpu.assume_multiple %946, 8 : i32
    %cst_312 = arith.constant dense<0.000000e+00> : vector<8x256xf32>
    %948 = tpu.matmul %936, %872, %cst_312 {dimension_numbers = #tpu.dot_dimension_numbers<[1], [0], [0], [1], [0, 0, 1, 1], [], []>} : vector<8x64xf32>, vector<64x256xf32>, vector<8x256xf32> -> vector<8x256xf32>
    %949 = arith.index_cast %945 : i32 to index
    %c0_313 = arith.constant 0 : index
    %950 = vector.load %arg19[%949, %c0_313] : memref<64x256xf32, #tpu.memory_space<vmem>>, vector<8x256xf32>
    %951 = arith.index_cast %947 : i32 to index
    %c0_314 = arith.constant 0 : index
    %952 = vector.load %arg19[%951, %c0_314] : memref<64x256xf32, #tpu.memory_space<vmem>>, vector<8x256xf32>
    %953 = arith.select %18, %950, %952 : vector<8x256xi1>, vector<8x256xf32>
    %954 = arith.addf %948, %953 : vector<8x256xf32>
    %955 = vector.extract_strided_slice %954 {offsets = [0, 0], sizes = [8, 192], strides = [1, 1]} : vector<8x256xf32> to vector<8x192xf32>
    %956 = arith.negf %955 : vector<8x192xf32>
    %957 = math.exp %956 : vector<8x192xf32>
    %cst_315 = arith.constant 1.000000e+00 : f32
    %958 = vector.broadcast %cst_315 : f32 to vector<8x192xf32>
    %959 = arith.addf %958, %957 : vector<8x192xf32>
    %960 = arith.divf %958, %959 : vector<8x192xf32>
    %961 = vector.extract_strided_slice %954 {offsets = [0, 192], sizes = [8, 64], strides = [1, 1]} : vector<8x256xf32> to vector<8x64xf32>
    %962 = math.tanh %961 : vector<8x64xf32>
    %963 = vector.extract_strided_slice %960 {offsets = [0, 64], sizes = [8, 64], strides = [1, 1]} : vector<8x192xf32> to vector<8x64xf32>
    %964 = arith.mulf %963, %933 : vector<8x64xf32>
    %965 = vector.extract_strided_slice %960 {offsets = [0, 0], sizes = [8, 64], strides = [1, 1]} : vector<8x192xf32> to vector<8x64xf32>
    %966 = arith.mulf %965, %962 : vector<8x64xf32>
    %967 = arith.addf %964, %966 : vector<8x64xf32>
    %968 = vector.extract_strided_slice %960 {offsets = [0, 128], sizes = [8, 64], strides = [1, 1]} : vector<8x192xf32> to vector<8x64xf32>
    %969 = math.tanh %967 : vector<8x64xf32>
    %970 = arith.mulf %968, %969 : vector<8x64xf32>
    %971 = vector.extract_strided_slice %970 {offsets = [0, 0], sizes = [8, 32], strides = [1, 1]} : vector<8x64xf32> to vector<8x32xf32>
    %972 = arith.index_cast %945 : i32 to index
    %c0_316 = arith.constant 0 : index
    %973 = vector.load %arg20[%972, %c0_316] : memref<64x64xf32, #tpu.memory_space<vmem>>, vector<8x32xf32>
    tpu.vector_store %arg20[%972, %c0_316], %971 {strides = array<i32>} : memref<64x64xf32, #tpu.memory_space<vmem>>, vector<8x32xf32>,
    %974 = vector.extract_strided_slice %970 {offsets = [0, 32], sizes = [8, 32], strides = [1, 1]} : vector<8x64xf32> to vector<8x32xf32>
    %975 = arith.index_cast %947 : i32 to index
    %c32_317 = arith.constant 32 : index
    %976 = vector.load %arg20[%975, %c32_317] : memref<64x64xf32, #tpu.memory_space<vmem>>, vector<8x32xf32>
    tpu.vector_store %arg20[%975, %c32_317], %974 {strides = array<i32>} : memref<64x64xf32, #tpu.memory_space<vmem>>, vector<8x32xf32>,
    %c3_i32_318 = arith.constant 3 : i32
    %c7_i32_319 = arith.constant 7 : i32
    %977 = arith.subi %c7_i32_319, %c3_i32_318 : i32
    %c8_i32_320 = arith.constant 8 : i32
    %978 = arith.muli %c3_i32_318, %c8_i32_320 : i32
    %979 = tpu.assume_multiple %978, 8 : i32
    %c8_i32_321 = arith.constant 8 : i32
    %980 = arith.muli %977, %c8_i32_321 : i32
    %981 = tpu.assume_multiple %980, 8 : i32
    %cst_322 = arith.constant dense<0.000000e+00> : vector<8x256xf32>
    %982 = tpu.matmul %970, %872, %cst_322 {dimension_numbers = #tpu.dot_dimension_numbers<[1], [0], [0], [1], [0, 0, 1, 1], [], []>} : vector<8x64xf32>, vector<64x256xf32>, vector<8x256xf32> -> vector<8x256xf32>
    %983 = arith.index_cast %979 : i32 to index
    %c0_323 = arith.constant 0 : index
    %984 = vector.load %arg19[%983, %c0_323] : memref<64x256xf32, #tpu.memory_space<vmem>>, vector<8x256xf32>
    %985 = arith.index_cast %981 : i32 to index
    %c0_324 = arith.constant 0 : index
    %986 = vector.load %arg19[%985, %c0_324] : memref<64x256xf32, #tpu.memory_space<vmem>>, vector<8x256xf32>
    %987 = arith.select %18, %984, %986 : vector<8x256xi1>, vector<8x256xf32>
    %988 = arith.addf %982, %987 : vector<8x256xf32>
    %989 = vector.extract_strided_slice %988 {offsets = [0, 0], sizes = [8, 192], strides = [1, 1]} : vector<8x256xf32> to vector<8x192xf32>
    %990 = arith.negf %989 : vector<8x192xf32>
    %991 = math.exp %990 : vector<8x192xf32>
    %cst_325 = arith.constant 1.000000e+00 : f32
    %992 = vector.broadcast %cst_325 : f32 to vector<8x192xf32>
    %993 = arith.addf %992, %991 : vector<8x192xf32>
    %994 = arith.divf %992, %993 : vector<8x192xf32>
    %995 = vector.extract_strided_slice %988 {offsets = [0, 192], sizes = [8, 64], strides = [1, 1]} : vector<8x256xf32> to vector<8x64xf32>
    %996 = math.tanh %995 : vector<8x64xf32>
    %997 = vector.extract_strided_slice %994 {offsets = [0, 64], sizes = [8, 64], strides = [1, 1]} : vector<8x192xf32> to vector<8x64xf32>
    %998 = arith.mulf %997, %967 : vector<8x64xf32>
    %999 = vector.extract_strided_slice %994 {offsets = [0, 0], sizes = [8, 64], strides = [1, 1]} : vector<8x192xf32> to vector<8x64xf32>
    %1000 = arith.mulf %999, %996 : vector<8x64xf32>
    %1001 = arith.addf %998, %1000 : vector<8x64xf32>
    %1002 = vector.extract_strided_slice %994 {offsets = [0, 128], sizes = [8, 64], strides = [1, 1]} : vector<8x192xf32> to vector<8x64xf32>
    %1003 = math.tanh %1001 : vector<8x64xf32>
    %1004 = arith.mulf %1002, %1003 : vector<8x64xf32>
    %1005 = vector.extract_strided_slice %1004 {offsets = [0, 0], sizes = [8, 32], strides = [1, 1]} : vector<8x64xf32> to vector<8x32xf32>
    %1006 = arith.index_cast %979 : i32 to index
    %c0_326 = arith.constant 0 : index
    %1007 = vector.load %arg20[%1006, %c0_326] : memref<64x64xf32, #tpu.memory_space<vmem>>, vector<8x32xf32>
    tpu.vector_store %arg20[%1006, %c0_326], %1005 {strides = array<i32>} : memref<64x64xf32, #tpu.memory_space<vmem>>, vector<8x32xf32>,
    %1008 = vector.extract_strided_slice %1004 {offsets = [0, 32], sizes = [8, 32], strides = [1, 1]} : vector<8x64xf32> to vector<8x32xf32>
    %1009 = arith.index_cast %981 : i32 to index
    %c32_327 = arith.constant 32 : index
    %1010 = vector.load %arg20[%1009, %c32_327] : memref<64x64xf32, #tpu.memory_space<vmem>>, vector<8x32xf32>
    tpu.vector_store %arg20[%1009, %c32_327], %1008 {strides = array<i32>} : memref<64x64xf32, #tpu.memory_space<vmem>>, vector<8x32xf32>,
    %c4_i32_328 = arith.constant 4 : i32
    %c7_i32_329 = arith.constant 7 : i32
    %1011 = arith.subi %c7_i32_329, %c4_i32_328 : i32
    %c8_i32_330 = arith.constant 8 : i32
    %1012 = arith.muli %c4_i32_328, %c8_i32_330 : i32
    %1013 = tpu.assume_multiple %1012, 8 : i32
    %c8_i32_331 = arith.constant 8 : i32
    %1014 = arith.muli %1011, %c8_i32_331 : i32
    %1015 = tpu.assume_multiple %1014, 8 : i32
    %cst_332 = arith.constant dense<0.000000e+00> : vector<8x256xf32>
    %1016 = tpu.matmul %1004, %872, %cst_332 {dimension_numbers = #tpu.dot_dimension_numbers<[1], [0], [0], [1], [0, 0, 1, 1], [], []>} : vector<8x64xf32>, vector<64x256xf32>, vector<8x256xf32> -> vector<8x256xf32>
    %1017 = arith.index_cast %1013 : i32 to index
    %c0_333 = arith.constant 0 : index
    %1018 = vector.load %arg19[%1017, %c0_333] : memref<64x256xf32, #tpu.memory_space<vmem>>, vector<8x256xf32>
    %1019 = arith.index_cast %1015 : i32 to index
    %c0_334 = arith.constant 0 : index
    %1020 = vector.load %arg19[%1019, %c0_334] : memref<64x256xf32, #tpu.memory_space<vmem>>, vector<8x256xf32>
    %1021 = arith.select %18, %1018, %1020 : vector<8x256xi1>, vector<8x256xf32>
    %1022 = arith.addf %1016, %1021 : vector<8x256xf32>
    %1023 = vector.extract_strided_slice %1022 {offsets = [0, 0], sizes = [8, 192], strides = [1, 1]} : vector<8x256xf32> to vector<8x192xf32>
    %1024 = arith.negf %1023 : vector<8x192xf32>
    %1025 = math.exp %1024 : vector<8x192xf32>
    %cst_335 = arith.constant 1.000000e+00 : f32
    %1026 = vector.broadcast %cst_335 : f32 to vector<8x192xf32>
    %1027 = arith.addf %1026, %1025 : vector<8x192xf32>
    %1028 = arith.divf %1026, %1027 : vector<8x192xf32>
    %1029 = vector.extract_strided_slice %1022 {offsets = [0, 192], sizes = [8, 64], strides = [1, 1]} : vector<8x256xf32> to vector<8x64xf32>
    %1030 = math.tanh %1029 : vector<8x64xf32>
    %1031 = vector.extract_strided_slice %1028 {offsets = [0, 64], sizes = [8, 64], strides = [1, 1]} : vector<8x192xf32> to vector<8x64xf32>
    %1032 = arith.mulf %1031, %1001 : vector<8x64xf32>
    %1033 = vector.extract_strided_slice %1028 {offsets = [0, 0], sizes = [8, 64], strides = [1, 1]} : vector<8x192xf32> to vector<8x64xf32>
    %1034 = arith.mulf %1033, %1030 : vector<8x64xf32>
    %1035 = arith.addf %1032, %1034 : vector<8x64xf32>
    %1036 = vector.extract_strided_slice %1028 {offsets = [0, 128], sizes = [8, 64], strides = [1, 1]} : vector<8x192xf32> to vector<8x64xf32>
    %1037 = math.tanh %1035 : vector<8x64xf32>
    %1038 = arith.mulf %1036, %1037 : vector<8x64xf32>
    %1039 = vector.extract_strided_slice %1038 {offsets = [0, 0], sizes = [8, 32], strides = [1, 1]} : vector<8x64xf32> to vector<8x32xf32>
    %1040 = arith.index_cast %1013 : i32 to index
    %c0_336 = arith.constant 0 : index
    %1041 = vector.load %arg20[%1040, %c0_336] : memref<64x64xf32, #tpu.memory_space<vmem>>, vector<8x32xf32>
    tpu.vector_store %arg20[%1040, %c0_336], %1039 {strides = array<i32>} : memref<64x64xf32, #tpu.memory_space<vmem>>, vector<8x32xf32>,
    %1042 = vector.extract_strided_slice %1038 {offsets = [0, 32], sizes = [8, 32], strides = [1, 1]} : vector<8x64xf32> to vector<8x32xf32>
    %1043 = arith.index_cast %1015 : i32 to index
    %c32_337 = arith.constant 32 : index
    %1044 = vector.load %arg20[%1043, %c32_337] : memref<64x64xf32, #tpu.memory_space<vmem>>, vector<8x32xf32>
    tpu.vector_store %arg20[%1043, %c32_337], %1042 {strides = array<i32>} : memref<64x64xf32, #tpu.memory_space<vmem>>, vector<8x32xf32>,
    %c5_i32_338 = arith.constant 5 : i32
    %c7_i32_339 = arith.constant 7 : i32
    %1045 = arith.subi %c7_i32_339, %c5_i32_338 : i32
    %c8_i32_340 = arith.constant 8 : i32
    %1046 = arith.muli %c5_i32_338, %c8_i32_340 : i32
    %1047 = tpu.assume_multiple %1046, 8 : i32
    %c8_i32_341 = arith.constant 8 : i32
    %1048 = arith.muli %1045, %c8_i32_341 : i32
    %1049 = tpu.assume_multiple %1048, 8 : i32
    %cst_342 = arith.constant dense<0.000000e+00> : vector<8x256xf32>
    %1050 = tpu.matmul %1038, %872, %cst_342 {dimension_numbers = #tpu.dot_dimension_numbers<[1], [0], [0], [1], [0, 0, 1, 1], [], []>} : vector<8x64xf32>, vector<64x256xf32>, vector<8x256xf32> -> vector<8x256xf32>
    %1051 = arith.index_cast %1047 : i32 to index
    %c0_343 = arith.constant 0 : index
    %1052 = vector.load %arg19[%1051, %c0_343] : memref<64x256xf32, #tpu.memory_space<vmem>>, vector<8x256xf32>
    %1053 = arith.index_cast %1049 : i32 to index
    %c0_344 = arith.constant 0 : index
    %1054 = vector.load %arg19[%1053, %c0_344] : memref<64x256xf32, #tpu.memory_space<vmem>>, vector<8x256xf32>
    %1055 = arith.select %18, %1052, %1054 : vector<8x256xi1>, vector<8x256xf32>
    %1056 = arith.addf %1050, %1055 : vector<8x256xf32>
    %1057 = vector.extract_strided_slice %1056 {offsets = [0, 0], sizes = [8, 192], strides = [1, 1]} : vector<8x256xf32> to vector<8x192xf32>
    %1058 = arith.negf %1057 : vector<8x192xf32>
    %1059 = math.exp %1058 : vector<8x192xf32>
    %cst_345 = arith.constant 1.000000e+00 : f32
    %1060 = vector.broadcast %cst_345 : f32 to vector<8x192xf32>
    %1061 = arith.addf %1060, %1059 : vector<8x192xf32>
    %1062 = arith.divf %1060, %1061 : vector<8x192xf32>
    %1063 = vector.extract_strided_slice %1056 {offsets = [0, 192], sizes = [8, 64], strides = [1, 1]} : vector<8x256xf32> to vector<8x64xf32>
    %1064 = math.tanh %1063 : vector<8x64xf32>
    %1065 = vector.extract_strided_slice %1062 {offsets = [0, 64], sizes = [8, 64], strides = [1, 1]} : vector<8x192xf32> to vector<8x64xf32>
    %1066 = arith.mulf %1065, %1035 : vector<8x64xf32>
    %1067 = vector.extract_strided_slice %1062 {offsets = [0, 0], sizes = [8, 64], strides = [1, 1]} : vector<8x192xf32> to vector<8x64xf32>
    %1068 = arith.mulf %1067, %1064 : vector<8x64xf32>
    %1069 = arith.addf %1066, %1068 : vector<8x64xf32>
    %1070 = vector.extract_strided_slice %1062 {offsets = [0, 128], sizes = [8, 64], strides = [1, 1]} : vector<8x192xf32> to vector<8x64xf32>
    %1071 = math.tanh %1069 : vector<8x64xf32>
    %1072 = arith.mulf %1070, %1071 : vector<8x64xf32>
    %1073 = vector.extract_strided_slice %1072 {offsets = [0, 0], sizes = [8, 32], strides = [1, 1]} : vector<8x64xf32> to vector<8x32xf32>
    %1074 = arith.index_cast %1047 : i32 to index
    %c0_346 = arith.constant 0 : index
    %1075 = vector.load %arg20[%1074, %c0_346] : memref<64x64xf32, #tpu.memory_space<vmem>>, vector<8x32xf32>
    tpu.vector_store %arg20[%1074, %c0_346], %1073 {strides = array<i32>} : memref<64x64xf32, #tpu.memory_space<vmem>>, vector<8x32xf32>,
    %1076 = vector.extract_strided_slice %1072 {offsets = [0, 32], sizes = [8, 32], strides = [1, 1]} : vector<8x64xf32> to vector<8x32xf32>
    %1077 = arith.index_cast %1049 : i32 to index
    %c32_347 = arith.constant 32 : index
    %1078 = vector.load %arg20[%1077, %c32_347] : memref<64x64xf32, #tpu.memory_space<vmem>>, vector<8x32xf32>
    tpu.vector_store %arg20[%1077, %c32_347], %1076 {strides = array<i32>} : memref<64x64xf32, #tpu.memory_space<vmem>>, vector<8x32xf32>,
    %c6_i32_348 = arith.constant 6 : i32
    %c7_i32_349 = arith.constant 7 : i32
    %1079 = arith.subi %c7_i32_349, %c6_i32_348 : i32
    %c8_i32_350 = arith.constant 8 : i32
    %1080 = arith.muli %c6_i32_348, %c8_i32_350 : i32
    %1081 = tpu.assume_multiple %1080, 8 : i32
    %c8_i32_351 = arith.constant 8 : i32
    %1082 = arith.muli %1079, %c8_i32_351 : i32
    %1083 = tpu.assume_multiple %1082, 8 : i32
    %cst_352 = arith.constant dense<0.000000e+00> : vector<8x256xf32>
    %1084 = tpu.matmul %1072, %872, %cst_352 {dimension_numbers = #tpu.dot_dimension_numbers<[1], [0], [0], [1], [0, 0, 1, 1], [], []>} : vector<8x64xf32>, vector<64x256xf32>, vector<8x256xf32> -> vector<8x256xf32>
    %1085 = arith.index_cast %1081 : i32 to index
    %c0_353 = arith.constant 0 : index
    %1086 = vector.load %arg19[%1085, %c0_353] : memref<64x256xf32, #tpu.memory_space<vmem>>, vector<8x256xf32>
    %1087 = arith.index_cast %1083 : i32 to index
    %c0_354 = arith.constant 0 : index
    %1088 = vector.load %arg19[%1087, %c0_354] : memref<64x256xf32, #tpu.memory_space<vmem>>, vector<8x256xf32>
    %1089 = arith.select %18, %1086, %1088 : vector<8x256xi1>, vector<8x256xf32>
    %1090 = arith.addf %1084, %1089 : vector<8x256xf32>
    %1091 = vector.extract_strided_slice %1090 {offsets = [0, 0], sizes = [8, 192], strides = [1, 1]} : vector<8x256xf32> to vector<8x192xf32>
    %1092 = arith.negf %1091 : vector<8x192xf32>
    %1093 = math.exp %1092 : vector<8x192xf32>
    %cst_355 = arith.constant 1.000000e+00 : f32
    %1094 = vector.broadcast %cst_355 : f32 to vector<8x192xf32>
    %1095 = arith.addf %1094, %1093 : vector<8x192xf32>
    %1096 = arith.divf %1094, %1095 : vector<8x192xf32>
    %1097 = vector.extract_strided_slice %1090 {offsets = [0, 192], sizes = [8, 64], strides = [1, 1]} : vector<8x256xf32> to vector<8x64xf32>
    %1098 = math.tanh %1097 : vector<8x64xf32>
    %1099 = vector.extract_strided_slice %1096 {offsets = [0, 64], sizes = [8, 64], strides = [1, 1]} : vector<8x192xf32> to vector<8x64xf32>
    %1100 = arith.mulf %1099, %1069 : vector<8x64xf32>
    %1101 = vector.extract_strided_slice %1096 {offsets = [0, 0], sizes = [8, 64], strides = [1, 1]} : vector<8x192xf32> to vector<8x64xf32>
    %1102 = arith.mulf %1101, %1098 : vector<8x64xf32>
    %1103 = arith.addf %1100, %1102 : vector<8x64xf32>
    %1104 = vector.extract_strided_slice %1096 {offsets = [0, 128], sizes = [8, 64], strides = [1, 1]} : vector<8x192xf32> to vector<8x64xf32>
    %1105 = math.tanh %1103 : vector<8x64xf32>
    %1106 = arith.mulf %1104, %1105 : vector<8x64xf32>
    %1107 = vector.extract_strided_slice %1106 {offsets = [0, 0], sizes = [8, 32], strides = [1, 1]} : vector<8x64xf32> to vector<8x32xf32>
    %1108 = arith.index_cast %1081 : i32 to index
    %c0_356 = arith.constant 0 : index
    %1109 = vector.load %arg20[%1108, %c0_356] : memref<64x64xf32, #tpu.memory_space<vmem>>, vector<8x32xf32>
    tpu.vector_store %arg20[%1108, %c0_356], %1107 {strides = array<i32>} : memref<64x64xf32, #tpu.memory_space<vmem>>, vector<8x32xf32>,
    %1110 = vector.extract_strided_slice %1106 {offsets = [0, 32], sizes = [8, 32], strides = [1, 1]} : vector<8x64xf32> to vector<8x32xf32>
    %1111 = arith.index_cast %1083 : i32 to index
    %c32_357 = arith.constant 32 : index
    %1112 = vector.load %arg20[%1111, %c32_357] : memref<64x64xf32, #tpu.memory_space<vmem>>, vector<8x32xf32>
    tpu.vector_store %arg20[%1111, %c32_357], %1110 {strides = array<i32>} : memref<64x64xf32, #tpu.memory_space<vmem>>, vector<8x32xf32>,
    %c7_i32_358 = arith.constant 7 : i32
    %c7_i32_359 = arith.constant 7 : i32
    %1113 = arith.subi %c7_i32_359, %c7_i32_358 : i32
    %c8_i32_360 = arith.constant 8 : i32
    %1114 = arith.muli %c7_i32_358, %c8_i32_360 : i32
    %1115 = tpu.assume_multiple %1114, 8 : i32
    %c8_i32_361 = arith.constant 8 : i32
    %1116 = arith.muli %1113, %c8_i32_361 : i32
    %1117 = tpu.assume_multiple %1116, 8 : i32
    %cst_362 = arith.constant dense<0.000000e+00> : vector<8x256xf32>
    %1118 = tpu.matmul %1106, %872, %cst_362 {dimension_numbers = #tpu.dot_dimension_numbers<[1], [0], [0], [1], [0, 0, 1, 1], [], []>} : vector<8x64xf32>, vector<64x256xf32>, vector<8x256xf32> -> vector<8x256xf32>
    %1119 = arith.index_cast %1115 : i32 to index
    %c0_363 = arith.constant 0 : index
    %1120 = vector.load %arg19[%1119, %c0_363] : memref<64x256xf32, #tpu.memory_space<vmem>>, vector<8x256xf32>
    %1121 = arith.index_cast %1117 : i32 to index
    %c0_364 = arith.constant 0 : index
    %1122 = vector.load %arg19[%1121, %c0_364] : memref<64x256xf32, #tpu.memory_space<vmem>>, vector<8x256xf32>
    %1123 = arith.select %18, %1120, %1122 : vector<8x256xi1>, vector<8x256xf32>
    %1124 = arith.addf %1118, %1123 : vector<8x256xf32>
    %1125 = vector.extract_strided_slice %1124 {offsets = [0, 0], sizes = [8, 192], strides = [1, 1]} : vector<8x256xf32> to vector<8x192xf32>
    %1126 = arith.negf %1125 : vector<8x192xf32>
    %1127 = math.exp %1126 : vector<8x192xf32>
    %cst_365 = arith.constant 1.000000e+00 : f32
    %1128 = vector.broadcast %cst_365 : f32 to vector<8x192xf32>
    %1129 = arith.addf %1128, %1127 : vector<8x192xf32>
    %1130 = arith.divf %1128, %1129 : vector<8x192xf32>
    %1131 = vector.extract_strided_slice %1124 {offsets = [0, 192], sizes = [8, 64], strides = [1, 1]} : vector<8x256xf32> to vector<8x64xf32>
    %1132 = math.tanh %1131 : vector<8x64xf32>
    %1133 = vector.extract_strided_slice %1130 {offsets = [0, 64], sizes = [8, 64], strides = [1, 1]} : vector<8x192xf32> to vector<8x64xf32>
    %1134 = arith.mulf %1133, %1103 : vector<8x64xf32>
    %1135 = vector.extract_strided_slice %1130 {offsets = [0, 0], sizes = [8, 64], strides = [1, 1]} : vector<8x192xf32> to vector<8x64xf32>
    %1136 = arith.mulf %1135, %1132 : vector<8x64xf32>
    %1137 = arith.addf %1134, %1136 : vector<8x64xf32>
    %1138 = vector.extract_strided_slice %1130 {offsets = [0, 128], sizes = [8, 64], strides = [1, 1]} : vector<8x192xf32> to vector<8x64xf32>
    %1139 = math.tanh %1137 : vector<8x64xf32>
    %1140 = arith.mulf %1138, %1139 : vector<8x64xf32>
    %1141 = vector.extract_strided_slice %1140 {offsets = [0, 0], sizes = [8, 32], strides = [1, 1]} : vector<8x64xf32> to vector<8x32xf32>
    %1142 = arith.index_cast %1115 : i32 to index
    %c0_366 = arith.constant 0 : index
    %1143 = vector.load %arg20[%1142, %c0_366] : memref<64x64xf32, #tpu.memory_space<vmem>>, vector<8x32xf32>
    tpu.vector_store %arg20[%1142, %c0_366], %1141 {strides = array<i32>} : memref<64x64xf32, #tpu.memory_space<vmem>>, vector<8x32xf32>,
    %1144 = vector.extract_strided_slice %1140 {offsets = [0, 32], sizes = [8, 32], strides = [1, 1]} : vector<8x64xf32> to vector<8x32xf32>
    %1145 = arith.index_cast %1117 : i32 to index
    %c32_367 = arith.constant 32 : index
    %1146 = vector.load %arg20[%1145, %c32_367] : memref<64x64xf32, #tpu.memory_space<vmem>>, vector<8x32xf32>
    tpu.vector_store %arg20[%1145, %c32_367], %1144 {strides = array<i32>} : memref<64x64xf32, #tpu.memory_space<vmem>>, vector<8x32xf32>,
    %c8_i32_368 = arith.constant 8 : i32
    %c0_369 = arith.constant 0 : index
    %c0_370 = arith.constant 0 : index
    %1147 = vector.load %arg20[%c0_369, %c0_370] : memref<64x64xf32, #tpu.memory_space<vmem>>, vector<64x64xf32>
    %c0_371 = arith.constant 0 : index
    %c0_372 = arith.constant 0 : index
    %1148 = vector.load %arg14[%c0_371, %c0_372] : memref<64x32xf32, #tpu.memory_space<vmem>>, vector<64x32xf32>
    %cst_373 = arith.constant dense<0.000000e+00> : vector<64x32xf32>
    %1149 = tpu.matmul %1147, %1148, %cst_373 {dimension_numbers = #tpu.dot_dimension_numbers<[1], [0], [0], [1], [0, 0, 1, 1], [], []>} : vector<64x64xf32>, vector<64x32xf32>, vector<64x32xf32> -> vector<64x32xf32>
    %c0_374 = arith.constant 0 : index
    %c0_375 = arith.constant 0 : index
    %1150 = vector.load %arg15[%c0_374, %c0_375] : memref<1x32xf32, #tpu.memory_space<vmem>>, vector<1x32xf32>
    %1151 = vector.broadcast %1150 : vector<1x32xf32> to vector<64x32xf32>
    %1152 = arith.addf %1149, %1151 : vector<64x32xf32>
    %1153 = math.tanh %1152 : vector<64x32xf32>
    %c0_376 = arith.constant 0 : index
    %c0_377 = arith.constant 0 : index
    %1154 = vector.load %arg16[%c0_376, %c0_377] : memref<32x2xf32, #tpu.memory_space<vmem>>, vector<32x2xf32>
    %cst_378 = arith.constant dense<0.000000e+00> : vector<64x2xf32>
    %1155 = tpu.matmul %1153, %1154, %cst_378 {dimension_numbers = #tpu.dot_dimension_numbers<[1], [0], [0], [1], [0, 0, 1, 1], [], []>} : vector<64x32xf32>, vector<32x2xf32>, vector<64x2xf32> -> vector<64x2xf32>
    %c0_379 = arith.constant 0 : index
    %c0_380 = arith.constant 0 : index
    %1156 = vector.load %arg17[%c0_379, %c0_380] : memref<1x2xf32, #tpu.memory_space<vmem>>, vector<1x2xf32>
    %1157 = vector.broadcast %1156 : vector<1x2xf32> to vector<64x2xf32>
    %1158 = arith.addf %1155, %1157 : vector<64x2xf32>
    %c0_381 = arith.constant 0 : index
    %c0_382 = arith.constant 0 : index
    %1159 = vector.load %arg18[%c0_381, %c0_382] : memref<64x2xf32, #tpu.memory_space<vmem>>, vector<64x2xf32>
    tpu.vector_store %arg18[%c0_381, %c0_382], %1158 {strides = array<i32>} : memref<64x2xf32, #tpu.memory_space<vmem>>, vector<64x2xf32>,
    return
  }
  func.func @transform_0(%arg0: i32) -> (i32, i32) {
    %c0_i32 = arith.constant 0 : i32
    %c0_i32_0 = arith.constant 0 : i32
    return %arg0, %c0_i32 : i32, i32
  }
  func.func @transform_1(%arg0: i32) -> (i32, i32) {
    %c0_i32 = arith.constant 0 : i32
    %c0_i32_0 = arith.constant 0 : i32
    %c0_i32_1 = arith.constant 0 : i32
    return %c0_i32, %c0_i32_0 : i32, i32
  }
  func.func @transform_2(%arg0: i32) -> (i32, i32) {
    %c0_i32 = arith.constant 0 : i32
    %c0_i32_0 = arith.constant 0 : i32
    %c0_i32_1 = arith.constant 0 : i32
    return %c0_i32, %c0_i32_0 : i32, i32
  }
  func.func @transform_3(%arg0: i32) -> (i32, i32) {
    %c0_i32 = arith.constant 0 : i32
    %c0_i32_0 = arith.constant 0 : i32
    %c0_i32_1 = arith.constant 0 : i32
    return %c0_i32, %c0_i32_0 : i32, i32
  }
  func.func @transform_4(%arg0: i32) -> (i32, i32) {
    %c0_i32 = arith.constant 0 : i32
    %c0_i32_0 = arith.constant 0 : i32
    %c0_i32_1 = arith.constant 0 : i32
    return %c0_i32, %c0_i32_0 : i32, i32
  }
  func.func @transform_5(%arg0: i32) -> (i32, i32) {
    %c0_i32 = arith.constant 0 : i32
    %c0_i32_0 = arith.constant 0 : i32
    %c0_i32_1 = arith.constant 0 : i32
    return %c0_i32, %c0_i32_0 : i32, i32
  }
  func.func @transform_6(%arg0: i32) -> (i32, i32) {
    %c0_i32 = arith.constant 0 : i32
    %c0_i32_0 = arith.constant 0 : i32
    %c0_i32_1 = arith.constant 0 : i32
    return %c0_i32, %c0_i32_0 : i32, i32
  }
  func.func @transform_7(%arg0: i32) -> (i32, i32) {
    %c0_i32 = arith.constant 0 : i32
    %c0_i32_0 = arith.constant 0 : i32
    %c0_i32_1 = arith.constant 0 : i32
    return %c0_i32, %c0_i32_0 : i32, i32
  }
  func.func @transform_8(%arg0: i32) -> (i32, i32) {
    %c0_i32 = arith.constant 0 : i32
    %c0_i32_0 = arith.constant 0 : i32
    %c0_i32_1 = arith.constant 0 : i32
    return %c0_i32, %c0_i32_0 : i32, i32
  }
  func.func @transform_9(%arg0: i32) -> (i32, i32) {
    %c0_i32 = arith.constant 0 : i32
    %c0_i32_0 = arith.constant 0 : i32
    %c0_i32_1 = arith.constant 0 : i32
    return %c0_i32, %c0_i32_0 : i32, i32
  }
  func.func @transform_10(%arg0: i32) -> (i32, i32) {
    %c0_i32 = arith.constant 0 : i32
    %c0_i32_0 = arith.constant 0 : i32
    %c0_i32_1 = arith.constant 0 : i32
    return %c0_i32, %c0_i32_0 : i32, i32
  }
  func.func @transform_11(%arg0: i32) -> (i32, i32) {
    %c0_i32 = arith.constant 0 : i32
    %c0_i32_0 = arith.constant 0 : i32
    %c0_i32_1 = arith.constant 0 : i32
    return %c0_i32, %c0_i32_0 : i32, i32
  }
  func.func @transform_12(%arg0: i32) -> (i32, i32) {
    %c0_i32 = arith.constant 0 : i32
    %c0_i32_0 = arith.constant 0 : i32
    %c0_i32_1 = arith.constant 0 : i32
    return %c0_i32, %c0_i32_0 : i32, i32
  }
  func.func @transform_13(%arg0: i32) -> (i32, i32) {
    %c0_i32 = arith.constant 0 : i32
    %c0_i32_0 = arith.constant 0 : i32
    %c0_i32_1 = arith.constant 0 : i32
    return %c0_i32, %c0_i32_0 : i32, i32
  }
  func.func @transform_14(%arg0: i32) -> (i32, i32) {
    %c0_i32 = arith.constant 0 : i32
    %c0_i32_0 = arith.constant 0 : i32
    %c0_i32_1 = arith.constant 0 : i32
    return %c0_i32, %c0_i32_0 : i32, i32
  }
  func.func @transform_15(%arg0: i32) -> (i32, i32) {
    %c0_i32 = arith.constant 0 : i32
    %c0_i32_0 = arith.constant 0 : i32
    %c0_i32_1 = arith.constant 0 : i32
    return %c0_i32, %c0_i32_0 : i32, i32
  }
  func.func @transform_16(%arg0: i32) -> (i32, i32) {
    %c0_i32 = arith.constant 0 : i32
    %c0_i32_0 = arith.constant 0 : i32
    %c0_i32_1 = arith.constant 0 : i32
    return %c0_i32, %c0_i32_0 : i32, i32
  }
  func.func @transform_17(%arg0: i32) -> (i32, i32) {
    %c0_i32 = arith.constant 0 : i32
    %c0_i32_0 = arith.constant 0 : i32
    return %arg0, %c0_i32 : i32, i32
  }
}

</mosaic_0001>

<llo_original>
// kernel: lstm_model_forward.1
$region0: #{lstm_model_forward.1}
  #allocation0 [shape = 'u32[]', space=smem, size = 0x4, offset = 0x4, fixed_abs, tag = 'smem constant byte address 0x4 - core index']
  #allocation1 [shape = 'u32[144,128]{1,0:T(1,128)}', space=vmem, size = 0x12000, scoped, tag = 'internal scratch']
  #allocation2 [shape = 'f32[64,256]{1,0:T(8,128)}', space=vmem, size = 0x10000, scoped, tag = 'scratch operand']
  #allocation3 [shape = 'f32[64,64]{1,0:T(8,128)}', space=vmem, size = 0x8000, scoped, tag = 'scratch operand']
  %s0 = inlined_call_operand.vmem [shape: f32[64,32], index: 0, kind: input, shape index: {}]
  %s1 = inlined_call_operand.vmem [shape: f32[32,256], index: 1, kind: input, shape index: {}]
  %s2 = inlined_call_operand.vmem [shape: f32[64,256], index: 2, kind: input, shape index: {}]
  %s3 = inlined_call_operand.hbm [shape: f32[1,256], index: 3, kind: input, shape index: {}]
  %s4 = inlined_call_operand.vmem [shape: f32[64,256], index: 4, kind: input, shape index: {}]
  %s5 = inlined_call_operand.hbm [shape: f32[64,256], index: 5, kind: input, shape index: {}]
  %s6 = inlined_call_operand.hbm [shape: f32[1,256], index: 6, kind: input, shape index: {}]
  %s7 = inlined_call_operand.hbm [shape: f32[64,256], index: 7, kind: input, shape index: {}]
  %s8 = inlined_call_operand.hbm [shape: f32[64,256], index: 8, kind: input, shape index: {}]
  %s9 = inlined_call_operand.vmem [shape: f32[1,256], index: 9, kind: input, shape index: {}]
  %s10 = inlined_call_operand.hbm [shape: f32[64,256], index: 10, kind: input, shape index: {}]
  %s11 = inlined_call_operand.hbm [shape: f32[64,256], index: 11, kind: input, shape index: {}]
  %s12 = inlined_call_operand.vmem [shape: f32[1,256], index: 12, kind: input, shape index: {}]
  %s13 = inlined_call_operand.vmem [shape: f32[64,32], index: 13, kind: input, shape index: {}]
  %s14 = inlined_call_operand.hbm [shape: f32[1,32], index: 14, kind: input, shape index: {}]
  %s15 = inlined_call_operand.vmem [shape: f32[32,2], index: 15, kind: input, shape index: {}]
  %s16 = inlined_call_operand.hbm [shape: f32[1,2], index: 16, kind: input, shape index: {}]
  %s17 = inlined_call_operand.vmem [shape: f32[64,2], index: 17, kind: output, shape index: {}]
  %s18 = sld [smem:[#allocation0]]
  $region114: #{lstm_model_forward.1} parent=0
    _
  %s20 = ssub.s32 1, %s18
  %s21 = scalar_select 0, %s20, %s18
  $region1: #{lstm_model_forward.1} parent=0
    #allocation4 [shape = 'u8[1024]{0}', space=vmem, size = 0x400, scoped, tag = 'input window, operand 3, single buffered']
    #allocation5 [shape = 's32[1]{0}', space=sflag, size = 0x4, scoped, tag = 'scoped memory for lstm_model_forward.1']
    #allocation6 [shape = 'u8[65536]{0}', space=vmem, size = 0x10000, scoped, tag = 'input window, operand 5, single buffered']
    #allocation7 [shape = 's32[1]{0}', space=sflag, size = 0x4, scoped, tag = 'scoped memory for lstm_model_forward.1']
    #allocation8 [shape = 'u8[1024]{0}', space=vmem, size = 0x400, scoped, tag = 'input window, operand 6, single buffered']
    #allocation9 [shape = 'u8[65536]{0}', space=vmem, size = 0x10000, scoped, tag = 'input window, operand 7, single buffered']
    #allocation10 [shape = 's32[1]{0}', space=sflag, size = 0x4, scoped, tag = 'scoped memory for lstm_model_forward.1']
    #allocation11 [shape = 'u8[65536]{0}', space=vmem, size = 0x10000, scoped, tag = 'input window, operand 8, single buffered']
    #allocation12 [shape = 'u8[65536]{0}', space=vmem, size = 0x10000, scoped, tag = 'input window, operand 10, single buffered']
    #allocation13 [shape = 's32[1]{0}', space=sflag, size = 0x4, scoped, tag = 'scoped memory for lstm_model_forward.1']
    #allocation14 [shape = 'u8[65536]{0}', space=vmem, size = 0x10000, scoped, tag = 'input window, operand 11, single buffered']
    #allocation15 [shape = 'u8[512]{0}', space=vmem, size = 0x400, scoped, tag = 'input window, operand 14, single buffered']
    #allocation16 [shape = 's32[1]{0}', space=sflag, size = 0x4, scoped, tag = 'scoped memory for lstm_model_forward.1']
    #allocation17 [shape = 'u8[512]{0}', space=vmem, size = 0x400, scoped, tag = 'input window, operand 16, single buffered']
    %22 = vsyncpa [#allocation5], 0
    %23 = vsyncpa [#allocation7], 0
    %24 = vsyncpa [#allocation10], 0
    %25 = vsyncpa [#allocation13], 0
    %26 = vsyncpa [#allocation16], 0
    // Predicated region
    $region2: #{lstm_model_forward.1} parent=1 // pred_check
      _
    $region3: #{lstm_model_forward.1} parent=1 // pred_check_branch
      %28 = sbr.rel (0) target = $region5
    $region4: #{lstm_model_forward.1} parent=1 // pred_region
      _
    $region5: #{lstm_model_forward.1} parent=1 // pred_fallthru
      _
    // Predicated region
    $region6: #{lstm_model_forward.1} parent=1 // pred_check
      _
    $region7: #{lstm_model_forward.1} parent=1 // pred_check_branch
      %30 = sbr.rel (0) target = $region9
    $region8: #{lstm_model_forward.1} parent=1 // pred_region
      _
    $region9: #{lstm_model_forward.1} parent=1 // pred_fallthru
      _
    // Predicated region
    $region10: #{lstm_model_forward.1} parent=1 // pred_check
      _
    $region11: #{lstm_model_forward.1} parent=1 // pred_check_branch
      %32 = sbr.rel (0) target = $region13
    $region12: #{lstm_model_forward.1} parent=1 // pred_region
      _
    $region13: #{lstm_model_forward.1} parent=1 // pred_fallthru
      _
    // Predicated region
    $region14: #{lstm_model_forward.1} parent=1 // pred_check
      _
    $region15: #{lstm_model_forward.1} parent=1 // pred_check_branch
      %34 = sbr.rel (0) target = $region17
    $region16: #{lstm_model_forward.1} parent=1 // pred_region
      %s36 = ssub.s32 32, 32
      %37 = vsyncadd [#allocation5], %s36
      %s39 = sshll.u32 [#allocation4], 4
      %s40 = int_to_ptr.vmem [resolvable:$true] %s39
      %42 = dma.hbm_to_vmem [thread:$0]  %s3, 32, %s40, [#allocation5]
    $region17: #{lstm_model_forward.1} parent=1 // pred_fallthru
      _
    // Predicated region
    $region18: #{lstm_model_forward.1} parent=1 // pred_check
      _
    $region19: #{lstm_model_forward.1} parent=1 // pred_check_branch
      %44 = sbr.rel (0) target = $region21
    $region20: #{lstm_model_forward.1} parent=1 // pred_region
      _
    $region21: #{lstm_model_forward.1} parent=1 // pred_fallthru
      _
    // Predicated region
    $region22: #{lstm_model_forward.1} parent=1 // pred_check
      _
    $region23: #{lstm_model_forward.1} parent=1 // pred_check_branch
      %46 = sbr.rel (0) target = $region25
    $region24: #{lstm_model_forward.1} parent=1 // pred_region
      %s48 = ssub.s32 2048, 2048
      %49 = vsyncadd [#allocation7], %s48
      %s50 = sshll.u32 [#allocation6], 4
      %s51 = int_to_ptr.vmem [resolvable:$true] %s50
      %56 = dma.hbm_to_vmem [thread:$0]  %s5, 2048, %s51, [#allocation7], 256, 256, 16
    $region25: #{lstm_model_forward.1} parent=1 // pred_fallthru
      _
    // Predicated region
    $region26: #{lstm_model_forward.1} parent=1 // pred_check
      _
    $region27: #{lstm_model_forward.1} parent=1 // pred_check_branch
      %58 = sbr.rel (0) target = $region29
    $region28: #{lstm_model_forward.1} parent=1 // pred_region
      %s60 = ssub.s32 32, 32
      %61 = vsyncadd [#allocation7], %s60
      %s63 = sshll.u32 [#allocation8], 4
      %s64 = int_to_ptr.vmem [resolvable:$true] %s63
      %66 = dma.hbm_to_vmem [thread:$0]  %s6, 32, %s64, [#allocation7]
    $region29: #{lstm_model_forward.1} parent=1 // pred_fallthru
      _
    // Predicated region
    $region30: #{lstm_model_forward.1} parent=1 // pred_check
      _
    $region31: #{lstm_model_forward.1} parent=1 // pred_check_branch
      %68 = sbr.rel (0) target = $region33
    $region32: #{lstm_model_forward.1} parent=1 // pred_region
      %s70 = ssub.s32 2048, 2048
      %71 = vsyncadd [#allocation10], %s70
      %s72 = sshll.u32 [#allocation9], 4
      %s73 = int_to_ptr.vmem [resolvable:$true] %s72
      %78 = dma.hbm_to_vmem [thread:$0]  %s7, 2048, %s73, [#allocation10], 256, 256, 16
    $region33: #{lstm_model_forward.1} parent=1 // pred_fallthru
      _
    // Predicated region
    $region34: #{lstm_model_forward.1} parent=1 // pred_check
      _
    $region35: #{lstm_model_forward.1} parent=1 // pred_check_branch
      %80 = sbr.rel (0) target = $region37
    $region36: #{lstm_model_forward.1} parent=1 // pred_region
      %s82 = ssub.s32 2048, 2048
      %83 = vsyncadd [#allocation10], %s82
      %s84 = sshll.u32 [#allocation11], 4
      %s85 = int_to_ptr.vmem [resolvable:$true] %s84
      %90 = dma.hbm_to_vmem [thread:$0]  %s8, 2048, %s85, [#allocation10], 256, 256, 16
    $region37: #{lstm_model_forward.1} parent=1 // pred_fallthru
      _
    // Predicated region
    $region38: #{lstm_model_forward.1} parent=1 // pred_check
      _
    $region39: #{lstm_model_forward.1} parent=1 // pred_check_branch
      %92 = sbr.rel (0) target = $region41
    $region40: #{lstm_model_forward.1} parent=1 // pred_region
      _
    $region41: #{lstm_model_forward.1} parent=1 // pred_fallthru
      _
    // Predicated region
    $region42: #{lstm_model_forward.1} parent=1 // pred_check
      _
    $region43: #{lstm_model_forward.1} parent=1 // pred_check_branch
      %94 = sbr.rel (0) target = $region45
    $region44: #{lstm_model_forward.1} parent=1 // pred_region
      %s96 = ssub.s32 2048, 2048
      %97 = vsyncadd [#allocation13], %s96
      %s98 = sshll.u32 [#allocation12], 4
      %s99 = int_to_ptr.vmem [resolvable:$true] %s98
      %104 = dma.hbm_to_vmem [thread:$0]  %s10, 2048, %s99, [#allocation13], 256, 256, 16
    $region45: #{lstm_model_forward.1} parent=1 // pred_fallthru
      _
    // Predicated region
    $region46: #{lstm_model_forward.1} parent=1 // pred_check
      _
    $region47: #{lstm_model_forward.1} parent=1 // pred_check_branch
      %106 = sbr.rel (0) target = $region49
    $region48: #{lstm_model_forward.1} parent=1 // pred_region
      %s108 = ssub.s32 2048, 2048
      %109 = vsyncadd [#allocation13], %s108
      %s110 = sshll.u32 [#allocation14], 4
      %s111 = int_to_ptr.vmem [resolvable:$true] %s110
      %116 = dma.hbm_to_vmem [thread:$0]  %s11, 2048, %s111, [#allocation13], 256, 256, 16
    $region49: #{lstm_model_forward.1} parent=1 // pred_fallthru
      _
    // Predicated region
    $region50: #{lstm_model_forward.1} parent=1 // pred_check
      _
    $region51: #{lstm_model_forward.1} parent=1 // pred_check_branch
      %118 = sbr.rel (0) target = $region53
    $region52: #{lstm_model_forward.1} parent=1 // pred_region
      _
    $region53: #{lstm_model_forward.1} parent=1 // pred_fallthru
      _
    // Predicated region
    $region54: #{lstm_model_forward.1} parent=1 // pred_check
      _
    $region55: #{lstm_model_forward.1} parent=1 // pred_check_branch
      %120 = sbr.rel (0) target = $region57
    $region56: #{lstm_model_forward.1} parent=1 // pred_region
      _
    $region57: #{lstm_model_forward.1} parent=1 // pred_fallthru
      _
    // Predicated region
    $region58: #{lstm_model_forward.1} parent=1 // pred_check
      _
    $region59: #{lstm_model_forward.1} parent=1 // pred_check_branch
      %122 = sbr.rel (0) target = $region61
    $region60: #{lstm_model_forward.1} parent=1 // pred_region
      %s124 = ssub.s32 16, 16
      %125 = vsyncadd [#allocation16], %s124
      %s127 = sshll.u32 [#allocation15], 4
      %s128 = int_to_ptr.vmem [resolvable:$true] %s127
      %130 = dma.hbm_to_vmem [thread:$0]  %s14, 16, %s128, [#allocation16]
    $region61: #{lstm_model_forward.1} parent=1 // pred_fallthru
      _
    // Predicated region
    $region62: #{lstm_model_forward.1} parent=1 // pred_check
      _
    $region63: #{lstm_model_forward.1} parent=1 // pred_check_branch
      %132 = sbr.rel (0) target = $region65
    $region64: #{lstm_model_forward.1} parent=1 // pred_region
      _
    $region65: #{lstm_model_forward.1} parent=1 // pred_fallthru
      _
    // Predicated region
    $region66: #{lstm_model_forward.1} parent=1 // pred_check
      _
    $region67: #{lstm_model_forward.1} parent=1 // pred_check_branch
      %134 = sbr.rel (0) target = $region69
    $region68: #{lstm_model_forward.1} parent=1 // pred_region
      %s136 = ssub.s32 16, 16
      %137 = vsyncadd [#allocation16], %s136
      %s139 = sshll.u32 [#allocation17], 4
      %s140 = int_to_ptr.vmem [resolvable:$true] %s139
      %142 = dma.hbm_to_vmem [thread:$0]  %s16, 16, %s140, [#allocation16]
    $region69: #{lstm_model_forward.1} parent=1 // pred_fallthru
      _
    // Predicated region
    $region70: #{lstm_model_forward.1} parent=1 // pred_check
      _
    $region71: #{lstm_model_forward.1} parent=1 // pred_check_branch
      %144 = sbr.rel (0) target = $region73
    $region72: #{lstm_model_forward.1} parent=1 // pred_region
      %145 = dma.done [#allocation5], 32
    $region73: #{lstm_model_forward.1} parent=1 // pred_fallthru
      _
    // Predicated region
    $region74: #{lstm_model_forward.1} parent=1 // pred_check
      _
    $region75: #{lstm_model_forward.1} parent=1 // pred_check_branch
      %147 = sbr.rel (0) target = $region77
    $region76: #{lstm_model_forward.1} parent=1 // pred_region
      %148 = dma.done [#allocation7], 2048
    $region77: #{lstm_model_forward.1} parent=1 // pred_fallthru
      _
    // Predicated region
    $region78: #{lstm_model_forward.1} parent=1 // pred_check
      _
    $region79: #{lstm_model_forward.1} parent=1 // pred_check_branch
      %150 = sbr.rel (0) target = $region81
    $region80: #{lstm_model_forward.1} parent=1 // pred_region
      %151 = dma.done [#allocation7], 32
    $region81: #{lstm_model_forward.1} parent=1 // pred_fallthru
      _
    // Predicated region
    $region82: #{lstm_model_forward.1} parent=1 // pred_check
      _
    $region83: #{lstm_model_forward.1} parent=1 // pred_check_branch
      %153 = sbr.rel (0) target = $region85
    $region84: #{lstm_model_forward.1} parent=1 // pred_region
      %154 = dma.done [#allocation10], 2048
    $region85: #{lstm_model_forward.1} parent=1 // pred_fallthru
      _
    // Predicated region
    $region86: #{lstm_model_forward.1} parent=1 // pred_check
      _
    $region87: #{lstm_model_forward.1} parent=1 // pred_check_branch
      %156 = sbr.rel (0) target = $region89
    $region88: #{lstm_model_forward.1} parent=1 // pred_region
      %157 = dma.done [#allocation10], 2048
    $region89: #{lstm_model_forward.1} parent=1 // pred_fallthru
      _
    // Predicated region
    $region90: #{lstm_model_forward.1} parent=1 // pred_check
      _
    $region91: #{lstm_model_forward.1} parent=1 // pred_check_branch
      %159 = sbr.rel (0) target = $region93
    $region92: #{lstm_model_forward.1} parent=1 // pred_region
      %160 = dma.done [#allocation13], 2048
    $region93: #{lstm_model_forward.1} parent=1 // pred_fallthru
      _
    // Predicated region
    $region94: #{lstm_model_forward.1} parent=1 // pred_check
      _
    $region95: #{lstm_model_forward.1} parent=1 // pred_check_branch
      %162 = sbr.rel (0) target = $region97
    $region96: #{lstm_model_forward.1} parent=1 // pred_region
      %163 = dma.done [#allocation13], 2048
    $region97: #{lstm_model_forward.1} parent=1 // pred_fallthru
      _
    // Predicated region
    $region98: #{lstm_model_forward.1} parent=1 // pred_check
      _
    $region99: #{lstm_model_forward.1} parent=1 // pred_check_branch
      %165 = sbr.rel (0) target = $region101
    $region100: #{lstm_model_forward.1} parent=1 // pred_region
      %166 = dma.done [#allocation16], 16
    $region101: #{lstm_model_forward.1} parent=1 // pred_fallthru
      _
    // Predicated region
    $region102: #{lstm_model_forward.1} parent=1 // pred_check
      _
    $region103: #{lstm_model_forward.1} parent=1 // pred_check_branch
      %168 = sbr.rel (0) target = $region105
    $region104: #{lstm_model_forward.1} parent=1 // pred_region
      %169 = dma.done [#allocation16], 16
    $region105: #{lstm_model_forward.1} parent=1 // pred_fallthru
      _
    %v170 = vlaneseq
    %v171 = vand.u32 %v170, 127
    %v172 = vadd.s32 %v171, 128
    %vm173 = vcmp.lt.s32.totalorder %v171, 0
    %v174 = vsub.s32 0, %v171
    %v175 = vsel %vm173, %v174, %v171
    %v176 = vshrl.u32 %v175, 6
    %v177 = vand.u32 %v175, 63
    %v178 = vsub.s32 0, %v177
    %v179 = vsel %vm173, %v178, %v177
    %vm180 = vcmp.lt.s32.totalorder %v172, 0
    %v181 = vsub.s32 0, %v172
    %v182 = vsel %vm180, %v181, %v172
    %v183 = vshrl.u32 %v182, 6
    %v184 = vand.u32 %v182, 63
    %v185 = vsub.s32 0, %v184
    %v186 = vsel %vm180, %v185, %v184
    %vm187 = vcmp.ne.s32.totalorder %v179, 0
    %vm188 = vcmp.ne.s32.totalorder %v186, 0
    %vm189 = vcmp.lt.s32.totalorder %v179, 0
    %vm190 = vcmp.lt.s32.totalorder %v186, 0
    %vm191 = vmand %vm189, %vm187
    %vm192 = vmand %vm190, %vm188
    %v193 = vadd.s32 %v179, 64
    %v194 = vadd.s32 %v186, 64
    %v195 = vsel %vm191, %v193, %v179
    %v196 = vsel %vm192, %v194, %v186
    %vm197 = vcmp.lt.s32.totalorder %v195, 32
    %vm198 = vcmp.lt.s32.totalorder %v196, 32
    %v199 = vld [vmem:[%s0] sm:$0xff]
    %v200 = vld [vmem:[%s0 + $0x8] sm:$0xff]
    %v201 = vld [vmem:[%s0 + $0x10] sm:$0xff]
    %v202 = vld [vmem:[%s0 + $0x18] sm:$0xff]
    %v203 = vld [vmem:[%s0 + $0x20] sm:$0xff]
    %v204 = vld [vmem:[%s0 + $0x28] sm:$0xff]
    %v205 = vld [vmem:[%s0 + $0x30] sm:$0xff]
    %v206 = vld [vmem:[%s0 + $0x38] sm:$0xff]
    %v207 = vld [vmem:[%s1] sm:$0xff]
    %v208 = vld [vmem:[%s1 + $0x8] sm:$0xff]
    %v209 = vld [vmem:[%s1 + $0x10] sm:$0xff]
    %v210 = vld [vmem:[%s1 + $0x18] sm:$0xff]
    %v211 = vld [vmem:[%s1 + $0x20] sm:$0xff]
    %v212 = vld [vmem:[%s1 + $0x28] sm:$0xff]
    %v213 = vld [vmem:[%s1 + $0x30] sm:$0xff]
    %v214 = vld [vmem:[%s1 + $0x38] sm:$0xff]
    %v215 = vld [vmem:[#allocation4] sm:$0x3]
    %v217 = vlaneseq
    %v218 = vshrl.u32 %v217, 7
    %v219 = vsub.s32 0, %v218
    %v220 = vrot.slane %v215, %v219
    %v221 = vlaneseq
    %v222 = vshrl.u32 %v221, 7
    %v223 = vsub.s32 1, %v222
    %v224 = vrot.slane %v215, %v223
    %vm227 = vcmask 261120
    %v229 = vsel %vm227, %v199, 0
    %v232 = vsel %vm227, %v200, 0
    %v235 = vsel %vm227, %v201, 0
    %v238 = vsel %vm227, %v202, 0
    %v241 = vsel %vm227, %v203, 0
    %v244 = vsel %vm227, %v204, 0
    %v247 = vsel %vm227, %v205, 0
    %v250 = vsel %vm227, %v206, 0
    %252 = vmatprep.subr.mxu0 0.0
    %253 = vmatpush1.msra.mxu0 0.0
    %254 = vmatprep.subr.mxu0 0.0
    %255 = vmatpush1.msra.mxu0 0.0
    %256 = vmatprep.subr.mxu0 0.0
    %257 = vmatpush1.msra.mxu0 0.0
    %258 = vmatprep.subr.mxu0 0.0
    %259 = vmatpush1.msra.mxu0 0.0
    %260 = vmatprep.subr.mxu0 0.0
    %261 = vmatpush1.msra.mxu0 0.0
    %262 = vmatprep.subr.mxu0 0.0
    %263 = vmatpush1.msra.mxu0 0.0
    %264 = vmatprep.subr.mxu0 0.0
    %265 = vmatpush1.msra.mxu0 0.0
    %266 = vmatprep.subr.mxu0 0.0
    %267 = vmatpush1.msra.mxu0 0.0
    %268 = vmatprep.subr.mxu0 0.0
    %269 = vmatpush1.msra.mxu0 0.0
    %270 = vmatprep.subr.mxu0 0.0
    %271 = vmatpush1.msra.mxu0 0.0
    %272 = vmatprep.subr.mxu0 0.0
    %273 = vmatpush1.msra.mxu0 0.0
    %274 = vmatprep.subr.mxu0 0.0
    %275 = vmatpush1.msra.mxu0 0.0
    %276 = vmatprep.subr.mxu0 %v214
    %277 = vmatpush1.msra.mxu0 %v213
    %278 = vmatprep.subr.mxu0 %v212
    %279 = vmatpush1.msra.mxu0 %v211
    %280 = vmatprep.subr.mxu0 %v210
    %281 = vmatpush1.msra.mxu0 %v209
    %282 = vmatprep.subr.mxu0 %v208
    %283 = vmatpush1.msra.mxu0 %v207
    %284 = vmatprep.subr.mxu0 0.0
    %285 = vmatpush2.msra.mxu0 0.0
    %286 = vmatprep.subr.mxu0 0.0
    %287 = vmatpush2.msra.mxu0 0.0
    %288 = vmatprep.subr.mxu0 0.0
    %289 = vmatpush2.msra.mxu0 0.0
    %290 = vmatprep.subr.mxu0 0.0
    %291 = vmatpush2.msra.mxu0 0.0
    %292 = vmatprep.subr.mxu0 0.0
    %293 = vmatpush2.msra.mxu0 0.0
    %294 = vmatprep.subr.mxu0 0.0
    %295 = vmatpush2.msra.mxu0 0.0
    %296 = vmatprep.subr.mxu0 0.0
    %297 = vmatpush2.msra.mxu0 0.0
    %298 = vmatprep.subr.mxu0 0.0
    %299 = vmatpush2.msra.mxu0 0.0
    %300 = vmatprep.subr.mxu0 0.0
    %301 = vmatpush2.msra.mxu0 0.0
    %302 = vmatprep.subr.mxu0 0.0
    %303 = vmatpush2.msra.mxu0 0.0
    %304 = vmatprep.subr.mxu0 0.0
    %305 = vmatpush2.msra.mxu0 0.0
    %306 = vmatprep.subr.mxu0 0.0
    %307 = vmatpush2.msra.mxu0 0.0
    %308 = vmatprep.subr.mxu0 0.0
    %309 = vmatpush2.msra.mxu0 0.0
    %310 = vmatprep.subr.mxu0 0.0
    %311 = vmatpush2.msra.mxu0 0.0
    %312 = vmatprep.subr.mxu0 0.0
    %313 = vmatpush2.msra.mxu0 0.0
    %314 = vmatprep.subr.mxu0 0.0
    %315 = vmatpush2.msra.mxu0 0.0
    %316 = vmatprep.mubr.f32.mxu0 0.0
    %317 = vmatmul.mubr.f32.gmra.mxu0 %v229
    %v318 = vpop.f32.mrf.mxu0
    %v319 = vadd.f32 %v220, %v318
    %v320 = vpop.f32.mrf.mxu0
    %v321 = vadd.f32 %v224, %v320
    %322 = vmatprep.mubr.f32.mxu0 0.0
    %323 = vmatmul.mubr.f32.gmra.mxu0 %v232
    %v324 = vpop.f32.mrf.mxu0
    %v325 = vadd.f32 %v220, %v324
    %v326 = vpop.f32.mrf.mxu0
    %v327 = vadd.f32 %v224, %v326
    %328 = vmatprep.mubr.f32.mxu0 0.0
    %329 = vmatmul.mubr.f32.gmra.mxu0 %v235
    %v330 = vpop.f32.mrf.mxu0
    %v331 = vadd.f32 %v220, %v330
    %v332 = vpop.f32.mrf.mxu0
    %v333 = vadd.f32 %v224, %v332
    %334 = vmatprep.mubr.f32.mxu0 0.0
    %335 = vmatmul.mubr.f32.gmra.mxu0 %v238
    %v336 = vpop.f32.mrf.mxu0
    %v337 = vadd.f32 %v220, %v336
    %v338 = vpop.f32.mrf.mxu0
    %v339 = vadd.f32 %v224, %v338
    %340 = vmatprep.mubr.f32.mxu0 0.0
    %341 = vmatmul.mubr.f32.gmra.mxu0 %v241
    %v342 = vpop.f32.mrf.mxu0
    %v343 = vadd.f32 %v220, %v342
    %v344 = vpop.f32.mrf.mxu0
    %v345 = vadd.f32 %v224, %v344
    %346 = vmatprep.mubr.f32.mxu0 0.0
    %347 = vmatmul.mubr.f32.gmra.mxu0 %v244
    %v348 = vpop.f32.mrf.mxu0
    %v349 = vadd.f32 %v220, %v348
    %v350 = vpop.f32.mrf.mxu0
    %v351 = vadd.f32 %v224, %v350
    %352 = vmatprep.mubr.f32.mxu0 0.0
    %353 = vmatmul.mubr.f32.gmra.mxu0 %v247
    %v354 = vpop.f32.mrf.mxu0
    %v355 = vadd.f32 %v220, %v354
    %v356 = vpop.f32.mrf.mxu0
    %v357 = vadd.f32 %v224, %v356
    %358 = vmatprep.mubr.f32.mxu0 0.0
    %359 = vmatmul.mubr.f32.gmra.mxu0 %v250
    %v360 = vpop.f32.mrf.mxu0
    %v361 = vadd.f32 %v220, %v360
    %v362 = vpop.f32.mrf.mxu0
    %v363 = vadd.f32 %v224, %v362
    %364 = vdwg.mxu0
    %365 = vst [vmem:[#allocation2] sm:$0xff] %v319
    %366 = vst [vmem:[#allocation2 + $0x8] sm:$0xff] %v321
    %367 = vst [vmem:[#allocation2 + $0x10] sm:$0xff] %v325
    %368 = vst [vmem:[#allocation2 + $0x18] sm:$0xff] %v327
    %369 = vst [vmem:[#allocation2 + $0x20] sm:$0xff] %v331
    %370 = vst [vmem:[#allocation2 + $0x28] sm:$0xff] %v333
    %371 = vst [vmem:[#allocation2 + $0x30] sm:$0xff] %v337
    %372 = vst [vmem:[#allocation2 + $0x38] sm:$0xff] %v339
    %373 = vst [vmem:[#allocation2 + $0x40] sm:$0xff] %v343
    %374 = vst [vmem:[#allocation2 + $0x48] sm:$0xff] %v345
    %375 = vst [vmem:[#allocation2 + $0x50] sm:$0xff] %v349
    %376 = vst [vmem:[#allocation2 + $0x58] sm:$0xff] %v351
    %377 = vst [vmem:[#allocation2 + $0x60] sm:$0xff] %v355
    %378 = vst [vmem:[#allocation2 + $0x68] sm:$0xff] %v357
    %379 = vst [vmem:[#allocation2 + $0x70] sm:$0xff] %v361
    %380 = vst [vmem:[#allocation2 + $0x78] sm:$0xff] %v363
    %v381 = vld [vmem:[%s2] sm:$0xff]
    %v382 = vld [vmem:[%s2 + $0x8] sm:$0xff]
    %v383 = vld [vmem:[%s2 + $0x10] sm:$0xff]
    %v384 = vld [vmem:[%s2 + $0x18] sm:$0xff]
    %v385 = vld [vmem:[%s2 + $0x20] sm:$0xff]
    %v386 = vld [vmem:[%s2 + $0x28] sm:$0xff]
    %v387 = vld [vmem:[%s2 + $0x30] sm:$0xff]
    %v388 = vld [vmem:[%s2 + $0x38] sm:$0xff]
    %v389 = vld [vmem:[%s2 + $0x40] sm:$0xff]
    %v390 = vld [vmem:[%s2 + $0x48] sm:$0xff]
    %v391 = vld [vmem:[%s2 + $0x50] sm:$0xff]
    %v392 = vld [vmem:[%s2 + $0x58] sm:$0xff]
    %v393 = vld [vmem:[%s2 + $0x60] sm:$0xff]
    %v394 = vld [vmem:[%s2 + $0x68] sm:$0xff]
    %v395 = vld [vmem:[%s2 + $0x70] sm:$0xff]
    %v396 = vld [vmem:[%s2 + $0x78] sm:$0xff]
    %s397 = smul.u32 0, 2
    %s398 = smul.addr %s397, 8
    %s399 = scalar_lea.vmem [#allocation2], %s398
    %v400 = vld [vmem:[%s399] sm:$0xff]
    %v401 = vld [vmem:[%s399 + $0x8] sm:$0xff]
    %s402 = smul.u32 7, 2
    %s403 = smul.addr %s402, 8
    %s404 = scalar_lea.vmem [#allocation2], %s403
    %v405 = vld [vmem:[%s404] sm:$0xff]
    %v406 = vld [vmem:[%s404 + $0x8] sm:$0xff]
    %v407 = vsel %vm197, %v400, %v405
    %v408 = vsel %vm198, %v401, %v406
    %vm409 = vcmask 523264
    %v411 = vsel %vm409, 0.0, 0
    %413 = vmatprep.subr.mxu0 0.0
    %414 = vmatpush1.msra.mxu0 0.0
    %415 = vmatprep.subr.mxu0 0.0
    %416 = vmatpush1.msra.mxu0 0.0
    %417 = vmatprep.subr.mxu0 0.0
    %418 = vmatpush1.msra.mxu0 0.0
    %419 = vmatprep.subr.mxu0 0.0
    %420 = vmatpush1.msra.mxu0 0.0
    %421 = vmatprep.subr.mxu0 0.0
    %422 = vmatpush1.msra.mxu0 0.0
    %423 = vmatprep.subr.mxu0 0.0
    %424 = vmatpush1.msra.mxu0 0.0
    %425 = vmatprep.subr.mxu0 0.0
    %426 = vmatpush1.msra.mxu0 0.0
    %427 = vmatprep.subr.mxu0 0.0
    %428 = vmatpush1.msra.mxu0 0.0
    %429 = vmatprep.subr.mxu0 %v396
    %430 = vmatpush1.msra.mxu0 %v395
    %431 = vmatprep.subr.mxu0 %v394
    %432 = vmatpush1.msra.mxu0 %v393
    %433 = vmatprep.subr.mxu0 %v392
    %434 = vmatpush1.msra.mxu0 %v391
    %435 = vmatprep.subr.mxu0 %v390
    %436 = vmatpush1.msra.mxu0 %v389
    %437 = vmatprep.subr.mxu0 %v388
    %438 = vmatpush1.msra.mxu0 %v387
    %439 = vmatprep.subr.mxu0 %v386
    %440 = vmatpush1.msra.mxu0 %v385
    %441 = vmatprep.subr.mxu0 %v384
    %442 = vmatpush1.msra.mxu0 %v383
    %443 = vmatprep.subr.mxu0 %v382
    %444 = vmatpush1.msra.mxu0 %v381
    %445 = vmatprep.subr.mxu0 0.0
    %446 = vmatpush2.msra.mxu0 0.0
    %447 = vmatprep.subr.mxu0 0.0
    %448 = vmatpush2.msra.mxu0 0.0
    %449 = vmatprep.subr.mxu0 0.0
    %450 = vmatpush2.msra.mxu0 0.0
    %451 = vmatprep.subr.mxu0 0.0
    %452 = vmatpush2.msra.mxu0 0.0
    %453 = vmatprep.subr.mxu0 0.0
    %454 = vmatpush2.msra.mxu0 0.0
    %455 = vmatprep.subr.mxu0 0.0
    %456 = vmatpush2.msra.mxu0 0.0
    %457 = vmatprep.subr.mxu0 0.0
    %458 = vmatpush2.msra.mxu0 0.0
    %459 = vmatprep.subr.mxu0 0.0
    %460 = vmatpush2.msra.mxu0 0.0
    %461 = vmatprep.subr.mxu0 0.0
    %462 = vmatpush2.msra.mxu0 0.0
    %463 = vmatprep.subr.mxu0 0.0
    %464 = vmatpush2.msra.mxu0 0.0
    %465 = vmatprep.subr.mxu0 0.0
    %466 = vmatpush2.msra.mxu0 0.0
    %467 = vmatprep.subr.mxu0 0.0
    %468 = vmatpush2.msra.mxu0 0.0
    %469 = vmatprep.subr.mxu0 0.0
    %470 = vmatpush2.msra.mxu0 0.0
    %471 = vmatprep.subr.mxu0 0.0
    %472 = vmatpush2.msra.mxu0 0.0
    %473 = vmatprep.subr.mxu0 0.0
    %474 = vmatpush2.msra.mxu0 0.0
    %475 = vmatprep.subr.mxu0 0.0
    %476 = vmatpush2.msra.mxu0 0.0
    %477 = vmatprep.mubr.f32.mxu0 0.0
    %478 = vmatmul.mubr.f32.gmra.mxu0 %v411
    %v479 = vpop.f32.mrf.mxu0
    %v480 = vadd.f32 %v407, %v479
    %v481 = vpop.f32.mrf.mxu0
    %v482 = vadd.f32 %v408, %v481
    %483 = vdwg.mxu0
    %v484 = vxor.u32 %v480, 2147483648
    %v485 = vxor.u32 %v482, 2147483648
    %v486 = vmul.f32 %v484, 1.442695
    %v487 = vpow.pop %v486
    %v488 = vmul.f32 %v485, 1.442695
    %v489 = vpow.pop %v488
    %v490 = vadd.f32 %v487, 1.0
    %v491 = vadd.f32 %v489, 1.0
    %v492 = vrcp.pop %v490
    %v493 = vmul.f32 1.0, %v492
    %v494 = vrcp.pop %v491
    %v495 = vmul.f32 1.0, %v494
    %v496 = vtanh.pop %v482
    %v497 = vmul.f32 %v493, 0.0
    %499 = vrot.lane.b32.xlu0 %v496, 64
    %v500 = vpop.permute.xlu0 %499
    %v502 = vmul.f32 %v493, %v500
    %504 = vrot.lane.b32.xlu0 %v502, 64
    %v505 = vpop.permute.xlu0 %504
    %v507 = vadd.f32 %v497, %v505
    %v508 = vtanh.pop %v507
    %510 = vrot.lane.b32.xlu0 %v508, 64
    %v511 = vpop.permute.xlu0 %510
    %v513 = vmul.f32 %v495, %v511
    %514 = vst.msk [vmem:[#allocation3] sm:$0xff] %vm227, %v513
    %s515 = scalar_lea.vmem [#allocation3], 56
    %vm516 = vcmask 523520
    %517 = vst.msk [vmem:[%s515] sm:$0xff] %vm516, %v513
    %s518 = smul.u32 1, 2
    %s519 = smul.addr %s518, 8
    %s520 = scalar_lea.vmem [#allocation2], %s519
    %v521 = vld [vmem:[%s520] sm:$0xff]
    %v522 = vld [vmem:[%s520 + $0x8] sm:$0xff]
    %s523 = smul.u32 6, 2
    %s524 = smul.addr %s523, 8
    %s525 = scalar_lea.vmem [#allocation2], %s524
    %v526 = vld [vmem:[%s525] sm:$0xff]
    %v527 = vld [vmem:[%s525 + $0x8] sm:$0xff]
    %v528 = vsel %vm197, %v521, %v526
    %v529 = vsel %vm198, %v522, %v527
    %v531 = vsel %vm409, %v513, 0
    %533 = vmatprep.subr.mxu0 0.0
    %534 = vmatpush1.msra.mxu0 0.0
    %535 = vmatprep.subr.mxu0 0.0
    %536 = vmatpush1.msra.mxu0 0.0
    %537 = vmatprep.subr.mxu0 0.0
    %538 = vmatpush1.msra.mxu0 0.0
    %539 = vmatprep.subr.mxu0 0.0
    %540 = vmatpush1.msra.mxu0 0.0
    %541 = vmatprep.subr.mxu0 0.0
    %542 = vmatpush1.msra.mxu0 0.0
    %543 = vmatprep.subr.mxu0 0.0
    %544 = vmatpush1.msra.mxu0 0.0
    %545 = vmatprep.subr.mxu0 0.0
    %546 = vmatpush1.msra.mxu0 0.0
    %547 = vmatprep.subr.mxu0 0.0
    %548 = vmatpush1.msra.mxu0 0.0
    %549 = vmatprep.subr.mxu0 %v396
    %550 = vmatpush1.msra.mxu0 %v395
    %551 = vmatprep.subr.mxu0 %v394
    %552 = vmatpush1.msra.mxu0 %v393
    %553 = vmatprep.subr.mxu0 %v392
    %554 = vmatpush1.msra.mxu0 %v391
    %555 = vmatprep.subr.mxu0 %v390
    %556 = vmatpush1.msra.mxu0 %v389
    %557 = vmatprep.subr.mxu0 %v388
    %558 = vmatpush1.msra.mxu0 %v387
    %559 = vmatprep.subr.mxu0 %v386
    %560 = vmatpush1.msra.mxu0 %v385
    %561 = vmatprep.subr.mxu0 %v384
    %562 = vmatpush1.msra.mxu0 %v383
    %563 = vmatprep.subr.mxu0 %v382
    %564 = vmatpush1.msra.mxu0 %v381
    %565 = vmatprep.subr.mxu0 0.0
    %566 = vmatpush2.msra.mxu0 0.0
    %567 = vmatprep.subr.mxu0 0.0
    %568 = vmatpush2.msra.mxu0 0.0
    %569 = vmatprep.subr.mxu0 0.0
    %570 = vmatpush2.msra.mxu0 0.0
    %571 = vmatprep.subr.mxu0 0.0
    %572 = vmatpush2.msra.mxu0 0.0
    %573 = vmatprep.subr.mxu0 0.0
    %574 = vmatpush2.msra.mxu0 0.0
    %575 = vmatprep.subr.mxu0 0.0
    %576 = vmatpush2.msra.mxu0 0.0
    %577 = vmatprep.subr.mxu0 0.0
    %578 = vmatpush2.msra.mxu0 0.0
    %579 = vmatprep.subr.mxu0 0.0
    %580 = vmatpush2.msra.mxu0 0.0
    %581 = vmatprep.subr.mxu0 0.0
    %582 = vmatpush2.msra.mxu0 0.0
    %583 = vmatprep.subr.mxu0 0.0
    %584 = vmatpush2.msra.mxu0 0.0
    %585 = vmatprep.subr.mxu0 0.0
    %586 = vmatpush2.msra.mxu0 0.0
    %587 = vmatprep.subr.mxu0 0.0
    %588 = vmatpush2.msra.mxu0 0.0
    %589 = vmatprep.subr.mxu0 0.0
    %590 = vmatpush2.msra.mxu0 0.0
    %591 = vmatprep.subr.mxu0 0.0
    %592 = vmatpush2.msra.mxu0 0.0
    %593 = vmatprep.subr.mxu0 0.0
    %594 = vmatpush2.msra.mxu0 0.0
    %595 = vmatprep.subr.mxu0 0.0
    %596 = vmatpush2.msra.mxu0 0.0
    %597 = vmatprep.mubr.f32.mxu0 0.0
    %598 = vmatmul.mubr.f32.gmra.mxu0 %v531
    %v599 = vpop.f32.mrf.mxu0
    %v600 = vadd.f32 %v528, %v599
    %v601 = vpop.f32.mrf.mxu0
    %v602 = vadd.f32 %v529, %v601
    %603 = vdwg.mxu0
    %v604 = vxor.u32 %v600, 2147483648
    %v605 = vxor.u32 %v602, 2147483648
    %v606 = vmul.f32 %v604, 1.442695
    %v607 = vpow.pop %v606
    %v608 = vmul.f32 %v605, 1.442695
    %v609 = vpow.pop %v608
    %v610 = vadd.f32 %v607, 1.0
    %v611 = vadd.f32 %v609, 1.0
    %v612 = vrcp.pop %v610
    %v613 = vmul.f32 1.0, %v612
    %v614 = vrcp.pop %v611
    %v615 = vmul.f32 1.0, %v614
    %v616 = vtanh.pop %v602
    %v617 = vmul.f32 %v613, %v507
    %619 = vrot.lane.b32.xlu0 %v616, 64
    %v620 = vpop.permute.xlu0 %619
    %v622 = vmul.f32 %v613, %v620
    %624 = vrot.lane.b32.xlu0 %v622, 64
    %v625 = vpop.permute.xlu0 %624
    %v627 = vadd.f32 %v617, %v625
    %v628 = vtanh.pop %v627
    %630 = vrot.lane.b32.xlu0 %v628, 64
    %v631 = vpop.permute.xlu0 %630
    %v633 = vmul.f32 %v615, %v631
    %s634 = scalar_lea.vmem [#allocation3], 8
    %635 = vst.msk [vmem:[%s634] sm:$0xff] %vm227, %v633
    %s636 = scalar_lea.vmem [#allocation3], 48
    %637 = vst.msk [vmem:[%s636] sm:$0xff] %vm516, %v633
    %s638 = smul.u32 2, 2
    %s639 = smul.addr %s638, 8
    %s640 = scalar_lea.vmem [#allocation2], %s639
    %v641 = vld [vmem:[%s640] sm:$0xff]
    %v642 = vld [vmem:[%s640 + $0x8] sm:$0xff]
    %s643 = smul.u32 5, 2
    %s644 = smul.addr %s643, 8
    %s645 = scalar_lea.vmem [#allocation2], %s644
    %v646 = vld [vmem:[%s645] sm:$0xff]
    %v647 = vld [vmem:[%s645 + $0x8] sm:$0xff]
    %v648 = vsel %vm197, %v641, %v646
    %v649 = vsel %vm198, %v642, %v647
    %v651 = vsel %vm409, %v633, 0
    %653 = vmatprep.subr.mxu0 0.0
    %654 = vmatpush1.msra.mxu0 0.0
    %655 = vmatprep.subr.mxu0 0.0
    %656 = vmatpush1.msra.mxu0 0.0
    %657 = vmatprep.subr.mxu0 0.0
    %658 = vmatpush1.msra.mxu0 0.0
    %659 = vmatprep.subr.mxu0 0.0
    %660 = vmatpush1.msra.mxu0 0.0
    %661 = vmatprep.subr.mxu0 0.0
    %662 = vmatpush1.msra.mxu0 0.0
    %663 = vmatprep.subr.mxu0 0.0
    %664 = vmatpush1.msra.mxu0 0.0
    %665 = vmatprep.subr.mxu0 0.0
    %666 = vmatpush1.msra.mxu0 0.0
    %667 = vmatprep.subr.mxu0 0.0
    %668 = vmatpush1.msra.mxu0 0.0
    %669 = vmatprep.subr.mxu0 %v396
    %670 = vmatpush1.msra.mxu0 %v395
    %671 = vmatprep.subr.mxu0 %v394
    %672 = vmatpush1.msra.mxu0 %v393
    %673 = vmatprep.subr.mxu0 %v392
    %674 = vmatpush1.msra.mxu0 %v391
    %675 = vmatprep.subr.mxu0 %v390
    %676 = vmatpush1.msra.mxu0 %v389
    %677 = vmatprep.subr.mxu0 %v388
    %678 = vmatpush1.msra.mxu0 %v387
    %679 = vmatprep.subr.mxu0 %v386
    %680 = vmatpush1.msra.mxu0 %v385
    %681 = vmatprep.subr.mxu0 %v384
    %682 = vmatpush1.msra.mxu0 %v383
    %683 = vmatprep.subr.mxu0 %v382
    %684 = vmatpush1.msra.mxu0 %v381
    %685 = vmatprep.subr.mxu0 0.0
    %686 = vmatpush2.msra.mxu0 0.0
    %687 = vmatprep.subr.mxu0 0.0
    %688 = vmatpush2.msra.mxu0 0.0
    %689 = vmatprep.subr.mxu0 0.0
    %690 = vmatpush2.msra.mxu0 0.0
    %691 = vmatprep.subr.mxu0 0.0
    %692 = vmatpush2.msra.mxu0 0.0
    %693 = vmatprep.subr.mxu0 0.0
    %694 = vmatpush2.msra.mxu0 0.0
    %695 = vmatprep.subr.mxu0 0.0
    %696 = vmatpush2.msra.mxu0 0.0
    %697 = vmatprep.subr.mxu0 0.0
    %698 = vmatpush2.msra.mxu0 0.0
    %699 = vmatprep.subr.mxu0 0.0
    %700 = vmatpush2.msra.mxu0 0.0
    %701 = vmatprep.subr.mxu0 0.0
    %702 = vmatpush2.msra.mxu0 0.0
    %703 = vmatprep.subr.mxu0 0.0
    %704 = vmatpush2.msra.mxu0 0.0
    %705 = vmatprep.subr.mxu0 0.0
    %706 = vmatpush2.msra.mxu0 0.0
    %707 = vmatprep.subr.mxu0 0.0
    %708 = vmatpush2.msra.mxu0 0.0
    %709 = vmatprep.subr.mxu0 0.0
    %710 = vmatpush2.msra.mxu0 0.0
    %711 = vmatprep.subr.mxu0 0.0
    %712 = vmatpush2.msra.mxu0 0.0
    %713 = vmatprep.subr.mxu0 0.0
    %714 = vmatpush2.msra.mxu0 0.0
    %715 = vmatprep.subr.mxu0 0.0
    %716 = vmatpush2.msra.mxu0 0.0
    %717 = vmatprep.mubr.f32.mxu0 0.0
    %718 = vmatmul.mubr.f32.gmra.mxu0 %v651
    %v719 = vpop.f32.mrf.mxu0
    %v720 = vadd.f32 %v648, %v719
    %v721 = vpop.f32.mrf.mxu0
    %v722 = vadd.f32 %v649, %v721
    %723 = vdwg.mxu0
    %v724 = vxor.u32 %v720, 2147483648
    %v725 = vxor.u32 %v722, 2147483648
    %v726 = vmul.f32 %v724, 1.442695
    %v727 = vpow.pop %v726
    %v728 = vmul.f32 %v725, 1.442695
    %v729 = vpow.pop %v728
    %v730 = vadd.f32 %v727, 1.0
    %v731 = vadd.f32 %v729, 1.0
    %v732 = vrcp.pop %v730
    %v733 = vmul.f32 1.0, %v732
    %v734 = vrcp.pop %v731
    %v735 = vmul.f32 1.0, %v734
    %v736 = vtanh.pop %v722
    %v737 = vmul.f32 %v733, %v627
    %739 = vrot.lane.b32.xlu0 %v736, 64
    %v740 = vpop.permute.xlu0 %739
    %v742 = vmul.f32 %v733, %v740
    %744 = vrot.lane.b32.xlu0 %v742, 64
    %v745 = vpop.permute.xlu0 %744
    %v747 = vadd.f32 %v737, %v745
    %v748 = vtanh.pop %v747
    %750 = vrot.lane.b32.xlu0 %v748, 64
    %v751 = vpop.permute.xlu0 %750
    %v753 = vmul.f32 %v735, %v751
    %s754 = scalar_lea.vmem [#allocation3], 16
    %755 = vst.msk [vmem:[%s754] sm:$0xff] %vm227, %v753
    %s756 = scalar_lea.vmem [#allocation3], 40
    %757 = vst.msk [vmem:[%s756] sm:$0xff] %vm516, %v753
    %s758 = smul.u32 3, 2
    %s759 = smul.addr %s758, 8
    %s760 = scalar_lea.vmem [#allocation2], %s759
    %v761 = vld [vmem:[%s760] sm:$0xff]
    %v762 = vld [vmem:[%s760 + $0x8] sm:$0xff]
    %s763 = smul.u32 4, 2
    %s764 = smul.addr %s763, 8
    %s765 = scalar_lea.vmem [#allocation2], %s764
    %v766 = vld [vmem:[%s765] sm:$0xff]
    %v767 = vld [vmem:[%s765 + $0x8] sm:$0xff]
    %v768 = vsel %vm197, %v761, %v766
    %v769 = vsel %vm198, %v762, %v767
    %v771 = vsel %vm409, %v753, 0
    %773 = vmatprep.subr.mxu0 0.0
    %774 = vmatpush1.msra.mxu0 0.0
    %775 = vmatprep.subr.mxu0 0.0
    %776 = vmatpush1.msra.mxu0 0.0
    %777 = vmatprep.subr.mxu0 0.0
    %778 = vmatpush1.msra.mxu0 0.0
    %779 = vmatprep.subr.mxu0 0.0
    %780 = vmatpush1.msra.mxu0 0.0
    %781 = vmatprep.subr.mxu0 0.0
    %782 = vmatpush1.msra.mxu0 0.0
    %783 = vmatprep.subr.mxu0 0.0
    %784 = vmatpush1.msra.mxu0 0.0
    %785 = vmatprep.subr.mxu0 0.0
    %786 = vmatpush1.msra.mxu0 0.0
    %787 = vmatprep.subr.mxu0 0.0
    %788 = vmatpush1.msra.mxu0 0.0
    %789 = vmatprep.subr.mxu0 %v396
    %790 = vmatpush1.msra.mxu0 %v395
    %791 = vmatprep.subr.mxu0 %v394
    %792 = vmatpush1.msra.mxu0 %v393
    %793 = vmatprep.subr.mxu0 %v392
    %794 = vmatpush1.msra.mxu0 %v391
    %795 = vmatprep.subr.mxu0 %v390
    %796 = vmatpush1.msra.mxu0 %v389
    %797 = vmatprep.subr.mxu0 %v388
    %798 = vmatpush1.msra.mxu0 %v387
    %799 = vmatprep.subr.mxu0 %v386
    %800 = vmatpush1.msra.mxu0 %v385
    %801 = vmatprep.subr.mxu0 %v384
    %802 = vmatpush1.msra.mxu0 %v383
    %803 = vmatprep.subr.mxu0 %v382
    %804 = vmatpush1.msra.mxu0 %v381
    %805 = vmatprep.subr.mxu0 0.0
    %806 = vmatpush2.msra.mxu0 0.0
    %807 = vmatprep.subr.mxu0 0.0
    %808 = vmatpush2.msra.mxu0 0.0
    %809 = vmatprep.subr.mxu0 0.0
    %810 = vmatpush2.msra.mxu0 0.0
    %811 = vmatprep.subr.mxu0 0.0
    %812 = vmatpush2.msra.mxu0 0.0
    %813 = vmatprep.subr.mxu0 0.0
    %814 = vmatpush2.msra.mxu0 0.0
    %815 = vmatprep.subr.mxu0 0.0
    %816 = vmatpush2.msra.mxu0 0.0
    %817 = vmatprep.subr.mxu0 0.0
    %818 = vmatpush2.msra.mxu0 0.0
    %819 = vmatprep.subr.mxu0 0.0
    %820 = vmatpush2.msra.mxu0 0.0
    %821 = vmatprep.subr.mxu0 0.0
    %822 = vmatpush2.msra.mxu0 0.0
    %823 = vmatprep.subr.mxu0 0.0
    %824 = vmatpush2.msra.mxu0 0.0
    %825 = vmatprep.subr.mxu0 0.0
    %826 = vmatpush2.msra.mxu0 0.0
    %827 = vmatprep.subr.mxu0 0.0
    %828 = vmatpush2.msra.mxu0 0.0
    %829 = vmatprep.subr.mxu0 0.0
    %830 = vmatpush2.msra.mxu0 0.0
    %831 = vmatprep.subr.mxu0 0.0
    %832 = vmatpush2.msra.mxu0 0.0
    %833 = vmatprep.subr.mxu0 0.0
    %834 = vmatpush2.msra.mxu0 0.0
    %835 = vmatprep.subr.mxu0 0.0
    %836 = vmatpush2.msra.mxu0 0.0
    %837 = vmatprep.mubr.f32.mxu0 0.0
    %838 = vmatmul.mubr.f32.gmra.mxu0 %v771
    %v839 = vpop.f32.mrf.mxu0
    %v840 = vadd.f32 %v768, %v839
    %v841 = vpop.f32.mrf.mxu0
    %v842 = vadd.f32 %v769, %v841
    %843 = vdwg.mxu0
    %v844 = vxor.u32 %v840, 2147483648
    %v845 = vxor.u32 %v842, 2147483648
    %v846 = vmul.f32 %v844, 1.442695
    %v847 = vpow.pop %v846
    %v848 = vmul.f32 %v845, 1.442695
    %v849 = vpow.pop %v848
    %v850 = vadd.f32 %v847, 1.0
    %v851 = vadd.f32 %v849, 1.0
    %v852 = vrcp.pop %v850
    %v853 = vmul.f32 1.0, %v852
    %v854 = vrcp.pop %v851
    %v855 = vmul.f32 1.0, %v854
    %v856 = vtanh.pop %v842
    %v857 = vmul.f32 %v853, %v747
    %859 = vrot.lane.b32.xlu0 %v856, 64
    %v860 = vpop.permute.xlu0 %859
    %v862 = vmul.f32 %v853, %v860
    %864 = vrot.lane.b32.xlu0 %v862, 64
    %v865 = vpop.permute.xlu0 %864
    %v867 = vadd.f32 %v857, %v865
    %v868 = vtanh.pop %v867
    %870 = vrot.lane.b32.xlu0 %v868, 64
    %v871 = vpop.permute.xlu0 %870
    %v873 = vmul.f32 %v855, %v871
    %s874 = scalar_lea.vmem [#allocation3], 24
    %875 = vst.msk [vmem:[%s874] sm:$0xff] %vm227, %v873
    %s876 = scalar_lea.vmem [#allocation3], 32
    %877 = vst.msk [vmem:[%s876] sm:$0xff] %vm516, %v873
    %v878 = vld [vmem:[%s765] sm:$0xff]
    %v879 = vld [vmem:[%s765 + $0x8] sm:$0xff]
    %v880 = vld [vmem:[%s760] sm:$0xff]
    %v881 = vld [vmem:[%s760 + $0x8] sm:$0xff]
    %v882 = vsel %vm197, %v878, %v880
    %v883 = vsel %vm198, %v879, %v881
    %v885 = vsel %vm409, %v873, 0
    %887 = vmatprep.subr.mxu0 0.0
    %888 = vmatpush1.msra.mxu0 0.0
    %889 = vmatprep.subr.mxu0 0.0
    %890 = vmatpush1.msra.mxu0 0.0
    %891 = vmatprep.subr.mxu0 0.0
    %892 = vmatpush1.msra.mxu0 0.0
    %893 = vmatprep.subr.mxu0 0.0
    %894 = vmatpush1.msra.mxu0 0.0
    %895 = vmatprep.subr.mxu0 0.0
    %896 = vmatpush1.msra.mxu0 0.0
    %897 = vmatprep.subr.mxu0 0.0
    %898 = vmatpush1.msra.mxu0 0.0
    %899 = vmatprep.subr.mxu0 0.0
    %900 = vmatpush1.msra.mxu0 0.0
    %901 = vmatprep.subr.mxu0 0.0
    %902 = vmatpush1.msra.mxu0 0.0
    %903 = vmatprep.subr.mxu0 %v396
    %904 = vmatpush1.msra.mxu0 %v395
    %905 = vmatprep.subr.mxu0 %v394
    %906 = vmatpush1.msra.mxu0 %v393
    %907 = vmatprep.subr.mxu0 %v392
    %908 = vmatpush1.msra.mxu0 %v391
    %909 = vmatprep.subr.mxu0 %v390
    %910 = vmatpush1.msra.mxu0 %v389
    %911 = vmatprep.subr.mxu0 %v388
    %912 = vmatpush1.msra.mxu0 %v387
    %913 = vmatprep.subr.mxu0 %v386
    %914 = vmatpush1.msra.mxu0 %v385
    %915 = vmatprep.subr.mxu0 %v384
    %916 = vmatpush1.msra.mxu0 %v383
    %917 = vmatprep.subr.mxu0 %v382
    %918 = vmatpush1.msra.mxu0 %v381
    %919 = vmatprep.subr.mxu0 0.0
    %920 = vmatpush2.msra.mxu0 0.0
    %921 = vmatprep.subr.mxu0 0.0
    %922 = vmatpush2.msra.mxu0 0.0
    %923 = vmatprep.subr.mxu0 0.0
    %924 = vmatpush2.msra.mxu0 0.0
    %925 = vmatprep.subr.mxu0 0.0
    %926 = vmatpush2.msra.mxu0 0.0
    %927 = vmatprep.subr.mxu0 0.0
    %928 = vmatpush2.msra.mxu0 0.0
    %929 = vmatprep.subr.mxu0 0.0
    %930 = vmatpush2.msra.mxu0 0.0
    %931 = vmatprep.subr.mxu0 0.0
    %932 = vmatpush2.msra.mxu0 0.0
    %933 = vmatprep.subr.mxu0 0.0
    %934 = vmatpush2.msra.mxu0 0.0
    %935 = vmatprep.subr.mxu0 0.0
    %936 = vmatpush2.msra.mxu0 0.0
    %937 = vmatprep.subr.mxu0 0.0
    %938 = vmatpush2.msra.mxu0 0.0
    %939 = vmatprep.subr.mxu0 0.0
    %940 = vmatpush2.msra.mxu0 0.0
    %941 = vmatprep.subr.mxu0 0.0
    %942 = vmatpush2.msra.mxu0 0.0
    %943 = vmatprep.subr.mxu0 0.0
    %944 = vmatpush2.msra.mxu0 0.0
    %945 = vmatprep.subr.mxu0 0.0
    %946 = vmatpush2.msra.mxu0 0.0
    %947 = vmatprep.subr.mxu0 0.0
    %948 = vmatpush2.msra.mxu0 0.0
    %949 = vmatprep.subr.mxu0 0.0
    %950 = vmatpush2.msra.mxu0 0.0
    %951 = vmatprep.mubr.f32.mxu0 0.0
    %952 = vmatmul.mubr.f32.gmra.mxu0 %v885
    %v953 = vpop.f32.mrf.mxu0
    %v954 = vadd.f32 %v882, %v953
    %v955 = vpop.f32.mrf.mxu0
    %v956 = vadd.f32 %v883, %v955
    %957 = vdwg.mxu0
    %v958 = vxor.u32 %v954, 2147483648
    %v959 = vxor.u32 %v956, 2147483648
    %v960 = vmul.f32 %v958, 1.442695
    %v961 = vpow.pop %v960
    %v962 = vmul.f32 %v959, 1.442695
    %v963 = vpow.pop %v962
    %v964 = vadd.f32 %v961, 1.0
    %v965 = vadd.f32 %v963, 1.0
    %v966 = vrcp.pop %v964
    %v967 = vmul.f32 1.0, %v966
    %v968 = vrcp.pop %v965
    %v969 = vmul.f32 1.0, %v968
    %v970 = vtanh.pop %v956
    %v971 = vmul.f32 %v967, %v867
    %973 = vrot.lane.b32.xlu0 %v970, 64
    %v974 = vpop.permute.xlu0 %973
    %v976 = vmul.f32 %v967, %v974
    %978 = vrot.lane.b32.xlu0 %v976, 64
    %v979 = vpop.permute.xlu0 %978
    %v981 = vadd.f32 %v971, %v979
    %v982 = vtanh.pop %v981
    %984 = vrot.lane.b32.xlu0 %v982, 64
    %v985 = vpop.permute.xlu0 %984
    %v987 = vmul.f32 %v969, %v985
    %988 = vst.msk [vmem:[%s876] sm:$0xff] %vm227, %v987
    %989 = vst.msk [vmem:[%s874] sm:$0xff] %vm516, %v987
    %v990 = vld [vmem:[%s645] sm:$0xff]
    %v991 = vld [vmem:[%s645 + $0x8] sm:$0xff]
    %v992 = vld [vmem:[%s640] sm:$0xff]
    %v993 = vld [vmem:[%s640 + $0x8] sm:$0xff]
    %v994 = vsel %vm197, %v990, %v992
    %v995 = vsel %vm198, %v991, %v993
    %v997 = vsel %vm409, %v987, 0
    %999 = vmatprep.subr.mxu0 0.0
    %1000 = vmatpush1.msra.mxu0 0.0
    %1001 = vmatprep.subr.mxu0 0.0
    %1002 = vmatpush1.msra.mxu0 0.0
    %1003 = vmatprep.subr.mxu0 0.0
    %1004 = vmatpush1.msra.mxu0 0.0
    %1005 = vmatprep.subr.mxu0 0.0
    %1006 = vmatpush1.msra.mxu0 0.0
    %1007 = vmatprep.subr.mxu0 0.0
    %1008 = vmatpush1.msra.mxu0 0.0
    %1009 = vmatprep.subr.mxu0 0.0
    %1010 = vmatpush1.msra.mxu0 0.0
    %1011 = vmatprep.subr.mxu0 0.0
    %1012 = vmatpush1.msra.mxu0 0.0
    %1013 = vmatprep.subr.mxu0 0.0
    %1014 = vmatpush1.msra.mxu0 0.0
    %1015 = vmatprep.subr.mxu0 %v396
    %1016 = vmatpush1.msra.mxu0 %v395
    %1017 = vmatprep.subr.mxu0 %v394
    %1018 = vmatpush1.msra.mxu0 %v393
    %1019 = vmatprep.subr.mxu0 %v392
    %1020 = vmatpush1.msra.mxu0 %v391
    %1021 = vmatprep.subr.mxu0 %v390
    %1022 = vmatpush1.msra.mxu0 %v389
    %1023 = vmatprep.subr.mxu0 %v388
    %1024 = vmatpush1.msra.mxu0 %v387
    %1025 = vmatprep.subr.mxu0 %v386
    %1026 = vmatpush1.msra.mxu0 %v385
    %1027 = vmatprep.subr.mxu0 %v384
    %1028 = vmatpush1.msra.mxu0 %v383
    %1029 = vmatprep.subr.mxu0 %v382
    %1030 = vmatpush1.msra.mxu0 %v381
    %1031 = vmatprep.subr.mxu0 0.0
    %1032 = vmatpush2.msra.mxu0 0.0
    %1033 = vmatprep.subr.mxu0 0.0
    %1034 = vmatpush2.msra.mxu0 0.0
    %1035 = vmatprep.subr.mxu0 0.0
    %1036 = vmatpush2.msra.mxu0 0.0
    %1037 = vmatprep.subr.mxu0 0.0
    %1038 = vmatpush2.msra.mxu0 0.0
    %1039 = vmatprep.subr.mxu0 0.0
    %1040 = vmatpush2.msra.mxu0 0.0
    %1041 = vmatprep.subr.mxu0 0.0
    %1042 = vmatpush2.msra.mxu0 0.0
    %1043 = vmatprep.subr.mxu0 0.0
    %1044 = vmatpush2.msra.mxu0 0.0
    %1045 = vmatprep.subr.mxu0 0.0
    %1046 = vmatpush2.msra.mxu0 0.0
    %1047 = vmatprep.subr.mxu0 0.0
    %1048 = vmatpush2.msra.mxu0 0.0
    %1049 = vmatprep.subr.mxu0 0.0
    %1050 = vmatpush2.msra.mxu0 0.0
    %1051 = vmatprep.subr.mxu0 0.0
    %1052 = vmatpush2.msra.mxu0 0.0
    %1053 = vmatprep.subr.mxu0 0.0
    %1054 = vmatpush2.msra.mxu0 0.0
    %1055 = vmatprep.subr.mxu0 0.0
    %1056 = vmatpush2.msra.mxu0 0.0
    %1057 = vmatprep.subr.mxu0 0.0
    %1058 = vmatpush2.msra.mxu0 0.0
    %1059 = vmatprep.subr.mxu0 0.0
    %1060 = vmatpush2.msra.mxu0 0.0
    %1061 = vmatprep.subr.mxu0 0.0
    %1062 = vmatpush2.msra.mxu0 0.0
    %1063 = vmatprep.mubr.f32.mxu0 0.0
    %1064 = vmatmul.mubr.f32.gmra.mxu0 %v997
    %v1065 = vpop.f32.mrf.mxu0
    %v1066 = vadd.f32 %v994, %v1065
    %v1067 = vpop.f32.mrf.mxu0
    %v1068 = vadd.f32 %v995, %v1067
    %1069 = vdwg.mxu0
    %v1070 = vxor.u32 %v1066, 2147483648
    %v1071 = vxor.u32 %v1068, 2147483648
    %v1072 = vmul.f32 %v1070, 1.442695
    %v1073 = vpow.pop %v1072
    %v1074 = vmul.f32 %v1071, 1.442695
    %v1075 = vpow.pop %v1074
    %v1076 = vadd.f32 %v1073, 1.0
    %v1077 = vadd.f32 %v1075, 1.0
    %v1078 = vrcp.pop %v1076
    %v1079 = vmul.f32 1.0, %v1078
    %v1080 = vrcp.pop %v1077
    %v1081 = vmul.f32 1.0, %v1080
    %v1082 = vtanh.pop %v1068
    %v1083 = vmul.f32 %v1079, %v981
    %1085 = vrot.lane.b32.xlu0 %v1082, 64
    %v1086 = vpop.permute.xlu0 %1085
    %v1088 = vmul.f32 %v1079, %v1086
    %1090 = vrot.lane.b32.xlu0 %v1088, 64
    %v1091 = vpop.permute.xlu0 %1090
    %v1093 = vadd.f32 %v1083, %v1091
    %v1094 = vtanh.pop %v1093
    %1096 = vrot.lane.b32.xlu0 %v1094, 64
    %v1097 = vpop.permute.xlu0 %1096
    %v1099 = vmul.f32 %v1081, %v1097
    %1100 = vst.msk [vmem:[%s756] sm:$0xff] %vm227, %v1099
    %1101 = vst.msk [vmem:[%s754] sm:$0xff] %vm516, %v1099
    %v1102 = vld [vmem:[%s525] sm:$0xff]
    %v1103 = vld [vmem:[%s525 + $0x8] sm:$0xff]
    %v1104 = vld [vmem:[%s520] sm:$0xff]
    %v1105 = vld [vmem:[%s520 + $0x8] sm:$0xff]
    %v1106 = vsel %vm197, %v1102, %v1104
    %v1107 = vsel %vm198, %v1103, %v1105
    %v1109 = vsel %vm409, %v1099, 0
    %1111 = vmatprep.subr.mxu0 0.0
    %1112 = vmatpush1.msra.mxu0 0.0
    %1113 = vmatprep.subr.mxu0 0.0
    %1114 = vmatpush1.msra.mxu0 0.0
    %1115 = vmatprep.subr.mxu0 0.0
    %1116 = vmatpush1.msra.mxu0 0.0
    %1117 = vmatprep.subr.mxu0 0.0
    %1118 = vmatpush1.msra.mxu0 0.0
    %1119 = vmatprep.subr.mxu0 0.0
    %1120 = vmatpush1.msra.mxu0 0.0
    %1121 = vmatprep.subr.mxu0 0.0
    %1122 = vmatpush1.msra.mxu0 0.0
    %1123 = vmatprep.subr.mxu0 0.0
    %1124 = vmatpush1.msra.mxu0 0.0
    %1125 = vmatprep.subr.mxu0 0.0
    %1126 = vmatpush1.msra.mxu0 0.0
    %1127 = vmatprep.subr.mxu0 %v396
    %1128 = vmatpush1.msra.mxu0 %v395
    %1129 = vmatprep.subr.mxu0 %v394
    %1130 = vmatpush1.msra.mxu0 %v393
    %1131 = vmatprep.subr.mxu0 %v392
    %1132 = vmatpush1.msra.mxu0 %v391
    %1133 = vmatprep.subr.mxu0 %v390
    %1134 = vmatpush1.msra.mxu0 %v389
    %1135 = vmatprep.subr.mxu0 %v388
    %1136 = vmatpush1.msra.mxu0 %v387
    %1137 = vmatprep.subr.mxu0 %v386
    %1138 = vmatpush1.msra.mxu0 %v385
    %1139 = vmatprep.subr.mxu0 %v384
    %1140 = vmatpush1.msra.mxu0 %v383
    %1141 = vmatprep.subr.mxu0 %v382
    %1142 = vmatpush1.msra.mxu0 %v381
    %1143 = vmatprep.subr.mxu0 0.0
    %1144 = vmatpush2.msra.mxu0 0.0
    %1145 = vmatprep.subr.mxu0 0.0
    %1146 = vmatpush2.msra.mxu0 0.0
    %1147 = vmatprep.subr.mxu0 0.0
    %1148 = vmatpush2.msra.mxu0 0.0
    %1149 = vmatprep.subr.mxu0 0.0
    %1150 = vmatpush2.msra.mxu0 0.0
    %1151 = vmatprep.subr.mxu0 0.0
    %1152 = vmatpush2.msra.mxu0 0.0
    %1153 = vmatprep.subr.mxu0 0.0
    %1154 = vmatpush2.msra.mxu0 0.0
    %1155 = vmatprep.subr.mxu0 0.0
    %1156 = vmatpush2.msra.mxu0 0.0
    %1157 = vmatprep.subr.mxu0 0.0
    %1158 = vmatpush2.msra.mxu0 0.0
    %1159 = vmatprep.subr.mxu0 0.0
    %1160 = vmatpush2.msra.mxu0 0.0
    %1161 = vmatprep.subr.mxu0 0.0
    %1162 = vmatpush2.msra.mxu0 0.0
    %1163 = vmatprep.subr.mxu0 0.0
    %1164 = vmatpush2.msra.mxu0 0.0
    %1165 = vmatprep.subr.mxu0 0.0
    %1166 = vmatpush2.msra.mxu0 0.0
    %1167 = vmatprep.subr.mxu0 0.0
    %1168 = vmatpush2.msra.mxu0 0.0
    %1169 = vmatprep.subr.mxu0 0.0
    %1170 = vmatpush2.msra.mxu0 0.0
    %1171 = vmatprep.subr.mxu0 0.0
    %1172 = vmatpush2.msra.mxu0 0.0
    %1173 = vmatprep.subr.mxu0 0.0
    %1174 = vmatpush2.msra.mxu0 0.0
    %1175 = vmatprep.mubr.f32.mxu0 0.0
    %1176 = vmatmul.mubr.f32.gmra.mxu0 %v1109
    %v1177 = vpop.f32.mrf.mxu0
    %v1178 = vadd.f32 %v1106, %v1177
    %v1179 = vpop.f32.mrf.mxu0
    %v1180 = vadd.f32 %v1107, %v1179
    %1181 = vdwg.mxu0
    %v1182 = vxor.u32 %v1178, 2147483648
    %v1183 = vxor.u32 %v1180, 2147483648
    %v1184 = vmul.f32 %v1182, 1.442695
    %v1185 = vpow.pop %v1184
    %v1186 = vmul.f32 %v1183, 1.442695
    %v1187 = vpow.pop %v1186
    %v1188 = vadd.f32 %v1185, 1.0
    %v1189 = vadd.f32 %v1187, 1.0
    %v1190 = vrcp.pop %v1188
    %v1191 = vmul.f32 1.0, %v1190
    %v1192 = vrcp.pop %v1189
    %v1193 = vmul.f32 1.0, %v1192
    %v1194 = vtanh.pop %v1180
    %v1195 = vmul.f32 %v1191, %v1093
    %1197 = vrot.lane.b32.xlu0 %v1194, 64
    %v1198 = vpop.permute.xlu0 %1197
    %v1200 = vmul.f32 %v1191, %v1198
    %1202 = vrot.lane.b32.xlu0 %v1200, 64
    %v1203 = vpop.permute.xlu0 %1202
    %v1205 = vadd.f32 %v1195, %v1203
    %v1206 = vtanh.pop %v1205
    %1208 = vrot.lane.b32.xlu0 %v1206, 64
    %v1209 = vpop.permute.xlu0 %1208
    %v1211 = vmul.f32 %v1193, %v1209
    %1212 = vst.msk [vmem:[%s636] sm:$0xff] %vm227, %v1211
    %1213 = vst.msk [vmem:[%s634] sm:$0xff] %vm516, %v1211
    %v1214 = vld [vmem:[%s404] sm:$0xff]
    %v1215 = vld [vmem:[%s404 + $0x8] sm:$0xff]
    %v1216 = vld [vmem:[%s399] sm:$0xff]
    %v1217 = vld [vmem:[%s399 + $0x8] sm:$0xff]
    %v1218 = vsel %vm197, %v1214, %v1216
    %v1219 = vsel %vm198, %v1215, %v1217
    %v1221 = vsel %vm409, %v1211, 0
    %1223 = vmatprep.subr.mxu0 0.0
    %1224 = vmatpush1.msra.mxu0 0.0
    %1225 = vmatprep.subr.mxu0 0.0
    %1226 = vmatpush1.msra.mxu0 0.0
    %1227 = vmatprep.subr.mxu0 0.0
    %1228 = vmatpush1.msra.mxu0 0.0
    %1229 = vmatprep.subr.mxu0 0.0
    %1230 = vmatpush1.msra.mxu0 0.0
    %1231 = vmatprep.subr.mxu0 0.0
    %1232 = vmatpush1.msra.mxu0 0.0
    %1233 = vmatprep.subr.mxu0 0.0
    %1234 = vmatpush1.msra.mxu0 0.0
    %1235 = vmatprep.subr.mxu0 0.0
    %1236 = vmatpush1.msra.mxu0 0.0
    %1237 = vmatprep.subr.mxu0 0.0
    %1238 = vmatpush1.msra.mxu0 0.0
    %1239 = vmatprep.subr.mxu0 %v396
    %1240 = vmatpush1.msra.mxu0 %v395
    %1241 = vmatprep.subr.mxu0 %v394
    %1242 = vmatpush1.msra.mxu0 %v393
    %1243 = vmatprep.subr.mxu0 %v392
    %1244 = vmatpush1.msra.mxu0 %v391
    %1245 = vmatprep.subr.mxu0 %v390
    %1246 = vmatpush1.msra.mxu0 %v389
    %1247 = vmatprep.subr.mxu0 %v388
    %1248 = vmatpush1.msra.mxu0 %v387
    %1249 = vmatprep.subr.mxu0 %v386
    %1250 = vmatpush1.msra.mxu0 %v385
    %1251 = vmatprep.subr.mxu0 %v384
    %1252 = vmatpush1.msra.mxu0 %v383
    %1253 = vmatprep.subr.mxu0 %v382
    %1254 = vmatpush1.msra.mxu0 %v381
    %1255 = vmatprep.subr.mxu0 0.0
    %1256 = vmatpush2.msra.mxu0 0.0
    %1257 = vmatprep.subr.mxu0 0.0
    %1258 = vmatpush2.msra.mxu0 0.0
    %1259 = vmatprep.subr.mxu0 0.0
    %1260 = vmatpush2.msra.mxu0 0.0
    %1261 = vmatprep.subr.mxu0 0.0
    %1262 = vmatpush2.msra.mxu0 0.0
    %1263 = vmatprep.subr.mxu0 0.0
    %1264 = vmatpush2.msra.mxu0 0.0
    %1265 = vmatprep.subr.mxu0 0.0
    %1266 = vmatpush2.msra.mxu0 0.0
    %1267 = vmatprep.subr.mxu0 0.0
    %1268 = vmatpush2.msra.mxu0 0.0
    %1269 = vmatprep.subr.mxu0 0.0
    %1270 = vmatpush2.msra.mxu0 0.0
    %1271 = vmatprep.subr.mxu0 0.0
    %1272 = vmatpush2.msra.mxu0 0.0
    %1273 = vmatprep.subr.mxu0 0.0
    %1274 = vmatpush2.msra.mxu0 0.0
    %1275 = vmatprep.subr.mxu0 0.0
    %1276 = vmatpush2.msra.mxu0 0.0
    %1277 = vmatprep.subr.mxu0 0.0
    %1278 = vmatpush2.msra.mxu0 0.0
    %1279 = vmatprep.subr.mxu0 0.0
    %1280 = vmatpush2.msra.mxu0 0.0
    %1281 = vmatprep.subr.mxu0 0.0
    %1282 = vmatpush2.msra.mxu0 0.0
    %1283 = vmatprep.subr.mxu0 0.0
    %1284 = vmatpush2.msra.mxu0 0.0
    %1285 = vmatprep.subr.mxu0 0.0
    %1286 = vmatpush2.msra.mxu0 0.0
    %1287 = vmatprep.mubr.f32.mxu0 0.0
    %1288 = vmatmul.mubr.f32.gmra.mxu0 %v1221
    %v1289 = vpop.f32.mrf.mxu0
    %v1290 = vadd.f32 %v1218, %v1289
    %v1291 = vpop.f32.mrf.mxu0
    %v1292 = vadd.f32 %v1219, %v1291
    %1293 = vdwg.mxu0
    %v1294 = vxor.u32 %v1290, 2147483648
    %v1295 = vxor.u32 %v1292, 2147483648
    %v1296 = vmul.f32 %v1294, 1.442695
    %v1297 = vpow.pop %v1296
    %v1298 = vmul.f32 %v1295, 1.442695
    %v1299 = vpow.pop %v1298
    %v1300 = vadd.f32 %v1297, 1.0
    %v1301 = vadd.f32 %v1299, 1.0
    %v1302 = vrcp.pop %v1300
    %v1303 = vmul.f32 1.0, %v1302
    %v1304 = vrcp.pop %v1301
    %v1305 = vmul.f32 1.0, %v1304
    %v1306 = vtanh.pop %v1292
    %v1307 = vmul.f32 %v1303, %v1205
    %1309 = vrot.lane.b32.xlu0 %v1306, 64
    %v1310 = vpop.permute.xlu0 %1309
    %v1312 = vmul.f32 %v1303, %v1310
    %1314 = vrot.lane.b32.xlu0 %v1312, 64
    %v1315 = vpop.permute.xlu0 %1314
    %v1317 = vadd.f32 %v1307, %v1315
    %v1318 = vtanh.pop %v1317
    %1320 = vrot.lane.b32.xlu0 %v1318, 64
    %v1321 = vpop.permute.xlu0 %1320
    %v1323 = vmul.f32 %v1305, %v1321
    %1324 = vst.msk [vmem:[%s515] sm:$0xff] %vm227, %v1323
    %1325 = vst.msk [vmem:[#allocation3] sm:$0xff] %vm516, %v1323
    %v1326 = vld [vmem:[#allocation3] sm:$0xff]
    %v1327 = vld [vmem:[#allocation3 + $0x8] sm:$0xff]
    %v1328 = vld [vmem:[#allocation3 + $0x10] sm:$0xff]
    %v1329 = vld [vmem:[#allocation3 + $0x18] sm:$0xff]
    %v1330 = vld [vmem:[#allocation3 + $0x20] sm:$0xff]
    %v1331 = vld [vmem:[#allocation3 + $0x28] sm:$0xff]
    %v1332 = vld [vmem:[#allocation3 + $0x30] sm:$0xff]
    %v1333 = vld [vmem:[#allocation3 + $0x38] sm:$0xff]
    %v1334 = vld [vmem:[%s4] sm:$0xff]
    %v1335 = vld [vmem:[%s4 + $0x8] sm:$0xff]
    %v1336 = vld [vmem:[%s4 + $0x10] sm:$0xff]
    %v1337 = vld [vmem:[%s4 + $0x18] sm:$0xff]
    %v1338 = vld [vmem:[%s4 + $0x20] sm:$0xff]
    %v1339 = vld [vmem:[%s4 + $0x28] sm:$0xff]
    %v1340 = vld [vmem:[%s4 + $0x30] sm:$0xff]
    %v1341 = vld [vmem:[%s4 + $0x38] sm:$0xff]
    %v1342 = vld [vmem:[%s4 + $0x40] sm:$0xff]
    %v1343 = vld [vmem:[%s4 + $0x48] sm:$0xff]
    %v1344 = vld [vmem:[%s4 + $0x50] sm:$0xff]
    %v1345 = vld [vmem:[%s4 + $0x58] sm:$0xff]
    %v1346 = vld [vmem:[%s4 + $0x60] sm:$0xff]
    %v1347 = vld [vmem:[%s4 + $0x68] sm:$0xff]
    %v1348 = vld [vmem:[%s4 + $0x70] sm:$0xff]
    %v1349 = vld [vmem:[%s4 + $0x78] sm:$0xff]
    %v1350 = vld [vmem:[#allocation8] sm:$0x3]
    %v1352 = vlaneseq
    %v1353 = vshrl.u32 %v1352, 7
    %v1354 = vsub.s32 0, %v1353
    %v1355 = vrot.slane %v1350, %v1354
    %v1356 = vlaneseq
    %v1357 = vshrl.u32 %v1356, 7
    %v1358 = vsub.s32 1, %v1357
    %v1359 = vrot.slane %v1350, %v1358
    %v1363 = vsel %vm409, %v1326, 0
    %v1366 = vsel %vm409, %v1327, 0
    %v1369 = vsel %vm409, %v1328, 0
    %v1372 = vsel %vm409, %v1329, 0
    %v1375 = vsel %vm409, %v1330, 0
    %v1378 = vsel %vm409, %v1331, 0
    %v1381 = vsel %vm409, %v1332, 0
    %v1384 = vsel %vm409, %v1333, 0
    %1386 = vmatprep.subr.mxu0 0.0
    %1387 = vmatpush1.msra.mxu0 0.0
    %1388 = vmatprep.subr.mxu0 0.0
    %1389 = vmatpush1.msra.mxu0 0.0
    %1390 = vmatprep.subr.mxu0 0.0
    %1391 = vmatpush1.msra.mxu0 0.0
    %1392 = vmatprep.subr.mxu0 0.0
    %1393 = vmatpush1.msra.mxu0 0.0
    %1394 = vmatprep.subr.mxu0 0.0
    %1395 = vmatpush1.msra.mxu0 0.0
    %1396 = vmatprep.subr.mxu0 0.0
    %1397 = vmatpush1.msra.mxu0 0.0
    %1398 = vmatprep.subr.mxu0 0.0
    %1399 = vmatpush1.msra.mxu0 0.0
    %1400 = vmatprep.subr.mxu0 0.0
    %1401 = vmatpush1.msra.mxu0 0.0
    %1402 = vmatprep.subr.mxu0 %v1349
    %1403 = vmatpush1.msra.mxu0 %v1348
    %1404 = vmatprep.subr.mxu0 %v1347
    %1405 = vmatpush1.msra.mxu0 %v1346
    %1406 = vmatprep.subr.mxu0 %v1345
    %1407 = vmatpush1.msra.mxu0 %v1344
    %1408 = vmatprep.subr.mxu0 %v1343
    %1409 = vmatpush1.msra.mxu0 %v1342
    %1410 = vmatprep.subr.mxu0 %v1341
    %1411 = vmatpush1.msra.mxu0 %v1340
    %1412 = vmatprep.subr.mxu0 %v1339
    %1413 = vmatpush1.msra.mxu0 %v1338
    %1414 = vmatprep.subr.mxu0 %v1337
    %1415 = vmatpush1.msra.mxu0 %v1336
    %1416 = vmatprep.subr.mxu0 %v1335
    %1417 = vmatpush1.msra.mxu0 %v1334
    %1418 = vmatprep.subr.mxu0 0.0
    %1419 = vmatpush2.msra.mxu0 0.0
    %1420 = vmatprep.subr.mxu0 0.0
    %1421 = vmatpush2.msra.mxu0 0.0
    %1422 = vmatprep.subr.mxu0 0.0
    %1423 = vmatpush2.msra.mxu0 0.0
    %1424 = vmatprep.subr.mxu0 0.0
    %1425 = vmatpush2.msra.mxu0 0.0
    %1426 = vmatprep.subr.mxu0 0.0
    %1427 = vmatpush2.msra.mxu0 0.0
    %1428 = vmatprep.subr.mxu0 0.0
    %1429 = vmatpush2.msra.mxu0 0.0
    %1430 = vmatprep.subr.mxu0 0.0
    %1431 = vmatpush2.msra.mxu0 0.0
    %1432 = vmatprep.subr.mxu0 0.0
    %1433 = vmatpush2.msra.mxu0 0.0
    %1434 = vmatprep.subr.mxu0 0.0
    %1435 = vmatpush2.msra.mxu0 0.0
    %1436 = vmatprep.subr.mxu0 0.0
    %1437 = vmatpush2.msra.mxu0 0.0
    %1438 = vmatprep.subr.mxu0 0.0
    %1439 = vmatpush2.msra.mxu0 0.0
    %1440 = vmatprep.subr.mxu0 0.0
    %1441 = vmatpush2.msra.mxu0 0.0
    %1442 = vmatprep.subr.mxu0 0.0
    %1443 = vmatpush2.msra.mxu0 0.0
    %1444 = vmatprep.subr.mxu0 0.0
    %1445 = vmatpush2.msra.mxu0 0.0
    %1446 = vmatprep.subr.mxu0 0.0
    %1447 = vmatpush2.msra.mxu0 0.0
    %1448 = vmatprep.subr.mxu0 0.0
    %1449 = vmatpush2.msra.mxu0 0.0
    %1450 = vmatprep.mubr.f32.mxu0 0.0
    %1451 = vmatmul.mubr.f32.gmra.mxu0 %v1363
    %v1452 = vpop.f32.mrf.mxu0
    %v1453 = vadd.f32 %v1355, %v1452
    %v1454 = vpop.f32.mrf.mxu0
    %v1455 = vadd.f32 %v1359, %v1454
    %1456 = vmatprep.mubr.f32.mxu0 0.0
    %1457 = vmatmul.mubr.f32.gmra.mxu0 %v1366
    %v1458 = vpop.f32.mrf.mxu0
    %v1459 = vadd.f32 %v1355, %v1458
    %v1460 = vpop.f32.mrf.mxu0
    %v1461 = vadd.f32 %v1359, %v1460
    %1462 = vmatprep.mubr.f32.mxu0 0.0
    %1463 = vmatmul.mubr.f32.gmra.mxu0 %v1369
    %v1464 = vpop.f32.mrf.mxu0
    %v1465 = vadd.f32 %v1355, %v1464
    %v1466 = vpop.f32.mrf.mxu0
    %v1467 = vadd.f32 %v1359, %v1466
    %1468 = vmatprep.mubr.f32.mxu0 0.0
    %1469 = vmatmul.mubr.f32.gmra.mxu0 %v1372
    %v1470 = vpop.f32.mrf.mxu0
    %v1471 = vadd.f32 %v1355, %v1470
    %v1472 = vpop.f32.mrf.mxu0
    %v1473 = vadd.f32 %v1359, %v1472
    %1474 = vmatprep.mubr.f32.mxu0 0.0
    %1475 = vmatmul.mubr.f32.gmra.mxu0 %v1375
    %v1476 = vpop.f32.mrf.mxu0
    %v1477 = vadd.f32 %v1355, %v1476
    %v1478 = vpop.f32.mrf.mxu0
    %v1479 = vadd.f32 %v1359, %v1478
    %1480 = vmatprep.mubr.f32.mxu0 0.0
    %1481 = vmatmul.mubr.f32.gmra.mxu0 %v1378
    %v1482 = vpop.f32.mrf.mxu0
    %v1483 = vadd.f32 %v1355, %v1482
    %v1484 = vpop.f32.mrf.mxu0
    %v1485 = vadd.f32 %v1359, %v1484
    %1486 = vmatprep.mubr.f32.mxu0 0.0
    %1487 = vmatmul.mubr.f32.gmra.mxu0 %v1381
    %v1488 = vpop.f32.mrf.mxu0
    %v1489 = vadd.f32 %v1355, %v1488
    %v1490 = vpop.f32.mrf.mxu0
    %v1491 = vadd.f32 %v1359, %v1490
    %1492 = vmatprep.mubr.f32.mxu0 0.0
    %1493 = vmatmul.mubr.f32.gmra.mxu0 %v1384
    %v1494 = vpop.f32.mrf.mxu0
    %v1495 = vadd.f32 %v1355, %v1494
    %v1496 = vpop.f32.mrf.mxu0
    %v1497 = vadd.f32 %v1359, %v1496
    %1498 = vdwg.mxu0
    %1499 = vst [vmem:[#allocation2] sm:$0xff] %v1453
    %1500 = vst [vmem:[#allocation2 + $0x8] sm:$0xff] %v1455
    %1501 = vst [vmem:[#allocation2 + $0x10] sm:$0xff] %v1459
    %1502 = vst [vmem:[#allocation2 + $0x18] sm:$0xff] %v1461
    %1503 = vst [vmem:[#allocation2 + $0x20] sm:$0xff] %v1465
    %1504 = vst [vmem:[#allocation2 + $0x28] sm:$0xff] %v1467
    %1505 = vst [vmem:[#allocation2 + $0x30] sm:$0xff] %v1471
    %1506 = vst [vmem:[#allocation2 + $0x38] sm:$0xff] %v1473
    %1507 = vst [vmem:[#allocation2 + $0x40] sm:$0xff] %v1477
    %1508 = vst [vmem:[#allocation2 + $0x48] sm:$0xff] %v1479
    %1509 = vst [vmem:[#allocation2 + $0x50] sm:$0xff] %v1483
    %1510 = vst [vmem:[#allocation2 + $0x58] sm:$0xff] %v1485
    %1511 = vst [vmem:[#allocation2 + $0x60] sm:$0xff] %v1489
    %1512 = vst [vmem:[#allocation2 + $0x68] sm:$0xff] %v1491
    %1513 = vst [vmem:[#allocation2 + $0x70] sm:$0xff] %v1495
    %1514 = vst [vmem:[#allocation2 + $0x78] sm:$0xff] %v1497
    %v1515 = vld [vmem:[#allocation6] sm:$0xff]
    %v1516 = vld [vmem:[#allocation6 + $0x8] sm:$0xff]
    %v1517 = vld [vmem:[#allocation6 + $0x10] sm:$0xff]
    %v1518 = vld [vmem:[#allocation6 + $0x18] sm:$0xff]
    %v1519 = vld [vmem:[#allocation6 + $0x20] sm:$0xff]
    %v1520 = vld [vmem:[#allocation6 + $0x28] sm:$0xff]
    %v1521 = vld [vmem:[#allocation6 + $0x30] sm:$0xff]
    %v1522 = vld [vmem:[#allocation6 + $0x38] sm:$0xff]
    %v1523 = vld [vmem:[#allocation6 + $0x40] sm:$0xff]
    %v1524 = vld [vmem:[#allocation6 + $0x48] sm:$0xff]
    %v1525 = vld [vmem:[#allocation6 + $0x50] sm:$0xff]
    %v1526 = vld [vmem:[#allocation6 + $0x58] sm:$0xff]
    %v1527 = vld [vmem:[#allocation6 + $0x60] sm:$0xff]
    %v1528 = vld [vmem:[#allocation6 + $0x68] sm:$0xff]
    %v1529 = vld [vmem:[#allocation6 + $0x70] sm:$0xff]
    %v1530 = vld [vmem:[#allocation6 + $0x78] sm:$0xff]
    %v1531 = vld [vmem:[%s399] sm:$0xff]
    %v1532 = vld [vmem:[%s399 + $0x8] sm:$0xff]
    %v1533 = vld [vmem:[%s404] sm:$0xff]
    %v1534 = vld [vmem:[%s404 + $0x8] sm:$0xff]
    %v1535 = vsel %vm197, %v1531, %v1533
    %v1536 = vsel %vm198, %v1532, %v1534
    %1537 = vmatprep.subr.mxu0 0.0
    %1538 = vmatpush1.msra.mxu0 0.0
    %1539 = vmatprep.subr.mxu0 0.0
    %1540 = vmatpush1.msra.mxu0 0.0
    %1541 = vmatprep.subr.mxu0 0.0
    %1542 = vmatpush1.msra.mxu0 0.0
    %1543 = vmatprep.subr.mxu0 0.0
    %1544 = vmatpush1.msra.mxu0 0.0
    %1545 = vmatprep.subr.mxu0 0.0
    %1546 = vmatpush1.msra.mxu0 0.0
    %1547 = vmatprep.subr.mxu0 0.0
    %1548 = vmatpush1.msra.mxu0 0.0
    %1549 = vmatprep.subr.mxu0 0.0
    %1550 = vmatpush1.msra.mxu0 0.0
    %1551 = vmatprep.subr.mxu0 0.0
    %1552 = vmatpush1.msra.mxu0 0.0
    %1553 = vmatprep.subr.mxu0 %v1530
    %1554 = vmatpush1.msra.mxu0 %v1529
    %1555 = vmatprep.subr.mxu0 %v1528
    %1556 = vmatpush1.msra.mxu0 %v1527
    %1557 = vmatprep.subr.mxu0 %v1526
    %1558 = vmatpush1.msra.mxu0 %v1525
    %1559 = vmatprep.subr.mxu0 %v1524
    %1560 = vmatpush1.msra.mxu0 %v1523
    %1561 = vmatprep.subr.mxu0 %v1522
    %1562 = vmatpush1.msra.mxu0 %v1521
    %1563 = vmatprep.subr.mxu0 %v1520
    %1564 = vmatpush1.msra.mxu0 %v1519
    %1565 = vmatprep.subr.mxu0 %v1518
    %1566 = vmatpush1.msra.mxu0 %v1517
    %1567 = vmatprep.subr.mxu0 %v1516
    %1568 = vmatpush1.msra.mxu0 %v1515
    %1569 = vmatprep.subr.mxu0 0.0
    %1570 = vmatpush2.msra.mxu0 0.0
    %1571 = vmatprep.subr.mxu0 0.0
    %1572 = vmatpush2.msra.mxu0 0.0
    %1573 = vmatprep.subr.mxu0 0.0
    %1574 = vmatpush2.msra.mxu0 0.0
    %1575 = vmatprep.subr.mxu0 0.0
    %1576 = vmatpush2.msra.mxu0 0.0
    %1577 = vmatprep.subr.mxu0 0.0
    %1578 = vmatpush2.msra.mxu0 0.0
    %1579 = vmatprep.subr.mxu0 0.0
    %1580 = vmatpush2.msra.mxu0 0.0
    %1581 = vmatprep.subr.mxu0 0.0
    %1582 = vmatpush2.msra.mxu0 0.0
    %1583 = vmatprep.subr.mxu0 0.0
    %1584 = vmatpush2.msra.mxu0 0.0
    %1585 = vmatprep.subr.mxu0 0.0
    %1586 = vmatpush2.msra.mxu0 0.0
    %1587 = vmatprep.subr.mxu0 0.0
    %1588 = vmatpush2.msra.mxu0 0.0
    %1589 = vmatprep.subr.mxu0 0.0
    %1590 = vmatpush2.msra.mxu0 0.0
    %1591 = vmatprep.subr.mxu0 0.0
    %1592 = vmatpush2.msra.mxu0 0.0
    %1593 = vmatprep.subr.mxu0 0.0
    %1594 = vmatpush2.msra.mxu0 0.0
    %1595 = vmatprep.subr.mxu0 0.0
    %1596 = vmatpush2.msra.mxu0 0.0
    %1597 = vmatprep.subr.mxu0 0.0
    %1598 = vmatpush2.msra.mxu0 0.0
    %1599 = vmatprep.subr.mxu0 0.0
    %1600 = vmatpush2.msra.mxu0 0.0
    %1601 = vmatprep.mubr.f32.mxu0 0.0
    %1602 = vmatmul.mubr.f32.gmra.mxu0 %v411
    %v1603 = vpop.f32.mrf.mxu0
    %v1604 = vadd.f32 %v1535, %v1603
    %v1605 = vpop.f32.mrf.mxu0
    %v1606 = vadd.f32 %v1536, %v1605
    %1607 = vdwg.mxu0
    %v1608 = vxor.u32 %v1604, 2147483648
    %v1609 = vxor.u32 %v1606, 2147483648
    %v1610 = vmul.f32 %v1608, 1.442695
    %v1611 = vpow.pop %v1610
    %v1612 = vmul.f32 %v1609, 1.442695
    %v1613 = vpow.pop %v1612
    %v1614 = vadd.f32 %v1611, 1.0
    %v1615 = vadd.f32 %v1613, 1.0
    %v1616 = vrcp.pop %v1614
    %v1617 = vmul.f32 1.0, %v1616
    %v1618 = vrcp.pop %v1615
    %v1619 = vmul.f32 1.0, %v1618
    %v1620 = vtanh.pop %v1606
    %v1621 = vmul.f32 %v1617, 0.0
    %1623 = vrot.lane.b32.xlu0 %v1620, 64
    %v1624 = vpop.permute.xlu0 %1623
    %v1626 = vmul.f32 %v1617, %v1624
    %1628 = vrot.lane.b32.xlu0 %v1626, 64
    %v1629 = vpop.permute.xlu0 %1628
    %v1631 = vadd.f32 %v1621, %v1629
    %v1632 = vtanh.pop %v1631
    %1634 = vrot.lane.b32.xlu0 %v1632, 64
    %v1635 = vpop.permute.xlu0 %1634
    %v1637 = vmul.f32 %v1619, %v1635
    %1638 = vst.msk [vmem:[#allocation3] sm:$0xff] %vm227, %v1637
    %1639 = vst.msk [vmem:[%s515] sm:$0xff] %vm516, %v1637
    %v1640 = vld [vmem:[%s520] sm:$0xff]
    %v1641 = vld [vmem:[%s520 + $0x8] sm:$0xff]
    %v1642 = vld [vmem:[%s525] sm:$0xff]
    %v1643 = vld [vmem:[%s525 + $0x8] sm:$0xff]
    %v1644 = vsel %vm197, %v1640, %v1642
    %v1645 = vsel %vm198, %v1641, %v1643
    %v1647 = vsel %vm409, %v1637, 0
    %1649 = vmatprep.subr.mxu0 0.0
    %1650 = vmatpush1.msra.mxu0 0.0
    %1651 = vmatprep.subr.mxu0 0.0
    %1652 = vmatpush1.msra.mxu0 0.0
    %1653 = vmatprep.subr.mxu0 0.0
    %1654 = vmatpush1.msra.mxu0 0.0
    %1655 = vmatprep.subr.mxu0 0.0
    %1656 = vmatpush1.msra.mxu0 0.0
    %1657 = vmatprep.subr.mxu0 0.0
    %1658 = vmatpush1.msra.mxu0 0.0
    %1659 = vmatprep.subr.mxu0 0.0
    %1660 = vmatpush1.msra.mxu0 0.0
    %1661 = vmatprep.subr.mxu0 0.0
    %1662 = vmatpush1.msra.mxu0 0.0
    %1663 = vmatprep.subr.mxu0 0.0
    %1664 = vmatpush1.msra.mxu0 0.0
    %1665 = vmatprep.subr.mxu0 %v1530
    %1666 = vmatpush1.msra.mxu0 %v1529
    %1667 = vmatprep.subr.mxu0 %v1528
    %1668 = vmatpush1.msra.mxu0 %v1527
    %1669 = vmatprep.subr.mxu0 %v1526
    %1670 = vmatpush1.msra.mxu0 %v1525
    %1671 = vmatprep.subr.mxu0 %v1524
    %1672 = vmatpush1.msra.mxu0 %v1523
    %1673 = vmatprep.subr.mxu0 %v1522
    %1674 = vmatpush1.msra.mxu0 %v1521
    %1675 = vmatprep.subr.mxu0 %v1520
    %1676 = vmatpush1.msra.mxu0 %v1519
    %1677 = vmatprep.subr.mxu0 %v1518
    %1678 = vmatpush1.msra.mxu0 %v1517
    %1679 = vmatprep.subr.mxu0 %v1516
    %1680 = vmatpush1.msra.mxu0 %v1515
    %1681 = vmatprep.subr.mxu0 0.0
    %1682 = vmatpush2.msra.mxu0 0.0
    %1683 = vmatprep.subr.mxu0 0.0
    %1684 = vmatpush2.msra.mxu0 0.0
    %1685 = vmatprep.subr.mxu0 0.0
    %1686 = vmatpush2.msra.mxu0 0.0
    %1687 = vmatprep.subr.mxu0 0.0
    %1688 = vmatpush2.msra.mxu0 0.0
    %1689 = vmatprep.subr.mxu0 0.0
    %1690 = vmatpush2.msra.mxu0 0.0
    %1691 = vmatprep.subr.mxu0 0.0
    %1692 = vmatpush2.msra.mxu0 0.0
    %1693 = vmatprep.subr.mxu0 0.0
    %1694 = vmatpush2.msra.mxu0 0.0
    %1695 = vmatprep.subr.mxu0 0.0
    %1696 = vmatpush2.msra.mxu0 0.0
    %1697 = vmatprep.subr.mxu0 0.0
    %1698 = vmatpush2.msra.mxu0 0.0
    %1699 = vmatprep.subr.mxu0 0.0
    %1700 = vmatpush2.msra.mxu0 0.0
    %1701 = vmatprep.subr.mxu0 0.0
    %1702 = vmatpush2.msra.mxu0 0.0
    %1703 = vmatprep.subr.mxu0 0.0
    %1704 = vmatpush2.msra.mxu0 0.0
    %1705 = vmatprep.subr.mxu0 0.0
    %1706 = vmatpush2.msra.mxu0 0.0
    %1707 = vmatprep.subr.mxu0 0.0
    %1708 = vmatpush2.msra.mxu0 0.0
    %1709 = vmatprep.subr.mxu0 0.0
    %1710 = vmatpush2.msra.mxu0 0.0
    %1711 = vmatprep.subr.mxu0 0.0
    %1712 = vmatpush2.msra.mxu0 0.0
    %1713 = vmatprep.mubr.f32.mxu0 0.0
    %1714 = vmatmul.mubr.f32.gmra.mxu0 %v1647
    %v1715 = vpop.f32.mrf.mxu0
    %v1716 = vadd.f32 %v1644, %v1715
    %v1717 = vpop.f32.mrf.mxu0
    %v1718 = vadd.f32 %v1645, %v1717
    %1719 = vdwg.mxu0
    %v1720 = vxor.u32 %v1716, 2147483648
    %v1721 = vxor.u32 %v1718, 2147483648
    %v1722 = vmul.f32 %v1720, 1.442695
    %v1723 = vpow.pop %v1722
    %v1724 = vmul.f32 %v1721, 1.442695
    %v1725 = vpow.pop %v1724
    %v1726 = vadd.f32 %v1723, 1.0
    %v1727 = vadd.f32 %v1725, 1.0
    %v1728 = vrcp.pop %v1726
    %v1729 = vmul.f32 1.0, %v1728
    %v1730 = vrcp.pop %v1727
    %v1731 = vmul.f32 1.0, %v1730
    %v1732 = vtanh.pop %v1718
    %v1733 = vmul.f32 %v1729, %v1631
    %1735 = vrot.lane.b32.xlu0 %v1732, 64
    %v1736 = vpop.permute.xlu0 %1735
    %v1738 = vmul.f32 %v1729, %v1736
    %1740 = vrot.lane.b32.xlu0 %v1738, 64
    %v1741 = vpop.permute.xlu0 %1740
    %v1743 = vadd.f32 %v1733, %v1741
    %v1744 = vtanh.pop %v1743
    %1746 = vrot.lane.b32.xlu0 %v1744, 64
    %v1747 = vpop.permute.xlu0 %1746
    %v1749 = vmul.f32 %v1731, %v1747
    %1750 = vst.msk [vmem:[%s634] sm:$0xff] %vm227, %v1749
    %1751 = vst.msk [vmem:[%s636] sm:$0xff] %vm516, %v1749
    %v1752 = vld [vmem:[%s640] sm:$0xff]
    %v1753 = vld [vmem:[%s640 + $0x8] sm:$0xff]
    %v1754 = vld [vmem:[%s645] sm:$0xff]
    %v1755 = vld [vmem:[%s645 + $0x8] sm:$0xff]
    %v1756 = vsel %vm197, %v1752, %v1754
    %v1757 = vsel %vm198, %v1753, %v1755
    %v1759 = vsel %vm409, %v1749, 0
    %1761 = vmatprep.subr.mxu0 0.0
    %1762 = vmatpush1.msra.mxu0 0.0
    %1763 = vmatprep.subr.mxu0 0.0
    %1764 = vmatpush1.msra.mxu0 0.0
    %1765 = vmatprep.subr.mxu0 0.0
    %1766 = vmatpush1.msra.mxu0 0.0
    %1767 = vmatprep.subr.mxu0 0.0
    %1768 = vmatpush1.msra.mxu0 0.0
    %1769 = vmatprep.subr.mxu0 0.0
    %1770 = vmatpush1.msra.mxu0 0.0
    %1771 = vmatprep.subr.mxu0 0.0
    %1772 = vmatpush1.msra.mxu0 0.0
    %1773 = vmatprep.subr.mxu0 0.0
    %1774 = vmatpush1.msra.mxu0 0.0
    %1775 = vmatprep.subr.mxu0 0.0
    %1776 = vmatpush1.msra.mxu0 0.0
    %1777 = vmatprep.subr.mxu0 %v1530
    %1778 = vmatpush1.msra.mxu0 %v1529
    %1779 = vmatprep.subr.mxu0 %v1528
    %1780 = vmatpush1.msra.mxu0 %v1527
    %1781 = vmatprep.subr.mxu0 %v1526
    %1782 = vmatpush1.msra.mxu0 %v1525
    %1783 = vmatprep.subr.mxu0 %v1524
    %1784 = vmatpush1.msra.mxu0 %v1523
    %1785 = vmatprep.subr.mxu0 %v1522
    %1786 = vmatpush1.msra.mxu0 %v1521
    %1787 = vmatprep.subr.mxu0 %v1520
    %1788 = vmatpush1.msra.mxu0 %v1519
    %1789 = vmatprep.subr.mxu0 %v1518
    %1790 = vmatpush1.msra.mxu0 %v1517
    %1791 = vmatprep.subr.mxu0 %v1516
    %1792 = vmatpush1.msra.mxu0 %v1515
    %1793 = vmatprep.subr.mxu0 0.0
    %1794 = vmatpush2.msra.mxu0 0.0
    %1795 = vmatprep.subr.mxu0 0.0
    %1796 = vmatpush2.msra.mxu0 0.0
    %1797 = vmatprep.subr.mxu0 0.0
    %1798 = vmatpush2.msra.mxu0 0.0
    %1799 = vmatprep.subr.mxu0 0.0
    %1800 = vmatpush2.msra.mxu0 0.0
    %1801 = vmatprep.subr.mxu0 0.0
    %1802 = vmatpush2.msra.mxu0 0.0
    %1803 = vmatprep.subr.mxu0 0.0
    %1804 = vmatpush2.msra.mxu0 0.0
    %1805 = vmatprep.subr.mxu0 0.0
    %1806 = vmatpush2.msra.mxu0 0.0
    %1807 = vmatprep.subr.mxu0 0.0
    %1808 = vmatpush2.msra.mxu0 0.0
    %1809 = vmatprep.subr.mxu0 0.0
    %1810 = vmatpush2.msra.mxu0 0.0
    %1811 = vmatprep.subr.mxu0 0.0
    %1812 = vmatpush2.msra.mxu0 0.0
    %1813 = vmatprep.subr.mxu0 0.0
    %1814 = vmatpush2.msra.mxu0 0.0
    %1815 = vmatprep.subr.mxu0 0.0
    %1816 = vmatpush2.msra.mxu0 0.0
    %1817 = vmatprep.subr.mxu0 0.0
    %1818 = vmatpush2.msra.mxu0 0.0
    %1819 = vmatprep.subr.mxu0 0.0
    %1820 = vmatpush2.msra.mxu0 0.0
    %1821 = vmatprep.subr.mxu0 0.0
    %1822 = vmatpush2.msra.mxu0 0.0
    %1823 = vmatprep.subr.mxu0 0.0
    %1824 = vmatpush2.msra.mxu0 0.0
    %1825 = vmatprep.mubr.f32.mxu0 0.0
    %1826 = vmatmul.mubr.f32.gmra.mxu0 %v1759
    %v1827 = vpop.f32.mrf.mxu0
    %v1828 = vadd.f32 %v1756, %v1827
    %v1829 = vpop.f32.mrf.mxu0
    %v1830 = vadd.f32 %v1757, %v1829
    %1831 = vdwg.mxu0
    %v1832 = vxor.u32 %v1828, 2147483648
    %v1833 = vxor.u32 %v1830, 2147483648
    %v1834 = vmul.f32 %v1832, 1.442695
    %v1835 = vpow.pop %v1834
    %v1836 = vmul.f32 %v1833, 1.442695
    %v1837 = vpow.pop %v1836
    %v1838 = vadd.f32 %v1835, 1.0
    %v1839 = vadd.f32 %v1837, 1.0
    %v1840 = vrcp.pop %v1838
    %v1841 = vmul.f32 1.0, %v1840
    %v1842 = vrcp.pop %v1839
    %v1843 = vmul.f32 1.0, %v1842
    %v1844 = vtanh.pop %v1830
    %v1845 = vmul.f32 %v1841, %v1743
    %1847 = vrot.lane.b32.xlu0 %v1844, 64
    %v1848 = vpop.permute.xlu0 %1847
    %v1850 = vmul.f32 %v1841, %v1848
    %1852 = vrot.lane.b32.xlu0 %v1850, 64
    %v1853 = vpop.permute.xlu0 %1852
    %v1855 = vadd.f32 %v1845, %v1853
    %v1856 = vtanh.pop %v1855
    %1858 = vrot.lane.b32.xlu0 %v1856, 64
    %v1859 = vpop.permute.xlu0 %1858
    %v1861 = vmul.f32 %v1843, %v1859
    %1862 = vst.msk [vmem:[%s754] sm:$0xff] %vm227, %v1861
    %1863 = vst.msk [vmem:[%s756] sm:$0xff] %vm516, %v1861
    %v1864 = vld [vmem:[%s760] sm:$0xff]
    %v1865 = vld [vmem:[%s760 + $0x8] sm:$0xff]
    %v1866 = vld [vmem:[%s765] sm:$0xff]
    %v1867 = vld [vmem:[%s765 + $0x8] sm:$0xff]
    %v1868 = vsel %vm197, %v1864, %v1866
    %v1869 = vsel %vm198, %v1865, %v1867
    %v1871 = vsel %vm409, %v1861, 0
    %1873 = vmatprep.subr.mxu0 0.0
    %1874 = vmatpush1.msra.mxu0 0.0
    %1875 = vmatprep.subr.mxu0 0.0
    %1876 = vmatpush1.msra.mxu0 0.0
    %1877 = vmatprep.subr.mxu0 0.0
    %1878 = vmatpush1.msra.mxu0 0.0
    %1879 = vmatprep.subr.mxu0 0.0
    %1880 = vmatpush1.msra.mxu0 0.0
    %1881 = vmatprep.subr.mxu0 0.0
    %1882 = vmatpush1.msra.mxu0 0.0
    %1883 = vmatprep.subr.mxu0 0.0
    %1884 = vmatpush1.msra.mxu0 0.0
    %1885 = vmatprep.subr.mxu0 0.0
    %1886 = vmatpush1.msra.mxu0 0.0
    %1887 = vmatprep.subr.mxu0 0.0
    %1888 = vmatpush1.msra.mxu0 0.0
    %1889 = vmatprep.subr.mxu0 %v1530
    %1890 = vmatpush1.msra.mxu0 %v1529
    %1891 = vmatprep.subr.mxu0 %v1528
    %1892 = vmatpush1.msra.mxu0 %v1527
    %1893 = vmatprep.subr.mxu0 %v1526
    %1894 = vmatpush1.msra.mxu0 %v1525
    %1895 = vmatprep.subr.mxu0 %v1524
    %1896 = vmatpush1.msra.mxu0 %v1523
    %1897 = vmatprep.subr.mxu0 %v1522
    %1898 = vmatpush1.msra.mxu0 %v1521
    %1899 = vmatprep.subr.mxu0 %v1520
    %1900 = vmatpush1.msra.mxu0 %v1519
    %1901 = vmatprep.subr.mxu0 %v1518
    %1902 = vmatpush1.msra.mxu0 %v1517
    %1903 = vmatprep.subr.mxu0 %v1516
    %1904 = vmatpush1.msra.mxu0 %v1515
    %1905 = vmatprep.subr.mxu0 0.0
    %1906 = vmatpush2.msra.mxu0 0.0
    %1907 = vmatprep.subr.mxu0 0.0
    %1908 = vmatpush2.msra.mxu0 0.0
    %1909 = vmatprep.subr.mxu0 0.0
    %1910 = vmatpush2.msra.mxu0 0.0
    %1911 = vmatprep.subr.mxu0 0.0
    %1912 = vmatpush2.msra.mxu0 0.0
    %1913 = vmatprep.subr.mxu0 0.0
    %1914 = vmatpush2.msra.mxu0 0.0
    %1915 = vmatprep.subr.mxu0 0.0
    %1916 = vmatpush2.msra.mxu0 0.0
    %1917 = vmatprep.subr.mxu0 0.0
    %1918 = vmatpush2.msra.mxu0 0.0
    %1919 = vmatprep.subr.mxu0 0.0
    %1920 = vmatpush2.msra.mxu0 0.0
    %1921 = vmatprep.subr.mxu0 0.0
    %1922 = vmatpush2.msra.mxu0 0.0
    %1923 = vmatprep.subr.mxu0 0.0
    %1924 = vmatpush2.msra.mxu0 0.0
    %1925 = vmatprep.subr.mxu0 0.0
    %1926 = vmatpush2.msra.mxu0 0.0
    %1927 = vmatprep.subr.mxu0 0.0
    %1928 = vmatpush2.msra.mxu0 0.0
    %1929 = vmatprep.subr.mxu0 0.0
    %1930 = vmatpush2.msra.mxu0 0.0
    %1931 = vmatprep.subr.mxu0 0.0
    %1932 = vmatpush2.msra.mxu0 0.0
    %1933 = vmatprep.subr.mxu0 0.0
    %1934 = vmatpush2.msra.mxu0 0.0
    %1935 = vmatprep.subr.mxu0 0.0
    %1936 = vmatpush2.msra.mxu0 0.0
    %1937 = vmatprep.mubr.f32.mxu0 0.0
    %1938 = vmatmul.mubr.f32.gmra.mxu0 %v1871
    %v1939 = vpop.f32.mrf.mxu0
    %v1940 = vadd.f32 %v1868, %v1939
    %v1941 = vpop.f32.mrf.mxu0
    %v1942 = vadd.f32 %v1869, %v1941
    %1943 = vdwg.mxu0
    %v1944 = vxor.u32 %v1940, 2147483648
    %v1945 = vxor.u32 %v1942, 2147483648
    %v1946 = vmul.f32 %v1944, 1.442695
    %v1947 = vpow.pop %v1946
    %v1948 = vmul.f32 %v1945, 1.442695
    %v1949 = vpow.pop %v1948
    %v1950 = vadd.f32 %v1947, 1.0
    %v1951 = vadd.f32 %v1949, 1.0
    %v1952 = vrcp.pop %v1950
    %v1953 = vmul.f32 1.0, %v1952
    %v1954 = vrcp.pop %v1951
    %v1955 = vmul.f32 1.0, %v1954
    %v1956 = vtanh.pop %v1942
    %v1957 = vmul.f32 %v1953, %v1855
    %1959 = vrot.lane.b32.xlu0 %v1956, 64
    %v1960 = vpop.permute.xlu0 %1959
    %v1962 = vmul.f32 %v1953, %v1960
    %1964 = vrot.lane.b32.xlu0 %v1962, 64
    %v1965 = vpop.permute.xlu0 %1964
    %v1967 = vadd.f32 %v1957, %v1965
    %v1968 = vtanh.pop %v1967
    %1970 = vrot.lane.b32.xlu0 %v1968, 64
    %v1971 = vpop.permute.xlu0 %1970
    %v1973 = vmul.f32 %v1955, %v1971
    %1974 = vst.msk [vmem:[%s874] sm:$0xff] %vm227, %v1973
    %1975 = vst.msk [vmem:[%s876] sm:$0xff] %vm516, %v1973
    %v1976 = vld [vmem:[%s765] sm:$0xff]
    %v1977 = vld [vmem:[%s765 + $0x8] sm:$0xff]
    %v1978 = vld [vmem:[%s760] sm:$0xff]
    %v1979 = vld [vmem:[%s760 + $0x8] sm:$0xff]
    %v1980 = vsel %vm197, %v1976, %v1978
    %v1981 = vsel %vm198, %v1977, %v1979
    %v1983 = vsel %vm409, %v1973, 0
    %1985 = vmatprep.subr.mxu0 0.0
    %1986 = vmatpush1.msra.mxu0 0.0
    %1987 = vmatprep.subr.mxu0 0.0
    %1988 = vmatpush1.msra.mxu0 0.0
    %1989 = vmatprep.subr.mxu0 0.0
    %1990 = vmatpush1.msra.mxu0 0.0
    %1991 = vmatprep.subr.mxu0 0.0
    %1992 = vmatpush1.msra.mxu0 0.0
    %1993 = vmatprep.subr.mxu0 0.0
    %1994 = vmatpush1.msra.mxu0 0.0
    %1995 = vmatprep.subr.mxu0 0.0
    %1996 = vmatpush1.msra.mxu0 0.0
    %1997 = vmatprep.subr.mxu0 0.0
    %1998 = vmatpush1.msra.mxu0 0.0
    %1999 = vmatprep.subr.mxu0 0.0
    %2000 = vmatpush1.msra.mxu0 0.0
    %2001 = vmatprep.subr.mxu0 %v1530
    %2002 = vmatpush1.msra.mxu0 %v1529
    %2003 = vmatprep.subr.mxu0 %v1528
    %2004 = vmatpush1.msra.mxu0 %v1527
    %2005 = vmatprep.subr.mxu0 %v1526
    %2006 = vmatpush1.msra.mxu0 %v1525
    %2007 = vmatprep.subr.mxu0 %v1524
    %2008 = vmatpush1.msra.mxu0 %v1523
    %2009 = vmatprep.subr.mxu0 %v1522
    %2010 = vmatpush1.msra.mxu0 %v1521
    %2011 = vmatprep.subr.mxu0 %v1520
    %2012 = vmatpush1.msra.mxu0 %v1519
    %2013 = vmatprep.subr.mxu0 %v1518
    %2014 = vmatpush1.msra.mxu0 %v1517
    %2015 = vmatprep.subr.mxu0 %v1516
    %2016 = vmatpush1.msra.mxu0 %v1515
    %2017 = vmatprep.subr.mxu0 0.0
    %2018 = vmatpush2.msra.mxu0 0.0
    %2019 = vmatprep.subr.mxu0 0.0
    %2020 = vmatpush2.msra.mxu0 0.0
    %2021 = vmatprep.subr.mxu0 0.0
    %2022 = vmatpush2.msra.mxu0 0.0
    %2023 = vmatprep.subr.mxu0 0.0
    %2024 = vmatpush2.msra.mxu0 0.0
    %2025 = vmatprep.subr.mxu0 0.0
    %2026 = vmatpush2.msra.mxu0 0.0
    %2027 = vmatprep.subr.mxu0 0.0
    %2028 = vmatpush2.msra.mxu0 0.0
    %2029 = vmatprep.subr.mxu0 0.0
    %2030 = vmatpush2.msra.mxu0 0.0
    %2031 = vmatprep.subr.mxu0 0.0
    %2032 = vmatpush2.msra.mxu0 0.0
    %2033 = vmatprep.subr.mxu0 0.0
    %2034 = vmatpush2.msra.mxu0 0.0
    %2035 = vmatprep.subr.mxu0 0.0
    %2036 = vmatpush2.msra.mxu0 0.0
    %2037 = vmatprep.subr.mxu0 0.0
    %2038 = vmatpush2.msra.mxu0 0.0
    %2039 = vmatprep.subr.mxu0 0.0
    %2040 = vmatpush2.msra.mxu0 0.0
    %2041 = vmatprep.subr.mxu0 0.0
    %2042 = vmatpush2.msra.mxu0 0.0
    %2043 = vmatprep.subr.mxu0 0.0
    %2044 = vmatpush2.msra.mxu0 0.0
    %2045 = vmatprep.subr.mxu0 0.0
    %2046 = vmatpush2.msra.mxu0 0.0
    %2047 = vmatprep.subr.mxu0 0.0
    %2048 = vmatpush2.msra.mxu0 0.0
    %2049 = vmatprep.mubr.f32.mxu0 0.0
    %2050 = vmatmul.mubr.f32.gmra.mxu0 %v1983
    %v2051 = vpop.f32.mrf.mxu0
    %v2052 = vadd.f32 %v1980, %v2051
    %v2053 = vpop.f32.mrf.mxu0
    %v2054 = vadd.f32 %v1981, %v2053
    %2055 = vdwg.mxu0
    %v2056 = vxor.u32 %v2052, 2147483648
    %v2057 = vxor.u32 %v2054, 2147483648
    %v2058 = vmul.f32 %v2056, 1.442695
    %v2059 = vpow.pop %v2058
    %v2060 = vmul.f32 %v2057, 1.442695
    %v2061 = vpow.pop %v2060
    %v2062 = vadd.f32 %v2059, 1.0
    %v2063 = vadd.f32 %v2061, 1.0
    %v2064 = vrcp.pop %v2062
    %v2065 = vmul.f32 1.0, %v2064
    %v2066 = vrcp.pop %v2063
    %v2067 = vmul.f32 1.0, %v2066
    %v2068 = vtanh.pop %v2054
    %v2069 = vmul.f32 %v2065, %v1967
    %2071 = vrot.lane.b32.xlu0 %v2068, 64
    %v2072 = vpop.permute.xlu0 %2071
    %v2074 = vmul.f32 %v2065, %v2072
    %2076 = vrot.lane.b32.xlu0 %v2074, 64
    %v2077 = vpop.permute.xlu0 %2076
    %v2079 = vadd.f32 %v2069, %v2077
    %v2080 = vtanh.pop %v2079
    %2082 = vrot.lane.b32.xlu0 %v2080, 64
    %v2083 = vpop.permute.xlu0 %2082
    %v2085 = vmul.f32 %v2067, %v2083
    %2086 = vst.msk [vmem:[%s876] sm:$0xff] %vm227, %v2085
    %2087 = vst.msk [vmem:[%s874] sm:$0xff] %vm516, %v2085
    %v2088 = vld [vmem:[%s645] sm:$0xff]
    %v2089 = vld [vmem:[%s645 + $0x8] sm:$0xff]
    %v2090 = vld [vmem:[%s640] sm:$0xff]
    %v2091 = vld [vmem:[%s640 + $0x8] sm:$0xff]
    %v2092 = vsel %vm197, %v2088, %v2090
    %v2093 = vsel %vm198, %v2089, %v2091
    %v2095 = vsel %vm409, %v2085, 0
    %2097 = vmatprep.subr.mxu0 0.0
    %2098 = vmatpush1.msra.mxu0 0.0
    %2099 = vmatprep.subr.mxu0 0.0
    %2100 = vmatpush1.msra.mxu0 0.0
    %2101 = vmatprep.subr.mxu0 0.0
    %2102 = vmatpush1.msra.mxu0 0.0
    %2103 = vmatprep.subr.mxu0 0.0
    %2104 = vmatpush1.msra.mxu0 0.0
    %2105 = vmatprep.subr.mxu0 0.0
    %2106 = vmatpush1.msra.mxu0 0.0
    %2107 = vmatprep.subr.mxu0 0.0
    %2108 = vmatpush1.msra.mxu0 0.0
    %2109 = vmatprep.subr.mxu0 0.0
    %2110 = vmatpush1.msra.mxu0 0.0
    %2111 = vmatprep.subr.mxu0 0.0
    %2112 = vmatpush1.msra.mxu0 0.0
    %2113 = vmatprep.subr.mxu0 %v1530
    %2114 = vmatpush1.msra.mxu0 %v1529
    %2115 = vmatprep.subr.mxu0 %v1528
    %2116 = vmatpush1.msra.mxu0 %v1527
    %2117 = vmatprep.subr.mxu0 %v1526
    %2118 = vmatpush1.msra.mxu0 %v1525
    %2119 = vmatprep.subr.mxu0 %v1524
    %2120 = vmatpush1.msra.mxu0 %v1523
    %2121 = vmatprep.subr.mxu0 %v1522
    %2122 = vmatpush1.msra.mxu0 %v1521
    %2123 = vmatprep.subr.mxu0 %v1520
    %2124 = vmatpush1.msra.mxu0 %v1519
    %2125 = vmatprep.subr.mxu0 %v1518
    %2126 = vmatpush1.msra.mxu0 %v1517
    %2127 = vmatprep.subr.mxu0 %v1516
    %2128 = vmatpush1.msra.mxu0 %v1515
    %2129 = vmatprep.subr.mxu0 0.0
    %2130 = vmatpush2.msra.mxu0 0.0
    %2131 = vmatprep.subr.mxu0 0.0
    %2132 = vmatpush2.msra.mxu0 0.0
    %2133 = vmatprep.subr.mxu0 0.0
    %2134 = vmatpush2.msra.mxu0 0.0
    %2135 = vmatprep.subr.mxu0 0.0
    %2136 = vmatpush2.msra.mxu0 0.0
    %2137 = vmatprep.subr.mxu0 0.0
    %2138 = vmatpush2.msra.mxu0 0.0
    %2139 = vmatprep.subr.mxu0 0.0
    %2140 = vmatpush2.msra.mxu0 0.0
    %2141 = vmatprep.subr.mxu0 0.0
    %2142 = vmatpush2.msra.mxu0 0.0
    %2143 = vmatprep.subr.mxu0 0.0
    %2144 = vmatpush2.msra.mxu0 0.0
    %2145 = vmatprep.subr.mxu0 0.0
    %2146 = vmatpush2.msra.mxu0 0.0
    %2147 = vmatprep.subr.mxu0 0.0
    %2148 = vmatpush2.msra.mxu0 0.0
    %2149 = vmatprep.subr.mxu0 0.0
    %2150 = vmatpush2.msra.mxu0 0.0
    %2151 = vmatprep.subr.mxu0 0.0
    %2152 = vmatpush2.msra.mxu0 0.0
    %2153 = vmatprep.subr.mxu0 0.0
    %2154 = vmatpush2.msra.mxu0 0.0
    %2155 = vmatprep.subr.mxu0 0.0
    %2156 = vmatpush2.msra.mxu0 0.0
    %2157 = vmatprep.subr.mxu0 0.0
    %2158 = vmatpush2.msra.mxu0 0.0
    %2159 = vmatprep.subr.mxu0 0.0
    %2160 = vmatpush2.msra.mxu0 0.0
    %2161 = vmatprep.mubr.f32.mxu0 0.0
    %2162 = vmatmul.mubr.f32.gmra.mxu0 %v2095
    %v2163 = vpop.f32.mrf.mxu0
    %v2164 = vadd.f32 %v2092, %v2163
    %v2165 = vpop.f32.mrf.mxu0
    %v2166 = vadd.f32 %v2093, %v2165
    %2167 = vdwg.mxu0
    %v2168 = vxor.u32 %v2164, 2147483648
    %v2169 = vxor.u32 %v2166, 2147483648
    %v2170 = vmul.f32 %v2168, 1.442695
    %v2171 = vpow.pop %v2170
    %v2172 = vmul.f32 %v2169, 1.442695
    %v2173 = vpow.pop %v2172
    %v2174 = vadd.f32 %v2171, 1.0
    %v2175 = vadd.f32 %v2173, 1.0
    %v2176 = vrcp.pop %v2174
    %v2177 = vmul.f32 1.0, %v2176
    %v2178 = vrcp.pop %v2175
    %v2179 = vmul.f32 1.0, %v2178
    %v2180 = vtanh.pop %v2166
    %v2181 = vmul.f32 %v2177, %v2079
    %2183 = vrot.lane.b32.xlu0 %v2180, 64
    %v2184 = vpop.permute.xlu0 %2183
    %v2186 = vmul.f32 %v2177, %v2184
    %2188 = vrot.lane.b32.xlu0 %v2186, 64
    %v2189 = vpop.permute.xlu0 %2188
    %v2191 = vadd.f32 %v2181, %v2189
    %v2192 = vtanh.pop %v2191
    %2194 = vrot.lane.b32.xlu0 %v2192, 64
    %v2195 = vpop.permute.xlu0 %2194
    %v2197 = vmul.f32 %v2179, %v2195
    %2198 = vst.msk [vmem:[%s756] sm:$0xff] %vm227, %v2197
    %2199 = vst.msk [vmem:[%s754] sm:$0xff] %vm516, %v2197
    %v2200 = vld [vmem:[%s525] sm:$0xff]
    %v2201 = vld [vmem:[%s525 + $0x8] sm:$0xff]
    %v2202 = vld [vmem:[%s520] sm:$0xff]
    %v2203 = vld [vmem:[%s520 + $0x8] sm:$0xff]
    %v2204 = vsel %vm197, %v2200, %v2202
    %v2205 = vsel %vm198, %v2201, %v2203
    %v2207 = vsel %vm409, %v2197, 0
    %2209 = vmatprep.subr.mxu0 0.0
    %2210 = vmatpush1.msra.mxu0 0.0
    %2211 = vmatprep.subr.mxu0 0.0
    %2212 = vmatpush1.msra.mxu0 0.0
    %2213 = vmatprep.subr.mxu0 0.0
    %2214 = vmatpush1.msra.mxu0 0.0
    %2215 = vmatprep.subr.mxu0 0.0
    %2216 = vmatpush1.msra.mxu0 0.0
    %2217 = vmatprep.subr.mxu0 0.0
    %2218 = vmatpush1.msra.mxu0 0.0
    %2219 = vmatprep.subr.mxu0 0.0
    %2220 = vmatpush1.msra.mxu0 0.0
    %2221 = vmatprep.subr.mxu0 0.0
    %2222 = vmatpush1.msra.mxu0 0.0
    %2223 = vmatprep.subr.mxu0 0.0
    %2224 = vmatpush1.msra.mxu0 0.0
    %2225 = vmatprep.subr.mxu0 %v1530
    %2226 = vmatpush1.msra.mxu0 %v1529
    %2227 = vmatprep.subr.mxu0 %v1528
    %2228 = vmatpush1.msra.mxu0 %v1527
    %2229 = vmatprep.subr.mxu0 %v1526
    %2230 = vmatpush1.msra.mxu0 %v1525
    %2231 = vmatprep.subr.mxu0 %v1524
    %2232 = vmatpush1.msra.mxu0 %v1523
    %2233 = vmatprep.subr.mxu0 %v1522
    %2234 = vmatpush1.msra.mxu0 %v1521
    %2235 = vmatprep.subr.mxu0 %v1520
    %2236 = vmatpush1.msra.mxu0 %v1519
    %2237 = vmatprep.subr.mxu0 %v1518
    %2238 = vmatpush1.msra.mxu0 %v1517
    %2239 = vmatprep.subr.mxu0 %v1516
    %2240 = vmatpush1.msra.mxu0 %v1515
    %2241 = vmatprep.subr.mxu0 0.0
    %2242 = vmatpush2.msra.mxu0 0.0
    %2243 = vmatprep.subr.mxu0 0.0
    %2244 = vmatpush2.msra.mxu0 0.0
    %2245 = vmatprep.subr.mxu0 0.0
    %2246 = vmatpush2.msra.mxu0 0.0
    %2247 = vmatprep.subr.mxu0 0.0
    %2248 = vmatpush2.msra.mxu0 0.0
    %2249 = vmatprep.subr.mxu0 0.0
    %2250 = vmatpush2.msra.mxu0 0.0
    %2251 = vmatprep.subr.mxu0 0.0
    %2252 = vmatpush2.msra.mxu0 0.0
    %2253 = vmatprep.subr.mxu0 0.0
    %2254 = vmatpush2.msra.mxu0 0.0
    %2255 = vmatprep.subr.mxu0 0.0
    %2256 = vmatpush2.msra.mxu0 0.0
    %2257 = vmatprep.subr.mxu0 0.0
    %2258 = vmatpush2.msra.mxu0 0.0
    %2259 = vmatprep.subr.mxu0 0.0
    %2260 = vmatpush2.msra.mxu0 0.0
    %2261 = vmatprep.subr.mxu0 0.0
    %2262 = vmatpush2.msra.mxu0 0.0
    %2263 = vmatprep.subr.mxu0 0.0
    %2264 = vmatpush2.msra.mxu0 0.0
    %2265 = vmatprep.subr.mxu0 0.0
    %2266 = vmatpush2.msra.mxu0 0.0
    %2267 = vmatprep.subr.mxu0 0.0
    %2268 = vmatpush2.msra.mxu0 0.0
    %2269 = vmatprep.subr.mxu0 0.0
    %2270 = vmatpush2.msra.mxu0 0.0
    %2271 = vmatprep.subr.mxu0 0.0
    %2272 = vmatpush2.msra.mxu0 0.0
    %2273 = vmatprep.mubr.f32.mxu0 0.0
    %2274 = vmatmul.mubr.f32.gmra.mxu0 %v2207
    %v2275 = vpop.f32.mrf.mxu0
    %v2276 = vadd.f32 %v2204, %v2275
    %v2277 = vpop.f32.mrf.mxu0
    %v2278 = vadd.f32 %v2205, %v2277
    %2279 = vdwg.mxu0
    %v2280 = vxor.u32 %v2276, 2147483648
    %v2281 = vxor.u32 %v2278, 2147483648
    %v2282 = vmul.f32 %v2280, 1.442695
    %v2283 = vpow.pop %v2282
    %v2284 = vmul.f32 %v2281, 1.442695
    %v2285 = vpow.pop %v2284
    %v2286 = vadd.f32 %v2283, 1.0
    %v2287 = vadd.f32 %v2285, 1.0
    %v2288 = vrcp.pop %v2286
    %v2289 = vmul.f32 1.0, %v2288
    %v2290 = vrcp.pop %v2287
    %v2291 = vmul.f32 1.0, %v2290
    %v2292 = vtanh.pop %v2278
    %v2293 = vmul.f32 %v2289, %v2191
    %2295 = vrot.lane.b32.xlu0 %v2292, 64
    %v2296 = vpop.permute.xlu0 %2295
    %v2298 = vmul.f32 %v2289, %v2296
    %2300 = vrot.lane.b32.xlu0 %v2298, 64
    %v2301 = vpop.permute.xlu0 %2300
    %v2303 = vadd.f32 %v2293, %v2301
    %v2304 = vtanh.pop %v2303
    %2306 = vrot.lane.b32.xlu0 %v2304, 64
    %v2307 = vpop.permute.xlu0 %2306
    %v2309 = vmul.f32 %v2291, %v2307
    %2310 = vst.msk [vmem:[%s636] sm:$0xff] %vm227, %v2309
    %2311 = vst.msk [vmem:[%s634] sm:$0xff] %vm516, %v2309
    %v2312 = vld [vmem:[%s404] sm:$0xff]
    %v2313 = vld [vmem:[%s404 + $0x8] sm:$0xff]
    %v2314 = vld [vmem:[%s399] sm:$0xff]
    %v2315 = vld [vmem:[%s399 + $0x8] sm:$0xff]
    %v2316 = vsel %vm197, %v2312, %v2314
    %v2317 = vsel %vm198, %v2313, %v2315
    %v2319 = vsel %vm409, %v2309, 0
    %2321 = vmatprep.subr.mxu0 0.0
    %2322 = vmatpush1.msra.mxu0 0.0
    %2323 = vmatprep.subr.mxu0 0.0
    %2324 = vmatpush1.msra.mxu0 0.0
    %2325 = vmatprep.subr.mxu0 0.0
    %2326 = vmatpush1.msra.mxu0 0.0
    %2327 = vmatprep.subr.mxu0 0.0
    %2328 = vmatpush1.msra.mxu0 0.0
    %2329 = vmatprep.subr.mxu0 0.0
    %2330 = vmatpush1.msra.mxu0 0.0
    %2331 = vmatprep.subr.mxu0 0.0
    %2332 = vmatpush1.msra.mxu0 0.0
    %2333 = vmatprep.subr.mxu0 0.0
    %2334 = vmatpush1.msra.mxu0 0.0
    %2335 = vmatprep.subr.mxu0 0.0
    %2336 = vmatpush1.msra.mxu0 0.0
    %2337 = vmatprep.subr.mxu0 %v1530
    %2338 = vmatpush1.msra.mxu0 %v1529
    %2339 = vmatprep.subr.mxu0 %v1528
    %2340 = vmatpush1.msra.mxu0 %v1527
    %2341 = vmatprep.subr.mxu0 %v1526
    %2342 = vmatpush1.msra.mxu0 %v1525
    %2343 = vmatprep.subr.mxu0 %v1524
    %2344 = vmatpush1.msra.mxu0 %v1523
    %2345 = vmatprep.subr.mxu0 %v1522
    %2346 = vmatpush1.msra.mxu0 %v1521
    %2347 = vmatprep.subr.mxu0 %v1520
    %2348 = vmatpush1.msra.mxu0 %v1519
    %2349 = vmatprep.subr.mxu0 %v1518
    %2350 = vmatpush1.msra.mxu0 %v1517
    %2351 = vmatprep.subr.mxu0 %v1516
    %2352 = vmatpush1.msra.mxu0 %v1515
    %2353 = vmatprep.subr.mxu0 0.0
    %2354 = vmatpush2.msra.mxu0 0.0
    %2355 = vmatprep.subr.mxu0 0.0
    %2356 = vmatpush2.msra.mxu0 0.0
    %2357 = vmatprep.subr.mxu0 0.0
    %2358 = vmatpush2.msra.mxu0 0.0
    %2359 = vmatprep.subr.mxu0 0.0
    %2360 = vmatpush2.msra.mxu0 0.0
    %2361 = vmatprep.subr.mxu0 0.0
    %2362 = vmatpush2.msra.mxu0 0.0
    %2363 = vmatprep.subr.mxu0 0.0
    %2364 = vmatpush2.msra.mxu0 0.0
    %2365 = vmatprep.subr.mxu0 0.0
    %2366 = vmatpush2.msra.mxu0 0.0
    %2367 = vmatprep.subr.mxu0 0.0
    %2368 = vmatpush2.msra.mxu0 0.0
    %2369 = vmatprep.subr.mxu0 0.0
    %2370 = vmatpush2.msra.mxu0 0.0
    %2371 = vmatprep.subr.mxu0 0.0
    %2372 = vmatpush2.msra.mxu0 0.0
    %2373 = vmatprep.subr.mxu0 0.0
    %2374 = vmatpush2.msra.mxu0 0.0
    %2375 = vmatprep.subr.mxu0 0.0
    %2376 = vmatpush2.msra.mxu0 0.0
    %2377 = vmatprep.subr.mxu0 0.0
    %2378 = vmatpush2.msra.mxu0 0.0
    %2379 = vmatprep.subr.mxu0 0.0
    %2380 = vmatpush2.msra.mxu0 0.0
    %2381 = vmatprep.subr.mxu0 0.0
    %2382 = vmatpush2.msra.mxu0 0.0
    %2383 = vmatprep.subr.mxu0 0.0
    %2384 = vmatpush2.msra.mxu0 0.0
    %2385 = vmatprep.mubr.f32.mxu0 0.0
    %2386 = vmatmul.mubr.f32.gmra.mxu0 %v2319
    %v2387 = vpop.f32.mrf.mxu0
    %v2388 = vadd.f32 %v2316, %v2387
    %v2389 = vpop.f32.mrf.mxu0
    %v2390 = vadd.f32 %v2317, %v2389
    %2391 = vdwg.mxu0
    %v2392 = vxor.u32 %v2388, 2147483648
    %v2393 = vxor.u32 %v2390, 2147483648
    %v2394 = vmul.f32 %v2392, 1.442695
    %v2395 = vpow.pop %v2394
    %v2396 = vmul.f32 %v2393, 1.442695
    %v2397 = vpow.pop %v2396
    %v2398 = vadd.f32 %v2395, 1.0
    %v2399 = vadd.f32 %v2397, 1.0
    %v2400 = vrcp.pop %v2398
    %v2401 = vmul.f32 1.0, %v2400
    %v2402 = vrcp.pop %v2399
    %v2403 = vmul.f32 1.0, %v2402
    %v2404 = vtanh.pop %v2390
    %v2405 = vmul.f32 %v2401, %v2303
    %2407 = vrot.lane.b32.xlu0 %v2404, 64
    %v2408 = vpop.permute.xlu0 %2407
    %v2410 = vmul.f32 %v2401, %v2408
    %2412 = vrot.lane.b32.xlu0 %v2410, 64
    %v2413 = vpop.permute.xlu0 %2412
    %v2415 = vadd.f32 %v2405, %v2413
    %v2416 = vtanh.pop %v2415
    %2418 = vrot.lane.b32.xlu0 %v2416, 64
    %v2419 = vpop.permute.xlu0 %2418
    %v2421 = vmul.f32 %v2403, %v2419
    %2422 = vst.msk [vmem:[%s515] sm:$0xff] %vm227, %v2421
    %2423 = vst.msk [vmem:[#allocation3] sm:$0xff] %vm516, %v2421
    %v2424 = vld [vmem:[#allocation3] sm:$0xff]
    %v2425 = vld [vmem:[#allocation3 + $0x8] sm:$0xff]
    %v2426 = vld [vmem:[#allocation3 + $0x10] sm:$0xff]
    %v2427 = vld [vmem:[#allocation3 + $0x18] sm:$0xff]
    %v2428 = vld [vmem:[#allocation3 + $0x20] sm:$0xff]
    %v2429 = vld [vmem:[#allocation3 + $0x28] sm:$0xff]
    %v2430 = vld [vmem:[#allocation3 + $0x30] sm:$0xff]
    %v2431 = vld [vmem:[#allocation3 + $0x38] sm:$0xff]
    %v2432 = vld [vmem:[#allocation9] sm:$0xff]
    %v2433 = vld [vmem:[#allocation9 + $0x8] sm:$0xff]
    %v2434 = vld [vmem:[#allocation9 + $0x10] sm:$0xff]
    %v2435 = vld [vmem:[#allocation9 + $0x18] sm:$0xff]
    %v2436 = vld [vmem:[#allocation9 + $0x20] sm:$0xff]
    %v2437 = vld [vmem:[#allocation9 + $0x28] sm:$0xff]
    %v2438 = vld [vmem:[#allocation9 + $0x30] sm:$0xff]
    %v2439 = vld [vmem:[#allocation9 + $0x38] sm:$0xff]
    %v2440 = vld [vmem:[#allocation9 + $0x40] sm:$0xff]
    %v2441 = vld [vmem:[#allocation9 + $0x48] sm:$0xff]
    %v2442 = vld [vmem:[#allocation9 + $0x50] sm:$0xff]
    %v2443 = vld [vmem:[#allocation9 + $0x58] sm:$0xff]
    %v2444 = vld [vmem:[#allocation9 + $0x60] sm:$0xff]
    %v2445 = vld [vmem:[#allocation9 + $0x68] sm:$0xff]
    %v2446 = vld [vmem:[#allocation9 + $0x70] sm:$0xff]
    %v2447 = vld [vmem:[#allocation9 + $0x78] sm:$0xff]
    %v2448 = vld [vmem:[%s9] sm:$0x3]
    %v2450 = vlaneseq
    %v2451 = vshrl.u32 %v2450, 7
    %v2452 = vsub.s32 0, %v2451
    %v2453 = vrot.slane %v2448, %v2452
    %v2454 = vlaneseq
    %v2455 = vshrl.u32 %v2454, 7
    %v2456 = vsub.s32 1, %v2455
    %v2457 = vrot.slane %v2448, %v2456
    %v2461 = vsel %vm409, %v2424, 0
    %v2464 = vsel %vm409, %v2425, 0
    %v2467 = vsel %vm409, %v2426, 0
    %v2470 = vsel %vm409, %v2427, 0
    %v2473 = vsel %vm409, %v2428, 0
    %v2476 = vsel %vm409, %v2429, 0
    %v2479 = vsel %vm409, %v2430, 0
    %v2482 = vsel %vm409, %v2431, 0
    %2484 = vmatprep.subr.mxu0 0.0
    %2485 = vmatpush1.msra.mxu0 0.0
    %2486 = vmatprep.subr.mxu0 0.0
    %2487 = vmatpush1.msra.mxu0 0.0
    %2488 = vmatprep.subr.mxu0 0.0
    %2489 = vmatpush1.msra.mxu0 0.0
    %2490 = vmatprep.subr.mxu0 0.0
    %2491 = vmatpush1.msra.mxu0 0.0
    %2492 = vmatprep.subr.mxu0 0.0
    %2493 = vmatpush1.msra.mxu0 0.0
    %2494 = vmatprep.subr.mxu0 0.0
    %2495 = vmatpush1.msra.mxu0 0.0
    %2496 = vmatprep.subr.mxu0 0.0
    %2497 = vmatpush1.msra.mxu0 0.0
    %2498 = vmatprep.subr.mxu0 0.0
    %2499 = vmatpush1.msra.mxu0 0.0
    %2500 = vmatprep.subr.mxu0 %v2447
    %2501 = vmatpush1.msra.mxu0 %v2446
    %2502 = vmatprep.subr.mxu0 %v2445
    %2503 = vmatpush1.msra.mxu0 %v2444
    %2504 = vmatprep.subr.mxu0 %v2443
    %2505 = vmatpush1.msra.mxu0 %v2442
    %2506 = vmatprep.subr.mxu0 %v2441
    %2507 = vmatpush1.msra.mxu0 %v2440
    %2508 = vmatprep.subr.mxu0 %v2439
    %2509 = vmatpush1.msra.mxu0 %v2438
    %2510 = vmatprep.subr.mxu0 %v2437
    %2511 = vmatpush1.msra.mxu0 %v2436
    %2512 = vmatprep.subr.mxu0 %v2435
    %2513 = vmatpush1.msra.mxu0 %v2434
    %2514 = vmatprep.subr.mxu0 %v2433
    %2515 = vmatpush1.msra.mxu0 %v2432
    %2516 = vmatprep.subr.mxu0 0.0
    %2517 = vmatpush2.msra.mxu0 0.0
    %2518 = vmatprep.subr.mxu0 0.0
    %2519 = vmatpush2.msra.mxu0 0.0
    %2520 = vmatprep.subr.mxu0 0.0
    %2521 = vmatpush2.msra.mxu0 0.0
    %2522 = vmatprep.subr.mxu0 0.0
    %2523 = vmatpush2.msra.mxu0 0.0
    %2524 = vmatprep.subr.mxu0 0.0
    %2525 = vmatpush2.msra.mxu0 0.0
    %2526 = vmatprep.subr.mxu0 0.0
    %2527 = vmatpush2.msra.mxu0 0.0
    %2528 = vmatprep.subr.mxu0 0.0
    %2529 = vmatpush2.msra.mxu0 0.0
    %2530 = vmatprep.subr.mxu0 0.0
    %2531 = vmatpush2.msra.mxu0 0.0
    %2532 = vmatprep.subr.mxu0 0.0
    %2533 = vmatpush2.msra.mxu0 0.0
    %2534 = vmatprep.subr.mxu0 0.0
    %2535 = vmatpush2.msra.mxu0 0.0
    %2536 = vmatprep.subr.mxu0 0.0
    %2537 = vmatpush2.msra.mxu0 0.0
    %2538 = vmatprep.subr.mxu0 0.0
    %2539 = vmatpush2.msra.mxu0 0.0
    %2540 = vmatprep.subr.mxu0 0.0
    %2541 = vmatpush2.msra.mxu0 0.0
    %2542 = vmatprep.subr.mxu0 0.0
    %2543 = vmatpush2.msra.mxu0 0.0
    %2544 = vmatprep.subr.mxu0 0.0
    %2545 = vmatpush2.msra.mxu0 0.0
    %2546 = vmatprep.subr.mxu0 0.0
    %2547 = vmatpush2.msra.mxu0 0.0
    %2548 = vmatprep.mubr.f32.mxu0 0.0
    %2549 = vmatmul.mubr.f32.gmra.mxu0 %v2461
    %v2550 = vpop.f32.mrf.mxu0
    %v2551 = vadd.f32 %v2453, %v2550
    %v2552 = vpop.f32.mrf.mxu0
    %v2553 = vadd.f32 %v2457, %v2552
    %2554 = vmatprep.mubr.f32.mxu0 0.0
    %2555 = vmatmul.mubr.f32.gmra.mxu0 %v2464
    %v2556 = vpop.f32.mrf.mxu0
    %v2557 = vadd.f32 %v2453, %v2556
    %v2558 = vpop.f32.mrf.mxu0
    %v2559 = vadd.f32 %v2457, %v2558
    %2560 = vmatprep.mubr.f32.mxu0 0.0
    %2561 = vmatmul.mubr.f32.gmra.mxu0 %v2467
    %v2562 = vpop.f32.mrf.mxu0
    %v2563 = vadd.f32 %v2453, %v2562
    %v2564 = vpop.f32.mrf.mxu0
    %v2565 = vadd.f32 %v2457, %v2564
    %2566 = vmatprep.mubr.f32.mxu0 0.0
    %2567 = vmatmul.mubr.f32.gmra.mxu0 %v2470
    %v2568 = vpop.f32.mrf.mxu0
    %v2569 = vadd.f32 %v2453, %v2568
    %v2570 = vpop.f32.mrf.mxu0
    %v2571 = vadd.f32 %v2457, %v2570
    %2572 = vmatprep.mubr.f32.mxu0 0.0
    %2573 = vmatmul.mubr.f32.gmra.mxu0 %v2473
    %v2574 = vpop.f32.mrf.mxu0
    %v2575 = vadd.f32 %v2453, %v2574
    %v2576 = vpop.f32.mrf.mxu0
    %v2577 = vadd.f32 %v2457, %v2576
    %2578 = vmatprep.mubr.f32.mxu0 0.0
    %2579 = vmatmul.mubr.f32.gmra.mxu0 %v2476
    %v2580 = vpop.f32.mrf.mxu0
    %v2581 = vadd.f32 %v2453, %v2580
    %v2582 = vpop.f32.mrf.mxu0
    %v2583 = vadd.f32 %v2457, %v2582
    %2584 = vmatprep.mubr.f32.mxu0 0.0
    %2585 = vmatmul.mubr.f32.gmra.mxu0 %v2479
    %v2586 = vpop.f32.mrf.mxu0
    %v2587 = vadd.f32 %v2453, %v2586
    %v2588 = vpop.f32.mrf.mxu0
    %v2589 = vadd.f32 %v2457, %v2588
    %2590 = vmatprep.mubr.f32.mxu0 0.0
    %2591 = vmatmul.mubr.f32.gmra.mxu0 %v2482
    %v2592 = vpop.f32.mrf.mxu0
    %v2593 = vadd.f32 %v2453, %v2592
    %v2594 = vpop.f32.mrf.mxu0
    %v2595 = vadd.f32 %v2457, %v2594
    %2596 = vdwg.mxu0
    %2597 = vst [vmem:[#allocation2] sm:$0xff] %v2551
    %2598 = vst [vmem:[#allocation2 + $0x8] sm:$0xff] %v2553
    %2599 = vst [vmem:[#allocation2 + $0x10] sm:$0xff] %v2557
    %2600 = vst [vmem:[#allocation2 + $0x18] sm:$0xff] %v2559
    %2601 = vst [vmem:[#allocation2 + $0x20] sm:$0xff] %v2563
    %2602 = vst [vmem:[#allocation2 + $0x28] sm:$0xff] %v2565
    %2603 = vst [vmem:[#allocation2 + $0x30] sm:$0xff] %v2569
    %2604 = vst [vmem:[#allocation2 + $0x38] sm:$0xff] %v2571
    %2605 = vst [vmem:[#allocation2 + $0x40] sm:$0xff] %v2575
    %2606 = vst [vmem:[#allocation2 + $0x48] sm:$0xff] %v2577
    %2607 = vst [vmem:[#allocation2 + $0x50] sm:$0xff] %v2581
    %2608 = vst [vmem:[#allocation2 + $0x58] sm:$0xff] %v2583
    %2609 = vst [vmem:[#allocation2 + $0x60] sm:$0xff] %v2587
    %2610 = vst [vmem:[#allocation2 + $0x68] sm:$0xff] %v2589
    %2611 = vst [vmem:[#allocation2 + $0x70] sm:$0xff] %v2593
    %2612 = vst [vmem:[#allocation2 + $0x78] sm:$0xff] %v2595
    %v2613 = vld [vmem:[#allocation11] sm:$0xff]
    %v2614 = vld [vmem:[#allocation11 + $0x8] sm:$0xff]
    %v2615 = vld [vmem:[#allocation11 + $0x10] sm:$0xff]
    %v2616 = vld [vmem:[#allocation11 + $0x18] sm:$0xff]
    %v2617 = vld [vmem:[#allocation11 + $0x20] sm:$0xff]
    %v2618 = vld [vmem:[#allocation11 + $0x28] sm:$0xff]
    %v2619 = vld [vmem:[#allocation11 + $0x30] sm:$0xff]
    %v2620 = vld [vmem:[#allocation11 + $0x38] sm:$0xff]
    %v2621 = vld [vmem:[#allocation11 + $0x40] sm:$0xff]
    %v2622 = vld [vmem:[#allocation11 + $0x48] sm:$0xff]
    %v2623 = vld [vmem:[#allocation11 + $0x50] sm:$0xff]
    %v2624 = vld [vmem:[#allocation11 + $0x58] sm:$0xff]
    %v2625 = vld [vmem:[#allocation11 + $0x60] sm:$0xff]
    %v2626 = vld [vmem:[#allocation11 + $0x68] sm:$0xff]
    %v2627 = vld [vmem:[#allocation11 + $0x70] sm:$0xff]
    %v2628 = vld [vmem:[#allocation11 + $0x78] sm:$0xff]
    %v2629 = vld [vmem:[%s399] sm:$0xff]
    %v2630 = vld [vmem:[%s399 + $0x8] sm:$0xff]
    %v2631 = vld [vmem:[%s404] sm:$0xff]
    %v2632 = vld [vmem:[%s404 + $0x8] sm:$0xff]
    %v2633 = vsel %vm197, %v2629, %v2631
    %v2634 = vsel %vm198, %v2630, %v2632
    %2635 = vmatprep.subr.mxu0 0.0
    %2636 = vmatpush1.msra.mxu0 0.0
    %2637 = vmatprep.subr.mxu0 0.0
    %2638 = vmatpush1.msra.mxu0 0.0
    %2639 = vmatprep.subr.mxu0 0.0
    %2640 = vmatpush1.msra.mxu0 0.0
    %2641 = vmatprep.subr.mxu0 0.0
    %2642 = vmatpush1.msra.mxu0 0.0
    %2643 = vmatprep.subr.mxu0 0.0
    %2644 = vmatpush1.msra.mxu0 0.0
    %2645 = vmatprep.subr.mxu0 0.0
    %2646 = vmatpush1.msra.mxu0 0.0
    %2647 = vmatprep.subr.mxu0 0.0
    %2648 = vmatpush1.msra.mxu0 0.0
    %2649 = vmatprep.subr.mxu0 0.0
    %2650 = vmatpush1.msra.mxu0 0.0
    %2651 = vmatprep.subr.mxu0 %v2628
    %2652 = vmatpush1.msra.mxu0 %v2627
    %2653 = vmatprep.subr.mxu0 %v2626
    %2654 = vmatpush1.msra.mxu0 %v2625
    %2655 = vmatprep.subr.mxu0 %v2624
    %2656 = vmatpush1.msra.mxu0 %v2623
    %2657 = vmatprep.subr.mxu0 %v2622
    %2658 = vmatpush1.msra.mxu0 %v2621
    %2659 = vmatprep.subr.mxu0 %v2620
    %2660 = vmatpush1.msra.mxu0 %v2619
    %2661 = vmatprep.subr.mxu0 %v2618
    %2662 = vmatpush1.msra.mxu0 %v2617
    %2663 = vmatprep.subr.mxu0 %v2616
    %2664 = vmatpush1.msra.mxu0 %v2615
    %2665 = vmatprep.subr.mxu0 %v2614
    %2666 = vmatpush1.msra.mxu0 %v2613
    %2667 = vmatprep.subr.mxu0 0.0
    %2668 = vmatpush2.msra.mxu0 0.0
    %2669 = vmatprep.subr.mxu0 0.0
    %2670 = vmatpush2.msra.mxu0 0.0
    %2671 = vmatprep.subr.mxu0 0.0
    %2672 = vmatpush2.msra.mxu0 0.0
    %2673 = vmatprep.subr.mxu0 0.0
    %2674 = vmatpush2.msra.mxu0 0.0
    %2675 = vmatprep.subr.mxu0 0.0
    %2676 = vmatpush2.msra.mxu0 0.0
    %2677 = vmatprep.subr.mxu0 0.0
    %2678 = vmatpush2.msra.mxu0 0.0
    %2679 = vmatprep.subr.mxu0 0.0
    %2680 = vmatpush2.msra.mxu0 0.0
    %2681 = vmatprep.subr.mxu0 0.0
    %2682 = vmatpush2.msra.mxu0 0.0
    %2683 = vmatprep.subr.mxu0 0.0
    %2684 = vmatpush2.msra.mxu0 0.0
    %2685 = vmatprep.subr.mxu0 0.0
    %2686 = vmatpush2.msra.mxu0 0.0
    %2687 = vmatprep.subr.mxu0 0.0
    %2688 = vmatpush2.msra.mxu0 0.0
    %2689 = vmatprep.subr.mxu0 0.0
    %2690 = vmatpush2.msra.mxu0 0.0
    %2691 = vmatprep.subr.mxu0 0.0
    %2692 = vmatpush2.msra.mxu0 0.0
    %2693 = vmatprep.subr.mxu0 0.0
    %2694 = vmatpush2.msra.mxu0 0.0
    %2695 = vmatprep.subr.mxu0 0.0
    %2696 = vmatpush2.msra.mxu0 0.0
    %2697 = vmatprep.subr.mxu0 0.0
    %2698 = vmatpush2.msra.mxu0 0.0
    %2699 = vmatprep.mubr.f32.mxu0 0.0
    %2700 = vmatmul.mubr.f32.gmra.mxu0 %v411
    %v2701 = vpop.f32.mrf.mxu0
    %v2702 = vadd.f32 %v2633, %v2701
    %v2703 = vpop.f32.mrf.mxu0
    %v2704 = vadd.f32 %v2634, %v2703
    %2705 = vdwg.mxu0
    %v2706 = vxor.u32 %v2702, 2147483648
    %v2707 = vxor.u32 %v2704, 2147483648
    %v2708 = vmul.f32 %v2706, 1.442695
    %v2709 = vpow.pop %v2708
    %v2710 = vmul.f32 %v2707, 1.442695
    %v2711 = vpow.pop %v2710
    %v2712 = vadd.f32 %v2709, 1.0
    %v2713 = vadd.f32 %v2711, 1.0
    %v2714 = vrcp.pop %v2712
    %v2715 = vmul.f32 1.0, %v2714
    %v2716 = vrcp.pop %v2713
    %v2717 = vmul.f32 1.0, %v2716
    %v2718 = vtanh.pop %v2704
    %v2719 = vmul.f32 %v2715, 0.0
    %2721 = vrot.lane.b32.xlu0 %v2718, 64
    %v2722 = vpop.permute.xlu0 %2721
    %v2724 = vmul.f32 %v2715, %v2722
    %2726 = vrot.lane.b32.xlu0 %v2724, 64
    %v2727 = vpop.permute.xlu0 %2726
    %v2729 = vadd.f32 %v2719, %v2727
    %v2730 = vtanh.pop %v2729
    %2732 = vrot.lane.b32.xlu0 %v2730, 64
    %v2733 = vpop.permute.xlu0 %2732
    %v2735 = vmul.f32 %v2717, %v2733
    %2736 = vst.msk [vmem:[#allocation3] sm:$0xff] %vm227, %v2735
    %2737 = vst.msk [vmem:[%s515] sm:$0xff] %vm516, %v2735
    %v2738 = vld [vmem:[%s520] sm:$0xff]
    %v2739 = vld [vmem:[%s520 + $0x8] sm:$0xff]
    %v2740 = vld [vmem:[%s525] sm:$0xff]
    %v2741 = vld [vmem:[%s525 + $0x8] sm:$0xff]
    %v2742 = vsel %vm197, %v2738, %v2740
    %v2743 = vsel %vm198, %v2739, %v2741
    %v2745 = vsel %vm409, %v2735, 0
    %2747 = vmatprep.subr.mxu0 0.0
    %2748 = vmatpush1.msra.mxu0 0.0
    %2749 = vmatprep.subr.mxu0 0.0
    %2750 = vmatpush1.msra.mxu0 0.0
    %2751 = vmatprep.subr.mxu0 0.0
    %2752 = vmatpush1.msra.mxu0 0.0
    %2753 = vmatprep.subr.mxu0 0.0
    %2754 = vmatpush1.msra.mxu0 0.0
    %2755 = vmatprep.subr.mxu0 0.0
    %2756 = vmatpush1.msra.mxu0 0.0
    %2757 = vmatprep.subr.mxu0 0.0
    %2758 = vmatpush1.msra.mxu0 0.0
    %2759 = vmatprep.subr.mxu0 0.0
    %2760 = vmatpush1.msra.mxu0 0.0
    %2761 = vmatprep.subr.mxu0 0.0
    %2762 = vmatpush1.msra.mxu0 0.0
    %2763 = vmatprep.subr.mxu0 %v2628
    %2764 = vmatpush1.msra.mxu0 %v2627
    %2765 = vmatprep.subr.mxu0 %v2626
    %2766 = vmatpush1.msra.mxu0 %v2625
    %2767 = vmatprep.subr.mxu0 %v2624
    %2768 = vmatpush1.msra.mxu0 %v2623
    %2769 = vmatprep.subr.mxu0 %v2622
    %2770 = vmatpush1.msra.mxu0 %v2621
    %2771 = vmatprep.subr.mxu0 %v2620
    %2772 = vmatpush1.msra.mxu0 %v2619
    %2773 = vmatprep.subr.mxu0 %v2618
    %2774 = vmatpush1.msra.mxu0 %v2617
    %2775 = vmatprep.subr.mxu0 %v2616
    %2776 = vmatpush1.msra.mxu0 %v2615
    %2777 = vmatprep.subr.mxu0 %v2614
    %2778 = vmatpush1.msra.mxu0 %v2613
    %2779 = vmatprep.subr.mxu0 0.0
    %2780 = vmatpush2.msra.mxu0 0.0
    %2781 = vmatprep.subr.mxu0 0.0
    %2782 = vmatpush2.msra.mxu0 0.0
    %2783 = vmatprep.subr.mxu0 0.0
    %2784 = vmatpush2.msra.mxu0 0.0
    %2785 = vmatprep.subr.mxu0 0.0
    %2786 = vmatpush2.msra.mxu0 0.0
    %2787 = vmatprep.subr.mxu0 0.0
    %2788 = vmatpush2.msra.mxu0 0.0
    %2789 = vmatprep.subr.mxu0 0.0
    %2790 = vmatpush2.msra.mxu0 0.0
    %2791 = vmatprep.subr.mxu0 0.0
    %2792 = vmatpush2.msra.mxu0 0.0
    %2793 = vmatprep.subr.mxu0 0.0
    %2794 = vmatpush2.msra.mxu0 0.0
    %2795 = vmatprep.subr.mxu0 0.0
    %2796 = vmatpush2.msra.mxu0 0.0
    %2797 = vmatprep.subr.mxu0 0.0
    %2798 = vmatpush2.msra.mxu0 0.0
    %2799 = vmatprep.subr.mxu0 0.0
    %2800 = vmatpush2.msra.mxu0 0.0
    %2801 = vmatprep.subr.mxu0 0.0
    %2802 = vmatpush2.msra.mxu0 0.0
    %2803 = vmatprep.subr.mxu0 0.0
    %2804 = vmatpush2.msra.mxu0 0.0
    %2805 = vmatprep.subr.mxu0 0.0
    %2806 = vmatpush2.msra.mxu0 0.0
    %2807 = vmatprep.subr.mxu0 0.0
    %2808 = vmatpush2.msra.mxu0 0.0
    %2809 = vmatprep.subr.mxu0 0.0
    %2810 = vmatpush2.msra.mxu0 0.0
    %2811 = vmatprep.mubr.f32.mxu0 0.0
    %2812 = vmatmul.mubr.f32.gmra.mxu0 %v2745
    %v2813 = vpop.f32.mrf.mxu0
    %v2814 = vadd.f32 %v2742, %v2813
    %v2815 = vpop.f32.mrf.mxu0
    %v2816 = vadd.f32 %v2743, %v2815
    %2817 = vdwg.mxu0
    %v2818 = vxor.u32 %v2814, 2147483648
    %v2819 = vxor.u32 %v2816, 2147483648
    %v2820 = vmul.f32 %v2818, 1.442695
    %v2821 = vpow.pop %v2820
    %v2822 = vmul.f32 %v2819, 1.442695
    %v2823 = vpow.pop %v2822
    %v2824 = vadd.f32 %v2821, 1.0
    %v2825 = vadd.f32 %v2823, 1.0
    %v2826 = vrcp.pop %v2824
    %v2827 = vmul.f32 1.0, %v2826
    %v2828 = vrcp.pop %v2825
    %v2829 = vmul.f32 1.0, %v2828
    %v2830 = vtanh.pop %v2816
    %v2831 = vmul.f32 %v2827, %v2729
    %2833 = vrot.lane.b32.xlu0 %v2830, 64
    %v2834 = vpop.permute.xlu0 %2833
    %v2836 = vmul.f32 %v2827, %v2834
    %2838 = vrot.lane.b32.xlu0 %v2836, 64
    %v2839 = vpop.permute.xlu0 %2838
    %v2841 = vadd.f32 %v2831, %v2839
    %v2842 = vtanh.pop %v2841
    %2844 = vrot.lane.b32.xlu0 %v2842, 64
    %v2845 = vpop.permute.xlu0 %2844
    %v2847 = vmul.f32 %v2829, %v2845
    %2848 = vst.msk [vmem:[%s634] sm:$0xff] %vm227, %v2847
    %2849 = vst.msk [vmem:[%s636] sm:$0xff] %vm516, %v2847
    %v2850 = vld [vmem:[%s640] sm:$0xff]
    %v2851 = vld [vmem:[%s640 + $0x8] sm:$0xff]
    %v2852 = vld [vmem:[%s645] sm:$0xff]
    %v2853 = vld [vmem:[%s645 + $0x8] sm:$0xff]
    %v2854 = vsel %vm197, %v2850, %v2852
    %v2855 = vsel %vm198, %v2851, %v2853
    %v2857 = vsel %vm409, %v2847, 0
    %2859 = vmatprep.subr.mxu0 0.0
    %2860 = vmatpush1.msra.mxu0 0.0
    %2861 = vmatprep.subr.mxu0 0.0
    %2862 = vmatpush1.msra.mxu0 0.0
    %2863 = vmatprep.subr.mxu0 0.0
    %2864 = vmatpush1.msra.mxu0 0.0
    %2865 = vmatprep.subr.mxu0 0.0
    %2866 = vmatpush1.msra.mxu0 0.0
    %2867 = vmatprep.subr.mxu0 0.0
    %2868 = vmatpush1.msra.mxu0 0.0
    %2869 = vmatprep.subr.mxu0 0.0
    %2870 = vmatpush1.msra.mxu0 0.0
    %2871 = vmatprep.subr.mxu0 0.0
    %2872 = vmatpush1.msra.mxu0 0.0
    %2873 = vmatprep.subr.mxu0 0.0
    %2874 = vmatpush1.msra.mxu0 0.0
    %2875 = vmatprep.subr.mxu0 %v2628
    %2876 = vmatpush1.msra.mxu0 %v2627
    %2877 = vmatprep.subr.mxu0 %v2626
    %2878 = vmatpush1.msra.mxu0 %v2625
    %2879 = vmatprep.subr.mxu0 %v2624
    %2880 = vmatpush1.msra.mxu0 %v2623
    %2881 = vmatprep.subr.mxu0 %v2622
    %2882 = vmatpush1.msra.mxu0 %v2621
    %2883 = vmatprep.subr.mxu0 %v2620
    %2884 = vmatpush1.msra.mxu0 %v2619
    %2885 = vmatprep.subr.mxu0 %v2618
    %2886 = vmatpush1.msra.mxu0 %v2617
    %2887 = vmatprep.subr.mxu0 %v2616
    %2888 = vmatpush1.msra.mxu0 %v2615
    %2889 = vmatprep.subr.mxu0 %v2614
    %2890 = vmatpush1.msra.mxu0 %v2613
    %2891 = vmatprep.subr.mxu0 0.0
    %2892 = vmatpush2.msra.mxu0 0.0
    %2893 = vmatprep.subr.mxu0 0.0
    %2894 = vmatpush2.msra.mxu0 0.0
    %2895 = vmatprep.subr.mxu0 0.0
    %2896 = vmatpush2.msra.mxu0 0.0
    %2897 = vmatprep.subr.mxu0 0.0
    %2898 = vmatpush2.msra.mxu0 0.0
    %2899 = vmatprep.subr.mxu0 0.0
    %2900 = vmatpush2.msra.mxu0 0.0
    %2901 = vmatprep.subr.mxu0 0.0
    %2902 = vmatpush2.msra.mxu0 0.0
    %2903 = vmatprep.subr.mxu0 0.0
    %2904 = vmatpush2.msra.mxu0 0.0
    %2905 = vmatprep.subr.mxu0 0.0
    %2906 = vmatpush2.msra.mxu0 0.0
    %2907 = vmatprep.subr.mxu0 0.0
    %2908 = vmatpush2.msra.mxu0 0.0
    %2909 = vmatprep.subr.mxu0 0.0
    %2910 = vmatpush2.msra.mxu0 0.0
    %2911 = vmatprep.subr.mxu0 0.0
    %2912 = vmatpush2.msra.mxu0 0.0
    %2913 = vmatprep.subr.mxu0 0.0
    %2914 = vmatpush2.msra.mxu0 0.0
    %2915 = vmatprep.subr.mxu0 0.0
    %2916 = vmatpush2.msra.mxu0 0.0
    %2917 = vmatprep.subr.mxu0 0.0
    %2918 = vmatpush2.msra.mxu0 0.0
    %2919 = vmatprep.subr.mxu0 0.0
    %2920 = vmatpush2.msra.mxu0 0.0
    %2921 = vmatprep.subr.mxu0 0.0
    %2922 = vmatpush2.msra.mxu0 0.0
    %2923 = vmatprep.mubr.f32.mxu0 0.0
    %2924 = vmatmul.mubr.f32.gmra.mxu0 %v2857
    %v2925 = vpop.f32.mrf.mxu0
    %v2926 = vadd.f32 %v2854, %v2925
    %v2927 = vpop.f32.mrf.mxu0
    %v2928 = vadd.f32 %v2855, %v2927
    %2929 = vdwg.mxu0
    %v2930 = vxor.u32 %v2926, 2147483648
    %v2931 = vxor.u32 %v2928, 2147483648
    %v2932 = vmul.f32 %v2930, 1.442695
    %v2933 = vpow.pop %v2932
    %v2934 = vmul.f32 %v2931, 1.442695
    %v2935 = vpow.pop %v2934
    %v2936 = vadd.f32 %v2933, 1.0
    %v2937 = vadd.f32 %v2935, 1.0
    %v2938 = vrcp.pop %v2936
    %v2939 = vmul.f32 1.0, %v2938
    %v2940 = vrcp.pop %v2937
    %v2941 = vmul.f32 1.0, %v2940
    %v2942 = vtanh.pop %v2928
    %v2943 = vmul.f32 %v2939, %v2841
    %2945 = vrot.lane.b32.xlu0 %v2942, 64
    %v2946 = vpop.permute.xlu0 %2945
    %v2948 = vmul.f32 %v2939, %v2946
    %2950 = vrot.lane.b32.xlu0 %v2948, 64
    %v2951 = vpop.permute.xlu0 %2950
    %v2953 = vadd.f32 %v2943, %v2951
    %v2954 = vtanh.pop %v2953
    %2956 = vrot.lane.b32.xlu0 %v2954, 64
    %v2957 = vpop.permute.xlu0 %2956
    %v2959 = vmul.f32 %v2941, %v2957
    %2960 = vst.msk [vmem:[%s754] sm:$0xff] %vm227, %v2959
    %2961 = vst.msk [vmem:[%s756] sm:$0xff] %vm516, %v2959
    %v2962 = vld [vmem:[%s760] sm:$0xff]
    %v2963 = vld [vmem:[%s760 + $0x8] sm:$0xff]
    %v2964 = vld [vmem:[%s765] sm:$0xff]
    %v2965 = vld [vmem:[%s765 + $0x8] sm:$0xff]
    %v2966 = vsel %vm197, %v2962, %v2964
    %v2967 = vsel %vm198, %v2963, %v2965
    %v2969 = vsel %vm409, %v2959, 0
    %2971 = vmatprep.subr.mxu0 0.0
    %2972 = vmatpush1.msra.mxu0 0.0
    %2973 = vmatprep.subr.mxu0 0.0
    %2974 = vmatpush1.msra.mxu0 0.0
    %2975 = vmatprep.subr.mxu0 0.0
    %2976 = vmatpush1.msra.mxu0 0.0
    %2977 = vmatprep.subr.mxu0 0.0
    %2978 = vmatpush1.msra.mxu0 0.0
    %2979 = vmatprep.subr.mxu0 0.0
    %2980 = vmatpush1.msra.mxu0 0.0
    %2981 = vmatprep.subr.mxu0 0.0
    %2982 = vmatpush1.msra.mxu0 0.0
    %2983 = vmatprep.subr.mxu0 0.0
    %2984 = vmatpush1.msra.mxu0 0.0
    %2985 = vmatprep.subr.mxu0 0.0
    %2986 = vmatpush1.msra.mxu0 0.0
    %2987 = vmatprep.subr.mxu0 %v2628
    %2988 = vmatpush1.msra.mxu0 %v2627
    %2989 = vmatprep.subr.mxu0 %v2626
    %2990 = vmatpush1.msra.mxu0 %v2625
    %2991 = vmatprep.subr.mxu0 %v2624
    %2992 = vmatpush1.msra.mxu0 %v2623
    %2993 = vmatprep.subr.mxu0 %v2622
    %2994 = vmatpush1.msra.mxu0 %v2621
    %2995 = vmatprep.subr.mxu0 %v2620
    %2996 = vmatpush1.msra.mxu0 %v2619
    %2997 = vmatprep.subr.mxu0 %v2618
    %2998 = vmatpush1.msra.mxu0 %v2617
    %2999 = vmatprep.subr.mxu0 %v2616
    %3000 = vmatpush1.msra.mxu0 %v2615
    %3001 = vmatprep.subr.mxu0 %v2614
    %3002 = vmatpush1.msra.mxu0 %v2613
    %3003 = vmatprep.subr.mxu0 0.0
    %3004 = vmatpush2.msra.mxu0 0.0
    %3005 = vmatprep.subr.mxu0 0.0
    %3006 = vmatpush2.msra.mxu0 0.0
    %3007 = vmatprep.subr.mxu0 0.0
    %3008 = vmatpush2.msra.mxu0 0.0
    %3009 = vmatprep.subr.mxu0 0.0
    %3010 = vmatpush2.msra.mxu0 0.0
    %3011 = vmatprep.subr.mxu0 0.0
    %3012 = vmatpush2.msra.mxu0 0.0
    %3013 = vmatprep.subr.mxu0 0.0
    %3014 = vmatpush2.msra.mxu0 0.0
    %3015 = vmatprep.subr.mxu0 0.0
    %3016 = vmatpush2.msra.mxu0 0.0
    %3017 = vmatprep.subr.mxu0 0.0
    %3018 = vmatpush2.msra.mxu0 0.0
    %3019 = vmatprep.subr.mxu0 0.0
    %3020 = vmatpush2.msra.mxu0 0.0
    %3021 = vmatprep.subr.mxu0 0.0
    %3022 = vmatpush2.msra.mxu0 0.0
    %3023 = vmatprep.subr.mxu0 0.0
    %3024 = vmatpush2.msra.mxu0 0.0
    %3025 = vmatprep.subr.mxu0 0.0
    %3026 = vmatpush2.msra.mxu0 0.0
    %3027 = vmatprep.subr.mxu0 0.0
    %3028 = vmatpush2.msra.mxu0 0.0
    %3029 = vmatprep.subr.mxu0 0.0
    %3030 = vmatpush2.msra.mxu0 0.0
    %3031 = vmatprep.subr.mxu0 0.0
    %3032 = vmatpush2.msra.mxu0 0.0
    %3033 = vmatprep.subr.mxu0 0.0
    %3034 = vmatpush2.msra.mxu0 0.0
    %3035 = vmatprep.mubr.f32.mxu0 0.0
    %3036 = vmatmul.mubr.f32.gmra.mxu0 %v2969
    %v3037 = vpop.f32.mrf.mxu0
    %v3038 = vadd.f32 %v2966, %v3037
    %v3039 = vpop.f32.mrf.mxu0
    %v3040 = vadd.f32 %v2967, %v3039
    %3041 = vdwg.mxu0
    %v3042 = vxor.u32 %v3038, 2147483648
    %v3043 = vxor.u32 %v3040, 2147483648
    %v3044 = vmul.f32 %v3042, 1.442695
    %v3045 = vpow.pop %v3044
    %v3046 = vmul.f32 %v3043, 1.442695
    %v3047 = vpow.pop %v3046
    %v3048 = vadd.f32 %v3045, 1.0
    %v3049 = vadd.f32 %v3047, 1.0
    %v3050 = vrcp.pop %v3048
    %v3051 = vmul.f32 1.0, %v3050
    %v3052 = vrcp.pop %v3049
    %v3053 = vmul.f32 1.0, %v3052
    %v3054 = vtanh.pop %v3040
    %v3055 = vmul.f32 %v3051, %v2953
    %3057 = vrot.lane.b32.xlu0 %v3054, 64
    %v3058 = vpop.permute.xlu0 %3057
    %v3060 = vmul.f32 %v3051, %v3058
    %3062 = vrot.lane.b32.xlu0 %v3060, 64
    %v3063 = vpop.permute.xlu0 %3062
    %v3065 = vadd.f32 %v3055, %v3063
    %v3066 = vtanh.pop %v3065
    %3068 = vrot.lane.b32.xlu0 %v3066, 64
    %v3069 = vpop.permute.xlu0 %3068
    %v3071 = vmul.f32 %v3053, %v3069
    %3072 = vst.msk [vmem:[%s874] sm:$0xff] %vm227, %v3071
    %3073 = vst.msk [vmem:[%s876] sm:$0xff] %vm516, %v3071
    %v3074 = vld [vmem:[%s765] sm:$0xff]
    %v3075 = vld [vmem:[%s765 + $0x8] sm:$0xff]
    %v3076 = vld [vmem:[%s760] sm:$0xff]
    %v3077 = vld [vmem:[%s760 + $0x8] sm:$0xff]
    %v3078 = vsel %vm197, %v3074, %v3076
    %v3079 = vsel %vm198, %v3075, %v3077
    %v3081 = vsel %vm409, %v3071, 0
    %3083 = vmatprep.subr.mxu0 0.0
    %3084 = vmatpush1.msra.mxu0 0.0
    %3085 = vmatprep.subr.mxu0 0.0
    %3086 = vmatpush1.msra.mxu0 0.0
    %3087 = vmatprep.subr.mxu0 0.0
    %3088 = vmatpush1.msra.mxu0 0.0
    %3089 = vmatprep.subr.mxu0 0.0
    %3090 = vmatpush1.msra.mxu0 0.0
    %3091 = vmatprep.subr.mxu0 0.0
    %3092 = vmatpush1.msra.mxu0 0.0
    %3093 = vmatprep.subr.mxu0 0.0
    %3094 = vmatpush1.msra.mxu0 0.0
    %3095 = vmatprep.subr.mxu0 0.0
    %3096 = vmatpush1.msra.mxu0 0.0
    %3097 = vmatprep.subr.mxu0 0.0
    %3098 = vmatpush1.msra.mxu0 0.0
    %3099 = vmatprep.subr.mxu0 %v2628
    %3100 = vmatpush1.msra.mxu0 %v2627
    %3101 = vmatprep.subr.mxu0 %v2626
    %3102 = vmatpush1.msra.mxu0 %v2625
    %3103 = vmatprep.subr.mxu0 %v2624
    %3104 = vmatpush1.msra.mxu0 %v2623
    %3105 = vmatprep.subr.mxu0 %v2622
    %3106 = vmatpush1.msra.mxu0 %v2621
    %3107 = vmatprep.subr.mxu0 %v2620
    %3108 = vmatpush1.msra.mxu0 %v2619
    %3109 = vmatprep.subr.mxu0 %v2618
    %3110 = vmatpush1.msra.mxu0 %v2617
    %3111 = vmatprep.subr.mxu0 %v2616
    %3112 = vmatpush1.msra.mxu0 %v2615
    %3113 = vmatprep.subr.mxu0 %v2614
    %3114 = vmatpush1.msra.mxu0 %v2613
    %3115 = vmatprep.subr.mxu0 0.0
    %3116 = vmatpush2.msra.mxu0 0.0
    %3117 = vmatprep.subr.mxu0 0.0
    %3118 = vmatpush2.msra.mxu0 0.0
    %3119 = vmatprep.subr.mxu0 0.0
    %3120 = vmatpush2.msra.mxu0 0.0
    %3121 = vmatprep.subr.mxu0 0.0
    %3122 = vmatpush2.msra.mxu0 0.0
    %3123 = vmatprep.subr.mxu0 0.0
    %3124 = vmatpush2.msra.mxu0 0.0
    %3125 = vmatprep.subr.mxu0 0.0
    %3126 = vmatpush2.msra.mxu0 0.0
    %3127 = vmatprep.subr.mxu0 0.0
    %3128 = vmatpush2.msra.mxu0 0.0
    %3129 = vmatprep.subr.mxu0 0.0
    %3130 = vmatpush2.msra.mxu0 0.0
    %3131 = vmatprep.subr.mxu0 0.0
    %3132 = vmatpush2.msra.mxu0 0.0
    %3133 = vmatprep.subr.mxu0 0.0
    %3134 = vmatpush2.msra.mxu0 0.0
    %3135 = vmatprep.subr.mxu0 0.0
    %3136 = vmatpush2.msra.mxu0 0.0
    %3137 = vmatprep.subr.mxu0 0.0
    %3138 = vmatpush2.msra.mxu0 0.0
    %3139 = vmatprep.subr.mxu0 0.0
    %3140 = vmatpush2.msra.mxu0 0.0
    %3141 = vmatprep.subr.mxu0 0.0
    %3142 = vmatpush2.msra.mxu0 0.0
    %3143 = vmatprep.subr.mxu0 0.0
    %3144 = vmatpush2.msra.mxu0 0.0
    %3145 = vmatprep.subr.mxu0 0.0
    %3146 = vmatpush2.msra.mxu0 0.0
    %3147 = vmatprep.mubr.f32.mxu0 0.0
    %3148 = vmatmul.mubr.f32.gmra.mxu0 %v3081
    %v3149 = vpop.f32.mrf.mxu0
    %v3150 = vadd.f32 %v3078, %v3149
    %v3151 = vpop.f32.mrf.mxu0
    %v3152 = vadd.f32 %v3079, %v3151
    %3153 = vdwg.mxu0
    %v3154 = vxor.u32 %v3150, 2147483648
    %v3155 = vxor.u32 %v3152, 2147483648
    %v3156 = vmul.f32 %v3154, 1.442695
    %v3157 = vpow.pop %v3156
    %v3158 = vmul.f32 %v3155, 1.442695
    %v3159 = vpow.pop %v3158
    %v3160 = vadd.f32 %v3157, 1.0
    %v3161 = vadd.f32 %v3159, 1.0
    %v3162 = vrcp.pop %v3160
    %v3163 = vmul.f32 1.0, %v3162
    %v3164 = vrcp.pop %v3161
    %v3165 = vmul.f32 1.0, %v3164
    %v3166 = vtanh.pop %v3152
    %v3167 = vmul.f32 %v3163, %v3065
    %3169 = vrot.lane.b32.xlu0 %v3166, 64
    %v3170 = vpop.permute.xlu0 %3169
    %v3172 = vmul.f32 %v3163, %v3170
    %3174 = vrot.lane.b32.xlu0 %v3172, 64
    %v3175 = vpop.permute.xlu0 %3174
    %v3177 = vadd.f32 %v3167, %v3175
    %v3178 = vtanh.pop %v3177
    %3180 = vrot.lane.b32.xlu0 %v3178, 64
    %v3181 = vpop.permute.xlu0 %3180
    %v3183 = vmul.f32 %v3165, %v3181
    %3184 = vst.msk [vmem:[%s876] sm:$0xff] %vm227, %v3183
    %3185 = vst.msk [vmem:[%s874] sm:$0xff] %vm516, %v3183
    %v3186 = vld [vmem:[%s645] sm:$0xff]
    %v3187 = vld [vmem:[%s645 + $0x8] sm:$0xff]
    %v3188 = vld [vmem:[%s640] sm:$0xff]
    %v3189 = vld [vmem:[%s640 + $0x8] sm:$0xff]
    %v3190 = vsel %vm197, %v3186, %v3188
    %v3191 = vsel %vm198, %v3187, %v3189
    %v3193 = vsel %vm409, %v3183, 0
    %3195 = vmatprep.subr.mxu0 0.0
    %3196 = vmatpush1.msra.mxu0 0.0
    %3197 = vmatprep.subr.mxu0 0.0
    %3198 = vmatpush1.msra.mxu0 0.0
    %3199 = vmatprep.subr.mxu0 0.0
    %3200 = vmatpush1.msra.mxu0 0.0
    %3201 = vmatprep.subr.mxu0 0.0
    %3202 = vmatpush1.msra.mxu0 0.0
    %3203 = vmatprep.subr.mxu0 0.0
    %3204 = vmatpush1.msra.mxu0 0.0
    %3205 = vmatprep.subr.mxu0 0.0
    %3206 = vmatpush1.msra.mxu0 0.0
    %3207 = vmatprep.subr.mxu0 0.0
    %3208 = vmatpush1.msra.mxu0 0.0
    %3209 = vmatprep.subr.mxu0 0.0
    %3210 = vmatpush1.msra.mxu0 0.0
    %3211 = vmatprep.subr.mxu0 %v2628
    %3212 = vmatpush1.msra.mxu0 %v2627
    %3213 = vmatprep.subr.mxu0 %v2626
    %3214 = vmatpush1.msra.mxu0 %v2625
    %3215 = vmatprep.subr.mxu0 %v2624
    %3216 = vmatpush1.msra.mxu0 %v2623
    %3217 = vmatprep.subr.mxu0 %v2622
    %3218 = vmatpush1.msra.mxu0 %v2621
    %3219 = vmatprep.subr.mxu0 %v2620
    %3220 = vmatpush1.msra.mxu0 %v2619
    %3221 = vmatprep.subr.mxu0 %v2618
    %3222 = vmatpush1.msra.mxu0 %v2617
    %3223 = vmatprep.subr.mxu0 %v2616
    %3224 = vmatpush1.msra.mxu0 %v2615
    %3225 = vmatprep.subr.mxu0 %v2614
    %3226 = vmatpush1.msra.mxu0 %v2613
    %3227 = vmatprep.subr.mxu0 0.0
    %3228 = vmatpush2.msra.mxu0 0.0
    %3229 = vmatprep.subr.mxu0 0.0
    %3230 = vmatpush2.msra.mxu0 0.0
    %3231 = vmatprep.subr.mxu0 0.0
    %3232 = vmatpush2.msra.mxu0 0.0
    %3233 = vmatprep.subr.mxu0 0.0
    %3234 = vmatpush2.msra.mxu0 0.0
    %3235 = vmatprep.subr.mxu0 0.0
    %3236 = vmatpush2.msra.mxu0 0.0
    %3237 = vmatprep.subr.mxu0 0.0
    %3238 = vmatpush2.msra.mxu0 0.0
    %3239 = vmatprep.subr.mxu0 0.0
    %3240 = vmatpush2.msra.mxu0 0.0
    %3241 = vmatprep.subr.mxu0 0.0
    %3242 = vmatpush2.msra.mxu0 0.0
    %3243 = vmatprep.subr.mxu0 0.0
    %3244 = vmatpush2.msra.mxu0 0.0
    %3245 = vmatprep.subr.mxu0 0.0
    %3246 = vmatpush2.msra.mxu0 0.0
    %3247 = vmatprep.subr.mxu0 0.0
    %3248 = vmatpush2.msra.mxu0 0.0
    %3249 = vmatprep.subr.mxu0 0.0
    %3250 = vmatpush2.msra.mxu0 0.0
    %3251 = vmatprep.subr.mxu0 0.0
    %3252 = vmatpush2.msra.mxu0 0.0
    %3253 = vmatprep.subr.mxu0 0.0
    %3254 = vmatpush2.msra.mxu0 0.0
    %3255 = vmatprep.subr.mxu0 0.0
    %3256 = vmatpush2.msra.mxu0 0.0
    %3257 = vmatprep.subr.mxu0 0.0
    %3258 = vmatpush2.msra.mxu0 0.0
    %3259 = vmatprep.mubr.f32.mxu0 0.0
    %3260 = vmatmul.mubr.f32.gmra.mxu0 %v3193
    %v3261 = vpop.f32.mrf.mxu0
    %v3262 = vadd.f32 %v3190, %v3261
    %v3263 = vpop.f32.mrf.mxu0
    %v3264 = vadd.f32 %v3191, %v3263
    %3265 = vdwg.mxu0
    %v3266 = vxor.u32 %v3262, 2147483648
    %v3267 = vxor.u32 %v3264, 2147483648
    %v3268 = vmul.f32 %v3266, 1.442695
    %v3269 = vpow.pop %v3268
    %v3270 = vmul.f32 %v3267, 1.442695
    %v3271 = vpow.pop %v3270
    %v3272 = vadd.f32 %v3269, 1.0
    %v3273 = vadd.f32 %v3271, 1.0
    %v3274 = vrcp.pop %v3272
    %v3275 = vmul.f32 1.0, %v3274
    %v3276 = vrcp.pop %v3273
    %v3277 = vmul.f32 1.0, %v3276
    %v3278 = vtanh.pop %v3264
    %v3279 = vmul.f32 %v3275, %v3177
    %3281 = vrot.lane.b32.xlu0 %v3278, 64
    %v3282 = vpop.permute.xlu0 %3281
    %v3284 = vmul.f32 %v3275, %v3282
    %3286 = vrot.lane.b32.xlu0 %v3284, 64
    %v3287 = vpop.permute.xlu0 %3286
    %v3289 = vadd.f32 %v3279, %v3287
    %v3290 = vtanh.pop %v3289
    %3292 = vrot.lane.b32.xlu0 %v3290, 64
    %v3293 = vpop.permute.xlu0 %3292
    %v3295 = vmul.f32 %v3277, %v3293
    %3296 = vst.msk [vmem:[%s756] sm:$0xff] %vm227, %v3295
    %3297 = vst.msk [vmem:[%s754] sm:$0xff] %vm516, %v3295
    %v3298 = vld [vmem:[%s525] sm:$0xff]
    %v3299 = vld [vmem:[%s525 + $0x8] sm:$0xff]
    %v3300 = vld [vmem:[%s520] sm:$0xff]
    %v3301 = vld [vmem:[%s520 + $0x8] sm:$0xff]
    %v3302 = vsel %vm197, %v3298, %v3300
    %v3303 = vsel %vm198, %v3299, %v3301
    %v3305 = vsel %vm409, %v3295, 0
    %3307 = vmatprep.subr.mxu0 0.0
    %3308 = vmatpush1.msra.mxu0 0.0
    %3309 = vmatprep.subr.mxu0 0.0
    %3310 = vmatpush1.msra.mxu0 0.0
    %3311 = vmatprep.subr.mxu0 0.0
    %3312 = vmatpush1.msra.mxu0 0.0
    %3313 = vmatprep.subr.mxu0 0.0
    %3314 = vmatpush1.msra.mxu0 0.0
    %3315 = vmatprep.subr.mxu0 0.0
    %3316 = vmatpush1.msra.mxu0 0.0
    %3317 = vmatprep.subr.mxu0 0.0
    %3318 = vmatpush1.msra.mxu0 0.0
    %3319 = vmatprep.subr.mxu0 0.0
    %3320 = vmatpush1.msra.mxu0 0.0
    %3321 = vmatprep.subr.mxu0 0.0
    %3322 = vmatpush1.msra.mxu0 0.0
    %3323 = vmatprep.subr.mxu0 %v2628
    %3324 = vmatpush1.msra.mxu0 %v2627
    %3325 = vmatprep.subr.mxu0 %v2626
    %3326 = vmatpush1.msra.mxu0 %v2625
    %3327 = vmatprep.subr.mxu0 %v2624
    %3328 = vmatpush1.msra.mxu0 %v2623
    %3329 = vmatprep.subr.mxu0 %v2622
    %3330 = vmatpush1.msra.mxu0 %v2621
    %3331 = vmatprep.subr.mxu0 %v2620
    %3332 = vmatpush1.msra.mxu0 %v2619
    %3333 = vmatprep.subr.mxu0 %v2618
    %3334 = vmatpush1.msra.mxu0 %v2617
    %3335 = vmatprep.subr.mxu0 %v2616
    %3336 = vmatpush1.msra.mxu0 %v2615
    %3337 = vmatprep.subr.mxu0 %v2614
    %3338 = vmatpush1.msra.mxu0 %v2613
    %3339 = vmatprep.subr.mxu0 0.0
    %3340 = vmatpush2.msra.mxu0 0.0
    %3341 = vmatprep.subr.mxu0 0.0
    %3342 = vmatpush2.msra.mxu0 0.0
    %3343 = vmatprep.subr.mxu0 0.0
    %3344 = vmatpush2.msra.mxu0 0.0
    %3345 = vmatprep.subr.mxu0 0.0
    %3346 = vmatpush2.msra.mxu0 0.0
    %3347 = vmatprep.subr.mxu0 0.0
    %3348 = vmatpush2.msra.mxu0 0.0
    %3349 = vmatprep.subr.mxu0 0.0
    %3350 = vmatpush2.msra.mxu0 0.0
    %3351 = vmatprep.subr.mxu0 0.0
    %3352 = vmatpush2.msra.mxu0 0.0
    %3353 = vmatprep.subr.mxu0 0.0
    %3354 = vmatpush2.msra.mxu0 0.0
    %3355 = vmatprep.subr.mxu0 0.0
    %3356 = vmatpush2.msra.mxu0 0.0
    %3357 = vmatprep.subr.mxu0 0.0
    %3358 = vmatpush2.msra.mxu0 0.0
    %3359 = vmatprep.subr.mxu0 0.0
    %3360 = vmatpush2.msra.mxu0 0.0
    %3361 = vmatprep.subr.mxu0 0.0
    %3362 = vmatpush2.msra.mxu0 0.0
    %3363 = vmatprep.subr.mxu0 0.0
    %3364 = vmatpush2.msra.mxu0 0.0
    %3365 = vmatprep.subr.mxu0 0.0
    %3366 = vmatpush2.msra.mxu0 0.0
    %3367 = vmatprep.subr.mxu0 0.0
    %3368 = vmatpush2.msra.mxu0 0.0
    %3369 = vmatprep.subr.mxu0 0.0
    %3370 = vmatpush2.msra.mxu0 0.0
    %3371 = vmatprep.mubr.f32.mxu0 0.0
    %3372 = vmatmul.mubr.f32.gmra.mxu0 %v3305
    %v3373 = vpop.f32.mrf.mxu0
    %v3374 = vadd.f32 %v3302, %v3373
    %v3375 = vpop.f32.mrf.mxu0
    %v3376 = vadd.f32 %v3303, %v3375
    %3377 = vdwg.mxu0
    %v3378 = vxor.u32 %v3374, 2147483648
    %v3379 = vxor.u32 %v3376, 2147483648
    %v3380 = vmul.f32 %v3378, 1.442695
    %v3381 = vpow.pop %v3380
    %v3382 = vmul.f32 %v3379, 1.442695
    %v3383 = vpow.pop %v3382
    %v3384 = vadd.f32 %v3381, 1.0
    %v3385 = vadd.f32 %v3383, 1.0
    %v3386 = vrcp.pop %v3384
    %v3387 = vmul.f32 1.0, %v3386
    %v3388 = vrcp.pop %v3385
    %v3389 = vmul.f32 1.0, %v3388
    %v3390 = vtanh.pop %v3376
    %v3391 = vmul.f32 %v3387, %v3289
    %3393 = vrot.lane.b32.xlu0 %v3390, 64
    %v3394 = vpop.permute.xlu0 %3393
    %v3396 = vmul.f32 %v3387, %v3394
    %3398 = vrot.lane.b32.xlu0 %v3396, 64
    %v3399 = vpop.permute.xlu0 %3398
    %v3401 = vadd.f32 %v3391, %v3399
    %v3402 = vtanh.pop %v3401
    %3404 = vrot.lane.b32.xlu0 %v3402, 64
    %v3405 = vpop.permute.xlu0 %3404
    %v3407 = vmul.f32 %v3389, %v3405
    %3408 = vst.msk [vmem:[%s636] sm:$0xff] %vm227, %v3407
    %3409 = vst.msk [vmem:[%s634] sm:$0xff] %vm516, %v3407
    %v3410 = vld [vmem:[%s404] sm:$0xff]
    %v3411 = vld [vmem:[%s404 + $0x8] sm:$0xff]
    %v3412 = vld [vmem:[%s399] sm:$0xff]
    %v3413 = vld [vmem:[%s399 + $0x8] sm:$0xff]
    %v3414 = vsel %vm197, %v3410, %v3412
    %v3415 = vsel %vm198, %v3411, %v3413
    %v3417 = vsel %vm409, %v3407, 0
    %3419 = vmatprep.subr.mxu0 0.0
    %3420 = vmatpush1.msra.mxu0 0.0
    %3421 = vmatprep.subr.mxu0 0.0
    %3422 = vmatpush1.msra.mxu0 0.0
    %3423 = vmatprep.subr.mxu0 0.0
    %3424 = vmatpush1.msra.mxu0 0.0
    %3425 = vmatprep.subr.mxu0 0.0
    %3426 = vmatpush1.msra.mxu0 0.0
    %3427 = vmatprep.subr.mxu0 0.0
    %3428 = vmatpush1.msra.mxu0 0.0
    %3429 = vmatprep.subr.mxu0 0.0
    %3430 = vmatpush1.msra.mxu0 0.0
    %3431 = vmatprep.subr.mxu0 0.0
    %3432 = vmatpush1.msra.mxu0 0.0
    %3433 = vmatprep.subr.mxu0 0.0
    %3434 = vmatpush1.msra.mxu0 0.0
    %3435 = vmatprep.subr.mxu0 %v2628
    %3436 = vmatpush1.msra.mxu0 %v2627
    %3437 = vmatprep.subr.mxu0 %v2626
    %3438 = vmatpush1.msra.mxu0 %v2625
    %3439 = vmatprep.subr.mxu0 %v2624
    %3440 = vmatpush1.msra.mxu0 %v2623
    %3441 = vmatprep.subr.mxu0 %v2622
    %3442 = vmatpush1.msra.mxu0 %v2621
    %3443 = vmatprep.subr.mxu0 %v2620
    %3444 = vmatpush1.msra.mxu0 %v2619
    %3445 = vmatprep.subr.mxu0 %v2618
    %3446 = vmatpush1.msra.mxu0 %v2617
    %3447 = vmatprep.subr.mxu0 %v2616
    %3448 = vmatpush1.msra.mxu0 %v2615
    %3449 = vmatprep.subr.mxu0 %v2614
    %3450 = vmatpush1.msra.mxu0 %v2613
    %3451 = vmatprep.subr.mxu0 0.0
    %3452 = vmatpush2.msra.mxu0 0.0
    %3453 = vmatprep.subr.mxu0 0.0
    %3454 = vmatpush2.msra.mxu0 0.0
    %3455 = vmatprep.subr.mxu0 0.0
    %3456 = vmatpush2.msra.mxu0 0.0
    %3457 = vmatprep.subr.mxu0 0.0
    %3458 = vmatpush2.msra.mxu0 0.0
    %3459 = vmatprep.subr.mxu0 0.0
    %3460 = vmatpush2.msra.mxu0 0.0
    %3461 = vmatprep.subr.mxu0 0.0
    %3462 = vmatpush2.msra.mxu0 0.0
    %3463 = vmatprep.subr.mxu0 0.0
    %3464 = vmatpush2.msra.mxu0 0.0
    %3465 = vmatprep.subr.mxu0 0.0
    %3466 = vmatpush2.msra.mxu0 0.0
    %3467 = vmatprep.subr.mxu0 0.0
    %3468 = vmatpush2.msra.mxu0 0.0
    %3469 = vmatprep.subr.mxu0 0.0
    %3470 = vmatpush2.msra.mxu0 0.0
    %3471 = vmatprep.subr.mxu0 0.0
    %3472 = vmatpush2.msra.mxu0 0.0
    %3473 = vmatprep.subr.mxu0 0.0
    %3474 = vmatpush2.msra.mxu0 0.0
    %3475 = vmatprep.subr.mxu0 0.0
    %3476 = vmatpush2.msra.mxu0 0.0
    %3477 = vmatprep.subr.mxu0 0.0
    %3478 = vmatpush2.msra.mxu0 0.0
    %3479 = vmatprep.subr.mxu0 0.0
    %3480 = vmatpush2.msra.mxu0 0.0
    %3481 = vmatprep.subr.mxu0 0.0
    %3482 = vmatpush2.msra.mxu0 0.0
    %3483 = vmatprep.mubr.f32.mxu0 0.0
    %3484 = vmatmul.mubr.f32.gmra.mxu0 %v3417
    %v3485 = vpop.f32.mrf.mxu0
    %v3486 = vadd.f32 %v3414, %v3485
    %v3487 = vpop.f32.mrf.mxu0
    %v3488 = vadd.f32 %v3415, %v3487
    %3489 = vdwg.mxu0
    %v3490 = vxor.u32 %v3486, 2147483648
    %v3491 = vxor.u32 %v3488, 2147483648
    %v3492 = vmul.f32 %v3490, 1.442695
    %v3493 = vpow.pop %v3492
    %v3494 = vmul.f32 %v3491, 1.442695
    %v3495 = vpow.pop %v3494
    %v3496 = vadd.f32 %v3493, 1.0
    %v3497 = vadd.f32 %v3495, 1.0
    %v3498 = vrcp.pop %v3496
    %v3499 = vmul.f32 1.0, %v3498
    %v3500 = vrcp.pop %v3497
    %v3501 = vmul.f32 1.0, %v3500
    %v3502 = vtanh.pop %v3488
    %v3503 = vmul.f32 %v3499, %v3401
    %3505 = vrot.lane.b32.xlu0 %v3502, 64
    %v3506 = vpop.permute.xlu0 %3505
    %v3508 = vmul.f32 %v3499, %v3506
    %3510 = vrot.lane.b32.xlu0 %v3508, 64
    %v3511 = vpop.permute.xlu0 %3510
    %v3513 = vadd.f32 %v3503, %v3511
    %v3514 = vtanh.pop %v3513
    %3516 = vrot.lane.b32.xlu0 %v3514, 64
    %v3517 = vpop.permute.xlu0 %3516
    %v3519 = vmul.f32 %v3501, %v3517
    %3520 = vst.msk [vmem:[%s515] sm:$0xff] %vm227, %v3519
    %3521 = vst.msk [vmem:[#allocation3] sm:$0xff] %vm516, %v3519
    %v3522 = vld [vmem:[#allocation3] sm:$0xff]
    %v3523 = vld [vmem:[#allocation3 + $0x8] sm:$0xff]
    %v3524 = vld [vmem:[#allocation3 + $0x10] sm:$0xff]
    %v3525 = vld [vmem:[#allocation3 + $0x18] sm:$0xff]
    %v3526 = vld [vmem:[#allocation3 + $0x20] sm:$0xff]
    %v3527 = vld [vmem:[#allocation3 + $0x28] sm:$0xff]
    %v3528 = vld [vmem:[#allocation3 + $0x30] sm:$0xff]
    %v3529 = vld [vmem:[#allocation3 + $0x38] sm:$0xff]
    %v3530 = vld [vmem:[#allocation12] sm:$0xff]
    %v3531 = vld [vmem:[#allocation12 + $0x8] sm:$0xff]
    %v3532 = vld [vmem:[#allocation12 + $0x10] sm:$0xff]
    %v3533 = vld [vmem:[#allocation12 + $0x18] sm:$0xff]
    %v3534 = vld [vmem:[#allocation12 + $0x20] sm:$0xff]
    %v3535 = vld [vmem:[#allocation12 + $0x28] sm:$0xff]
    %v3536 = vld [vmem:[#allocation12 + $0x30] sm:$0xff]
    %v3537 = vld [vmem:[#allocation12 + $0x38] sm:$0xff]
    %v3538 = vld [vmem:[#allocation12 + $0x40] sm:$0xff]
    %v3539 = vld [vmem:[#allocation12 + $0x48] sm:$0xff]
    %v3540 = vld [vmem:[#allocation12 + $0x50] sm:$0xff]
    %v3541 = vld [vmem:[#allocation12 + $0x58] sm:$0xff]
    %v3542 = vld [vmem:[#allocation12 + $0x60] sm:$0xff]
    %v3543 = vld [vmem:[#allocation12 + $0x68] sm:$0xff]
    %v3544 = vld [vmem:[#allocation12 + $0x70] sm:$0xff]
    %v3545 = vld [vmem:[#allocation12 + $0x78] sm:$0xff]
    %v3546 = vld [vmem:[%s12] sm:$0x3]
    %v3548 = vlaneseq
    %v3549 = vshrl.u32 %v3548, 7
    %v3550 = vsub.s32 0, %v3549
    %v3551 = vrot.slane %v3546, %v3550
    %v3552 = vlaneseq
    %v3553 = vshrl.u32 %v3552, 7
    %v3554 = vsub.s32 1, %v3553
    %v3555 = vrot.slane %v3546, %v3554
    %v3559 = vsel %vm409, %v3522, 0
    %v3562 = vsel %vm409, %v3523, 0
    %v3565 = vsel %vm409, %v3524, 0
    %v3568 = vsel %vm409, %v3525, 0
    %v3571 = vsel %vm409, %v3526, 0
    %v3574 = vsel %vm409, %v3527, 0
    %v3577 = vsel %vm409, %v3528, 0
    %v3580 = vsel %vm409, %v3529, 0
    %3582 = vmatprep.subr.mxu0 0.0
    %3583 = vmatpush1.msra.mxu0 0.0
    %3584 = vmatprep.subr.mxu0 0.0
    %3585 = vmatpush1.msra.mxu0 0.0
    %3586 = vmatprep.subr.mxu0 0.0
    %3587 = vmatpush1.msra.mxu0 0.0
    %3588 = vmatprep.subr.mxu0 0.0
    %3589 = vmatpush1.msra.mxu0 0.0
    %3590 = vmatprep.subr.mxu0 0.0
    %3591 = vmatpush1.msra.mxu0 0.0
    %3592 = vmatprep.subr.mxu0 0.0
    %3593 = vmatpush1.msra.mxu0 0.0
    %3594 = vmatprep.subr.mxu0 0.0
    %3595 = vmatpush1.msra.mxu0 0.0
    %3596 = vmatprep.subr.mxu0 0.0
    %3597 = vmatpush1.msra.mxu0 0.0
    %3598 = vmatprep.subr.mxu0 %v3545
    %3599 = vmatpush1.msra.mxu0 %v3544
    %3600 = vmatprep.subr.mxu0 %v3543
    %3601 = vmatpush1.msra.mxu0 %v3542
    %3602 = vmatprep.subr.mxu0 %v3541
    %3603 = vmatpush1.msra.mxu0 %v3540
    %3604 = vmatprep.subr.mxu0 %v3539
    %3605 = vmatpush1.msra.mxu0 %v3538
    %3606 = vmatprep.subr.mxu0 %v3537
    %3607 = vmatpush1.msra.mxu0 %v3536
    %3608 = vmatprep.subr.mxu0 %v3535
    %3609 = vmatpush1.msra.mxu0 %v3534
    %3610 = vmatprep.subr.mxu0 %v3533
    %3611 = vmatpush1.msra.mxu0 %v3532
    %3612 = vmatprep.subr.mxu0 %v3531
    %3613 = vmatpush1.msra.mxu0 %v3530
    %3614 = vmatprep.subr.mxu0 0.0
    %3615 = vmatpush2.msra.mxu0 0.0
    %3616 = vmatprep.subr.mxu0 0.0
    %3617 = vmatpush2.msra.mxu0 0.0
    %3618 = vmatprep.subr.mxu0 0.0
    %3619 = vmatpush2.msra.mxu0 0.0
    %3620 = vmatprep.subr.mxu0 0.0
    %3621 = vmatpush2.msra.mxu0 0.0
    %3622 = vmatprep.subr.mxu0 0.0
    %3623 = vmatpush2.msra.mxu0 0.0
    %3624 = vmatprep.subr.mxu0 0.0
    %3625 = vmatpush2.msra.mxu0 0.0
    %3626 = vmatprep.subr.mxu0 0.0
    %3627 = vmatpush2.msra.mxu0 0.0
    %3628 = vmatprep.subr.mxu0 0.0
    %3629 = vmatpush2.msra.mxu0 0.0
    %3630 = vmatprep.subr.mxu0 0.0
    %3631 = vmatpush2.msra.mxu0 0.0
    %3632 = vmatprep.subr.mxu0 0.0
    %3633 = vmatpush2.msra.mxu0 0.0
    %3634 = vmatprep.subr.mxu0 0.0
    %3635 = vmatpush2.msra.mxu0 0.0
    %3636 = vmatprep.subr.mxu0 0.0
    %3637 = vmatpush2.msra.mxu0 0.0
    %3638 = vmatprep.subr.mxu0 0.0
    %3639 = vmatpush2.msra.mxu0 0.0
    %3640 = vmatprep.subr.mxu0 0.0
    %3641 = vmatpush2.msra.mxu0 0.0
    %3642 = vmatprep.subr.mxu0 0.0
    %3643 = vmatpush2.msra.mxu0 0.0
    %3644 = vmatprep.subr.mxu0 0.0
    %3645 = vmatpush2.msra.mxu0 0.0
    %3646 = vmatprep.mubr.f32.mxu0 0.0
    %3647 = vmatmul.mubr.f32.gmra.mxu0 %v3559
    %v3648 = vpop.f32.mrf.mxu0
    %v3649 = vadd.f32 %v3551, %v3648
    %v3650 = vpop.f32.mrf.mxu0
    %v3651 = vadd.f32 %v3555, %v3650
    %3652 = vmatprep.mubr.f32.mxu0 0.0
    %3653 = vmatmul.mubr.f32.gmra.mxu0 %v3562
    %v3654 = vpop.f32.mrf.mxu0
    %v3655 = vadd.f32 %v3551, %v3654
    %v3656 = vpop.f32.mrf.mxu0
    %v3657 = vadd.f32 %v3555, %v3656
    %3658 = vmatprep.mubr.f32.mxu0 0.0
    %3659 = vmatmul.mubr.f32.gmra.mxu0 %v3565
    %v3660 = vpop.f32.mrf.mxu0
    %v3661 = vadd.f32 %v3551, %v3660
    %v3662 = vpop.f32.mrf.mxu0
    %v3663 = vadd.f32 %v3555, %v3662
    %3664 = vmatprep.mubr.f32.mxu0 0.0
    %3665 = vmatmul.mubr.f32.gmra.mxu0 %v3568
    %v3666 = vpop.f32.mrf.mxu0
    %v3667 = vadd.f32 %v3551, %v3666
    %v3668 = vpop.f32.mrf.mxu0
    %v3669 = vadd.f32 %v3555, %v3668
    %3670 = vmatprep.mubr.f32.mxu0 0.0
    %3671 = vmatmul.mubr.f32.gmra.mxu0 %v3571
    %v3672 = vpop.f32.mrf.mxu0
    %v3673 = vadd.f32 %v3551, %v3672
    %v3674 = vpop.f32.mrf.mxu0
    %v3675 = vadd.f32 %v3555, %v3674
    %3676 = vmatprep.mubr.f32.mxu0 0.0
    %3677 = vmatmul.mubr.f32.gmra.mxu0 %v3574
    %v3678 = vpop.f32.mrf.mxu0
    %v3679 = vadd.f32 %v3551, %v3678
    %v3680 = vpop.f32.mrf.mxu0
    %v3681 = vadd.f32 %v3555, %v3680
    %3682 = vmatprep.mubr.f32.mxu0 0.0
    %3683 = vmatmul.mubr.f32.gmra.mxu0 %v3577
    %v3684 = vpop.f32.mrf.mxu0
    %v3685 = vadd.f32 %v3551, %v3684
    %v3686 = vpop.f32.mrf.mxu0
    %v3687 = vadd.f32 %v3555, %v3686
    %3688 = vmatprep.mubr.f32.mxu0 0.0
    %3689 = vmatmul.mubr.f32.gmra.mxu0 %v3580
    %v3690 = vpop.f32.mrf.mxu0
    %v3691 = vadd.f32 %v3551, %v3690
    %v3692 = vpop.f32.mrf.mxu0
    %v3693 = vadd.f32 %v3555, %v3692
    %3694 = vdwg.mxu0
    %3695 = vst [vmem:[#allocation2] sm:$0xff] %v3649
    %3696 = vst [vmem:[#allocation2 + $0x8] sm:$0xff] %v3651
    %3697 = vst [vmem:[#allocation2 + $0x10] sm:$0xff] %v3655
    %3698 = vst [vmem:[#allocation2 + $0x18] sm:$0xff] %v3657
    %3699 = vst [vmem:[#allocation2 + $0x20] sm:$0xff] %v3661
    %3700 = vst [vmem:[#allocation2 + $0x28] sm:$0xff] %v3663
    %3701 = vst [vmem:[#allocation2 + $0x30] sm:$0xff] %v3667
    %3702 = vst [vmem:[#allocation2 + $0x38] sm:$0xff] %v3669
    %3703 = vst [vmem:[#allocation2 + $0x40] sm:$0xff] %v3673
    %3704 = vst [vmem:[#allocation2 + $0x48] sm:$0xff] %v3675
    %3705 = vst [vmem:[#allocation2 + $0x50] sm:$0xff] %v3679
    %3706 = vst [vmem:[#allocation2 + $0x58] sm:$0xff] %v3681
    %3707 = vst [vmem:[#allocation2 + $0x60] sm:$0xff] %v3685
    %3708 = vst [vmem:[#allocation2 + $0x68] sm:$0xff] %v3687
    %3709 = vst [vmem:[#allocation2 + $0x70] sm:$0xff] %v3691
    %3710 = vst [vmem:[#allocation2 + $0x78] sm:$0xff] %v3693
    %v3711 = vld [vmem:[#allocation14] sm:$0xff]
    %v3712 = vld [vmem:[#allocation14 + $0x8] sm:$0xff]
    %v3713 = vld [vmem:[#allocation14 + $0x10] sm:$0xff]
    %v3714 = vld [vmem:[#allocation14 + $0x18] sm:$0xff]
    %v3715 = vld [vmem:[#allocation14 + $0x20] sm:$0xff]
    %v3716 = vld [vmem:[#allocation14 + $0x28] sm:$0xff]
    %v3717 = vld [vmem:[#allocation14 + $0x30] sm:$0xff]
    %v3718 = vld [vmem:[#allocation14 + $0x38] sm:$0xff]
    %v3719 = vld [vmem:[#allocation14 + $0x40] sm:$0xff]
    %v3720 = vld [vmem:[#allocation14 + $0x48] sm:$0xff]
    %v3721 = vld [vmem:[#allocation14 + $0x50] sm:$0xff]
    %v3722 = vld [vmem:[#allocation14 + $0x58] sm:$0xff]
    %v3723 = vld [vmem:[#allocation14 + $0x60] sm:$0xff]
    %v3724 = vld [vmem:[#allocation14 + $0x68] sm:$0xff]
    %v3725 = vld [vmem:[#allocation14 + $0x70] sm:$0xff]
    %v3726 = vld [vmem:[#allocation14 + $0x78] sm:$0xff]
    %v3727 = vld [vmem:[%s399] sm:$0xff]
    %v3728 = vld [vmem:[%s399 + $0x8] sm:$0xff]
    %v3729 = vld [vmem:[%s404] sm:$0xff]
    %v3730 = vld [vmem:[%s404 + $0x8] sm:$0xff]
    %v3731 = vsel %vm197, %v3727, %v3729
    %v3732 = vsel %vm198, %v3728, %v3730
    %3733 = vmatprep.subr.mxu0 0.0
    %3734 = vmatpush1.msra.mxu0 0.0
    %3735 = vmatprep.subr.mxu0 0.0
    %3736 = vmatpush1.msra.mxu0 0.0
    %3737 = vmatprep.subr.mxu0 0.0
    %3738 = vmatpush1.msra.mxu0 0.0
    %3739 = vmatprep.subr.mxu0 0.0
    %3740 = vmatpush1.msra.mxu0 0.0
    %3741 = vmatprep.subr.mxu0 0.0
    %3742 = vmatpush1.msra.mxu0 0.0
    %3743 = vmatprep.subr.mxu0 0.0
    %3744 = vmatpush1.msra.mxu0 0.0
    %3745 = vmatprep.subr.mxu0 0.0
    %3746 = vmatpush1.msra.mxu0 0.0
    %3747 = vmatprep.subr.mxu0 0.0
    %3748 = vmatpush1.msra.mxu0 0.0
    %3749 = vmatprep.subr.mxu0 %v3726
    %3750 = vmatpush1.msra.mxu0 %v3725
    %3751 = vmatprep.subr.mxu0 %v3724
    %3752 = vmatpush1.msra.mxu0 %v3723
    %3753 = vmatprep.subr.mxu0 %v3722
    %3754 = vmatpush1.msra.mxu0 %v3721
    %3755 = vmatprep.subr.mxu0 %v3720
    %3756 = vmatpush1.msra.mxu0 %v3719
    %3757 = vmatprep.subr.mxu0 %v3718
    %3758 = vmatpush1.msra.mxu0 %v3717
    %3759 = vmatprep.subr.mxu0 %v3716
    %3760 = vmatpush1.msra.mxu0 %v3715
    %3761 = vmatprep.subr.mxu0 %v3714
    %3762 = vmatpush1.msra.mxu0 %v3713
    %3763 = vmatprep.subr.mxu0 %v3712
    %3764 = vmatpush1.msra.mxu0 %v3711
    %3765 = vmatprep.subr.mxu0 0.0
    %3766 = vmatpush2.msra.mxu0 0.0
    %3767 = vmatprep.subr.mxu0 0.0
    %3768 = vmatpush2.msra.mxu0 0.0
    %3769 = vmatprep.subr.mxu0 0.0
    %3770 = vmatpush2.msra.mxu0 0.0
    %3771 = vmatprep.subr.mxu0 0.0
    %3772 = vmatpush2.msra.mxu0 0.0
    %3773 = vmatprep.subr.mxu0 0.0
    %3774 = vmatpush2.msra.mxu0 0.0
    %3775 = vmatprep.subr.mxu0 0.0
    %3776 = vmatpush2.msra.mxu0 0.0
    %3777 = vmatprep.subr.mxu0 0.0
    %3778 = vmatpush2.msra.mxu0 0.0
    %3779 = vmatprep.subr.mxu0 0.0
    %3780 = vmatpush2.msra.mxu0 0.0
    %3781 = vmatprep.subr.mxu0 0.0
    %3782 = vmatpush2.msra.mxu0 0.0
    %3783 = vmatprep.subr.mxu0 0.0
    %3784 = vmatpush2.msra.mxu0 0.0
    %3785 = vmatprep.subr.mxu0 0.0
    %3786 = vmatpush2.msra.mxu0 0.0
    %3787 = vmatprep.subr.mxu0 0.0
    %3788 = vmatpush2.msra.mxu0 0.0
    %3789 = vmatprep.subr.mxu0 0.0
    %3790 = vmatpush2.msra.mxu0 0.0
    %3791 = vmatprep.subr.mxu0 0.0
    %3792 = vmatpush2.msra.mxu0 0.0
    %3793 = vmatprep.subr.mxu0 0.0
    %3794 = vmatpush2.msra.mxu0 0.0
    %3795 = vmatprep.subr.mxu0 0.0
    %3796 = vmatpush2.msra.mxu0 0.0
    %3797 = vmatprep.mubr.f32.mxu0 0.0
    %3798 = vmatmul.mubr.f32.gmra.mxu0 %v411
    %v3799 = vpop.f32.mrf.mxu0
    %v3800 = vadd.f32 %v3731, %v3799
    %v3801 = vpop.f32.mrf.mxu0
    %v3802 = vadd.f32 %v3732, %v3801
    %3803 = vdwg.mxu0
    %v3804 = vxor.u32 %v3800, 2147483648
    %v3805 = vxor.u32 %v3802, 2147483648
    %v3806 = vmul.f32 %v3804, 1.442695
    %v3807 = vpow.pop %v3806
    %v3808 = vmul.f32 %v3805, 1.442695
    %v3809 = vpow.pop %v3808
    %v3810 = vadd.f32 %v3807, 1.0
    %v3811 = vadd.f32 %v3809, 1.0
    %v3812 = vrcp.pop %v3810
    %v3813 = vmul.f32 1.0, %v3812
    %v3814 = vrcp.pop %v3811
    %v3815 = vmul.f32 1.0, %v3814
    %v3816 = vtanh.pop %v3802
    %v3817 = vmul.f32 %v3813, 0.0
    %3819 = vrot.lane.b32.xlu0 %v3816, 64
    %v3820 = vpop.permute.xlu0 %3819
    %v3822 = vmul.f32 %v3813, %v3820
    %3824 = vrot.lane.b32.xlu0 %v3822, 64
    %v3825 = vpop.permute.xlu0 %3824
    %v3827 = vadd.f32 %v3817, %v3825
    %v3828 = vtanh.pop %v3827
    %3830 = vrot.lane.b32.xlu0 %v3828, 64
    %v3831 = vpop.permute.xlu0 %3830
    %v3833 = vmul.f32 %v3815, %v3831
    %3834 = vst.msk [vmem:[#allocation3] sm:$0xff] %vm227, %v3833
    %3835 = vst.msk [vmem:[%s515] sm:$0xff] %vm516, %v3833
    %v3836 = vld [vmem:[%s520] sm:$0xff]
    %v3837 = vld [vmem:[%s520 + $0x8] sm:$0xff]
    %v3838 = vld [vmem:[%s525] sm:$0xff]
    %v3839 = vld [vmem:[%s525 + $0x8] sm:$0xff]
    %v3840 = vsel %vm197, %v3836, %v3838
    %v3841 = vsel %vm198, %v3837, %v3839
    %v3843 = vsel %vm409, %v3833, 0
    %3845 = vmatprep.subr.mxu0 0.0
    %3846 = vmatpush1.msra.mxu0 0.0
    %3847 = vmatprep.subr.mxu0 0.0
    %3848 = vmatpush1.msra.mxu0 0.0
    %3849 = vmatprep.subr.mxu0 0.0
    %3850 = vmatpush1.msra.mxu0 0.0
    %3851 = vmatprep.subr.mxu0 0.0
    %3852 = vmatpush1.msra.mxu0 0.0
    %3853 = vmatprep.subr.mxu0 0.0
    %3854 = vmatpush1.msra.mxu0 0.0
    %3855 = vmatprep.subr.mxu0 0.0
    %3856 = vmatpush1.msra.mxu0 0.0
    %3857 = vmatprep.subr.mxu0 0.0
    %3858 = vmatpush1.msra.mxu0 0.0
    %3859 = vmatprep.subr.mxu0 0.0
    %3860 = vmatpush1.msra.mxu0 0.0
    %3861 = vmatprep.subr.mxu0 %v3726
    %3862 = vmatpush1.msra.mxu0 %v3725
    %3863 = vmatprep.subr.mxu0 %v3724
    %3864 = vmatpush1.msra.mxu0 %v3723
    %3865 = vmatprep.subr.mxu0 %v3722
    %3866 = vmatpush1.msra.mxu0 %v3721
    %3867 = vmatprep.subr.mxu0 %v3720
    %3868 = vmatpush1.msra.mxu0 %v3719
    %3869 = vmatprep.subr.mxu0 %v3718
    %3870 = vmatpush1.msra.mxu0 %v3717
    %3871 = vmatprep.subr.mxu0 %v3716
    %3872 = vmatpush1.msra.mxu0 %v3715
    %3873 = vmatprep.subr.mxu0 %v3714
    %3874 = vmatpush1.msra.mxu0 %v3713
    %3875 = vmatprep.subr.mxu0 %v3712
    %3876 = vmatpush1.msra.mxu0 %v3711
    %3877 = vmatprep.subr.mxu0 0.0
    %3878 = vmatpush2.msra.mxu0 0.0
    %3879 = vmatprep.subr.mxu0 0.0
    %3880 = vmatpush2.msra.mxu0 0.0
    %3881 = vmatprep.subr.mxu0 0.0
    %3882 = vmatpush2.msra.mxu0 0.0
    %3883 = vmatprep.subr.mxu0 0.0
    %3884 = vmatpush2.msra.mxu0 0.0
    %3885 = vmatprep.subr.mxu0 0.0
    %3886 = vmatpush2.msra.mxu0 0.0
    %3887 = vmatprep.subr.mxu0 0.0
    %3888 = vmatpush2.msra.mxu0 0.0
    %3889 = vmatprep.subr.mxu0 0.0
    %3890 = vmatpush2.msra.mxu0 0.0
    %3891 = vmatprep.subr.mxu0 0.0
    %3892 = vmatpush2.msra.mxu0 0.0
    %3893 = vmatprep.subr.mxu0 0.0
    %3894 = vmatpush2.msra.mxu0 0.0
    %3895 = vmatprep.subr.mxu0 0.0
    %3896 = vmatpush2.msra.mxu0 0.0
    %3897 = vmatprep.subr.mxu0 0.0
    %3898 = vmatpush2.msra.mxu0 0.0
    %3899 = vmatprep.subr.mxu0 0.0
    %3900 = vmatpush2.msra.mxu0 0.0
    %3901 = vmatprep.subr.mxu0 0.0
    %3902 = vmatpush2.msra.mxu0 0.0
    %3903 = vmatprep.subr.mxu0 0.0
    %3904 = vmatpush2.msra.mxu0 0.0
    %3905 = vmatprep.subr.mxu0 0.0
    %3906 = vmatpush2.msra.mxu0 0.0
    %3907 = vmatprep.subr.mxu0 0.0
    %3908 = vmatpush2.msra.mxu0 0.0
    %3909 = vmatprep.mubr.f32.mxu0 0.0
    %3910 = vmatmul.mubr.f32.gmra.mxu0 %v3843
    %v3911 = vpop.f32.mrf.mxu0
    %v3912 = vadd.f32 %v3840, %v3911
    %v3913 = vpop.f32.mrf.mxu0
    %v3914 = vadd.f32 %v3841, %v3913
    %3915 = vdwg.mxu0
    %v3916 = vxor.u32 %v3912, 2147483648
    %v3917 = vxor.u32 %v3914, 2147483648
    %v3918 = vmul.f32 %v3916, 1.442695
    %v3919 = vpow.pop %v3918
    %v3920 = vmul.f32 %v3917, 1.442695
    %v3921 = vpow.pop %v3920
    %v3922 = vadd.f32 %v3919, 1.0
    %v3923 = vadd.f32 %v3921, 1.0
    %v3924 = vrcp.pop %v3922
    %v3925 = vmul.f32 1.0, %v3924
    %v3926 = vrcp.pop %v3923
    %v3927 = vmul.f32 1.0, %v3926
    %v3928 = vtanh.pop %v3914
    %v3929 = vmul.f32 %v3925, %v3827
    %3931 = vrot.lane.b32.xlu0 %v3928, 64
    %v3932 = vpop.permute.xlu0 %3931
    %v3934 = vmul.f32 %v3925, %v3932
    %3936 = vrot.lane.b32.xlu0 %v3934, 64
    %v3937 = vpop.permute.xlu0 %3936
    %v3939 = vadd.f32 %v3929, %v3937
    %v3940 = vtanh.pop %v3939
    %3942 = vrot.lane.b32.xlu0 %v3940, 64
    %v3943 = vpop.permute.xlu0 %3942
    %v3945 = vmul.f32 %v3927, %v3943
    %3946 = vst.msk [vmem:[%s634] sm:$0xff] %vm227, %v3945
    %3947 = vst.msk [vmem:[%s636] sm:$0xff] %vm516, %v3945
    %v3948 = vld [vmem:[%s640] sm:$0xff]
    %v3949 = vld [vmem:[%s640 + $0x8] sm:$0xff]
    %v3950 = vld [vmem:[%s645] sm:$0xff]
    %v3951 = vld [vmem:[%s645 + $0x8] sm:$0xff]
    %v3952 = vsel %vm197, %v3948, %v3950
    %v3953 = vsel %vm198, %v3949, %v3951
    %v3955 = vsel %vm409, %v3945, 0
    %3957 = vmatprep.subr.mxu0 0.0
    %3958 = vmatpush1.msra.mxu0 0.0
    %3959 = vmatprep.subr.mxu0 0.0
    %3960 = vmatpush1.msra.mxu0 0.0
    %3961 = vmatprep.subr.mxu0 0.0
    %3962 = vmatpush1.msra.mxu0 0.0
    %3963 = vmatprep.subr.mxu0 0.0
    %3964 = vmatpush1.msra.mxu0 0.0
    %3965 = vmatprep.subr.mxu0 0.0
    %3966 = vmatpush1.msra.mxu0 0.0
    %3967 = vmatprep.subr.mxu0 0.0
    %3968 = vmatpush1.msra.mxu0 0.0
    %3969 = vmatprep.subr.mxu0 0.0
    %3970 = vmatpush1.msra.mxu0 0.0
    %3971 = vmatprep.subr.mxu0 0.0
    %3972 = vmatpush1.msra.mxu0 0.0
    %3973 = vmatprep.subr.mxu0 %v3726
    %3974 = vmatpush1.msra.mxu0 %v3725
    %3975 = vmatprep.subr.mxu0 %v3724
    %3976 = vmatpush1.msra.mxu0 %v3723
    %3977 = vmatprep.subr.mxu0 %v3722
    %3978 = vmatpush1.msra.mxu0 %v3721
    %3979 = vmatprep.subr.mxu0 %v3720
    %3980 = vmatpush1.msra.mxu0 %v3719
    %3981 = vmatprep.subr.mxu0 %v3718
    %3982 = vmatpush1.msra.mxu0 %v3717
    %3983 = vmatprep.subr.mxu0 %v3716
    %3984 = vmatpush1.msra.mxu0 %v3715
    %3985 = vmatprep.subr.mxu0 %v3714
    %3986 = vmatpush1.msra.mxu0 %v3713
    %3987 = vmatprep.subr.mxu0 %v3712
    %3988 = vmatpush1.msra.mxu0 %v3711
    %3989 = vmatprep.subr.mxu0 0.0
    %3990 = vmatpush2.msra.mxu0 0.0
    %3991 = vmatprep.subr.mxu0 0.0
    %3992 = vmatpush2.msra.mxu0 0.0
    %3993 = vmatprep.subr.mxu0 0.0
    %3994 = vmatpush2.msra.mxu0 0.0
    %3995 = vmatprep.subr.mxu0 0.0
    %3996 = vmatpush2.msra.mxu0 0.0
    %3997 = vmatprep.subr.mxu0 0.0
    %3998 = vmatpush2.msra.mxu0 0.0
    %3999 = vmatprep.subr.mxu0 0.0
    %4000 = vmatpush2.msra.mxu0 0.0
    %4001 = vmatprep.subr.mxu0 0.0
    %4002 = vmatpush2.msra.mxu0 0.0
    %4003 = vmatprep.subr.mxu0 0.0
    %4004 = vmatpush2.msra.mxu0 0.0
    %4005 = vmatprep.subr.mxu0 0.0
    %4006 = vmatpush2.msra.mxu0 0.0
    %4007 = vmatprep.subr.mxu0 0.0
    %4008 = vmatpush2.msra.mxu0 0.0
    %4009 = vmatprep.subr.mxu0 0.0
    %4010 = vmatpush2.msra.mxu0 0.0
    %4011 = vmatprep.subr.mxu0 0.0
    %4012 = vmatpush2.msra.mxu0 0.0
    %4013 = vmatprep.subr.mxu0 0.0
    %4014 = vmatpush2.msra.mxu0 0.0
    %4015 = vmatprep.subr.mxu0 0.0
    %4016 = vmatpush2.msra.mxu0 0.0
    %4017 = vmatprep.subr.mxu0 0.0
    %4018 = vmatpush2.msra.mxu0 0.0
    %4019 = vmatprep.subr.mxu0 0.0
    %4020 = vmatpush2.msra.mxu0 0.0
    %4021 = vmatprep.mubr.f32.mxu0 0.0
    %4022 = vmatmul.mubr.f32.gmra.mxu0 %v3955
    %v4023 = vpop.f32.mrf.mxu0
    %v4024 = vadd.f32 %v3952, %v4023
    %v4025 = vpop.f32.mrf.mxu0
    %v4026 = vadd.f32 %v3953, %v4025
    %4027 = vdwg.mxu0
    %v4028 = vxor.u32 %v4024, 2147483648
    %v4029 = vxor.u32 %v4026, 2147483648
    %v4030 = vmul.f32 %v4028, 1.442695
    %v4031 = vpow.pop %v4030
    %v4032 = vmul.f32 %v4029, 1.442695
    %v4033 = vpow.pop %v4032
    %v4034 = vadd.f32 %v4031, 1.0
    %v4035 = vadd.f32 %v4033, 1.0
    %v4036 = vrcp.pop %v4034
    %v4037 = vmul.f32 1.0, %v4036
    %v4038 = vrcp.pop %v4035
    %v4039 = vmul.f32 1.0, %v4038
    %v4040 = vtanh.pop %v4026
    %v4041 = vmul.f32 %v4037, %v3939
    %4043 = vrot.lane.b32.xlu0 %v4040, 64
    %v4044 = vpop.permute.xlu0 %4043
    %v4046 = vmul.f32 %v4037, %v4044
    %4048 = vrot.lane.b32.xlu0 %v4046, 64
    %v4049 = vpop.permute.xlu0 %4048
    %v4051 = vadd.f32 %v4041, %v4049
    %v4052 = vtanh.pop %v4051
    %4054 = vrot.lane.b32.xlu0 %v4052, 64
    %v4055 = vpop.permute.xlu0 %4054
    %v4057 = vmul.f32 %v4039, %v4055
    %4058 = vst.msk [vmem:[%s754] sm:$0xff] %vm227, %v4057
    %4059 = vst.msk [vmem:[%s756] sm:$0xff] %vm516, %v4057
    %v4060 = vld [vmem:[%s760] sm:$0xff]
    %v4061 = vld [vmem:[%s760 + $0x8] sm:$0xff]
    %v4062 = vld [vmem:[%s765] sm:$0xff]
    %v4063 = vld [vmem:[%s765 + $0x8] sm:$0xff]
    %v4064 = vsel %vm197, %v4060, %v4062
    %v4065 = vsel %vm198, %v4061, %v4063
    %v4067 = vsel %vm409, %v4057, 0
    %4069 = vmatprep.subr.mxu0 0.0
    %4070 = vmatpush1.msra.mxu0 0.0
    %4071 = vmatprep.subr.mxu0 0.0
    %4072 = vmatpush1.msra.mxu0 0.0
    %4073 = vmatprep.subr.mxu0 0.0
    %4074 = vmatpush1.msra.mxu0 0.0
    %4075 = vmatprep.subr.mxu0 0.0
    %4076 = vmatpush1.msra.mxu0 0.0
    %4077 = vmatprep.subr.mxu0 0.0
    %4078 = vmatpush1.msra.mxu0 0.0
    %4079 = vmatprep.subr.mxu0 0.0
    %4080 = vmatpush1.msra.mxu0 0.0
    %4081 = vmatprep.subr.mxu0 0.0
    %4082 = vmatpush1.msra.mxu0 0.0
    %4083 = vmatprep.subr.mxu0 0.0
    %4084 = vmatpush1.msra.mxu0 0.0
    %4085 = vmatprep.subr.mxu0 %v3726
    %4086 = vmatpush1.msra.mxu0 %v3725
    %4087 = vmatprep.subr.mxu0 %v3724
    %4088 = vmatpush1.msra.mxu0 %v3723
    %4089 = vmatprep.subr.mxu0 %v3722
    %4090 = vmatpush1.msra.mxu0 %v3721
    %4091 = vmatprep.subr.mxu0 %v3720
    %4092 = vmatpush1.msra.mxu0 %v3719
    %4093 = vmatprep.subr.mxu0 %v3718
    %4094 = vmatpush1.msra.mxu0 %v3717
    %4095 = vmatprep.subr.mxu0 %v3716
    %4096 = vmatpush1.msra.mxu0 %v3715
    %4097 = vmatprep.subr.mxu0 %v3714
    %4098 = vmatpush1.msra.mxu0 %v3713
    %4099 = vmatprep.subr.mxu0 %v3712
    %4100 = vmatpush1.msra.mxu0 %v3711
    %4101 = vmatprep.subr.mxu0 0.0
    %4102 = vmatpush2.msra.mxu0 0.0
    %4103 = vmatprep.subr.mxu0 0.0
    %4104 = vmatpush2.msra.mxu0 0.0
    %4105 = vmatprep.subr.mxu0 0.0
    %4106 = vmatpush2.msra.mxu0 0.0
    %4107 = vmatprep.subr.mxu0 0.0
    %4108 = vmatpush2.msra.mxu0 0.0
    %4109 = vmatprep.subr.mxu0 0.0
    %4110 = vmatpush2.msra.mxu0 0.0
    %4111 = vmatprep.subr.mxu0 0.0
    %4112 = vmatpush2.msra.mxu0 0.0
    %4113 = vmatprep.subr.mxu0 0.0
    %4114 = vmatpush2.msra.mxu0 0.0
    %4115 = vmatprep.subr.mxu0 0.0
    %4116 = vmatpush2.msra.mxu0 0.0
    %4117 = vmatprep.subr.mxu0 0.0
    %4118 = vmatpush2.msra.mxu0 0.0
    %4119 = vmatprep.subr.mxu0 0.0
    %4120 = vmatpush2.msra.mxu0 0.0
    %4121 = vmatprep.subr.mxu0 0.0
    %4122 = vmatpush2.msra.mxu0 0.0
    %4123 = vmatprep.subr.mxu0 0.0
    %4124 = vmatpush2.msra.mxu0 0.0
    %4125 = vmatprep.subr.mxu0 0.0
    %4126 = vmatpush2.msra.mxu0 0.0
    %4127 = vmatprep.subr.mxu0 0.0
    %4128 = vmatpush2.msra.mxu0 0.0
    %4129 = vmatprep.subr.mxu0 0.0
    %4130 = vmatpush2.msra.mxu0 0.0
    %4131 = vmatprep.subr.mxu0 0.0
    %4132 = vmatpush2.msra.mxu0 0.0
    %4133 = vmatprep.mubr.f32.mxu0 0.0
    %4134 = vmatmul.mubr.f32.gmra.mxu0 %v4067
    %v4135 = vpop.f32.mrf.mxu0
    %v4136 = vadd.f32 %v4064, %v4135
    %v4137 = vpop.f32.mrf.mxu0
    %v4138 = vadd.f32 %v4065, %v4137
    %4139 = vdwg.mxu0
    %v4140 = vxor.u32 %v4136, 2147483648
    %v4141 = vxor.u32 %v4138, 2147483648
    %v4142 = vmul.f32 %v4140, 1.442695
    %v4143 = vpow.pop %v4142
    %v4144 = vmul.f32 %v4141, 1.442695
    %v4145 = vpow.pop %v4144
    %v4146 = vadd.f32 %v4143, 1.0
    %v4147 = vadd.f32 %v4145, 1.0
    %v4148 = vrcp.pop %v4146
    %v4149 = vmul.f32 1.0, %v4148
    %v4150 = vrcp.pop %v4147
    %v4151 = vmul.f32 1.0, %v4150
    %v4152 = vtanh.pop %v4138
    %v4153 = vmul.f32 %v4149, %v4051
    %4155 = vrot.lane.b32.xlu0 %v4152, 64
    %v4156 = vpop.permute.xlu0 %4155
    %v4158 = vmul.f32 %v4149, %v4156
    %4160 = vrot.lane.b32.xlu0 %v4158, 64
    %v4161 = vpop.permute.xlu0 %4160
    %v4163 = vadd.f32 %v4153, %v4161
    %v4164 = vtanh.pop %v4163
    %4166 = vrot.lane.b32.xlu0 %v4164, 64
    %v4167 = vpop.permute.xlu0 %4166
    %v4169 = vmul.f32 %v4151, %v4167
    %4170 = vst.msk [vmem:[%s874] sm:$0xff] %vm227, %v4169
    %4171 = vst.msk [vmem:[%s876] sm:$0xff] %vm516, %v4169
    %v4172 = vld [vmem:[%s765] sm:$0xff]
    %v4173 = vld [vmem:[%s765 + $0x8] sm:$0xff]
    %v4174 = vld [vmem:[%s760] sm:$0xff]
    %v4175 = vld [vmem:[%s760 + $0x8] sm:$0xff]
    %v4176 = vsel %vm197, %v4172, %v4174
    %v4177 = vsel %vm198, %v4173, %v4175
    %v4179 = vsel %vm409, %v4169, 0
    %4181 = vmatprep.subr.mxu0 0.0
    %4182 = vmatpush1.msra.mxu0 0.0
    %4183 = vmatprep.subr.mxu0 0.0
    %4184 = vmatpush1.msra.mxu0 0.0
    %4185 = vmatprep.subr.mxu0 0.0
    %4186 = vmatpush1.msra.mxu0 0.0
    %4187 = vmatprep.subr.mxu0 0.0
    %4188 = vmatpush1.msra.mxu0 0.0
    %4189 = vmatprep.subr.mxu0 0.0
    %4190 = vmatpush1.msra.mxu0 0.0
    %4191 = vmatprep.subr.mxu0 0.0
    %4192 = vmatpush1.msra.mxu0 0.0
    %4193 = vmatprep.subr.mxu0 0.0
    %4194 = vmatpush1.msra.mxu0 0.0
    %4195 = vmatprep.subr.mxu0 0.0
    %4196 = vmatpush1.msra.mxu0 0.0
    %4197 = vmatprep.subr.mxu0 %v3726
    %4198 = vmatpush1.msra.mxu0 %v3725
    %4199 = vmatprep.subr.mxu0 %v3724
    %4200 = vmatpush1.msra.mxu0 %v3723
    %4201 = vmatprep.subr.mxu0 %v3722
    %4202 = vmatpush1.msra.mxu0 %v3721
    %4203 = vmatprep.subr.mxu0 %v3720
    %4204 = vmatpush1.msra.mxu0 %v3719
    %4205 = vmatprep.subr.mxu0 %v3718
    %4206 = vmatpush1.msra.mxu0 %v3717
    %4207 = vmatprep.subr.mxu0 %v3716
    %4208 = vmatpush1.msra.mxu0 %v3715
    %4209 = vmatprep.subr.mxu0 %v3714
    %4210 = vmatpush1.msra.mxu0 %v3713
    %4211 = vmatprep.subr.mxu0 %v3712
    %4212 = vmatpush1.msra.mxu0 %v3711
    %4213 = vmatprep.subr.mxu0 0.0
    %4214 = vmatpush2.msra.mxu0 0.0
    %4215 = vmatprep.subr.mxu0 0.0
    %4216 = vmatpush2.msra.mxu0 0.0
    %4217 = vmatprep.subr.mxu0 0.0
    %4218 = vmatpush2.msra.mxu0 0.0
    %4219 = vmatprep.subr.mxu0 0.0
    %4220 = vmatpush2.msra.mxu0 0.0
    %4221 = vmatprep.subr.mxu0 0.0
    %4222 = vmatpush2.msra.mxu0 0.0
    %4223 = vmatprep.subr.mxu0 0.0
    %4224 = vmatpush2.msra.mxu0 0.0
    %4225 = vmatprep.subr.mxu0 0.0
    %4226 = vmatpush2.msra.mxu0 0.0
    %4227 = vmatprep.subr.mxu0 0.0
    %4228 = vmatpush2.msra.mxu0 0.0
    %4229 = vmatprep.subr.mxu0 0.0
    %4230 = vmatpush2.msra.mxu0 0.0
    %4231 = vmatprep.subr.mxu0 0.0
    %4232 = vmatpush2.msra.mxu0 0.0
    %4233 = vmatprep.subr.mxu0 0.0
    %4234 = vmatpush2.msra.mxu0 0.0
    %4235 = vmatprep.subr.mxu0 0.0
    %4236 = vmatpush2.msra.mxu0 0.0
    %4237 = vmatprep.subr.mxu0 0.0
    %4238 = vmatpush2.msra.mxu0 0.0
    %4239 = vmatprep.subr.mxu0 0.0
    %4240 = vmatpush2.msra.mxu0 0.0
    %4241 = vmatprep.subr.mxu0 0.0
    %4242 = vmatpush2.msra.mxu0 0.0
    %4243 = vmatprep.subr.mxu0 0.0
    %4244 = vmatpush2.msra.mxu0 0.0
    %4245 = vmatprep.mubr.f32.mxu0 0.0
    %4246 = vmatmul.mubr.f32.gmra.mxu0 %v4179
    %v4247 = vpop.f32.mrf.mxu0
    %v4248 = vadd.f32 %v4176, %v4247
    %v4249 = vpop.f32.mrf.mxu0
    %v4250 = vadd.f32 %v4177, %v4249
    %4251 = vdwg.mxu0
    %v4252 = vxor.u32 %v4248, 2147483648
    %v4253 = vxor.u32 %v4250, 2147483648
    %v4254 = vmul.f32 %v4252, 1.442695
    %v4255 = vpow.pop %v4254
    %v4256 = vmul.f32 %v4253, 1.442695
    %v4257 = vpow.pop %v4256
    %v4258 = vadd.f32 %v4255, 1.0
    %v4259 = vadd.f32 %v4257, 1.0
    %v4260 = vrcp.pop %v4258
    %v4261 = vmul.f32 1.0, %v4260
    %v4262 = vrcp.pop %v4259
    %v4263 = vmul.f32 1.0, %v4262
    %v4264 = vtanh.pop %v4250
    %v4265 = vmul.f32 %v4261, %v4163
    %4267 = vrot.lane.b32.xlu0 %v4264, 64
    %v4268 = vpop.permute.xlu0 %4267
    %v4270 = vmul.f32 %v4261, %v4268
    %4272 = vrot.lane.b32.xlu0 %v4270, 64
    %v4273 = vpop.permute.xlu0 %4272
    %v4275 = vadd.f32 %v4265, %v4273
    %v4276 = vtanh.pop %v4275
    %4278 = vrot.lane.b32.xlu0 %v4276, 64
    %v4279 = vpop.permute.xlu0 %4278
    %v4281 = vmul.f32 %v4263, %v4279
    %4282 = vst.msk [vmem:[%s876] sm:$0xff] %vm227, %v4281
    %4283 = vst.msk [vmem:[%s874] sm:$0xff] %vm516, %v4281
    %v4284 = vld [vmem:[%s645] sm:$0xff]
    %v4285 = vld [vmem:[%s645 + $0x8] sm:$0xff]
    %v4286 = vld [vmem:[%s640] sm:$0xff]
    %v4287 = vld [vmem:[%s640 + $0x8] sm:$0xff]
    %v4288 = vsel %vm197, %v4284, %v4286
    %v4289 = vsel %vm198, %v4285, %v4287
    %v4291 = vsel %vm409, %v4281, 0
    %4293 = vmatprep.subr.mxu0 0.0
    %4294 = vmatpush1.msra.mxu0 0.0
    %4295 = vmatprep.subr.mxu0 0.0
    %4296 = vmatpush1.msra.mxu0 0.0
    %4297 = vmatprep.subr.mxu0 0.0
    %4298 = vmatpush1.msra.mxu0 0.0
    %4299 = vmatprep.subr.mxu0 0.0
    %4300 = vmatpush1.msra.mxu0 0.0
    %4301 = vmatprep.subr.mxu0 0.0
    %4302 = vmatpush1.msra.mxu0 0.0
    %4303 = vmatprep.subr.mxu0 0.0
    %4304 = vmatpush1.msra.mxu0 0.0
    %4305 = vmatprep.subr.mxu0 0.0
    %4306 = vmatpush1.msra.mxu0 0.0
    %4307 = vmatprep.subr.mxu0 0.0
    %4308 = vmatpush1.msra.mxu0 0.0
    %4309 = vmatprep.subr.mxu0 %v3726
    %4310 = vmatpush1.msra.mxu0 %v3725
    %4311 = vmatprep.subr.mxu0 %v3724
    %4312 = vmatpush1.msra.mxu0 %v3723
    %4313 = vmatprep.subr.mxu0 %v3722
    %4314 = vmatpush1.msra.mxu0 %v3721
    %4315 = vmatprep.subr.mxu0 %v3720
    %4316 = vmatpush1.msra.mxu0 %v3719
    %4317 = vmatprep.subr.mxu0 %v3718
    %4318 = vmatpush1.msra.mxu0 %v3717
    %4319 = vmatprep.subr.mxu0 %v3716
    %4320 = vmatpush1.msra.mxu0 %v3715
    %4321 = vmatprep.subr.mxu0 %v3714
    %4322 = vmatpush1.msra.mxu0 %v3713
    %4323 = vmatprep.subr.mxu0 %v3712
    %4324 = vmatpush1.msra.mxu0 %v3711
    %4325 = vmatprep.subr.mxu0 0.0
    %4326 = vmatpush2.msra.mxu0 0.0
    %4327 = vmatprep.subr.mxu0 0.0
    %4328 = vmatpush2.msra.mxu0 0.0
    %4329 = vmatprep.subr.mxu0 0.0
    %4330 = vmatpush2.msra.mxu0 0.0
    %4331 = vmatprep.subr.mxu0 0.0
    %4332 = vmatpush2.msra.mxu0 0.0
    %4333 = vmatprep.subr.mxu0 0.0
    %4334 = vmatpush2.msra.mxu0 0.0
    %4335 = vmatprep.subr.mxu0 0.0
    %4336 = vmatpush2.msra.mxu0 0.0
    %4337 = vmatprep.subr.mxu0 0.0
    %4338 = vmatpush2.msra.mxu0 0.0
    %4339 = vmatprep.subr.mxu0 0.0
    %4340 = vmatpush2.msra.mxu0 0.0
    %4341 = vmatprep.subr.mxu0 0.0
    %4342 = vmatpush2.msra.mxu0 0.0
    %4343 = vmatprep.subr.mxu0 0.0
    %4344 = vmatpush2.msra.mxu0 0.0
    %4345 = vmatprep.subr.mxu0 0.0
    %4346 = vmatpush2.msra.mxu0 0.0
    %4347 = vmatprep.subr.mxu0 0.0
    %4348 = vmatpush2.msra.mxu0 0.0
    %4349 = vmatprep.subr.mxu0 0.0
    %4350 = vmatpush2.msra.mxu0 0.0
    %4351 = vmatprep.subr.mxu0 0.0
    %4352 = vmatpush2.msra.mxu0 0.0
    %4353 = vmatprep.subr.mxu0 0.0
    %4354 = vmatpush2.msra.mxu0 0.0
    %4355 = vmatprep.subr.mxu0 0.0
    %4356 = vmatpush2.msra.mxu0 0.0
    %4357 = vmatprep.mubr.f32.mxu0 0.0
    %4358 = vmatmul.mubr.f32.gmra.mxu0 %v4291
    %v4359 = vpop.f32.mrf.mxu0
    %v4360 = vadd.f32 %v4288, %v4359
    %v4361 = vpop.f32.mrf.mxu0
    %v4362 = vadd.f32 %v4289, %v4361
    %4363 = vdwg.mxu0
    %v4364 = vxor.u32 %v4360, 2147483648
    %v4365 = vxor.u32 %v4362, 2147483648
    %v4366 = vmul.f32 %v4364, 1.442695
    %v4367 = vpow.pop %v4366
    %v4368 = vmul.f32 %v4365, 1.442695
    %v4369 = vpow.pop %v4368
    %v4370 = vadd.f32 %v4367, 1.0
    %v4371 = vadd.f32 %v4369, 1.0
    %v4372 = vrcp.pop %v4370
    %v4373 = vmul.f32 1.0, %v4372
    %v4374 = vrcp.pop %v4371
    %v4375 = vmul.f32 1.0, %v4374
    %v4376 = vtanh.pop %v4362
    %v4377 = vmul.f32 %v4373, %v4275
    %4379 = vrot.lane.b32.xlu0 %v4376, 64
    %v4380 = vpop.permute.xlu0 %4379
    %v4382 = vmul.f32 %v4373, %v4380
    %4384 = vrot.lane.b32.xlu0 %v4382, 64
    %v4385 = vpop.permute.xlu0 %4384
    %v4387 = vadd.f32 %v4377, %v4385
    %v4388 = vtanh.pop %v4387
    %4390 = vrot.lane.b32.xlu0 %v4388, 64
    %v4391 = vpop.permute.xlu0 %4390
    %v4393 = vmul.f32 %v4375, %v4391
    %4394 = vst.msk [vmem:[%s756] sm:$0xff] %vm227, %v4393
    %4395 = vst.msk [vmem:[%s754] sm:$0xff] %vm516, %v4393
    %v4396 = vld [vmem:[%s525] sm:$0xff]
    %v4397 = vld [vmem:[%s525 + $0x8] sm:$0xff]
    %v4398 = vld [vmem:[%s520] sm:$0xff]
    %v4399 = vld [vmem:[%s520 + $0x8] sm:$0xff]
    %v4400 = vsel %vm197, %v4396, %v4398
    %v4401 = vsel %vm198, %v4397, %v4399
    %v4403 = vsel %vm409, %v4393, 0
    %4405 = vmatprep.subr.mxu0 0.0
    %4406 = vmatpush1.msra.mxu0 0.0
    %4407 = vmatprep.subr.mxu0 0.0
    %4408 = vmatpush1.msra.mxu0 0.0
    %4409 = vmatprep.subr.mxu0 0.0
    %4410 = vmatpush1.msra.mxu0 0.0
    %4411 = vmatprep.subr.mxu0 0.0
    %4412 = vmatpush1.msra.mxu0 0.0
    %4413 = vmatprep.subr.mxu0 0.0
    %4414 = vmatpush1.msra.mxu0 0.0
    %4415 = vmatprep.subr.mxu0 0.0
    %4416 = vmatpush1.msra.mxu0 0.0
    %4417 = vmatprep.subr.mxu0 0.0
    %4418 = vmatpush1.msra.mxu0 0.0
    %4419 = vmatprep.subr.mxu0 0.0
    %4420 = vmatpush1.msra.mxu0 0.0
    %4421 = vmatprep.subr.mxu0 %v3726
    %4422 = vmatpush1.msra.mxu0 %v3725
    %4423 = vmatprep.subr.mxu0 %v3724
    %4424 = vmatpush1.msra.mxu0 %v3723
    %4425 = vmatprep.subr.mxu0 %v3722
    %4426 = vmatpush1.msra.mxu0 %v3721
    %4427 = vmatprep.subr.mxu0 %v3720
    %4428 = vmatpush1.msra.mxu0 %v3719
    %4429 = vmatprep.subr.mxu0 %v3718
    %4430 = vmatpush1.msra.mxu0 %v3717
    %4431 = vmatprep.subr.mxu0 %v3716
    %4432 = vmatpush1.msra.mxu0 %v3715
    %4433 = vmatprep.subr.mxu0 %v3714
    %4434 = vmatpush1.msra.mxu0 %v3713
    %4435 = vmatprep.subr.mxu0 %v3712
    %4436 = vmatpush1.msra.mxu0 %v3711
    %4437 = vmatprep.subr.mxu0 0.0
    %4438 = vmatpush2.msra.mxu0 0.0
    %4439 = vmatprep.subr.mxu0 0.0
    %4440 = vmatpush2.msra.mxu0 0.0
    %4441 = vmatprep.subr.mxu0 0.0
    %4442 = vmatpush2.msra.mxu0 0.0
    %4443 = vmatprep.subr.mxu0 0.0
    %4444 = vmatpush2.msra.mxu0 0.0
    %4445 = vmatprep.subr.mxu0 0.0
    %4446 = vmatpush2.msra.mxu0 0.0
    %4447 = vmatprep.subr.mxu0 0.0
    %4448 = vmatpush2.msra.mxu0 0.0
    %4449 = vmatprep.subr.mxu0 0.0
    %4450 = vmatpush2.msra.mxu0 0.0
    %4451 = vmatprep.subr.mxu0 0.0
    %4452 = vmatpush2.msra.mxu0 0.0
    %4453 = vmatprep.subr.mxu0 0.0
    %4454 = vmatpush2.msra.mxu0 0.0
    %4455 = vmatprep.subr.mxu0 0.0
    %4456 = vmatpush2.msra.mxu0 0.0
    %4457 = vmatprep.subr.mxu0 0.0
    %4458 = vmatpush2.msra.mxu0 0.0
    %4459 = vmatprep.subr.mxu0 0.0
    %4460 = vmatpush2.msra.mxu0 0.0
    %4461 = vmatprep.subr.mxu0 0.0
    %4462 = vmatpush2.msra.mxu0 0.0
    %4463 = vmatprep.subr.mxu0 0.0
    %4464 = vmatpush2.msra.mxu0 0.0
    %4465 = vmatprep.subr.mxu0 0.0
    %4466 = vmatpush2.msra.mxu0 0.0
    %4467 = vmatprep.subr.mxu0 0.0
    %4468 = vmatpush2.msra.mxu0 0.0
    %4469 = vmatprep.mubr.f32.mxu0 0.0
    %4470 = vmatmul.mubr.f32.gmra.mxu0 %v4403
    %v4471 = vpop.f32.mrf.mxu0
    %v4472 = vadd.f32 %v4400, %v4471
    %v4473 = vpop.f32.mrf.mxu0
    %v4474 = vadd.f32 %v4401, %v4473
    %4475 = vdwg.mxu0
    %v4476 = vxor.u32 %v4472, 2147483648
    %v4477 = vxor.u32 %v4474, 2147483648
    %v4478 = vmul.f32 %v4476, 1.442695
    %v4479 = vpow.pop %v4478
    %v4480 = vmul.f32 %v4477, 1.442695
    %v4481 = vpow.pop %v4480
    %v4482 = vadd.f32 %v4479, 1.0
    %v4483 = vadd.f32 %v4481, 1.0
    %v4484 = vrcp.pop %v4482
    %v4485 = vmul.f32 1.0, %v4484
    %v4486 = vrcp.pop %v4483
    %v4487 = vmul.f32 1.0, %v4486
    %v4488 = vtanh.pop %v4474
    %v4489 = vmul.f32 %v4485, %v4387
    %4491 = vrot.lane.b32.xlu0 %v4488, 64
    %v4492 = vpop.permute.xlu0 %4491
    %v4494 = vmul.f32 %v4485, %v4492
    %4496 = vrot.lane.b32.xlu0 %v4494, 64
    %v4497 = vpop.permute.xlu0 %4496
    %v4499 = vadd.f32 %v4489, %v4497
    %v4500 = vtanh.pop %v4499
    %4502 = vrot.lane.b32.xlu0 %v4500, 64
    %v4503 = vpop.permute.xlu0 %4502
    %v4505 = vmul.f32 %v4487, %v4503
    %4506 = vst.msk [vmem:[%s636] sm:$0xff] %vm227, %v4505
    %4507 = vst.msk [vmem:[%s634] sm:$0xff] %vm516, %v4505
    %v4508 = vld [vmem:[%s404] sm:$0xff]
    %v4509 = vld [vmem:[%s404 + $0x8] sm:$0xff]
    %v4510 = vld [vmem:[%s399] sm:$0xff]
    %v4511 = vld [vmem:[%s399 + $0x8] sm:$0xff]
    %v4512 = vsel %vm197, %v4508, %v4510
    %v4513 = vsel %vm198, %v4509, %v4511
    %v4515 = vsel %vm409, %v4505, 0
    %4517 = vmatprep.subr.mxu0 0.0
    %4518 = vmatpush1.msra.mxu0 0.0
    %4519 = vmatprep.subr.mxu0 0.0
    %4520 = vmatpush1.msra.mxu0 0.0
    %4521 = vmatprep.subr.mxu0 0.0
    %4522 = vmatpush1.msra.mxu0 0.0
    %4523 = vmatprep.subr.mxu0 0.0
    %4524 = vmatpush1.msra.mxu0 0.0
    %4525 = vmatprep.subr.mxu0 0.0
    %4526 = vmatpush1.msra.mxu0 0.0
    %4527 = vmatprep.subr.mxu0 0.0
    %4528 = vmatpush1.msra.mxu0 0.0
    %4529 = vmatprep.subr.mxu0 0.0
    %4530 = vmatpush1.msra.mxu0 0.0
    %4531 = vmatprep.subr.mxu0 0.0
    %4532 = vmatpush1.msra.mxu0 0.0
    %4533 = vmatprep.subr.mxu0 %v3726
    %4534 = vmatpush1.msra.mxu0 %v3725
    %4535 = vmatprep.subr.mxu0 %v3724
    %4536 = vmatpush1.msra.mxu0 %v3723
    %4537 = vmatprep.subr.mxu0 %v3722
    %4538 = vmatpush1.msra.mxu0 %v3721
    %4539 = vmatprep.subr.mxu0 %v3720
    %4540 = vmatpush1.msra.mxu0 %v3719
    %4541 = vmatprep.subr.mxu0 %v3718
    %4542 = vmatpush1.msra.mxu0 %v3717
    %4543 = vmatprep.subr.mxu0 %v3716
    %4544 = vmatpush1.msra.mxu0 %v3715
    %4545 = vmatprep.subr.mxu0 %v3714
    %4546 = vmatpush1.msra.mxu0 %v3713
    %4547 = vmatprep.subr.mxu0 %v3712
    %4548 = vmatpush1.msra.mxu0 %v3711
    %4549 = vmatprep.subr.mxu0 0.0
    %4550 = vmatpush2.msra.mxu0 0.0
    %4551 = vmatprep.subr.mxu0 0.0
    %4552 = vmatpush2.msra.mxu0 0.0
    %4553 = vmatprep.subr.mxu0 0.0
    %4554 = vmatpush2.msra.mxu0 0.0
    %4555 = vmatprep.subr.mxu0 0.0
    %4556 = vmatpush2.msra.mxu0 0.0
    %4557 = vmatprep.subr.mxu0 0.0
    %4558 = vmatpush2.msra.mxu0 0.0
    %4559 = vmatprep.subr.mxu0 0.0
    %4560 = vmatpush2.msra.mxu0 0.0
    %4561 = vmatprep.subr.mxu0 0.0
    %4562 = vmatpush2.msra.mxu0 0.0
    %4563 = vmatprep.subr.mxu0 0.0
    %4564 = vmatpush2.msra.mxu0 0.0
    %4565 = vmatprep.subr.mxu0 0.0
    %4566 = vmatpush2.msra.mxu0 0.0
    %4567 = vmatprep.subr.mxu0 0.0
    %4568 = vmatpush2.msra.mxu0 0.0
    %4569 = vmatprep.subr.mxu0 0.0
    %4570 = vmatpush2.msra.mxu0 0.0
    %4571 = vmatprep.subr.mxu0 0.0
    %4572 = vmatpush2.msra.mxu0 0.0
    %4573 = vmatprep.subr.mxu0 0.0
    %4574 = vmatpush2.msra.mxu0 0.0
    %4575 = vmatprep.subr.mxu0 0.0
    %4576 = vmatpush2.msra.mxu0 0.0
    %4577 = vmatprep.subr.mxu0 0.0
    %4578 = vmatpush2.msra.mxu0 0.0
    %4579 = vmatprep.subr.mxu0 0.0
    %4580 = vmatpush2.msra.mxu0 0.0
    %4581 = vmatprep.mubr.f32.mxu0 0.0
    %4582 = vmatmul.mubr.f32.gmra.mxu0 %v4515
    %v4583 = vpop.f32.mrf.mxu0
    %v4584 = vadd.f32 %v4512, %v4583
    %v4585 = vpop.f32.mrf.mxu0
    %v4586 = vadd.f32 %v4513, %v4585
    %4587 = vdwg.mxu0
    %v4588 = vxor.u32 %v4584, 2147483648
    %v4589 = vxor.u32 %v4586, 2147483648
    %v4590 = vmul.f32 %v4588, 1.442695
    %v4591 = vpow.pop %v4590
    %v4592 = vmul.f32 %v4589, 1.442695
    %v4593 = vpow.pop %v4592
    %v4594 = vadd.f32 %v4591, 1.0
    %v4595 = vadd.f32 %v4593, 1.0
    %v4596 = vrcp.pop %v4594
    %v4597 = vmul.f32 1.0, %v4596
    %v4598 = vrcp.pop %v4595
    %v4599 = vmul.f32 1.0, %v4598
    %v4600 = vtanh.pop %v4586
    %v4601 = vmul.f32 %v4597, %v4499
    %4603 = vrot.lane.b32.xlu0 %v4600, 64
    %v4604 = vpop.permute.xlu0 %4603
    %v4606 = vmul.f32 %v4597, %v4604
    %4608 = vrot.lane.b32.xlu0 %v4606, 64
    %v4609 = vpop.permute.xlu0 %4608
    %v4611 = vadd.f32 %v4601, %v4609
    %v4612 = vtanh.pop %v4611
    %4614 = vrot.lane.b32.xlu0 %v4612, 64
    %v4615 = vpop.permute.xlu0 %4614
    %v4617 = vmul.f32 %v4599, %v4615
    %4618 = vst.msk [vmem:[%s515] sm:$0xff] %vm227, %v4617
    %4619 = vst.msk [vmem:[#allocation3] sm:$0xff] %vm516, %v4617
    %v4620 = vld [vmem:[#allocation3] sm:$0xff]
    %v4621 = vld [vmem:[#allocation3 + $0x8] sm:$0xff]
    %v4622 = vld [vmem:[#allocation3 + $0x10] sm:$0xff]
    %v4623 = vld [vmem:[#allocation3 + $0x18] sm:$0xff]
    %v4624 = vld [vmem:[#allocation3 + $0x20] sm:$0xff]
    %v4625 = vld [vmem:[#allocation3 + $0x28] sm:$0xff]
    %v4626 = vld [vmem:[#allocation3 + $0x30] sm:$0xff]
    %v4627 = vld [vmem:[#allocation3 + $0x38] sm:$0xff]
    %v4628 = vld [vmem:[%s13] sm:$0xff]
    %v4629 = vld [vmem:[%s13 + $0x8] sm:$0xff]
    %v4630 = vld [vmem:[%s13 + $0x10] sm:$0xff]
    %v4631 = vld [vmem:[%s13 + $0x18] sm:$0xff]
    %v4632 = vld [vmem:[%s13 + $0x20] sm:$0xff]
    %v4633 = vld [vmem:[%s13 + $0x28] sm:$0xff]
    %v4634 = vld [vmem:[%s13 + $0x30] sm:$0xff]
    %v4635 = vld [vmem:[%s13 + $0x38] sm:$0xff]
    %v4636 = vld [vmem:[#allocation15] sm:$0x1]
    %v4638 = vlaneseq
    %v4639 = vshrl.u32 %v4638, 7
    %v4640 = vsub.s32 0, %v4639
    %v4641 = vrot.slane %v4636, %v4640
    %v4644 = vsel %vm409, %v4620, 0
    %v4647 = vsel %vm409, %v4621, 0
    %v4650 = vsel %vm409, %v4622, 0
    %v4653 = vsel %vm409, %v4623, 0
    %v4656 = vsel %vm409, %v4624, 0
    %v4659 = vsel %vm409, %v4625, 0
    %v4662 = vsel %vm409, %v4626, 0
    %v4665 = vsel %vm409, %v4627, 0
    %4667 = vmatprep.subr.mxu0 0.0
    %4668 = vmatpush1.msra.mxu0 0.0
    %4669 = vmatprep.subr.mxu0 0.0
    %4670 = vmatpush1.msra.mxu0 0.0
    %4671 = vmatprep.subr.mxu0 0.0
    %4672 = vmatpush1.msra.mxu0 0.0
    %4673 = vmatprep.subr.mxu0 0.0
    %4674 = vmatpush1.msra.mxu0 0.0
    %4675 = vmatprep.subr.mxu0 0.0
    %4676 = vmatpush1.msra.mxu0 0.0
    %4677 = vmatprep.subr.mxu0 0.0
    %4678 = vmatpush1.msra.mxu0 0.0
    %4679 = vmatprep.subr.mxu0 0.0
    %4680 = vmatpush1.msra.mxu0 0.0
    %4681 = vmatprep.subr.mxu0 0.0
    %4682 = vmatpush1.msra.mxu0 0.0
    %4683 = vmatprep.subr.mxu0 0.0
    %4684 = vmatpush1.msra.mxu0 %v4635
    %4685 = vmatprep.subr.mxu0 0.0
    %4686 = vmatpush1.msra.mxu0 %v4634
    %4687 = vmatprep.subr.mxu0 0.0
    %4688 = vmatpush1.msra.mxu0 %v4633
    %4689 = vmatprep.subr.mxu0 0.0
    %4690 = vmatpush1.msra.mxu0 %v4632
    %4691 = vmatprep.subr.mxu0 0.0
    %4692 = vmatpush1.msra.mxu0 %v4631
    %4693 = vmatprep.subr.mxu0 0.0
    %4694 = vmatpush1.msra.mxu0 %v4630
    %4695 = vmatprep.subr.mxu0 0.0
    %4696 = vmatpush1.msra.mxu0 %v4629
    %4697 = vmatprep.subr.mxu0 0.0
    %4698 = vmatpush1.msra.mxu0 %v4628
    %4699 = vmatprep.subr.mxu0 0.0
    %4700 = vmatpush2.msra.mxu0 0.0
    %4701 = vmatprep.subr.mxu0 0.0
    %4702 = vmatpush2.msra.mxu0 0.0
    %4703 = vmatprep.subr.mxu0 0.0
    %4704 = vmatpush2.msra.mxu0 0.0
    %4705 = vmatprep.subr.mxu0 0.0
    %4706 = vmatpush2.msra.mxu0 0.0
    %4707 = vmatprep.subr.mxu0 0.0
    %4708 = vmatpush2.msra.mxu0 0.0
    %4709 = vmatprep.subr.mxu0 0.0
    %4710 = vmatpush2.msra.mxu0 0.0
    %4711 = vmatprep.subr.mxu0 0.0
    %4712 = vmatpush2.msra.mxu0 0.0
    %4713 = vmatprep.subr.mxu0 0.0
    %4714 = vmatpush2.msra.mxu0 0.0
    %4715 = vmatprep.subr.mxu0 0.0
    %4716 = vmatpush2.msra.mxu0 0.0
    %4717 = vmatprep.subr.mxu0 0.0
    %4718 = vmatpush2.msra.mxu0 0.0
    %4719 = vmatprep.subr.mxu0 0.0
    %4720 = vmatpush2.msra.mxu0 0.0
    %4721 = vmatprep.subr.mxu0 0.0
    %4722 = vmatpush2.msra.mxu0 0.0
    %4723 = vmatprep.subr.mxu0 0.0
    %4724 = vmatpush2.msra.mxu0 0.0
    %4725 = vmatprep.subr.mxu0 0.0
    %4726 = vmatpush2.msra.mxu0 0.0
    %4727 = vmatprep.subr.mxu0 0.0
    %4728 = vmatpush2.msra.mxu0 0.0
    %4729 = vmatprep.subr.mxu0 0.0
    %4730 = vmatpush2.msra.mxu0 0.0
    %4731 = vmatprep.mubr.f32.mxu0 0.0
    %4732 = vmatmul.mubr.f32.gmra.mxu0 %v4644
    %v4733 = vpop.f32.mrf.mxu0
    %v4734 = vadd.f32 %v4641, %v4733
    %v4735 = vpop.f32.mrf.mxu0
    %4736 = vmatprep.mubr.f32.mxu0 0.0
    %4737 = vmatmul.mubr.f32.gmra.mxu0 %v4647
    %v4738 = vpop.f32.mrf.mxu0
    %v4739 = vadd.f32 %v4641, %v4738
    %v4740 = vpop.f32.mrf.mxu0
    %4741 = vmatprep.mubr.f32.mxu0 0.0
    %4742 = vmatmul.mubr.f32.gmra.mxu0 %v4650
    %v4743 = vpop.f32.mrf.mxu0
    %v4744 = vadd.f32 %v4641, %v4743
    %v4745 = vpop.f32.mrf.mxu0
    %4746 = vmatprep.mubr.f32.mxu0 0.0
    %4747 = vmatmul.mubr.f32.gmra.mxu0 %v4653
    %v4748 = vpop.f32.mrf.mxu0
    %v4749 = vadd.f32 %v4641, %v4748
    %v4750 = vpop.f32.mrf.mxu0
    %4751 = vmatprep.mubr.f32.mxu0 0.0
    %4752 = vmatmul.mubr.f32.gmra.mxu0 %v4656
    %v4753 = vpop.f32.mrf.mxu0
    %v4754 = vadd.f32 %v4641, %v4753
    %v4755 = vpop.f32.mrf.mxu0
    %4756 = vmatprep.mubr.f32.mxu0 0.0
    %4757 = vmatmul.mubr.f32.gmra.mxu0 %v4659
    %v4758 = vpop.f32.mrf.mxu0
    %v4759 = vadd.f32 %v4641, %v4758
    %v4760 = vpop.f32.mrf.mxu0
    %4761 = vmatprep.mubr.f32.mxu0 0.0
    %4762 = vmatmul.mubr.f32.gmra.mxu0 %v4662
    %v4763 = vpop.f32.mrf.mxu0
    %v4764 = vadd.f32 %v4641, %v4763
    %v4765 = vpop.f32.mrf.mxu0
    %4766 = vmatprep.mubr.f32.mxu0 0.0
    %4767 = vmatmul.mubr.f32.gmra.mxu0 %v4665
    %v4768 = vpop.f32.mrf.mxu0
    %v4769 = vadd.f32 %v4641, %v4768
    %v4770 = vpop.f32.mrf.mxu0
    %4771 = vdwg.mxu0
    %v4772 = vtanh.pop %v4734
    %v4773 = vtanh.pop %v4739
    %v4774 = vtanh.pop %v4744
    %v4775 = vtanh.pop %v4749
    %v4776 = vtanh.pop %v4754
    %v4777 = vtanh.pop %v4759
    %v4778 = vtanh.pop %v4764
    %v4779 = vtanh.pop %v4769
    %v4780 = vld [vmem:[%s15] sm:$0xff]
    %v4781 = vld [vmem:[%s15 + $0x8] sm:$0xff]
    %v4782 = vld [vmem:[%s15 + $0x10] sm:$0xff]
    %v4783 = vld [vmem:[%s15 + $0x18] sm:$0xff]
    %v4784 = vld [vmem:[#allocation17] sm:$0x1]
    %v4786 = vlaneseq
    %v4787 = vshrl.u32 %v4786, 7
    %v4788 = vsub.s32 0, %v4787
    %v4789 = vrot.slane %v4784, %v4788
    %v4792 = vsel %vm227, %v4772, 0
    %v4795 = vsel %vm227, %v4773, 0
    %v4798 = vsel %vm227, %v4774, 0
    %v4801 = vsel %vm227, %v4775, 0
    %v4804 = vsel %vm227, %v4776, 0
    %v4807 = vsel %vm227, %v4777, 0
    %v4810 = vsel %vm227, %v4778, 0
    %v4813 = vsel %vm227, %v4779, 0
    %4815 = vmatprep.subr.mxu0 0.0
    %4816 = vmatpush1.msra.mxu0 0.0
    %4817 = vmatprep.subr.mxu0 0.0
    %4818 = vmatpush1.msra.mxu0 0.0
    %4819 = vmatprep.subr.mxu0 0.0
    %4820 = vmatpush1.msra.mxu0 0.0
    %4821 = vmatprep.subr.mxu0 0.0
    %4822 = vmatpush1.msra.mxu0 0.0
    %4823 = vmatprep.subr.mxu0 0.0
    %4824 = vmatpush1.msra.mxu0 0.0
    %4825 = vmatprep.subr.mxu0 0.0
    %4826 = vmatpush1.msra.mxu0 0.0
    %4827 = vmatprep.subr.mxu0 0.0
    %4828 = vmatpush1.msra.mxu0 0.0
    %4829 = vmatprep.subr.mxu0 0.0
    %4830 = vmatpush1.msra.mxu0 0.0
    %4831 = vmatprep.subr.mxu0 0.0
    %4832 = vmatpush1.msra.mxu0 0.0
    %4833 = vmatprep.subr.mxu0 0.0
    %4834 = vmatpush1.msra.mxu0 0.0
    %4835 = vmatprep.subr.mxu0 0.0
    %4836 = vmatpush1.msra.mxu0 0.0
    %4837 = vmatprep.subr.mxu0 0.0
    %4838 = vmatpush1.msra.mxu0 0.0
    %4839 = vmatprep.subr.mxu0 0.0
    %4840 = vmatpush1.msra.mxu0 %v4783
    %4841 = vmatprep.subr.mxu0 0.0
    %4842 = vmatpush1.msra.mxu0 %v4782
    %4843 = vmatprep.subr.mxu0 0.0
    %4844 = vmatpush1.msra.mxu0 %v4781
    %4845 = vmatprep.subr.mxu0 0.0
    %4846 = vmatpush1.msra.mxu0 %v4780
    %4847 = vmatprep.subr.mxu0 0.0
    %4848 = vmatpush2.msra.mxu0 0.0
    %4849 = vmatprep.subr.mxu0 0.0
    %4850 = vmatpush2.msra.mxu0 0.0
    %4851 = vmatprep.subr.mxu0 0.0
    %4852 = vmatpush2.msra.mxu0 0.0
    %4853 = vmatprep.subr.mxu0 0.0
    %4854 = vmatpush2.msra.mxu0 0.0
    %4855 = vmatprep.subr.mxu0 0.0
    %4856 = vmatpush2.msra.mxu0 0.0
    %4857 = vmatprep.subr.mxu0 0.0
    %4858 = vmatpush2.msra.mxu0 0.0
    %4859 = vmatprep.subr.mxu0 0.0
    %4860 = vmatpush2.msra.mxu0 0.0
    %4861 = vmatprep.subr.mxu0 0.0
    %4862 = vmatpush2.msra.mxu0 0.0
    %4863 = vmatprep.subr.mxu0 0.0
    %4864 = vmatpush2.msra.mxu0 0.0
    %4865 = vmatprep.subr.mxu0 0.0
    %4866 = vmatpush2.msra.mxu0 0.0
    %4867 = vmatprep.subr.mxu0 0.0
    %4868 = vmatpush2.msra.mxu0 0.0
    %4869 = vmatprep.subr.mxu0 0.0
    %4870 = vmatpush2.msra.mxu0 0.0
    %4871 = vmatprep.subr.mxu0 0.0
    %4872 = vmatpush2.msra.mxu0 0.0
    %4873 = vmatprep.subr.mxu0 0.0
    %4874 = vmatpush2.msra.mxu0 0.0
    %4875 = vmatprep.subr.mxu0 0.0
    %4876 = vmatpush2.msra.mxu0 0.0
    %4877 = vmatprep.subr.mxu0 0.0
    %4878 = vmatpush2.msra.mxu0 0.0
    %4879 = vmatprep.mubr.f32.mxu0 0.0
    %4880 = vmatmul.mubr.f32.gmra.mxu0 %v4792
    %v4881 = vpop.f32.mrf.mxu0
    %v4882 = vadd.f32 %v4789, %v4881
    %v4883 = vpop.f32.mrf.mxu0
    %4884 = vmatprep.mubr.f32.mxu0 0.0
    %4885 = vmatmul.mubr.f32.gmra.mxu0 %v4795
    %v4886 = vpop.f32.mrf.mxu0
    %v4887 = vadd.f32 %v4789, %v4886
    %v4888 = vpop.f32.mrf.mxu0
    %4889 = vmatprep.mubr.f32.mxu0 0.0
    %4890 = vmatmul.mubr.f32.gmra.mxu0 %v4798
    %v4891 = vpop.f32.mrf.mxu0
    %v4892 = vadd.f32 %v4789, %v4891
    %v4893 = vpop.f32.mrf.mxu0
    %4894 = vmatprep.mubr.f32.mxu0 0.0
    %4895 = vmatmul.mubr.f32.gmra.mxu0 %v4801
    %v4896 = vpop.f32.mrf.mxu0
    %v4897 = vadd.f32 %v4789, %v4896
    %v4898 = vpop.f32.mrf.mxu0
    %4899 = vmatprep.mubr.f32.mxu0 0.0
    %4900 = vmatmul.mubr.f32.gmra.mxu0 %v4804
    %v4901 = vpop.f32.mrf.mxu0
    %v4902 = vadd.f32 %v4789, %v4901
    %v4903 = vpop.f32.mrf.mxu0
    %4904 = vmatprep.mubr.f32.mxu0 0.0
    %4905 = vmatmul.mubr.f32.gmra.mxu0 %v4807
    %v4906 = vpop.f32.mrf.mxu0
    %v4907 = vadd.f32 %v4789, %v4906
    %v4908 = vpop.f32.mrf.mxu0
    %4909 = vmatprep.mubr.f32.mxu0 0.0
    %4910 = vmatmul.mubr.f32.gmra.mxu0 %v4810
    %v4911 = vpop.f32.mrf.mxu0
    %v4912 = vadd.f32 %v4789, %v4911
    %v4913 = vpop.f32.mrf.mxu0
    %4914 = vmatprep.mubr.f32.mxu0 0.0
    %4915 = vmatmul.mubr.f32.gmra.mxu0 %v4813
    %v4916 = vpop.f32.mrf.mxu0
    %v4917 = vadd.f32 %v4789, %v4916
    %v4918 = vpop.f32.mrf.mxu0
    %4919 = vdwg.mxu0
    %vm4920 = vcmask 15360
    %4921 = vst.msk [vmem:[%s17] sm:$0xff] %vm4920, %v4882
    %4922 = vst.msk [vmem:[%s17 + $0x8] sm:$0xff] %vm4920, %v4887
    %4923 = vst.msk [vmem:[%s17 + $0x10] sm:$0xff] %vm4920, %v4892
    %4924 = vst.msk [vmem:[%s17 + $0x18] sm:$0xff] %vm4920, %v4897
    %4925 = vst.msk [vmem:[%s17 + $0x20] sm:$0xff] %vm4920, %v4902
    %4926 = vst.msk [vmem:[%s17 + $0x28] sm:$0xff] %vm4920, %v4907
    %4927 = vst.msk [vmem:[%s17 + $0x30] sm:$0xff] %vm4920, %v4912
    %4928 = vst.msk [vmem:[%s17 + $0x38] sm:$0xff] %vm4920, %v4917
    // Predicated region
    $region106: #{lstm_model_forward.1} parent=1 // pred_check
      _
    $region107: #{lstm_model_forward.1} parent=1 // pred_check_branch
      %4930 = sbr.rel (0) target = $region109
    $region108: #{lstm_model_forward.1} parent=1 // pred_region
      _
    $region109: #{lstm_model_forward.1} parent=1 // pred_fallthru
      _
    // Predicated region
    $region110: #{lstm_model_forward.1} parent=1 // pred_check
      _
    $region111: #{lstm_model_forward.1} parent=1 // pred_check_branch
      %4932 = sbr.rel (0) target = $region113
    $region112: #{lstm_model_forward.1} parent=1 // pred_region
      _
    $region113: #{lstm_model_forward.1} parent=1 // pred_fallthru
      _
    %4933 = vsyncpa [#allocation5], 1
    %4934 = vsyncpa [#allocation7], 1
    %4935 = vsyncpa [#allocation10], 1
    %4936 = vsyncpa [#allocation13], 1
    %4937 = vsyncpa [#allocation16], 1

</llo_original>
